<compile_context>
chip_gen: v7x
topology: tpu7x:2x2x1
jax: 0.10.0
libtpu: 0.0.40
codegen_flags: <defaults>
</compile_context>

<pallas_src>
import math
from functools import partial

import jax
import jax.numpy as jnp
from jax.experimental import pallas as pl
from jax.experimental.pallas import tpu as pltpu

BN_EPS = 1e-5


def _vmem_spec():
    # Whole array resident in VMEM, grid=() — total footprint here is <1 MiB.
    # TODO(synk): if batch (T*B) grows, tile it with a grid + dimension_semantics
    # ("parallel",) so v7x's two TensorCores share the work within 64 MiB VMEM.
    return pl.BlockSpec(memory_space=pltpu.MemorySpace.VMEM)


def _sigmoid(x):
    # sigmoid(x) == 0.5*(1 + tanh(x/2)); tanh runs on the EUP slot (no VALU divide).
    return 0.5 * jnp.tanh(0.5 * x) + 0.5


# ----------------------------------------------------------------------------
# Fused forward kernel
# ----------------------------------------------------------------------------
def cldnn_fused_kernel(*refs, T, B, kernel_sizes, strides, n_cnn, n_rnn,
                       num_dir, hidden):
    # ref order: x, (cnn_w, cnn_b)*n_cnn, (w_ih, w_hh, b_ih, b_hh)*n_rnn, fc_w, fc_b, out
    it = iter(refs)
    x_ref = next(it)
    cnn_refs = [(next(it), next(it)) for _ in range(n_cnn)]
    gru_refs = [tuple(next(it) for _ in range(4)) for _ in range(n_rnn)]
    fc_w_ref, fc_b_ref, o_ref = next(it), next(it), next(it)

    N = T * B
    H = hidden

    # ------------------------------------------------------------------
    # CNN stack: Conv1d(+bias, BN folded) -> ReLU -> MaxPool, one matmul per layer.
    # Activations are kept as a list of per-position (N, C) columns so no in-kernel
    # reshapes are needed; the conv is a single im2col contraction on the MXU.
    # (Dropout is the identity in eval mode.)
    # ------------------------------------------------------------------
    x = x_ref[...]                                    # (N, S1), C_in == 1
    L = x.shape[1]
    cols = None                                       # list of (N, C) for layers > 0
    for i in range(n_cnn):
        K, s = kernel_sizes[i], strides[i]
        w_ref, b_ref = cnn_refs[i]
        w = w_ref[...]                                # (K*C_in, C_out), BN-scaled
        b = b_ref[...]                                # (1, C_out),     BN-folded
        l_conv = (L - K) // s + 1
        l_pool = (l_conv - K) // s + 1
        if i == 0:                                    # C_in == 1 -> contiguous taps
            rows = [x[:, l * s:l * s + K] for l in range(l_conv)]
        else:
            rows = [jnp.concatenate([cols[l * s + j] for j in range(K)], axis=-1)
                    for l in range(l_conv)]
        xw = jnp.concatenate(rows, axis=0) if l_conv > 1 else rows[0]
        y = jnp.maximum(jnp.dot(xw, w, preferred_element_type=jnp.float32) + b, 0.0)
        conv_cols = [y[l * N:(l + 1) * N, :] for l in range(l_conv)]
        pooled = []
        for p in range(l_pool):                       # MaxPool1d(K, s)
            m = conv_cols[p * s]
            for j in range(1, K):
                m = jnp.maximum(m, conv_cols[p * s + j])
            pooled.append(m)
        cols, L = pooled, l_pool

    # Spatial dim collapsed to 1 (checked in the wrapper): GRU input is (T*B, C_last)
    # with rows ordered t*B + b, identical to torch's cnn_out.reshape(T, B, -1).
    layer_x = cols[0]

    # ------------------------------------------------------------------
    # Multi-layer (bi)directional GRU, PyTorch gate order [r, z, n].
    # ------------------------------------------------------------------
    for l in range(n_rnn):
        w_ih_ref, w_hh_ref, b_ih_ref, b_hh_ref = gru_refs[l]
        w_ih = w_ih_ref[...]                          # (nd, 3, D_in, H), gate-major
        w_hh = w_hh_ref[...]                          # (nd, 3, H, H)
        b_ih = b_ih_ref[...]                          # (nd, 3, 1, H)
        b_hh = b_hh_ref[...]                          # (nd, 3, 1, H)
        whh_g = [w_hh[:, g] for g in range(3)]        # hoisted (nd, H, H) per gate
        bhh_g = [b_hh[:, g] for g in range(3)]        # hoisted (nd, 1, H) per gate

        # Hoisted input projections: one (T*B, D_in)x(D_in, H) matmul per dir/gate.
        gi = [[jnp.dot(layer_x, w_ih[d, g], preferred_element_type=jnp.float32)
               + b_ih[d, g]
               for g in range(3)] for d in range(num_dir)]

        def gi_step(g, step):
            # (nd, B, H) input projection for this step; the backward direction reads
            # the time-reversed row block (static index -> plain sublane slice).
            parts = []
            for d in range(num_dir):
                t = step if d == 0 else T - 1 - step
                parts.append(gi[d][g][t * B:(t + 1) * B, :])
            return jnp.stack(parts, axis=0)

        h_t = jnp.zeros((num_dir, B, H), jnp.float32)
        hs = []
        for step in range(T):                         # sequential recurrence (static T)
            gh_r = jnp.einsum('dbh,dhk->dbk', h_t, whh_g[0],
                              preferred_element_type=jnp.float32) + bhh_g[0]
            gh_z = jnp.einsum('dbh,dhk->dbk', h_t, whh_g[1],
                              preferred_element_type=jnp.float32) + bhh_g[1]
            gh_n = jnp.einsum('dbh,dhk->dbk', h_t, whh_g[2],
                              preferred_element_type=jnp.float32) + bhh_g[2]
            r = _sigmoid(gi_step(0, step) + gh_r)
            z = _sigmoid(gi_step(1, step) + gh_z)
            ng = jnp.tanh(gi_step(2, step) + r * gh_n)
            h_t = (1.0 - z) * ng + z * h_t
            hs.append(h_t)

        # Re-assemble (T*B, nd*H): forward outputs in time order, backward outputs
        # reversed back to original time (static list reordering, no lax.rev).
        out_cols = []
        for t in range(T):
            if num_dir == 2:
                out_cols.append(jnp.concatenate([hs[t][0], hs[T - 1 - t][1]], axis=-1))
            else:
                out_cols.append(hs[t][0])
        layer_x = jnp.concatenate(out_cols, axis=0)   # rows ordered t*B + b

    # ------------------------------------------------------------------
    # Final Linear + Sigmoid: single whole-block store.
    # ------------------------------------------------------------------
    logits = _sigmoid(jnp.dot(layer_x, fc_w_ref[...],
                              preferred_element_type=jnp.float32) + fc_b_ref[...])
    o_ref[...] = logits


# ----------------------------------------------------------------------------
# One-time parameter preparation (outside the kernel / jit):
# fold BatchNorm into the conv weight/bias, transpose everything to (in, out)
# MXU-friendly layouts, split GRU weights gate-major.
# ----------------------------------------------------------------------------
def prepare_params(params, cfg):
    H = cfg["rnn_hid_size"]
    prep = {"cnn": [], "gru": [], "fc": None}

    for layer in params["cnn"]:
        c_out = layer["w"].shape[0]
        scale = layer["gamma"] / jnp.sqrt(layer["var"] + BN_EPS)        # (C_out,)
        shift = layer["beta"] - layer["mean"] * scale
        w_kio = jnp.transpose(layer["w"], (2, 1, 0))                    # (K, C_in, C_out)
        k_sz, c_in, _ = w_kio.shape
        w_eff = (w_kio * scale).reshape(k_sz * c_in, c_out)             # BN scale folded
        b_eff = (layer["b"] * scale + shift).reshape(1, c_out)          # BN shift folded
        prep["cnn"].append((w_eff, b_eff))

    for dirs in params["gru"]:
        w_ih = jnp.stack([jnp.transpose(d["w_ih"].reshape(3, H, -1), (0, 2, 1))
                          for d in dirs])                               # (nd, 3, D_in, H)
        w_hh = jnp.stack([jnp.transpose(d["w_hh"].reshape(3, H, H), (0, 2, 1))
                          for d in dirs])                               # (nd, 3, H, H)
        b_ih = jnp.stack([d["b_ih"].reshape(3, 1, H) for d in dirs])    # (nd, 3, 1, H)
        b_hh = jnp.stack([d["b_hh"].reshape(3, 1, H) for d in dirs])    # (nd, 3, 1, H)
        prep["gru"].append((w_ih, w_hh, b_ih, b_hh))

    prep["fc"] = (params["fc"]["w"].T, params["fc"]["b"].reshape(1, -1))
    return prep


# ----------------------------------------------------------------------------
# Forward pass wrapper — one pallas_call for the whole model.
# ----------------------------------------------------------------------------
def cldnn_forward(x, prep, cfg):
    T, B, S1 = x.shape
    n_cnn = len(prep["cnn"])
    n_rnn = len(prep["gru"])
    nd = cfg["num_directions"]
    H = cfg["rnn_hid_size"]
    C = cfg["num_classes"]

    # The CNN must collapse the spatial dim to 1 so the GRU input size equals
    # n_filters[-1] (same constraint the PyTorch module implies).
    L = S1
    for k_sz, st in zip(cfg["kernel_sizes"], cfg["strides"]):
        L = (L - k_sz) // st + 1          # conv
        L = (L - k_sz) // st + 1          # pool
    assert L == 1, f"CNN output length must be 1 for the GRU input size, got {L}"

    args = [x.reshape(T * B, S1)]
    for w, b in prep["cnn"]:
        args += [w, b]
    for w_ih, w_hh, b_ih, b_hh in prep["gru"]:
        args += [w_ih, w_hh, b_ih, b_hh]
    args += [prep["fc"][0], prep["fc"][1]]

    kern = partial(cldnn_fused_kernel, T=T, B=B,
                   kernel_sizes=tuple(cfg["kernel_sizes"]),
                   strides=tuple(cfg["strides"]),
                   n_cnn=n_cnn, n_rnn=n_rnn, num_dir=nd, hidden=H)
    out = pl.pallas_call(
        kern,
        out_shape=jax.ShapeDtypeStruct((T * B, C), jnp.float32),
        in_specs=[_vmem_spec()] * len(args),
        out_specs=_vmem_spec(),
    )(*args)
    return out.reshape(T, B, C)


# ----------------------------------------------------------------------------
# Deterministic parameter initialization (PyTorch-native shapes)
# ----------------------------------------------------------------------------
def init_params(key, cfg):
    n_filters = cfg["n_filters"]
    ks = cfg["kernel_sizes"]
    in_channels = [1] + n_filters[:-1]
    H = cfg["rnn_hid_size"]
    nd = cfg["num_directions"]

    def u(k, shape, bound):
        return jax.random.uniform(k, shape, jnp.float32, -bound, bound)

    params = {"cnn": [], "gru": [], "fc": {}}
    for i, c_out in enumerate(n_filters):
        c_in, k_sz = in_channels[i], ks[i]
        key, k1, k2, k3, k4, k5, k6 = jax.random.split(key, 7)
        bound = 1.0 / math.sqrt(c_in * k_sz)
        params["cnn"].append(dict(
            w=u(k1, (c_out, c_in, k_sz), bound),            # torch Conv1d weight
            b=u(k2, (c_out,), bound),
            gamma=jax.random.uniform(k3, (c_out,), jnp.float32, 0.5, 1.5),
            beta=u(k4, (c_out,), 0.5),
            mean=u(k5, (c_out,), 0.5),
            var=jax.random.uniform(k6, (c_out,), jnp.float32, 0.5, 1.5),
        ))

    for l in range(cfg["rnn_n_layers"]):
        in_size = n_filters[-1] if l == 0 else nd * H
        dirs = []
        for _ in range(nd):
            key, k1, k2, k3, k4 = jax.random.split(key, 5)
            bound = 1.0 / math.sqrt(H)
            dirs.append(dict(
                w_ih=u(k1, (3 * H, in_size), bound),        # torch weight_ih_l{l}
                w_hh=u(k2, (3 * H, H), bound),              # torch weight_hh_l{l}
                b_ih=u(k3, (3 * H,), bound),
                b_hh=u(k4, (3 * H,), bound),
            ))
        params["gru"].append(dirs)

    key, k1, k2 = jax.random.split(key, 3)
    fc_in = nd * H
    bound = 1.0 / math.sqrt(fc_in)
    params["fc"] = dict(w=u(k1, (cfg["num_classes"], fc_in), bound),
                        b=u(k2, (cfg["num_classes"],), bound))
    return params


if __name__ == "__main__":
    cfg = dict(
        n_filters=[8, 16],
        kernel_sizes=[3, 3],
        strides=[1, 1],
        dropout=0.1,              # eval mode -> identity
        rnn_hid_size=32,
        rnn_n_layers=2,
        bidirectional=True,
        num_classes=3,
    )
    cfg["num_directions"] = 2 if cfg["bidirectional"] else 1

    # S1=9 -> conv(3,1)=7 -> pool(3,1)=5 -> conv(3,1)=3 -> pool(3,1)=1
    T, B, S1 = 8, 2, 9

    key = jax.random.PRNGKey(0)
    key, xk = jax.random.split(key)
    x = jax.random.normal(xk, (T, B, S1), jnp.float32)
    params = init_params(key, cfg)
    prep = prepare_params(params, cfg)          # one-time fold/transpose, outside jit

    fwd = jax.jit(lambda x_, p_: cldnn_forward(x_, p_, cfg))
    out = jax.block_until_ready(fwd(x, prep))

    assert out.shape == (T, B, cfg["num_classes"]), out.shape
    assert bool(jnp.all(jnp.isfinite(out)))
    assert bool(jnp.all((out >= 0.0) & (out <= 1.0)))   # sigmoid range
    print("KERNEL_OK")
</pallas_src>

<mosaic_0001>
module attributes {stable_mosaic.version = 11 : i64} {
  func.func @cldnn_fused_kernel(%arg0: memref<16x9xf32, #tpu.memory_space<vmem>>, %arg1: memref<3x8xf32, #tpu.memory_space<vmem>>, %arg2: memref<1x8xf32, #tpu.memory_space<vmem>>, %arg3: memref<24x16xf32, #tpu.memory_space<vmem>>, %arg4: memref<1x16xf32, #tpu.memory_space<vmem>>, %arg5: memref<2x3x16x32xf32, #tpu.memory_space<vmem>>, %arg6: memref<2x3x32x32xf32, #tpu.memory_space<vmem>>, %arg7: memref<2x3x1x32xf32, #tpu.memory_space<vmem>>, %arg8: memref<2x3x1x32xf32, #tpu.memory_space<vmem>>, %arg9: memref<2x3x64x32xf32, #tpu.memory_space<vmem>>, %arg10: memref<2x3x32x32xf32, #tpu.memory_space<vmem>>, %arg11: memref<2x3x1x32xf32, #tpu.memory_space<vmem>>, %arg12: memref<2x3x1x32xf32, #tpu.memory_space<vmem>>, %arg13: memref<64x3xf32, #tpu.memory_space<vmem>>, %arg14: memref<1x3xf32, #tpu.memory_space<vmem>>, %arg15: memref<16x3xf32, #tpu.memory_space<vmem>>) attributes {dimension_semantics = [], scalar_prefetch = 0 : i64, scratch_operands = 0 : i64, tpu.core_type = #tpu.core_type<tc>} {
    %c0 = arith.constant 0 : index
    %c0_0 = arith.constant 0 : index
    %0 = vector.load %arg0[%c0, %c0_0] : memref<16x9xf32, #tpu.memory_space<vmem>>, vector<16x9xf32>
    %c0_1 = arith.constant 0 : index
    %c0_2 = arith.constant 0 : index
    %1 = vector.load %arg1[%c0_1, %c0_2] : memref<3x8xf32, #tpu.memory_space<vmem>>, vector<3x8xf32>
    %c0_3 = arith.constant 0 : index
    %c0_4 = arith.constant 0 : index
    %2 = vector.load %arg2[%c0_3, %c0_4] : memref<1x8xf32, #tpu.memory_space<vmem>>, vector<1x8xf32>
    %3 = vector.extract_strided_slice %0 {offsets = [0, 0], sizes = [16, 3], strides = [1, 1]} : vector<16x9xf32> to vector<16x3xf32>
    %4 = vector.extract_strided_slice %0 {offsets = [0, 1], sizes = [16, 3], strides = [1, 1]} : vector<16x9xf32> to vector<16x3xf32>
    %5 = vector.extract_strided_slice %0 {offsets = [0, 2], sizes = [16, 3], strides = [1, 1]} : vector<16x9xf32> to vector<16x3xf32>
    %6 = vector.extract_strided_slice %0 {offsets = [0, 3], sizes = [16, 3], strides = [1, 1]} : vector<16x9xf32> to vector<16x3xf32>
    %7 = vector.extract_strided_slice %0 {offsets = [0, 4], sizes = [16, 3], strides = [1, 1]} : vector<16x9xf32> to vector<16x3xf32>
    %8 = vector.extract_strided_slice %0 {offsets = [0, 5], sizes = [16, 3], strides = [1, 1]} : vector<16x9xf32> to vector<16x3xf32>
    %9 = vector.extract_strided_slice %0 {offsets = [0, 6], sizes = [16, 3], strides = [1, 1]} : vector<16x9xf32> to vector<16x3xf32>
    %10 = tpu.concatenate %3, %4, %5, %6, %7, %8, %9 in 0 : vector<16x3xf32>, vector<16x3xf32>, vector<16x3xf32>, vector<16x3xf32>, vector<16x3xf32>, vector<16x3xf32>, vector<16x3xf32> -> vector<112x3xf32>
    %cst = arith.constant dense<0.000000e+00> : vector<112x8xf32>
    %11 = tpu.matmul %10, %1, %cst {dimension_numbers = #tpu.dot_dimension_numbers<[1], [0], [0], [1], [0, 0, 1, 1], [], []>} : vector<112x3xf32>, vector<3x8xf32>, vector<112x8xf32> -> vector<112x8xf32>
    %12 = vector.broadcast %2 : vector<1x8xf32> to vector<112x8xf32>
    %13 = arith.addf %11, %12 : vector<112x8xf32>
    %cst_5 = arith.constant 0.000000e+00 : f32
    %14 = vector.broadcast %cst_5 : f32 to vector<112x8xf32>
    %15 = arith.maximumf %13, %14 : vector<112x8xf32>
    %16 = vector.extract_strided_slice %15 {offsets = [0, 0], sizes = [16, 8], strides = [1, 1]} : vector<112x8xf32> to vector<16x8xf32>
    %17 = vector.extract_strided_slice %15 {offsets = [16, 0], sizes = [16, 8], strides = [1, 1]} : vector<112x8xf32> to vector<16x8xf32>
    %18 = vector.extract_strided_slice %15 {offsets = [32, 0], sizes = [16, 8], strides = [1, 1]} : vector<112x8xf32> to vector<16x8xf32>
    %19 = vector.extract_strided_slice %15 {offsets = [48, 0], sizes = [16, 8], strides = [1, 1]} : vector<112x8xf32> to vector<16x8xf32>
    %20 = vector.extract_strided_slice %15 {offsets = [64, 0], sizes = [16, 8], strides = [1, 1]} : vector<112x8xf32> to vector<16x8xf32>
    %21 = vector.extract_strided_slice %15 {offsets = [80, 0], sizes = [16, 8], strides = [1, 1]} : vector<112x8xf32> to vector<16x8xf32>
    %22 = vector.extract_strided_slice %15 {offsets = [96, 0], sizes = [16, 8], strides = [1, 1]} : vector<112x8xf32> to vector<16x8xf32>
    %23 = arith.maximumf %16, %17 : vector<16x8xf32>
    %24 = arith.maximumf %23, %18 : vector<16x8xf32>
    %25 = arith.maximumf %17, %18 : vector<16x8xf32>
    %26 = arith.maximumf %25, %19 : vector<16x8xf32>
    %27 = arith.maximumf %18, %19 : vector<16x8xf32>
    %28 = arith.maximumf %27, %20 : vector<16x8xf32>
    %29 = arith.maximumf %19, %20 : vector<16x8xf32>
    %30 = arith.maximumf %29, %21 : vector<16x8xf32>
    %31 = arith.maximumf %20, %21 : vector<16x8xf32>
    %32 = arith.maximumf %31, %22 : vector<16x8xf32>
    %c0_6 = arith.constant 0 : index
    %c0_7 = arith.constant 0 : index
    %33 = vector.load %arg3[%c0_6, %c0_7] : memref<24x16xf32, #tpu.memory_space<vmem>>, vector<24x16xf32>
    %c0_8 = arith.constant 0 : index
    %c0_9 = arith.constant 0 : index
    %34 = vector.load %arg4[%c0_8, %c0_9] : memref<1x16xf32, #tpu.memory_space<vmem>>, vector<1x16xf32>
    %35 = tpu.concatenate %24, %26, %28 in 1 : vector<16x8xf32>, vector<16x8xf32>, vector<16x8xf32> -> vector<16x24xf32>
    %36 = tpu.concatenate %26, %28, %30 in 1 : vector<16x8xf32>, vector<16x8xf32>, vector<16x8xf32> -> vector<16x24xf32>
    %37 = tpu.concatenate %28, %30, %32 in 1 : vector<16x8xf32>, vector<16x8xf32>, vector<16x8xf32> -> vector<16x24xf32>
    %38 = tpu.concatenate %35, %36, %37 in 0 : vector<16x24xf32>, vector<16x24xf32>, vector<16x24xf32> -> vector<48x24xf32>
    %cst_10 = arith.constant dense<0.000000e+00> : vector<48x16xf32>
    %39 = tpu.matmul %38, %33, %cst_10 {dimension_numbers = #tpu.dot_dimension_numbers<[1], [0], [0], [1], [0, 0, 1, 1], [], []>} : vector<48x24xf32>, vector<24x16xf32>, vector<48x16xf32> -> vector<48x16xf32>
    %40 = vector.broadcast %34 : vector<1x16xf32> to vector<48x16xf32>
    %41 = arith.addf %39, %40 : vector<48x16xf32>
    %cst_11 = arith.constant 0.000000e+00 : f32
    %42 = vector.broadcast %cst_11 : f32 to vector<48x16xf32>
    %43 = arith.maximumf %41, %42 : vector<48x16xf32>
    %44 = vector.extract_strided_slice %43 {offsets = [0, 0], sizes = [16, 16], strides = [1, 1]} : vector<48x16xf32> to vector<16x16xf32>
    %45 = vector.extract_strided_slice %43 {offsets = [16, 0], sizes = [16, 16], strides = [1, 1]} : vector<48x16xf32> to vector<16x16xf32>
    %46 = vector.extract_strided_slice %43 {offsets = [32, 0], sizes = [16, 16], strides = [1, 1]} : vector<48x16xf32> to vector<16x16xf32>
    %47 = arith.maximumf %44, %45 : vector<16x16xf32>
    %48 = arith.maximumf %47, %46 : vector<16x16xf32>
    %c0_12 = arith.constant 0 : index
    %c0_13 = arith.constant 0 : index
    %c0_14 = arith.constant 0 : index
    %c0_15 = arith.constant 0 : index
    %49 = vector.load %arg5[%c0_12, %c0_13, %c0_14, %c0_15] : memref<2x3x16x32xf32, #tpu.memory_space<vmem>>, vector<2x3x16x32xf32>
    %c0_16 = arith.constant 0 : index
    %c0_17 = arith.constant 0 : index
    %c0_18 = arith.constant 0 : index
    %c0_19 = arith.constant 0 : index
    %50 = vector.load %arg6[%c0_16, %c0_17, %c0_18, %c0_19] : memref<2x3x32x32xf32, #tpu.memory_space<vmem>>, vector<2x3x32x32xf32>
    %c0_20 = arith.constant 0 : index
    %c0_21 = arith.constant 0 : index
    %c0_22 = arith.constant 0 : index
    %c0_23 = arith.constant 0 : index
    %51 = vector.load %arg7[%c0_20, %c0_21, %c0_22, %c0_23] : memref<2x3x1x32xf32, #tpu.memory_space<vmem>>, vector<2x3x1x32xf32>
    %c0_24 = arith.constant 0 : index
    %c0_25 = arith.constant 0 : index
    %c0_26 = arith.constant 0 : index
    %c0_27 = arith.constant 0 : index
    %52 = vector.load %arg8[%c0_24, %c0_25, %c0_26, %c0_27] : memref<2x3x1x32xf32, #tpu.memory_space<vmem>>, vector<2x3x1x32xf32>
    %53 = vector.extract_strided_slice %50 {offsets = [0, 0, 0, 0], sizes = [2, 1, 32, 32], strides = [1, 1, 1, 1]} : vector<2x3x32x32xf32> to vector<2x1x32x32xf32>
    %54 = vector.shape_cast %53 : vector<2x1x32x32xf32> to vector<2x32x32xf32>
    %55 = vector.extract_strided_slice %50 {offsets = [0, 1, 0, 0], sizes = [2, 1, 32, 32], strides = [1, 1, 1, 1]} : vector<2x3x32x32xf32> to vector<2x1x32x32xf32>
    %56 = vector.shape_cast %55 : vector<2x1x32x32xf32> to vector<2x32x32xf32>
    %57 = vector.extract_strided_slice %50 {offsets = [0, 2, 0, 0], sizes = [2, 1, 32, 32], strides = [1, 1, 1, 1]} : vector<2x3x32x32xf32> to vector<2x1x32x32xf32>
    %58 = vector.shape_cast %57 : vector<2x1x32x32xf32> to vector<2x32x32xf32>
    %59 = vector.extract_strided_slice %52 {offsets = [0, 0, 0, 0], sizes = [2, 1, 1, 32], strides = [1, 1, 1, 1]} : vector<2x3x1x32xf32> to vector<2x1x1x32xf32>
    %60 = vector.shape_cast %59 : vector<2x1x1x32xf32> to vector<2x1x32xf32>
    %61 = vector.extract_strided_slice %52 {offsets = [0, 1, 0, 0], sizes = [2, 1, 1, 32], strides = [1, 1, 1, 1]} : vector<2x3x1x32xf32> to vector<2x1x1x32xf32>
    %62 = vector.shape_cast %61 : vector<2x1x1x32xf32> to vector<2x1x32xf32>
    %63 = vector.extract_strided_slice %52 {offsets = [0, 2, 0, 0], sizes = [2, 1, 1, 32], strides = [1, 1, 1, 1]} : vector<2x3x1x32xf32> to vector<2x1x1x32xf32>
    %64 = vector.shape_cast %63 : vector<2x1x1x32xf32> to vector<2x1x32xf32>
    %65 = vector.extract_strided_slice %49 {offsets = [0, 0, 0, 0], sizes = [1, 1, 16, 32], strides = [1, 1, 1, 1]} : vector<2x3x16x32xf32> to vector<1x1x16x32xf32>
    %66 = vector.shape_cast %65 : vector<1x1x16x32xf32> to vector<16x32xf32>
    %cst_28 = arith.constant dense<0.000000e+00> : vector<16x32xf32>
    %67 = tpu.matmul %48, %66, %cst_28 {dimension_numbers = #tpu.dot_dimension_numbers<[1], [0], [0], [1], [0, 0, 1, 1], [], []>} : vector<16x16xf32>, vector<16x32xf32>, vector<16x32xf32> -> vector<16x32xf32>
    %68 = vector.extract_strided_slice %51 {offsets = [0, 0, 0, 0], sizes = [1, 1, 1, 32], strides = [1, 1, 1, 1]} : vector<2x3x1x32xf32> to vector<1x1x1x32xf32>
    %69 = vector.shape_cast %68 : vector<1x1x1x32xf32> to vector<1x32xf32>
    %70 = vector.broadcast %69 : vector<1x32xf32> to vector<16x32xf32>
    %71 = arith.addf %67, %70 : vector<16x32xf32>
    %72 = vector.extract_strided_slice %49 {offsets = [0, 1, 0, 0], sizes = [1, 1, 16, 32], strides = [1, 1, 1, 1]} : vector<2x3x16x32xf32> to vector<1x1x16x32xf32>
    %73 = vector.shape_cast %72 : vector<1x1x16x32xf32> to vector<16x32xf32>
    %cst_29 = arith.constant dense<0.000000e+00> : vector<16x32xf32>
    %74 = tpu.matmul %48, %73, %cst_29 {dimension_numbers = #tpu.dot_dimension_numbers<[1], [0], [0], [1], [0, 0, 1, 1], [], []>} : vector<16x16xf32>, vector<16x32xf32>, vector<16x32xf32> -> vector<16x32xf32>
    %75 = vector.extract_strided_slice %51 {offsets = [0, 1, 0, 0], sizes = [1, 1, 1, 32], strides = [1, 1, 1, 1]} : vector<2x3x1x32xf32> to vector<1x1x1x32xf32>
    %76 = vector.shape_cast %75 : vector<1x1x1x32xf32> to vector<1x32xf32>
    %77 = vector.broadcast %76 : vector<1x32xf32> to vector<16x32xf32>
    %78 = arith.addf %74, %77 : vector<16x32xf32>
    %79 = vector.extract_strided_slice %49 {offsets = [0, 2, 0, 0], sizes = [1, 1, 16, 32], strides = [1, 1, 1, 1]} : vector<2x3x16x32xf32> to vector<1x1x16x32xf32>
    %80 = vector.shape_cast %79 : vector<1x1x16x32xf32> to vector<16x32xf32>
    %cst_30 = arith.constant dense<0.000000e+00> : vector<16x32xf32>
    %81 = tpu.matmul %48, %80, %cst_30 {dimension_numbers = #tpu.dot_dimension_numbers<[1], [0], [0], [1], [0, 0, 1, 1], [], []>} : vector<16x16xf32>, vector<16x32xf32>, vector<16x32xf32> -> vector<16x32xf32>
    %82 = vector.extract_strided_slice %51 {offsets = [0, 2, 0, 0], sizes = [1, 1, 1, 32], strides = [1, 1, 1, 1]} : vector<2x3x1x32xf32> to vector<1x1x1x32xf32>
    %83 = vector.shape_cast %82 : vector<1x1x1x32xf32> to vector<1x32xf32>
    %84 = vector.broadcast %83 : vector<1x32xf32> to vector<16x32xf32>
    %85 = arith.addf %81, %84 : vector<16x32xf32>
    %86 = vector.extract_strided_slice %49 {offsets = [1, 0, 0, 0], sizes = [1, 1, 16, 32], strides = [1, 1, 1, 1]} : vector<2x3x16x32xf32> to vector<1x1x16x32xf32>
    %87 = vector.shape_cast %86 : vector<1x1x16x32xf32> to vector<16x32xf32>
    %cst_31 = arith.constant dense<0.000000e+00> : vector<16x32xf32>
    %88 = tpu.matmul %48, %87, %cst_31 {dimension_numbers = #tpu.dot_dimension_numbers<[1], [0], [0], [1], [0, 0, 1, 1], [], []>} : vector<16x16xf32>, vector<16x32xf32>, vector<16x32xf32> -> vector<16x32xf32>
    %89 = vector.extract_strided_slice %51 {offsets = [1, 0, 0, 0], sizes = [1, 1, 1, 32], strides = [1, 1, 1, 1]} : vector<2x3x1x32xf32> to vector<1x1x1x32xf32>
    %90 = vector.shape_cast %89 : vector<1x1x1x32xf32> to vector<1x32xf32>
    %91 = vector.broadcast %90 : vector<1x32xf32> to vector<16x32xf32>
    %92 = arith.addf %88, %91 : vector<16x32xf32>
    %93 = vector.extract_strided_slice %49 {offsets = [1, 1, 0, 0], sizes = [1, 1, 16, 32], strides = [1, 1, 1, 1]} : vector<2x3x16x32xf32> to vector<1x1x16x32xf32>
    %94 = vector.shape_cast %93 : vector<1x1x16x32xf32> to vector<16x32xf32>
    %cst_32 = arith.constant dense<0.000000e+00> : vector<16x32xf32>
    %95 = tpu.matmul %48, %94, %cst_32 {dimension_numbers = #tpu.dot_dimension_numbers<[1], [0], [0], [1], [0, 0, 1, 1], [], []>} : vector<16x16xf32>, vector<16x32xf32>, vector<16x32xf32> -> vector<16x32xf32>
    %96 = vector.extract_strided_slice %51 {offsets = [1, 1, 0, 0], sizes = [1, 1, 1, 32], strides = [1, 1, 1, 1]} : vector<2x3x1x32xf32> to vector<1x1x1x32xf32>
    %97 = vector.shape_cast %96 : vector<1x1x1x32xf32> to vector<1x32xf32>
    %98 = vector.broadcast %97 : vector<1x32xf32> to vector<16x32xf32>
    %99 = arith.addf %95, %98 : vector<16x32xf32>
    %100 = vector.extract_strided_slice %49 {offsets = [1, 2, 0, 0], sizes = [1, 1, 16, 32], strides = [1, 1, 1, 1]} : vector<2x3x16x32xf32> to vector<1x1x16x32xf32>
    %101 = vector.shape_cast %100 : vector<1x1x16x32xf32> to vector<16x32xf32>
    %cst_33 = arith.constant dense<0.000000e+00> : vector<16x32xf32>
    %102 = tpu.matmul %48, %101, %cst_33 {dimension_numbers = #tpu.dot_dimension_numbers<[1], [0], [0], [1], [0, 0, 1, 1], [], []>} : vector<16x16xf32>, vector<16x32xf32>, vector<16x32xf32> -> vector<16x32xf32>
    %103 = vector.extract_strided_slice %51 {offsets = [1, 2, 0, 0], sizes = [1, 1, 1, 32], strides = [1, 1, 1, 1]} : vector<2x3x1x32xf32> to vector<1x1x1x32xf32>
    %104 = vector.shape_cast %103 : vector<1x1x1x32xf32> to vector<1x32xf32>
    %105 = vector.broadcast %104 : vector<1x32xf32> to vector<16x32xf32>
    %106 = arith.addf %102, %105 : vector<16x32xf32>
    %cst_34 = arith.constant 0.000000e+00 : f32
    %107 = vector.broadcast %cst_34 : f32 to vector<2x2x32xf32>
    "tpu.trace_start"() <{level = 10 : i32, message = "dbh,dhk->dbk"}> : () -> ()
    %cst_35 = arith.constant dense<0.000000e+00> : vector<2x2x32xf32>
    %108 = tpu.matmul %107, %54, %cst_35 {dimension_numbers = #tpu.dot_dimension_numbers<[2], [1], [1], [2], [0, 0, 0, 1, 1, 2], [0], [0]>} : vector<2x2x32xf32>, vector<2x32x32xf32>, vector<2x2x32xf32> -> vector<2x2x32xf32>
    "tpu.trace_stop"() : () -> ()
    %109 = vector.broadcast %60 : vector<2x1x32xf32> to vector<2x2x32xf32>
    %110 = arith.addf %108, %109 : vector<2x2x32xf32>
    "tpu.trace_start"() <{level = 10 : i32, message = "dbh,dhk->dbk"}> : () -> ()
    %cst_36 = arith.constant dense<0.000000e+00> : vector<2x2x32xf32>
    %111 = tpu.matmul %107, %56, %cst_36 {dimension_numbers = #tpu.dot_dimension_numbers<[2], [1], [1], [2], [0, 0, 0, 1, 1, 2], [0], [0]>} : vector<2x2x32xf32>, vector<2x32x32xf32>, vector<2x2x32xf32> -> vector<2x2x32xf32>
    "tpu.trace_stop"() : () -> ()
    %112 = vector.broadcast %62 : vector<2x1x32xf32> to vector<2x2x32xf32>
    %113 = arith.addf %111, %112 : vector<2x2x32xf32>
    "tpu.trace_start"() <{level = 10 : i32, message = "dbh,dhk->dbk"}> : () -> ()
    %cst_37 = arith.constant dense<0.000000e+00> : vector<2x2x32xf32>
    %114 = tpu.matmul %107, %58, %cst_37 {dimension_numbers = #tpu.dot_dimension_numbers<[2], [1], [1], [2], [0, 0, 0, 1, 1, 2], [0], [0]>} : vector<2x2x32xf32>, vector<2x32x32xf32>, vector<2x2x32xf32> -> vector<2x2x32xf32>
    "tpu.trace_stop"() : () -> ()
    %115 = vector.broadcast %64 : vector<2x1x32xf32> to vector<2x2x32xf32>
    %116 = arith.addf %114, %115 : vector<2x2x32xf32>
    %117 = vector.extract_strided_slice %71 {offsets = [0, 0], sizes = [2, 32], strides = [1, 1]} : vector<16x32xf32> to vector<2x32xf32>
    %118 = vector.extract_strided_slice %92 {offsets = [14, 0], sizes = [2, 32], strides = [1, 1]} : vector<16x32xf32> to vector<2x32xf32>
    %119 = vector.shape_cast %117 : vector<2x32xf32> to vector<1x2x32xf32>
    %120 = vector.shape_cast %118 : vector<2x32xf32> to vector<1x2x32xf32>
    %121 = tpu.concatenate %119, %120 in 0 : vector<1x2x32xf32>, vector<1x2x32xf32> -> vector<2x2x32xf32>
    %122 = arith.addf %121, %110 : vector<2x2x32xf32>
    %cst_38 = arith.constant 5.000000e-01 : f32
    %123 = vector.broadcast %cst_38 : f32 to vector<2x2x32xf32>
    %124 = arith.mulf %123, %122 : vector<2x2x32xf32>
    %125 = math.tanh %124 : vector<2x2x32xf32>
    %cst_39 = arith.constant 5.000000e-01 : f32
    %126 = vector.broadcast %cst_39 : f32 to vector<2x2x32xf32>
    %127 = arith.mulf %126, %125 : vector<2x2x32xf32>
    %cst_40 = arith.constant 5.000000e-01 : f32
    %128 = vector.broadcast %cst_40 : f32 to vector<2x2x32xf32>
    %129 = arith.addf %127, %128 : vector<2x2x32xf32>
    %130 = vector.extract_strided_slice %78 {offsets = [0, 0], sizes = [2, 32], strides = [1, 1]} : vector<16x32xf32> to vector<2x32xf32>
    %131 = vector.extract_strided_slice %99 {offsets = [14, 0], sizes = [2, 32], strides = [1, 1]} : vector<16x32xf32> to vector<2x32xf32>
    %132 = vector.shape_cast %130 : vector<2x32xf32> to vector<1x2x32xf32>
    %133 = vector.shape_cast %131 : vector<2x32xf32> to vector<1x2x32xf32>
    %134 = tpu.concatenate %132, %133 in 0 : vector<1x2x32xf32>, vector<1x2x32xf32> -> vector<2x2x32xf32>
    %135 = arith.addf %134, %113 : vector<2x2x32xf32>
    %cst_41 = arith.constant 5.000000e-01 : f32
    %136 = vector.broadcast %cst_41 : f32 to vector<2x2x32xf32>
    %137 = arith.mulf %136, %135 : vector<2x2x32xf32>
    %138 = math.tanh %137 : vector<2x2x32xf32>
    %cst_42 = arith.constant 5.000000e-01 : f32
    %139 = vector.broadcast %cst_42 : f32 to vector<2x2x32xf32>
    %140 = arith.mulf %139, %138 : vector<2x2x32xf32>
    %cst_43 = arith.constant 5.000000e-01 : f32
    %141 = vector.broadcast %cst_43 : f32 to vector<2x2x32xf32>
    %142 = arith.addf %140, %141 : vector<2x2x32xf32>
    %143 = vector.extract_strided_slice %85 {offsets = [0, 0], sizes = [2, 32], strides = [1, 1]} : vector<16x32xf32> to vector<2x32xf32>
    %144 = vector.extract_strided_slice %106 {offsets = [14, 0], sizes = [2, 32], strides = [1, 1]} : vector<16x32xf32> to vector<2x32xf32>
    %145 = vector.shape_cast %143 : vector<2x32xf32> to vector<1x2x32xf32>
    %146 = vector.shape_cast %144 : vector<2x32xf32> to vector<1x2x32xf32>
    %147 = tpu.concatenate %145, %146 in 0 : vector<1x2x32xf32>, vector<1x2x32xf32> -> vector<2x2x32xf32>
    %148 = arith.mulf %129, %116 : vector<2x2x32xf32>
    %149 = arith.addf %147, %148 : vector<2x2x32xf32>
    %150 = math.tanh %149 : vector<2x2x32xf32>
    %cst_44 = arith.constant 1.000000e+00 : f32
    %151 = vector.broadcast %cst_44 : f32 to vector<2x2x32xf32>
    %152 = arith.subf %151, %142 : vector<2x2x32xf32>
    %153 = arith.mulf %152, %150 : vector<2x2x32xf32>
    %154 = arith.mulf %142, %107 : vector<2x2x32xf32>
    %155 = arith.addf %153, %154 : vector<2x2x32xf32>
    "tpu.trace_start"() <{level = 10 : i32, message = "dbh,dhk->dbk"}> : () -> ()
    %cst_45 = arith.constant dense<0.000000e+00> : vector<2x2x32xf32>
    %156 = tpu.matmul %155, %54, %cst_45 {dimension_numbers = #tpu.dot_dimension_numbers<[2], [1], [1], [2], [0, 0, 0, 1, 1, 2], [0], [0]>} : vector<2x2x32xf32>, vector<2x32x32xf32>, vector<2x2x32xf32> -> vector<2x2x32xf32>
    "tpu.trace_stop"() : () -> ()
    %157 = vector.broadcast %60 : vector<2x1x32xf32> to vector<2x2x32xf32>
    %158 = arith.addf %156, %157 : vector<2x2x32xf32>
    "tpu.trace_start"() <{level = 10 : i32, message = "dbh,dhk->dbk"}> : () -> ()
    %cst_46 = arith.constant dense<0.000000e+00> : vector<2x2x32xf32>
    %159 = tpu.matmul %155, %56, %cst_46 {dimension_numbers = #tpu.dot_dimension_numbers<[2], [1], [1], [2], [0, 0, 0, 1, 1, 2], [0], [0]>} : vector<2x2x32xf32>, vector<2x32x32xf32>, vector<2x2x32xf32> -> vector<2x2x32xf32>
    "tpu.trace_stop"() : () -> ()
    %160 = vector.broadcast %62 : vector<2x1x32xf32> to vector<2x2x32xf32>
    %161 = arith.addf %159, %160 : vector<2x2x32xf32>
    "tpu.trace_start"() <{level = 10 : i32, message = "dbh,dhk->dbk"}> : () -> ()
    %cst_47 = arith.constant dense<0.000000e+00> : vector<2x2x32xf32>
    %162 = tpu.matmul %155, %58, %cst_47 {dimension_numbers = #tpu.dot_dimension_numbers<[2], [1], [1], [2], [0, 0, 0, 1, 1, 2], [0], [0]>} : vector<2x2x32xf32>, vector<2x32x32xf32>, vector<2x2x32xf32> -> vector<2x2x32xf32>
    "tpu.trace_stop"() : () -> ()
    %163 = vector.broadcast %64 : vector<2x1x32xf32> to vector<2x2x32xf32>
    %164 = arith.addf %162, %163 : vector<2x2x32xf32>
    %165 = vector.extract_strided_slice %71 {offsets = [2, 0], sizes = [2, 32], strides = [1, 1]} : vector<16x32xf32> to vector<2x32xf32>
    %166 = vector.extract_strided_slice %92 {offsets = [12, 0], sizes = [2, 32], strides = [1, 1]} : vector<16x32xf32> to vector<2x32xf32>
    %167 = vector.shape_cast %165 : vector<2x32xf32> to vector<1x2x32xf32>
    %168 = vector.shape_cast %166 : vector<2x32xf32> to vector<1x2x32xf32>
    %169 = tpu.concatenate %167, %168 in 0 : vector<1x2x32xf32>, vector<1x2x32xf32> -> vector<2x2x32xf32>
    %170 = arith.addf %169, %158 : vector<2x2x32xf32>
    %cst_48 = arith.constant 5.000000e-01 : f32
    %171 = vector.broadcast %cst_48 : f32 to vector<2x2x32xf32>
    %172 = arith.mulf %171, %170 : vector<2x2x32xf32>
    %173 = math.tanh %172 : vector<2x2x32xf32>
    %cst_49 = arith.constant 5.000000e-01 : f32
    %174 = vector.broadcast %cst_49 : f32 to vector<2x2x32xf32>
    %175 = arith.mulf %174, %173 : vector<2x2x32xf32>
    %cst_50 = arith.constant 5.000000e-01 : f32
    %176 = vector.broadcast %cst_50 : f32 to vector<2x2x32xf32>
    %177 = arith.addf %175, %176 : vector<2x2x32xf32>
    %178 = vector.extract_strided_slice %78 {offsets = [2, 0], sizes = [2, 32], strides = [1, 1]} : vector<16x32xf32> to vector<2x32xf32>
    %179 = vector.extract_strided_slice %99 {offsets = [12, 0], sizes = [2, 32], strides = [1, 1]} : vector<16x32xf32> to vector<2x32xf32>
    %180 = vector.shape_cast %178 : vector<2x32xf32> to vector<1x2x32xf32>
    %181 = vector.shape_cast %179 : vector<2x32xf32> to vector<1x2x32xf32>
    %182 = tpu.concatenate %180, %181 in 0 : vector<1x2x32xf32>, vector<1x2x32xf32> -> vector<2x2x32xf32>
    %183 = arith.addf %182, %161 : vector<2x2x32xf32>
    %cst_51 = arith.constant 5.000000e-01 : f32
    %184 = vector.broadcast %cst_51 : f32 to vector<2x2x32xf32>
    %185 = arith.mulf %184, %183 : vector<2x2x32xf32>
    %186 = math.tanh %185 : vector<2x2x32xf32>
    %cst_52 = arith.constant 5.000000e-01 : f32
    %187 = vector.broadcast %cst_52 : f32 to vector<2x2x32xf32>
    %188 = arith.mulf %187, %186 : vector<2x2x32xf32>
    %cst_53 = arith.constant 5.000000e-01 : f32
    %189 = vector.broadcast %cst_53 : f32 to vector<2x2x32xf32>
    %190 = arith.addf %188, %189 : vector<2x2x32xf32>
    %191 = vector.extract_strided_slice %85 {offsets = [2, 0], sizes = [2, 32], strides = [1, 1]} : vector<16x32xf32> to vector<2x32xf32>
    %192 = vector.extract_strided_slice %106 {offsets = [12, 0], sizes = [2, 32], strides = [1, 1]} : vector<16x32xf32> to vector<2x32xf32>
    %193 = vector.shape_cast %191 : vector<2x32xf32> to vector<1x2x32xf32>
    %194 = vector.shape_cast %192 : vector<2x32xf32> to vector<1x2x32xf32>
    %195 = tpu.concatenate %193, %194 in 0 : vector<1x2x32xf32>, vector<1x2x32xf32> -> vector<2x2x32xf32>
    %196 = arith.mulf %177, %164 : vector<2x2x32xf32>
    %197 = arith.addf %195, %196 : vector<2x2x32xf32>
    %198 = math.tanh %197 : vector<2x2x32xf32>
    %cst_54 = arith.constant 1.000000e+00 : f32
    %199 = vector.broadcast %cst_54 : f32 to vector<2x2x32xf32>
    %200 = arith.subf %199, %190 : vector<2x2x32xf32>
    %201 = arith.mulf %200, %198 : vector<2x2x32xf32>
    %202 = arith.mulf %190, %155 : vector<2x2x32xf32>
    %203 = arith.addf %201, %202 : vector<2x2x32xf32>
    "tpu.trace_start"() <{level = 10 : i32, message = "dbh,dhk->dbk"}> : () -> ()
    %cst_55 = arith.constant dense<0.000000e+00> : vector<2x2x32xf32>
    %204 = tpu.matmul %203, %54, %cst_55 {dimension_numbers = #tpu.dot_dimension_numbers<[2], [1], [1], [2], [0, 0, 0, 1, 1, 2], [0], [0]>} : vector<2x2x32xf32>, vector<2x32x32xf32>, vector<2x2x32xf32> -> vector<2x2x32xf32>
    "tpu.trace_stop"() : () -> ()
    %205 = vector.broadcast %60 : vector<2x1x32xf32> to vector<2x2x32xf32>
    %206 = arith.addf %204, %205 : vector<2x2x32xf32>
    "tpu.trace_start"() <{level = 10 : i32, message = "dbh,dhk->dbk"}> : () -> ()
    %cst_56 = arith.constant dense<0.000000e+00> : vector<2x2x32xf32>
    %207 = tpu.matmul %203, %56, %cst_56 {dimension_numbers = #tpu.dot_dimension_numbers<[2], [1], [1], [2], [0, 0, 0, 1, 1, 2], [0], [0]>} : vector<2x2x32xf32>, vector<2x32x32xf32>, vector<2x2x32xf32> -> vector<2x2x32xf32>
    "tpu.trace_stop"() : () -> ()
    %208 = vector.broadcast %62 : vector<2x1x32xf32> to vector<2x2x32xf32>
    %209 = arith.addf %207, %208 : vector<2x2x32xf32>
    "tpu.trace_start"() <{level = 10 : i32, message = "dbh,dhk->dbk"}> : () -> ()
    %cst_57 = arith.constant dense<0.000000e+00> : vector<2x2x32xf32>
    %210 = tpu.matmul %203, %58, %cst_57 {dimension_numbers = #tpu.dot_dimension_numbers<[2], [1], [1], [2], [0, 0, 0, 1, 1, 2], [0], [0]>} : vector<2x2x32xf32>, vector<2x32x32xf32>, vector<2x2x32xf32> -> vector<2x2x32xf32>
    "tpu.trace_stop"() : () -> ()
    %211 = vector.broadcast %64 : vector<2x1x32xf32> to vector<2x2x32xf32>
    %212 = arith.addf %210, %211 : vector<2x2x32xf32>
    %213 = vector.extract_strided_slice %71 {offsets = [4, 0], sizes = [2, 32], strides = [1, 1]} : vector<16x32xf32> to vector<2x32xf32>
    %214 = vector.extract_strided_slice %92 {offsets = [10, 0], sizes = [2, 32], strides = [1, 1]} : vector<16x32xf32> to vector<2x32xf32>
    %215 = vector.shape_cast %213 : vector<2x32xf32> to vector<1x2x32xf32>
    %216 = vector.shape_cast %214 : vector<2x32xf32> to vector<1x2x32xf32>
    %217 = tpu.concatenate %215, %216 in 0 : vector<1x2x32xf32>, vector<1x2x32xf32> -> vector<2x2x32xf32>
    %218 = arith.addf %217, %206 : vector<2x2x32xf32>
    %cst_58 = arith.constant 5.000000e-01 : f32
    %219 = vector.broadcast %cst_58 : f32 to vector<2x2x32xf32>
    %220 = arith.mulf %219, %218 : vector<2x2x32xf32>
    %221 = math.tanh %220 : vector<2x2x32xf32>
    %cst_59 = arith.constant 5.000000e-01 : f32
    %222 = vector.broadcast %cst_59 : f32 to vector<2x2x32xf32>
    %223 = arith.mulf %222, %221 : vector<2x2x32xf32>
    %cst_60 = arith.constant 5.000000e-01 : f32
    %224 = vector.broadcast %cst_60 : f32 to vector<2x2x32xf32>
    %225 = arith.addf %223, %224 : vector<2x2x32xf32>
    %226 = vector.extract_strided_slice %78 {offsets = [4, 0], sizes = [2, 32], strides = [1, 1]} : vector<16x32xf32> to vector<2x32xf32>
    %227 = vector.extract_strided_slice %99 {offsets = [10, 0], sizes = [2, 32], strides = [1, 1]} : vector<16x32xf32> to vector<2x32xf32>
    %228 = vector.shape_cast %226 : vector<2x32xf32> to vector<1x2x32xf32>
    %229 = vector.shape_cast %227 : vector<2x32xf32> to vector<1x2x32xf32>
    %230 = tpu.concatenate %228, %229 in 0 : vector<1x2x32xf32>, vector<1x2x32xf32> -> vector<2x2x32xf32>
    %231 = arith.addf %230, %209 : vector<2x2x32xf32>
    %cst_61 = arith.constant 5.000000e-01 : f32
    %232 = vector.broadcast %cst_61 : f32 to vector<2x2x32xf32>
    %233 = arith.mulf %232, %231 : vector<2x2x32xf32>
    %234 = math.tanh %233 : vector<2x2x32xf32>
    %cst_62 = arith.constant 5.000000e-01 : f32
    %235 = vector.broadcast %cst_62 : f32 to vector<2x2x32xf32>
    %236 = arith.mulf %235, %234 : vector<2x2x32xf32>
    %cst_63 = arith.constant 5.000000e-01 : f32
    %237 = vector.broadcast %cst_63 : f32 to vector<2x2x32xf32>
    %238 = arith.addf %236, %237 : vector<2x2x32xf32>
    %239 = vector.extract_strided_slice %85 {offsets = [4, 0], sizes = [2, 32], strides = [1, 1]} : vector<16x32xf32> to vector<2x32xf32>
    %240 = vector.extract_strided_slice %106 {offsets = [10, 0], sizes = [2, 32], strides = [1, 1]} : vector<16x32xf32> to vector<2x32xf32>
    %241 = vector.shape_cast %239 : vector<2x32xf32> to vector<1x2x32xf32>
    %242 = vector.shape_cast %240 : vector<2x32xf32> to vector<1x2x32xf32>
    %243 = tpu.concatenate %241, %242 in 0 : vector<1x2x32xf32>, vector<1x2x32xf32> -> vector<2x2x32xf32>
    %244 = arith.mulf %225, %212 : vector<2x2x32xf32>
    %245 = arith.addf %243, %244 : vector<2x2x32xf32>
    %246 = math.tanh %245 : vector<2x2x32xf32>
    %cst_64 = arith.constant 1.000000e+00 : f32
    %247 = vector.broadcast %cst_64 : f32 to vector<2x2x32xf32>
    %248 = arith.subf %247, %238 : vector<2x2x32xf32>
    %249 = arith.mulf %248, %246 : vector<2x2x32xf32>
    %250 = arith.mulf %238, %203 : vector<2x2x32xf32>
    %251 = arith.addf %249, %250 : vector<2x2x32xf32>
    "tpu.trace_start"() <{level = 10 : i32, message = "dbh,dhk->dbk"}> : () -> ()
    %cst_65 = arith.constant dense<0.000000e+00> : vector<2x2x32xf32>
    %252 = tpu.matmul %251, %54, %cst_65 {dimension_numbers = #tpu.dot_dimension_numbers<[2], [1], [1], [2], [0, 0, 0, 1, 1, 2], [0], [0]>} : vector<2x2x32xf32>, vector<2x32x32xf32>, vector<2x2x32xf32> -> vector<2x2x32xf32>
    "tpu.trace_stop"() : () -> ()
    %253 = vector.broadcast %60 : vector<2x1x32xf32> to vector<2x2x32xf32>
    %254 = arith.addf %252, %253 : vector<2x2x32xf32>
    "tpu.trace_start"() <{level = 10 : i32, message = "dbh,dhk->dbk"}> : () -> ()
    %cst_66 = arith.constant dense<0.000000e+00> : vector<2x2x32xf32>
    %255 = tpu.matmul %251, %56, %cst_66 {dimension_numbers = #tpu.dot_dimension_numbers<[2], [1], [1], [2], [0, 0, 0, 1, 1, 2], [0], [0]>} : vector<2x2x32xf32>, vector<2x32x32xf32>, vector<2x2x32xf32> -> vector<2x2x32xf32>
    "tpu.trace_stop"() : () -> ()
    %256 = vector.broadcast %62 : vector<2x1x32xf32> to vector<2x2x32xf32>
    %257 = arith.addf %255, %256 : vector<2x2x32xf32>
    "tpu.trace_start"() <{level = 10 : i32, message = "dbh,dhk->dbk"}> : () -> ()
    %cst_67 = arith.constant dense<0.000000e+00> : vector<2x2x32xf32>
    %258 = tpu.matmul %251, %58, %cst_67 {dimension_numbers = #tpu.dot_dimension_numbers<[2], [1], [1], [2], [0, 0, 0, 1, 1, 2], [0], [0]>} : vector<2x2x32xf32>, vector<2x32x32xf32>, vector<2x2x32xf32> -> vector<2x2x32xf32>
    "tpu.trace_stop"() : () -> ()
    %259 = vector.broadcast %64 : vector<2x1x32xf32> to vector<2x2x32xf32>
    %260 = arith.addf %258, %259 : vector<2x2x32xf32>
    %261 = vector.extract_strided_slice %71 {offsets = [6, 0], sizes = [2, 32], strides = [1, 1]} : vector<16x32xf32> to vector<2x32xf32>
    %262 = vector.extract_strided_slice %92 {offsets = [8, 0], sizes = [2, 32], strides = [1, 1]} : vector<16x32xf32> to vector<2x32xf32>
    %263 = vector.shape_cast %261 : vector<2x32xf32> to vector<1x2x32xf32>
    %264 = vector.shape_cast %262 : vector<2x32xf32> to vector<1x2x32xf32>
    %265 = tpu.concatenate %263, %264 in 0 : vector<1x2x32xf32>, vector<1x2x32xf32> -> vector<2x2x32xf32>
    %266 = arith.addf %265, %254 : vector<2x2x32xf32>
    %cst_68 = arith.constant 5.000000e-01 : f32
    %267 = vector.broadcast %cst_68 : f32 to vector<2x2x32xf32>
    %268 = arith.mulf %267, %266 : vector<2x2x32xf32>
    %269 = math.tanh %268 : vector<2x2x32xf32>
    %cst_69 = arith.constant 5.000000e-01 : f32
    %270 = vector.broadcast %cst_69 : f32 to vector<2x2x32xf32>
    %271 = arith.mulf %270, %269 : vector<2x2x32xf32>
    %cst_70 = arith.constant 5.000000e-01 : f32
    %272 = vector.broadcast %cst_70 : f32 to vector<2x2x32xf32>
    %273 = arith.addf %271, %272 : vector<2x2x32xf32>
    %274 = vector.extract_strided_slice %78 {offsets = [6, 0], sizes = [2, 32], strides = [1, 1]} : vector<16x32xf32> to vector<2x32xf32>
    %275 = vector.extract_strided_slice %99 {offsets = [8, 0], sizes = [2, 32], strides = [1, 1]} : vector<16x32xf32> to vector<2x32xf32>
    %276 = vector.shape_cast %274 : vector<2x32xf32> to vector<1x2x32xf32>
    %277 = vector.shape_cast %275 : vector<2x32xf32> to vector<1x2x32xf32>
    %278 = tpu.concatenate %276, %277 in 0 : vector<1x2x32xf32>, vector<1x2x32xf32> -> vector<2x2x32xf32>
    %279 = arith.addf %278, %257 : vector<2x2x32xf32>
    %cst_71 = arith.constant 5.000000e-01 : f32
    %280 = vector.broadcast %cst_71 : f32 to vector<2x2x32xf32>
    %281 = arith.mulf %280, %279 : vector<2x2x32xf32>
    %282 = math.tanh %281 : vector<2x2x32xf32>
    %cst_72 = arith.constant 5.000000e-01 : f32
    %283 = vector.broadcast %cst_72 : f32 to vector<2x2x32xf32>
    %284 = arith.mulf %283, %282 : vector<2x2x32xf32>
    %cst_73 = arith.constant 5.000000e-01 : f32
    %285 = vector.broadcast %cst_73 : f32 to vector<2x2x32xf32>
    %286 = arith.addf %284, %285 : vector<2x2x32xf32>
    %287 = vector.extract_strided_slice %85 {offsets = [6, 0], sizes = [2, 32], strides = [1, 1]} : vector<16x32xf32> to vector<2x32xf32>
    %288 = vector.extract_strided_slice %106 {offsets = [8, 0], sizes = [2, 32], strides = [1, 1]} : vector<16x32xf32> to vector<2x32xf32>
    %289 = vector.shape_cast %287 : vector<2x32xf32> to vector<1x2x32xf32>
    %290 = vector.shape_cast %288 : vector<2x32xf32> to vector<1x2x32xf32>
    %291 = tpu.concatenate %289, %290 in 0 : vector<1x2x32xf32>, vector<1x2x32xf32> -> vector<2x2x32xf32>
    %292 = arith.mulf %273, %260 : vector<2x2x32xf32>
    %293 = arith.addf %291, %292 : vector<2x2x32xf32>
    %294 = math.tanh %293 : vector<2x2x32xf32>
    %cst_74 = arith.constant 1.000000e+00 : f32
    %295 = vector.broadcast %cst_74 : f32 to vector<2x2x32xf32>
    %296 = arith.subf %295, %286 : vector<2x2x32xf32>
    %297 = arith.mulf %296, %294 : vector<2x2x32xf32>
    %298 = arith.mulf %286, %251 : vector<2x2x32xf32>
    %299 = arith.addf %297, %298 : vector<2x2x32xf32>
    "tpu.trace_start"() <{level = 10 : i32, message = "dbh,dhk->dbk"}> : () -> ()
    %cst_75 = arith.constant dense<0.000000e+00> : vector<2x2x32xf32>
    %300 = tpu.matmul %299, %54, %cst_75 {dimension_numbers = #tpu.dot_dimension_numbers<[2], [1], [1], [2], [0, 0, 0, 1, 1, 2], [0], [0]>} : vector<2x2x32xf32>, vector<2x32x32xf32>, vector<2x2x32xf32> -> vector<2x2x32xf32>
    "tpu.trace_stop"() : () -> ()
    %301 = vector.broadcast %60 : vector<2x1x32xf32> to vector<2x2x32xf32>
    %302 = arith.addf %300, %301 : vector<2x2x32xf32>
    "tpu.trace_start"() <{level = 10 : i32, message = "dbh,dhk->dbk"}> : () -> ()
    %cst_76 = arith.constant dense<0.000000e+00> : vector<2x2x32xf32>
    %303 = tpu.matmul %299, %56, %cst_76 {dimension_numbers = #tpu.dot_dimension_numbers<[2], [1], [1], [2], [0, 0, 0, 1, 1, 2], [0], [0]>} : vector<2x2x32xf32>, vector<2x32x32xf32>, vector<2x2x32xf32> -> vector<2x2x32xf32>
    "tpu.trace_stop"() : () -> ()
    %304 = vector.broadcast %62 : vector<2x1x32xf32> to vector<2x2x32xf32>
    %305 = arith.addf %303, %304 : vector<2x2x32xf32>
    "tpu.trace_start"() <{level = 10 : i32, message = "dbh,dhk->dbk"}> : () -> ()
    %cst_77 = arith.constant dense<0.000000e+00> : vector<2x2x32xf32>
    %306 = tpu.matmul %299, %58, %cst_77 {dimension_numbers = #tpu.dot_dimension_numbers<[2], [1], [1], [2], [0, 0, 0, 1, 1, 2], [0], [0]>} : vector<2x2x32xf32>, vector<2x32x32xf32>, vector<2x2x32xf32> -> vector<2x2x32xf32>
    "tpu.trace_stop"() : () -> ()
    %307 = vector.broadcast %64 : vector<2x1x32xf32> to vector<2x2x32xf32>
    %308 = arith.addf %306, %307 : vector<2x2x32xf32>
    %309 = vector.extract_strided_slice %71 {offsets = [8, 0], sizes = [2, 32], strides = [1, 1]} : vector<16x32xf32> to vector<2x32xf32>
    %310 = vector.extract_strided_slice %92 {offsets = [6, 0], sizes = [2, 32], strides = [1, 1]} : vector<16x32xf32> to vector<2x32xf32>
    %311 = vector.shape_cast %309 : vector<2x32xf32> to vector<1x2x32xf32>
    %312 = vector.shape_cast %310 : vector<2x32xf32> to vector<1x2x32xf32>
    %313 = tpu.concatenate %311, %312 in 0 : vector<1x2x32xf32>, vector<1x2x32xf32> -> vector<2x2x32xf32>
    %314 = arith.addf %313, %302 : vector<2x2x32xf32>
    %cst_78 = arith.constant 5.000000e-01 : f32
    %315 = vector.broadcast %cst_78 : f32 to vector<2x2x32xf32>
    %316 = arith.mulf %315, %314 : vector<2x2x32xf32>
    %317 = math.tanh %316 : vector<2x2x32xf32>
    %cst_79 = arith.constant 5.000000e-01 : f32
    %318 = vector.broadcast %cst_79 : f32 to vector<2x2x32xf32>
    %319 = arith.mulf %318, %317 : vector<2x2x32xf32>
    %cst_80 = arith.constant 5.000000e-01 : f32
    %320 = vector.broadcast %cst_80 : f32 to vector<2x2x32xf32>
    %321 = arith.addf %319, %320 : vector<2x2x32xf32>
    %322 = vector.extract_strided_slice %78 {offsets = [8, 0], sizes = [2, 32], strides = [1, 1]} : vector<16x32xf32> to vector<2x32xf32>
    %323 = vector.extract_strided_slice %99 {offsets = [6, 0], sizes = [2, 32], strides = [1, 1]} : vector<16x32xf32> to vector<2x32xf32>
    %324 = vector.shape_cast %322 : vector<2x32xf32> to vector<1x2x32xf32>
    %325 = vector.shape_cast %323 : vector<2x32xf32> to vector<1x2x32xf32>
    %326 = tpu.concatenate %324, %325 in 0 : vector<1x2x32xf32>, vector<1x2x32xf32> -> vector<2x2x32xf32>
    %327 = arith.addf %326, %305 : vector<2x2x32xf32>
    %cst_81 = arith.constant 5.000000e-01 : f32
    %328 = vector.broadcast %cst_81 : f32 to vector<2x2x32xf32>
    %329 = arith.mulf %328, %327 : vector<2x2x32xf32>
    %330 = math.tanh %329 : vector<2x2x32xf32>
    %cst_82 = arith.constant 5.000000e-01 : f32
    %331 = vector.broadcast %cst_82 : f32 to vector<2x2x32xf32>
    %332 = arith.mulf %331, %330 : vector<2x2x32xf32>
    %cst_83 = arith.constant 5.000000e-01 : f32
    %333 = vector.broadcast %cst_83 : f32 to vector<2x2x32xf32>
    %334 = arith.addf %332, %333 : vector<2x2x32xf32>
    %335 = vector.extract_strided_slice %85 {offsets = [8, 0], sizes = [2, 32], strides = [1, 1]} : vector<16x32xf32> to vector<2x32xf32>
    %336 = vector.extract_strided_slice %106 {offsets = [6, 0], sizes = [2, 32], strides = [1, 1]} : vector<16x32xf32> to vector<2x32xf32>
    %337 = vector.shape_cast %335 : vector<2x32xf32> to vector<1x2x32xf32>
    %338 = vector.shape_cast %336 : vector<2x32xf32> to vector<1x2x32xf32>
    %339 = tpu.concatenate %337, %338 in 0 : vector<1x2x32xf32>, vector<1x2x32xf32> -> vector<2x2x32xf32>
    %340 = arith.mulf %321, %308 : vector<2x2x32xf32>
    %341 = arith.addf %339, %340 : vector<2x2x32xf32>
    %342 = math.tanh %341 : vector<2x2x32xf32>
    %cst_84 = arith.constant 1.000000e+00 : f32
    %343 = vector.broadcast %cst_84 : f32 to vector<2x2x32xf32>
    %344 = arith.subf %343, %334 : vector<2x2x32xf32>
    %345 = arith.mulf %344, %342 : vector<2x2x32xf32>
    %346 = arith.mulf %334, %299 : vector<2x2x32xf32>
    %347 = arith.addf %345, %346 : vector<2x2x32xf32>
    "tpu.trace_start"() <{level = 10 : i32, message = "dbh,dhk->dbk"}> : () -> ()
    %cst_85 = arith.constant dense<0.000000e+00> : vector<2x2x32xf32>
    %348 = tpu.matmul %347, %54, %cst_85 {dimension_numbers = #tpu.dot_dimension_numbers<[2], [1], [1], [2], [0, 0, 0, 1, 1, 2], [0], [0]>} : vector<2x2x32xf32>, vector<2x32x32xf32>, vector<2x2x32xf32> -> vector<2x2x32xf32>
    "tpu.trace_stop"() : () -> ()
    %349 = vector.broadcast %60 : vector<2x1x32xf32> to vector<2x2x32xf32>
    %350 = arith.addf %348, %349 : vector<2x2x32xf32>
    "tpu.trace_start"() <{level = 10 : i32, message = "dbh,dhk->dbk"}> : () -> ()
    %cst_86 = arith.constant dense<0.000000e+00> : vector<2x2x32xf32>
    %351 = tpu.matmul %347, %56, %cst_86 {dimension_numbers = #tpu.dot_dimension_numbers<[2], [1], [1], [2], [0, 0, 0, 1, 1, 2], [0], [0]>} : vector<2x2x32xf32>, vector<2x32x32xf32>, vector<2x2x32xf32> -> vector<2x2x32xf32>
    "tpu.trace_stop"() : () -> ()
    %352 = vector.broadcast %62 : vector<2x1x32xf32> to vector<2x2x32xf32>
    %353 = arith.addf %351, %352 : vector<2x2x32xf32>
    "tpu.trace_start"() <{level = 10 : i32, message = "dbh,dhk->dbk"}> : () -> ()
    %cst_87 = arith.constant dense<0.000000e+00> : vector<2x2x32xf32>
    %354 = tpu.matmul %347, %58, %cst_87 {dimension_numbers = #tpu.dot_dimension_numbers<[2], [1], [1], [2], [0, 0, 0, 1, 1, 2], [0], [0]>} : vector<2x2x32xf32>, vector<2x32x32xf32>, vector<2x2x32xf32> -> vector<2x2x32xf32>
    "tpu.trace_stop"() : () -> ()
    %355 = vector.broadcast %64 : vector<2x1x32xf32> to vector<2x2x32xf32>
    %356 = arith.addf %354, %355 : vector<2x2x32xf32>
    %357 = vector.extract_strided_slice %71 {offsets = [10, 0], sizes = [2, 32], strides = [1, 1]} : vector<16x32xf32> to vector<2x32xf32>
    %358 = vector.extract_strided_slice %92 {offsets = [4, 0], sizes = [2, 32], strides = [1, 1]} : vector<16x32xf32> to vector<2x32xf32>
    %359 = vector.shape_cast %357 : vector<2x32xf32> to vector<1x2x32xf32>
    %360 = vector.shape_cast %358 : vector<2x32xf32> to vector<1x2x32xf32>
    %361 = tpu.concatenate %359, %360 in 0 : vector<1x2x32xf32>, vector<1x2x32xf32> -> vector<2x2x32xf32>
    %362 = arith.addf %361, %350 : vector<2x2x32xf32>
    %cst_88 = arith.constant 5.000000e-01 : f32
    %363 = vector.broadcast %cst_88 : f32 to vector<2x2x32xf32>
    %364 = arith.mulf %363, %362 : vector<2x2x32xf32>
    %365 = math.tanh %364 : vector<2x2x32xf32>
    %cst_89 = arith.constant 5.000000e-01 : f32
    %366 = vector.broadcast %cst_89 : f32 to vector<2x2x32xf32>
    %367 = arith.mulf %366, %365 : vector<2x2x32xf32>
    %cst_90 = arith.constant 5.000000e-01 : f32
    %368 = vector.broadcast %cst_90 : f32 to vector<2x2x32xf32>
    %369 = arith.addf %367, %368 : vector<2x2x32xf32>
    %370 = vector.extract_strided_slice %78 {offsets = [10, 0], sizes = [2, 32], strides = [1, 1]} : vector<16x32xf32> to vector<2x32xf32>
    %371 = vector.extract_strided_slice %99 {offsets = [4, 0], sizes = [2, 32], strides = [1, 1]} : vector<16x32xf32> to vector<2x32xf32>
    %372 = vector.shape_cast %370 : vector<2x32xf32> to vector<1x2x32xf32>
    %373 = vector.shape_cast %371 : vector<2x32xf32> to vector<1x2x32xf32>
    %374 = tpu.concatenate %372, %373 in 0 : vector<1x2x32xf32>, vector<1x2x32xf32> -> vector<2x2x32xf32>
    %375 = arith.addf %374, %353 : vector<2x2x32xf32>
    %cst_91 = arith.constant 5.000000e-01 : f32
    %376 = vector.broadcast %cst_91 : f32 to vector<2x2x32xf32>
    %377 = arith.mulf %376, %375 : vector<2x2x32xf32>
    %378 = math.tanh %377 : vector<2x2x32xf32>
    %cst_92 = arith.constant 5.000000e-01 : f32
    %379 = vector.broadcast %cst_92 : f32 to vector<2x2x32xf32>
    %380 = arith.mulf %379, %378 : vector<2x2x32xf32>
    %cst_93 = arith.constant 5.000000e-01 : f32
    %381 = vector.broadcast %cst_93 : f32 to vector<2x2x32xf32>
    %382 = arith.addf %380, %381 : vector<2x2x32xf32>
    %383 = vector.extract_strided_slice %85 {offsets = [10, 0], sizes = [2, 32], strides = [1, 1]} : vector<16x32xf32> to vector<2x32xf32>
    %384 = vector.extract_strided_slice %106 {offsets = [4, 0], sizes = [2, 32], strides = [1, 1]} : vector<16x32xf32> to vector<2x32xf32>
    %385 = vector.shape_cast %383 : vector<2x32xf32> to vector<1x2x32xf32>
    %386 = vector.shape_cast %384 : vector<2x32xf32> to vector<1x2x32xf32>
    %387 = tpu.concatenate %385, %386 in 0 : vector<1x2x32xf32>, vector<1x2x32xf32> -> vector<2x2x32xf32>
    %388 = arith.mulf %369, %356 : vector<2x2x32xf32>
    %389 = arith.addf %387, %388 : vector<2x2x32xf32>
    %390 = math.tanh %389 : vector<2x2x32xf32>
    %cst_94 = arith.constant 1.000000e+00 : f32
    %391 = vector.broadcast %cst_94 : f32 to vector<2x2x32xf32>
    %392 = arith.subf %391, %382 : vector<2x2x32xf32>
    %393 = arith.mulf %392, %390 : vector<2x2x32xf32>
    %394 = arith.mulf %382, %347 : vector<2x2x32xf32>
    %395 = arith.addf %393, %394 : vector<2x2x32xf32>
    "tpu.trace_start"() <{level = 10 : i32, message = "dbh,dhk->dbk"}> : () -> ()
    %cst_95 = arith.constant dense<0.000000e+00> : vector<2x2x32xf32>
    %396 = tpu.matmul %395, %54, %cst_95 {dimension_numbers = #tpu.dot_dimension_numbers<[2], [1], [1], [2], [0, 0, 0, 1, 1, 2], [0], [0]>} : vector<2x2x32xf32>, vector<2x32x32xf32>, vector<2x2x32xf32> -> vector<2x2x32xf32>
    "tpu.trace_stop"() : () -> ()
    %397 = vector.broadcast %60 : vector<2x1x32xf32> to vector<2x2x32xf32>
    %398 = arith.addf %396, %397 : vector<2x2x32xf32>
    "tpu.trace_start"() <{level = 10 : i32, message = "dbh,dhk->dbk"}> : () -> ()
    %cst_96 = arith.constant dense<0.000000e+00> : vector<2x2x32xf32>
    %399 = tpu.matmul %395, %56, %cst_96 {dimension_numbers = #tpu.dot_dimension_numbers<[2], [1], [1], [2], [0, 0, 0, 1, 1, 2], [0], [0]>} : vector<2x2x32xf32>, vector<2x32x32xf32>, vector<2x2x32xf32> -> vector<2x2x32xf32>
    "tpu.trace_stop"() : () -> ()
    %400 = vector.broadcast %62 : vector<2x1x32xf32> to vector<2x2x32xf32>
    %401 = arith.addf %399, %400 : vector<2x2x32xf32>
    "tpu.trace_start"() <{level = 10 : i32, message = "dbh,dhk->dbk"}> : () -> ()
    %cst_97 = arith.constant dense<0.000000e+00> : vector<2x2x32xf32>
    %402 = tpu.matmul %395, %58, %cst_97 {dimension_numbers = #tpu.dot_dimension_numbers<[2], [1], [1], [2], [0, 0, 0, 1, 1, 2], [0], [0]>} : vector<2x2x32xf32>, vector<2x32x32xf32>, vector<2x2x32xf32> -> vector<2x2x32xf32>
    "tpu.trace_stop"() : () -> ()
    %403 = vector.broadcast %64 : vector<2x1x32xf32> to vector<2x2x32xf32>
    %404 = arith.addf %402, %403 : vector<2x2x32xf32>
    %405 = vector.extract_strided_slice %71 {offsets = [12, 0], sizes = [2, 32], strides = [1, 1]} : vector<16x32xf32> to vector<2x32xf32>
    %406 = vector.extract_strided_slice %92 {offsets = [2, 0], sizes = [2, 32], strides = [1, 1]} : vector<16x32xf32> to vector<2x32xf32>
    %407 = vector.shape_cast %405 : vector<2x32xf32> to vector<1x2x32xf32>
    %408 = vector.shape_cast %406 : vector<2x32xf32> to vector<1x2x32xf32>
    %409 = tpu.concatenate %407, %408 in 0 : vector<1x2x32xf32>, vector<1x2x32xf32> -> vector<2x2x32xf32>
    %410 = arith.addf %409, %398 : vector<2x2x32xf32>
    %cst_98 = arith.constant 5.000000e-01 : f32
    %411 = vector.broadcast %cst_98 : f32 to vector<2x2x32xf32>
    %412 = arith.mulf %411, %410 : vector<2x2x32xf32>
    %413 = math.tanh %412 : vector<2x2x32xf32>
    %cst_99 = arith.constant 5.000000e-01 : f32
    %414 = vector.broadcast %cst_99 : f32 to vector<2x2x32xf32>
    %415 = arith.mulf %414, %413 : vector<2x2x32xf32>
    %cst_100 = arith.constant 5.000000e-01 : f32
    %416 = vector.broadcast %cst_100 : f32 to vector<2x2x32xf32>
    %417 = arith.addf %415, %416 : vector<2x2x32xf32>
    %418 = vector.extract_strided_slice %78 {offsets = [12, 0], sizes = [2, 32], strides = [1, 1]} : vector<16x32xf32> to vector<2x32xf32>
    %419 = vector.extract_strided_slice %99 {offsets = [2, 0], sizes = [2, 32], strides = [1, 1]} : vector<16x32xf32> to vector<2x32xf32>
    %420 = vector.shape_cast %418 : vector<2x32xf32> to vector<1x2x32xf32>
    %421 = vector.shape_cast %419 : vector<2x32xf32> to vector<1x2x32xf32>
    %422 = tpu.concatenate %420, %421 in 0 : vector<1x2x32xf32>, vector<1x2x32xf32> -> vector<2x2x32xf32>
    %423 = arith.addf %422, %401 : vector<2x2x32xf32>
    %cst_101 = arith.constant 5.000000e-01 : f32
    %424 = vector.broadcast %cst_101 : f32 to vector<2x2x32xf32>
    %425 = arith.mulf %424, %423 : vector<2x2x32xf32>
    %426 = math.tanh %425 : vector<2x2x32xf32>
    %cst_102 = arith.constant 5.000000e-01 : f32
    %427 = vector.broadcast %cst_102 : f32 to vector<2x2x32xf32>
    %428 = arith.mulf %427, %426 : vector<2x2x32xf32>
    %cst_103 = arith.constant 5.000000e-01 : f32
    %429 = vector.broadcast %cst_103 : f32 to vector<2x2x32xf32>
    %430 = arith.addf %428, %429 : vector<2x2x32xf32>
    %431 = vector.extract_strided_slice %85 {offsets = [12, 0], sizes = [2, 32], strides = [1, 1]} : vector<16x32xf32> to vector<2x32xf32>
    %432 = vector.extract_strided_slice %106 {offsets = [2, 0], sizes = [2, 32], strides = [1, 1]} : vector<16x32xf32> to vector<2x32xf32>
    %433 = vector.shape_cast %431 : vector<2x32xf32> to vector<1x2x32xf32>
    %434 = vector.shape_cast %432 : vector<2x32xf32> to vector<1x2x32xf32>
    %435 = tpu.concatenate %433, %434 in 0 : vector<1x2x32xf32>, vector<1x2x32xf32> -> vector<2x2x32xf32>
    %436 = arith.mulf %417, %404 : vector<2x2x32xf32>
    %437 = arith.addf %435, %436 : vector<2x2x32xf32>
    %438 = math.tanh %437 : vector<2x2x32xf32>
    %cst_104 = arith.constant 1.000000e+00 : f32
    %439 = vector.broadcast %cst_104 : f32 to vector<2x2x32xf32>
    %440 = arith.subf %439, %430 : vector<2x2x32xf32>
    %441 = arith.mulf %440, %438 : vector<2x2x32xf32>
    %442 = arith.mulf %430, %395 : vector<2x2x32xf32>
    %443 = arith.addf %441, %442 : vector<2x2x32xf32>
    "tpu.trace_start"() <{level = 10 : i32, message = "dbh,dhk->dbk"}> : () -> ()
    %cst_105 = arith.constant dense<0.000000e+00> : vector<2x2x32xf32>
    %444 = tpu.matmul %443, %54, %cst_105 {dimension_numbers = #tpu.dot_dimension_numbers<[2], [1], [1], [2], [0, 0, 0, 1, 1, 2], [0], [0]>} : vector<2x2x32xf32>, vector<2x32x32xf32>, vector<2x2x32xf32> -> vector<2x2x32xf32>
    "tpu.trace_stop"() : () -> ()
    %445 = vector.broadcast %60 : vector<2x1x32xf32> to vector<2x2x32xf32>
    %446 = arith.addf %444, %445 : vector<2x2x32xf32>
    "tpu.trace_start"() <{level = 10 : i32, message = "dbh,dhk->dbk"}> : () -> ()
    %cst_106 = arith.constant dense<0.000000e+00> : vector<2x2x32xf32>
    %447 = tpu.matmul %443, %56, %cst_106 {dimension_numbers = #tpu.dot_dimension_numbers<[2], [1], [1], [2], [0, 0, 0, 1, 1, 2], [0], [0]>} : vector<2x2x32xf32>, vector<2x32x32xf32>, vector<2x2x32xf32> -> vector<2x2x32xf32>
    "tpu.trace_stop"() : () -> ()
    %448 = vector.broadcast %62 : vector<2x1x32xf32> to vector<2x2x32xf32>
    %449 = arith.addf %447, %448 : vector<2x2x32xf32>
    "tpu.trace_start"() <{level = 10 : i32, message = "dbh,dhk->dbk"}> : () -> ()
    %cst_107 = arith.constant dense<0.000000e+00> : vector<2x2x32xf32>
    %450 = tpu.matmul %443, %58, %cst_107 {dimension_numbers = #tpu.dot_dimension_numbers<[2], [1], [1], [2], [0, 0, 0, 1, 1, 2], [0], [0]>} : vector<2x2x32xf32>, vector<2x32x32xf32>, vector<2x2x32xf32> -> vector<2x2x32xf32>
    "tpu.trace_stop"() : () -> ()
    %451 = vector.broadcast %64 : vector<2x1x32xf32> to vector<2x2x32xf32>
    %452 = arith.addf %450, %451 : vector<2x2x32xf32>
    %453 = vector.extract_strided_slice %71 {offsets = [14, 0], sizes = [2, 32], strides = [1, 1]} : vector<16x32xf32> to vector<2x32xf32>
    %454 = vector.extract_strided_slice %92 {offsets = [0, 0], sizes = [2, 32], strides = [1, 1]} : vector<16x32xf32> to vector<2x32xf32>
    %455 = vector.shape_cast %453 : vector<2x32xf32> to vector<1x2x32xf32>
    %456 = vector.shape_cast %454 : vector<2x32xf32> to vector<1x2x32xf32>
    %457 = tpu.concatenate %455, %456 in 0 : vector<1x2x32xf32>, vector<1x2x32xf32> -> vector<2x2x32xf32>
    %458 = arith.addf %457, %446 : vector<2x2x32xf32>
    %cst_108 = arith.constant 5.000000e-01 : f32
    %459 = vector.broadcast %cst_108 : f32 to vector<2x2x32xf32>
    %460 = arith.mulf %459, %458 : vector<2x2x32xf32>
    %461 = math.tanh %460 : vector<2x2x32xf32>
    %cst_109 = arith.constant 5.000000e-01 : f32
    %462 = vector.broadcast %cst_109 : f32 to vector<2x2x32xf32>
    %463 = arith.mulf %462, %461 : vector<2x2x32xf32>
    %cst_110 = arith.constant 5.000000e-01 : f32
    %464 = vector.broadcast %cst_110 : f32 to vector<2x2x32xf32>
    %465 = arith.addf %463, %464 : vector<2x2x32xf32>
    %466 = vector.extract_strided_slice %78 {offsets = [14, 0], sizes = [2, 32], strides = [1, 1]} : vector<16x32xf32> to vector<2x32xf32>
    %467 = vector.extract_strided_slice %99 {offsets = [0, 0], sizes = [2, 32], strides = [1, 1]} : vector<16x32xf32> to vector<2x32xf32>
    %468 = vector.shape_cast %466 : vector<2x32xf32> to vector<1x2x32xf32>
    %469 = vector.shape_cast %467 : vector<2x32xf32> to vector<1x2x32xf32>
    %470 = tpu.concatenate %468, %469 in 0 : vector<1x2x32xf32>, vector<1x2x32xf32> -> vector<2x2x32xf32>
    %471 = arith.addf %470, %449 : vector<2x2x32xf32>
    %cst_111 = arith.constant 5.000000e-01 : f32
    %472 = vector.broadcast %cst_111 : f32 to vector<2x2x32xf32>
    %473 = arith.mulf %472, %471 : vector<2x2x32xf32>
    %474 = math.tanh %473 : vector<2x2x32xf32>
    %cst_112 = arith.constant 5.000000e-01 : f32
    %475 = vector.broadcast %cst_112 : f32 to vector<2x2x32xf32>
    %476 = arith.mulf %475, %474 : vector<2x2x32xf32>
    %cst_113 = arith.constant 5.000000e-01 : f32
    %477 = vector.broadcast %cst_113 : f32 to vector<2x2x32xf32>
    %478 = arith.addf %476, %477 : vector<2x2x32xf32>
    %479 = vector.extract_strided_slice %85 {offsets = [14, 0], sizes = [2, 32], strides = [1, 1]} : vector<16x32xf32> to vector<2x32xf32>
    %480 = vector.extract_strided_slice %106 {offsets = [0, 0], sizes = [2, 32], strides = [1, 1]} : vector<16x32xf32> to vector<2x32xf32>
    %481 = vector.shape_cast %479 : vector<2x32xf32> to vector<1x2x32xf32>
    %482 = vector.shape_cast %480 : vector<2x32xf32> to vector<1x2x32xf32>
    %483 = tpu.concatenate %481, %482 in 0 : vector<1x2x32xf32>, vector<1x2x32xf32> -> vector<2x2x32xf32>
    %484 = arith.mulf %465, %452 : vector<2x2x32xf32>
    %485 = arith.addf %483, %484 : vector<2x2x32xf32>
    %486 = math.tanh %485 : vector<2x2x32xf32>
    %cst_114 = arith.constant 1.000000e+00 : f32
    %487 = vector.broadcast %cst_114 : f32 to vector<2x2x32xf32>
    %488 = arith.subf %487, %478 : vector<2x2x32xf32>
    %489 = arith.mulf %488, %486 : vector<2x2x32xf32>
    %490 = arith.mulf %478, %443 : vector<2x2x32xf32>
    %491 = arith.addf %489, %490 : vector<2x2x32xf32>
    %492 = vector.extract_strided_slice %155 {offsets = [0, 0, 0], sizes = [1, 2, 32], strides = [1, 1, 1]} : vector<2x2x32xf32> to vector<1x2x32xf32>
    %493 = vector.shape_cast %492 : vector<1x2x32xf32> to vector<2x32xf32>
    %494 = vector.extract_strided_slice %491 {offsets = [1, 0, 0], sizes = [1, 2, 32], strides = [1, 1, 1]} : vector<2x2x32xf32> to vector<1x2x32xf32>
    %495 = vector.shape_cast %494 : vector<1x2x32xf32> to vector<2x32xf32>
    %496 = tpu.concatenate %493, %495 in 1 : vector<2x32xf32>, vector<2x32xf32> -> vector<2x64xf32>
    %497 = vector.extract_strided_slice %203 {offsets = [0, 0, 0], sizes = [1, 2, 32], strides = [1, 1, 1]} : vector<2x2x32xf32> to vector<1x2x32xf32>
    %498 = vector.shape_cast %497 : vector<1x2x32xf32> to vector<2x32xf32>
    %499 = vector.extract_strided_slice %443 {offsets = [1, 0, 0], sizes = [1, 2, 32], strides = [1, 1, 1]} : vector<2x2x32xf32> to vector<1x2x32xf32>
    %500 = vector.shape_cast %499 : vector<1x2x32xf32> to vector<2x32xf32>
    %501 = tpu.concatenate %498, %500 in 1 : vector<2x32xf32>, vector<2x32xf32> -> vector<2x64xf32>
    %502 = vector.extract_strided_slice %251 {offsets = [0, 0, 0], sizes = [1, 2, 32], strides = [1, 1, 1]} : vector<2x2x32xf32> to vector<1x2x32xf32>
    %503 = vector.shape_cast %502 : vector<1x2x32xf32> to vector<2x32xf32>
    %504 = vector.extract_strided_slice %395 {offsets = [1, 0, 0], sizes = [1, 2, 32], strides = [1, 1, 1]} : vector<2x2x32xf32> to vector<1x2x32xf32>
    %505 = vector.shape_cast %504 : vector<1x2x32xf32> to vector<2x32xf32>
    %506 = tpu.concatenate %503, %505 in 1 : vector<2x32xf32>, vector<2x32xf32> -> vector<2x64xf32>
    %507 = vector.extract_strided_slice %299 {offsets = [0, 0, 0], sizes = [1, 2, 32], strides = [1, 1, 1]} : vector<2x2x32xf32> to vector<1x2x32xf32>
    %508 = vector.shape_cast %507 : vector<1x2x32xf32> to vector<2x32xf32>
    %509 = vector.extract_strided_slice %347 {offsets = [1, 0, 0], sizes = [1, 2, 32], strides = [1, 1, 1]} : vector<2x2x32xf32> to vector<1x2x32xf32>
    %510 = vector.shape_cast %509 : vector<1x2x32xf32> to vector<2x32xf32>
    %511 = tpu.concatenate %508, %510 in 1 : vector<2x32xf32>, vector<2x32xf32> -> vector<2x64xf32>
    %512 = vector.extract_strided_slice %347 {offsets = [0, 0, 0], sizes = [1, 2, 32], strides = [1, 1, 1]} : vector<2x2x32xf32> to vector<1x2x32xf32>
    %513 = vector.shape_cast %512 : vector<1x2x32xf32> to vector<2x32xf32>
    %514 = vector.extract_strided_slice %299 {offsets = [1, 0, 0], sizes = [1, 2, 32], strides = [1, 1, 1]} : vector<2x2x32xf32> to vector<1x2x32xf32>
    %515 = vector.shape_cast %514 : vector<1x2x32xf32> to vector<2x32xf32>
    %516 = tpu.concatenate %513, %515 in 1 : vector<2x32xf32>, vector<2x32xf32> -> vector<2x64xf32>
    %517 = vector.extract_strided_slice %395 {offsets = [0, 0, 0], sizes = [1, 2, 32], strides = [1, 1, 1]} : vector<2x2x32xf32> to vector<1x2x32xf32>
    %518 = vector.shape_cast %517 : vector<1x2x32xf32> to vector<2x32xf32>
    %519 = vector.extract_strided_slice %251 {offsets = [1, 0, 0], sizes = [1, 2, 32], strides = [1, 1, 1]} : vector<2x2x32xf32> to vector<1x2x32xf32>
    %520 = vector.shape_cast %519 : vector<1x2x32xf32> to vector<2x32xf32>
    %521 = tpu.concatenate %518, %520 in 1 : vector<2x32xf32>, vector<2x32xf32> -> vector<2x64xf32>
    %522 = vector.extract_strided_slice %443 {offsets = [0, 0, 0], sizes = [1, 2, 32], strides = [1, 1, 1]} : vector<2x2x32xf32> to vector<1x2x32xf32>
    %523 = vector.shape_cast %522 : vector<1x2x32xf32> to vector<2x32xf32>
    %524 = vector.extract_strided_slice %203 {offsets = [1, 0, 0], sizes = [1, 2, 32], strides = [1, 1, 1]} : vector<2x2x32xf32> to vector<1x2x32xf32>
    %525 = vector.shape_cast %524 : vector<1x2x32xf32> to vector<2x32xf32>
    %526 = tpu.concatenate %523, %525 in 1 : vector<2x32xf32>, vector<2x32xf32> -> vector<2x64xf32>
    %527 = vector.extract_strided_slice %491 {offsets = [0, 0, 0], sizes = [1, 2, 32], strides = [1, 1, 1]} : vector<2x2x32xf32> to vector<1x2x32xf32>
    %528 = vector.shape_cast %527 : vector<1x2x32xf32> to vector<2x32xf32>
    %529 = vector.extract_strided_slice %155 {offsets = [1, 0, 0], sizes = [1, 2, 32], strides = [1, 1, 1]} : vector<2x2x32xf32> to vector<1x2x32xf32>
    %530 = vector.shape_cast %529 : vector<1x2x32xf32> to vector<2x32xf32>
    %531 = tpu.concatenate %528, %530 in 1 : vector<2x32xf32>, vector<2x32xf32> -> vector<2x64xf32>
    %532 = tpu.concatenate %496, %501, %506, %511, %516, %521, %526, %531 in 0 : vector<2x64xf32>, vector<2x64xf32>, vector<2x64xf32>, vector<2x64xf32>, vector<2x64xf32>, vector<2x64xf32>, vector<2x64xf32>, vector<2x64xf32> -> vector<16x64xf32>
    %c0_115 = arith.constant 0 : index
    %c0_116 = arith.constant 0 : index
    %c0_117 = arith.constant 0 : index
    %c0_118 = arith.constant 0 : index
    %533 = vector.load %arg9[%c0_115, %c0_116, %c0_117, %c0_118] : memref<2x3x64x32xf32, #tpu.memory_space<vmem>>, vector<2x3x64x32xf32>
    %c0_119 = arith.constant 0 : index
    %c0_120 = arith.constant 0 : index
    %c0_121 = arith.constant 0 : index
    %c0_122 = arith.constant 0 : index
    %534 = vector.load %arg10[%c0_119, %c0_120, %c0_121, %c0_122] : memref<2x3x32x32xf32, #tpu.memory_space<vmem>>, vector<2x3x32x32xf32>
    %c0_123 = arith.constant 0 : index
    %c0_124 = arith.constant 0 : index
    %c0_125 = arith.constant 0 : index
    %c0_126 = arith.constant 0 : index
    %535 = vector.load %arg11[%c0_123, %c0_124, %c0_125, %c0_126] : memref<2x3x1x32xf32, #tpu.memory_space<vmem>>, vector<2x3x1x32xf32>
    %c0_127 = arith.constant 0 : index
    %c0_128 = arith.constant 0 : index
    %c0_129 = arith.constant 0 : index
    %c0_130 = arith.constant 0 : index
    %536 = vector.load %arg12[%c0_127, %c0_128, %c0_129, %c0_130] : memref<2x3x1x32xf32, #tpu.memory_space<vmem>>, vector<2x3x1x32xf32>
    %537 = vector.extract_strided_slice %534 {offsets = [0, 0, 0, 0], sizes = [2, 1, 32, 32], strides = [1, 1, 1, 1]} : vector<2x3x32x32xf32> to vector<2x1x32x32xf32>
    %538 = vector.shape_cast %537 : vector<2x1x32x32xf32> to vector<2x32x32xf32>
    %539 = vector.extract_strided_slice %534 {offsets = [0, 1, 0, 0], sizes = [2, 1, 32, 32], strides = [1, 1, 1, 1]} : vector<2x3x32x32xf32> to vector<2x1x32x32xf32>
    %540 = vector.shape_cast %539 : vector<2x1x32x32xf32> to vector<2x32x32xf32>
    %541 = vector.extract_strided_slice %534 {offsets = [0, 2, 0, 0], sizes = [2, 1, 32, 32], strides = [1, 1, 1, 1]} : vector<2x3x32x32xf32> to vector<2x1x32x32xf32>
    %542 = vector.shape_cast %541 : vector<2x1x32x32xf32> to vector<2x32x32xf32>
    %543 = vector.extract_strided_slice %536 {offsets = [0, 0, 0, 0], sizes = [2, 1, 1, 32], strides = [1, 1, 1, 1]} : vector<2x3x1x32xf32> to vector<2x1x1x32xf32>
    %544 = vector.shape_cast %543 : vector<2x1x1x32xf32> to vector<2x1x32xf32>
    %545 = vector.extract_strided_slice %536 {offsets = [0, 1, 0, 0], sizes = [2, 1, 1, 32], strides = [1, 1, 1, 1]} : vector<2x3x1x32xf32> to vector<2x1x1x32xf32>
    %546 = vector.shape_cast %545 : vector<2x1x1x32xf32> to vector<2x1x32xf32>
    %547 = vector.extract_strided_slice %536 {offsets = [0, 2, 0, 0], sizes = [2, 1, 1, 32], strides = [1, 1, 1, 1]} : vector<2x3x1x32xf32> to vector<2x1x1x32xf32>
    %548 = vector.shape_cast %547 : vector<2x1x1x32xf32> to vector<2x1x32xf32>
    %549 = vector.extract_strided_slice %533 {offsets = [0, 0, 0, 0], sizes = [1, 1, 64, 32], strides = [1, 1, 1, 1]} : vector<2x3x64x32xf32> to vector<1x1x64x32xf32>
    %550 = vector.shape_cast %549 : vector<1x1x64x32xf32> to vector<64x32xf32>
    %cst_131 = arith.constant dense<0.000000e+00> : vector<16x32xf32>
    %551 = tpu.matmul %532, %550, %cst_131 {dimension_numbers = #tpu.dot_dimension_numbers<[1], [0], [0], [1], [0, 0, 1, 1], [], []>} : vector<16x64xf32>, vector<64x32xf32>, vector<16x32xf32> -> vector<16x32xf32>
    %552 = vector.extract_strided_slice %535 {offsets = [0, 0, 0, 0], sizes = [1, 1, 1, 32], strides = [1, 1, 1, 1]} : vector<2x3x1x32xf32> to vector<1x1x1x32xf32>
    %553 = vector.shape_cast %552 : vector<1x1x1x32xf32> to vector<1x32xf32>
    %554 = vector.broadcast %553 : vector<1x32xf32> to vector<16x32xf32>
    %555 = arith.addf %551, %554 : vector<16x32xf32>
    %556 = vector.extract_strided_slice %533 {offsets = [0, 1, 0, 0], sizes = [1, 1, 64, 32], strides = [1, 1, 1, 1]} : vector<2x3x64x32xf32> to vector<1x1x64x32xf32>
    %557 = vector.shape_cast %556 : vector<1x1x64x32xf32> to vector<64x32xf32>
    %cst_132 = arith.constant dense<0.000000e+00> : vector<16x32xf32>
    %558 = tpu.matmul %532, %557, %cst_132 {dimension_numbers = #tpu.dot_dimension_numbers<[1], [0], [0], [1], [0, 0, 1, 1], [], []>} : vector<16x64xf32>, vector<64x32xf32>, vector<16x32xf32> -> vector<16x32xf32>
    %559 = vector.extract_strided_slice %535 {offsets = [0, 1, 0, 0], sizes = [1, 1, 1, 32], strides = [1, 1, 1, 1]} : vector<2x3x1x32xf32> to vector<1x1x1x32xf32>
    %560 = vector.shape_cast %559 : vector<1x1x1x32xf32> to vector<1x32xf32>
    %561 = vector.broadcast %560 : vector<1x32xf32> to vector<16x32xf32>
    %562 = arith.addf %558, %561 : vector<16x32xf32>
    %563 = vector.extract_strided_slice %533 {offsets = [0, 2, 0, 0], sizes = [1, 1, 64, 32], strides = [1, 1, 1, 1]} : vector<2x3x64x32xf32> to vector<1x1x64x32xf32>
    %564 = vector.shape_cast %563 : vector<1x1x64x32xf32> to vector<64x32xf32>
    %cst_133 = arith.constant dense<0.000000e+00> : vector<16x32xf32>
    %565 = tpu.matmul %532, %564, %cst_133 {dimension_numbers = #tpu.dot_dimension_numbers<[1], [0], [0], [1], [0, 0, 1, 1], [], []>} : vector<16x64xf32>, vector<64x32xf32>, vector<16x32xf32> -> vector<16x32xf32>
    %566 = vector.extract_strided_slice %535 {offsets = [0, 2, 0, 0], sizes = [1, 1, 1, 32], strides = [1, 1, 1, 1]} : vector<2x3x1x32xf32> to vector<1x1x1x32xf32>
    %567 = vector.shape_cast %566 : vector<1x1x1x32xf32> to vector<1x32xf32>
    %568 = vector.broadcast %567 : vector<1x32xf32> to vector<16x32xf32>
    %569 = arith.addf %565, %568 : vector<16x32xf32>
    %570 = vector.extract_strided_slice %533 {offsets = [1, 0, 0, 0], sizes = [1, 1, 64, 32], strides = [1, 1, 1, 1]} : vector<2x3x64x32xf32> to vector<1x1x64x32xf32>
    %571 = vector.shape_cast %570 : vector<1x1x64x32xf32> to vector<64x32xf32>
    %cst_134 = arith.constant dense<0.000000e+00> : vector<16x32xf32>
    %572 = tpu.matmul %532, %571, %cst_134 {dimension_numbers = #tpu.dot_dimension_numbers<[1], [0], [0], [1], [0, 0, 1, 1], [], []>} : vector<16x64xf32>, vector<64x32xf32>, vector<16x32xf32> -> vector<16x32xf32>
    %573 = vector.extract_strided_slice %535 {offsets = [1, 0, 0, 0], sizes = [1, 1, 1, 32], strides = [1, 1, 1, 1]} : vector<2x3x1x32xf32> to vector<1x1x1x32xf32>
    %574 = vector.shape_cast %573 : vector<1x1x1x32xf32> to vector<1x32xf32>
    %575 = vector.broadcast %574 : vector<1x32xf32> to vector<16x32xf32>
    %576 = arith.addf %572, %575 : vector<16x32xf32>
    %577 = vector.extract_strided_slice %533 {offsets = [1, 1, 0, 0], sizes = [1, 1, 64, 32], strides = [1, 1, 1, 1]} : vector<2x3x64x32xf32> to vector<1x1x64x32xf32>
    %578 = vector.shape_cast %577 : vector<1x1x64x32xf32> to vector<64x32xf32>
    %cst_135 = arith.constant dense<0.000000e+00> : vector<16x32xf32>
    %579 = tpu.matmul %532, %578, %cst_135 {dimension_numbers = #tpu.dot_dimension_numbers<[1], [0], [0], [1], [0, 0, 1, 1], [], []>} : vector<16x64xf32>, vector<64x32xf32>, vector<16x32xf32> -> vector<16x32xf32>
    %580 = vector.extract_strided_slice %535 {offsets = [1, 1, 0, 0], sizes = [1, 1, 1, 32], strides = [1, 1, 1, 1]} : vector<2x3x1x32xf32> to vector<1x1x1x32xf32>
    %581 = vector.shape_cast %580 : vector<1x1x1x32xf32> to vector<1x32xf32>
    %582 = vector.broadcast %581 : vector<1x32xf32> to vector<16x32xf32>
    %583 = arith.addf %579, %582 : vector<16x32xf32>
    %584 = vector.extract_strided_slice %533 {offsets = [1, 2, 0, 0], sizes = [1, 1, 64, 32], strides = [1, 1, 1, 1]} : vector<2x3x64x32xf32> to vector<1x1x64x32xf32>
    %585 = vector.shape_cast %584 : vector<1x1x64x32xf32> to vector<64x32xf32>
    %cst_136 = arith.constant dense<0.000000e+00> : vector<16x32xf32>
    %586 = tpu.matmul %532, %585, %cst_136 {dimension_numbers = #tpu.dot_dimension_numbers<[1], [0], [0], [1], [0, 0, 1, 1], [], []>} : vector<16x64xf32>, vector<64x32xf32>, vector<16x32xf32> -> vector<16x32xf32>
    %587 = vector.extract_strided_slice %535 {offsets = [1, 2, 0, 0], sizes = [1, 1, 1, 32], strides = [1, 1, 1, 1]} : vector<2x3x1x32xf32> to vector<1x1x1x32xf32>
    %588 = vector.shape_cast %587 : vector<1x1x1x32xf32> to vector<1x32xf32>
    %589 = vector.broadcast %588 : vector<1x32xf32> to vector<16x32xf32>
    %590 = arith.addf %586, %589 : vector<16x32xf32>
    %cst_137 = arith.constant 0.000000e+00 : f32
    %591 = vector.broadcast %cst_137 : f32 to vector<2x2x32xf32>
    "tpu.trace_start"() <{level = 10 : i32, message = "dbh,dhk->dbk"}> : () -> ()
    %cst_138 = arith.constant dense<0.000000e+00> : vector<2x2x32xf32>
    %592 = tpu.matmul %591, %538, %cst_138 {dimension_numbers = #tpu.dot_dimension_numbers<[2], [1], [1], [2], [0, 0, 0, 1, 1, 2], [0], [0]>} : vector<2x2x32xf32>, vector<2x32x32xf32>, vector<2x2x32xf32> -> vector<2x2x32xf32>
    "tpu.trace_stop"() : () -> ()
    %593 = vector.broadcast %544 : vector<2x1x32xf32> to vector<2x2x32xf32>
    %594 = arith.addf %592, %593 : vector<2x2x32xf32>
    "tpu.trace_start"() <{level = 10 : i32, message = "dbh,dhk->dbk"}> : () -> ()
    %cst_139 = arith.constant dense<0.000000e+00> : vector<2x2x32xf32>
    %595 = tpu.matmul %591, %540, %cst_139 {dimension_numbers = #tpu.dot_dimension_numbers<[2], [1], [1], [2], [0, 0, 0, 1, 1, 2], [0], [0]>} : vector<2x2x32xf32>, vector<2x32x32xf32>, vector<2x2x32xf32> -> vector<2x2x32xf32>
    "tpu.trace_stop"() : () -> ()
    %596 = vector.broadcast %546 : vector<2x1x32xf32> to vector<2x2x32xf32>
    %597 = arith.addf %595, %596 : vector<2x2x32xf32>
    "tpu.trace_start"() <{level = 10 : i32, message = "dbh,dhk->dbk"}> : () -> ()
    %cst_140 = arith.constant dense<0.000000e+00> : vector<2x2x32xf32>
    %598 = tpu.matmul %591, %542, %cst_140 {dimension_numbers = #tpu.dot_dimension_numbers<[2], [1], [1], [2], [0, 0, 0, 1, 1, 2], [0], [0]>} : vector<2x2x32xf32>, vector<2x32x32xf32>, vector<2x2x32xf32> -> vector<2x2x32xf32>
    "tpu.trace_stop"() : () -> ()
    %599 = vector.broadcast %548 : vector<2x1x32xf32> to vector<2x2x32xf32>
    %600 = arith.addf %598, %599 : vector<2x2x32xf32>
    %601 = vector.extract_strided_slice %555 {offsets = [0, 0], sizes = [2, 32], strides = [1, 1]} : vector<16x32xf32> to vector<2x32xf32>
    %602 = vector.extract_strided_slice %576 {offsets = [14, 0], sizes = [2, 32], strides = [1, 1]} : vector<16x32xf32> to vector<2x32xf32>
    %603 = vector.shape_cast %601 : vector<2x32xf32> to vector<1x2x32xf32>
    %604 = vector.shape_cast %602 : vector<2x32xf32> to vector<1x2x32xf32>
    %605 = tpu.concatenate %603, %604 in 0 : vector<1x2x32xf32>, vector<1x2x32xf32> -> vector<2x2x32xf32>
    %606 = arith.addf %605, %594 : vector<2x2x32xf32>
    %cst_141 = arith.constant 5.000000e-01 : f32
    %607 = vector.broadcast %cst_141 : f32 to vector<2x2x32xf32>
    %608 = arith.mulf %607, %606 : vector<2x2x32xf32>
    %609 = math.tanh %608 : vector<2x2x32xf32>
    %cst_142 = arith.constant 5.000000e-01 : f32
    %610 = vector.broadcast %cst_142 : f32 to vector<2x2x32xf32>
    %611 = arith.mulf %610, %609 : vector<2x2x32xf32>
    %cst_143 = arith.constant 5.000000e-01 : f32
    %612 = vector.broadcast %cst_143 : f32 to vector<2x2x32xf32>
    %613 = arith.addf %611, %612 : vector<2x2x32xf32>
    %614 = vector.extract_strided_slice %562 {offsets = [0, 0], sizes = [2, 32], strides = [1, 1]} : vector<16x32xf32> to vector<2x32xf32>
    %615 = vector.extract_strided_slice %583 {offsets = [14, 0], sizes = [2, 32], strides = [1, 1]} : vector<16x32xf32> to vector<2x32xf32>
    %616 = vector.shape_cast %614 : vector<2x32xf32> to vector<1x2x32xf32>
    %617 = vector.shape_cast %615 : vector<2x32xf32> to vector<1x2x32xf32>
    %618 = tpu.concatenate %616, %617 in 0 : vector<1x2x32xf32>, vector<1x2x32xf32> -> vector<2x2x32xf32>
    %619 = arith.addf %618, %597 : vector<2x2x32xf32>
    %cst_144 = arith.constant 5.000000e-01 : f32
    %620 = vector.broadcast %cst_144 : f32 to vector<2x2x32xf32>
    %621 = arith.mulf %620, %619 : vector<2x2x32xf32>
    %622 = math.tanh %621 : vector<2x2x32xf32>
    %cst_145 = arith.constant 5.000000e-01 : f32
    %623 = vector.broadcast %cst_145 : f32 to vector<2x2x32xf32>
    %624 = arith.mulf %623, %622 : vector<2x2x32xf32>
    %cst_146 = arith.constant 5.000000e-01 : f32
    %625 = vector.broadcast %cst_146 : f32 to vector<2x2x32xf32>
    %626 = arith.addf %624, %625 : vector<2x2x32xf32>
    %627 = vector.extract_strided_slice %569 {offsets = [0, 0], sizes = [2, 32], strides = [1, 1]} : vector<16x32xf32> to vector<2x32xf32>
    %628 = vector.extract_strided_slice %590 {offsets = [14, 0], sizes = [2, 32], strides = [1, 1]} : vector<16x32xf32> to vector<2x32xf32>
    %629 = vector.shape_cast %627 : vector<2x32xf32> to vector<1x2x32xf32>
    %630 = vector.shape_cast %628 : vector<2x32xf32> to vector<1x2x32xf32>
    %631 = tpu.concatenate %629, %630 in 0 : vector<1x2x32xf32>, vector<1x2x32xf32> -> vector<2x2x32xf32>
    %632 = arith.mulf %613, %600 : vector<2x2x32xf32>
    %633 = arith.addf %631, %632 : vector<2x2x32xf32>
    %634 = math.tanh %633 : vector<2x2x32xf32>
    %cst_147 = arith.constant 1.000000e+00 : f32
    %635 = vector.broadcast %cst_147 : f32 to vector<2x2x32xf32>
    %636 = arith.subf %635, %626 : vector<2x2x32xf32>
    %637 = arith.mulf %636, %634 : vector<2x2x32xf32>
    %638 = arith.mulf %626, %591 : vector<2x2x32xf32>
    %639 = arith.addf %637, %638 : vector<2x2x32xf32>
    "tpu.trace_start"() <{level = 10 : i32, message = "dbh,dhk->dbk"}> : () -> ()
    %cst_148 = arith.constant dense<0.000000e+00> : vector<2x2x32xf32>
    %640 = tpu.matmul %639, %538, %cst_148 {dimension_numbers = #tpu.dot_dimension_numbers<[2], [1], [1], [2], [0, 0, 0, 1, 1, 2], [0], [0]>} : vector<2x2x32xf32>, vector<2x32x32xf32>, vector<2x2x32xf32> -> vector<2x2x32xf32>
    "tpu.trace_stop"() : () -> ()
    %641 = vector.broadcast %544 : vector<2x1x32xf32> to vector<2x2x32xf32>
    %642 = arith.addf %640, %641 : vector<2x2x32xf32>
    "tpu.trace_start"() <{level = 10 : i32, message = "dbh,dhk->dbk"}> : () -> ()
    %cst_149 = arith.constant dense<0.000000e+00> : vector<2x2x32xf32>
    %643 = tpu.matmul %639, %540, %cst_149 {dimension_numbers = #tpu.dot_dimension_numbers<[2], [1], [1], [2], [0, 0, 0, 1, 1, 2], [0], [0]>} : vector<2x2x32xf32>, vector<2x32x32xf32>, vector<2x2x32xf32> -> vector<2x2x32xf32>
    "tpu.trace_stop"() : () -> ()
    %644 = vector.broadcast %546 : vector<2x1x32xf32> to vector<2x2x32xf32>
    %645 = arith.addf %643, %644 : vector<2x2x32xf32>
    "tpu.trace_start"() <{level = 10 : i32, message = "dbh,dhk->dbk"}> : () -> ()
    %cst_150 = arith.constant dense<0.000000e+00> : vector<2x2x32xf32>
    %646 = tpu.matmul %639, %542, %cst_150 {dimension_numbers = #tpu.dot_dimension_numbers<[2], [1], [1], [2], [0, 0, 0, 1, 1, 2], [0], [0]>} : vector<2x2x32xf32>, vector<2x32x32xf32>, vector<2x2x32xf32> -> vector<2x2x32xf32>
    "tpu.trace_stop"() : () -> ()
    %647 = vector.broadcast %548 : vector<2x1x32xf32> to vector<2x2x32xf32>
    %648 = arith.addf %646, %647 : vector<2x2x32xf32>
    %649 = vector.extract_strided_slice %555 {offsets = [2, 0], sizes = [2, 32], strides = [1, 1]} : vector<16x32xf32> to vector<2x32xf32>
    %650 = vector.extract_strided_slice %576 {offsets = [12, 0], sizes = [2, 32], strides = [1, 1]} : vector<16x32xf32> to vector<2x32xf32>
    %651 = vector.shape_cast %649 : vector<2x32xf32> to vector<1x2x32xf32>
    %652 = vector.shape_cast %650 : vector<2x32xf32> to vector<1x2x32xf32>
    %653 = tpu.concatenate %651, %652 in 0 : vector<1x2x32xf32>, vector<1x2x32xf32> -> vector<2x2x32xf32>
    %654 = arith.addf %653, %642 : vector<2x2x32xf32>
    %cst_151 = arith.constant 5.000000e-01 : f32
    %655 = vector.broadcast %cst_151 : f32 to vector<2x2x32xf32>
    %656 = arith.mulf %655, %654 : vector<2x2x32xf32>
    %657 = math.tanh %656 : vector<2x2x32xf32>
    %cst_152 = arith.constant 5.000000e-01 : f32
    %658 = vector.broadcast %cst_152 : f32 to vector<2x2x32xf32>
    %659 = arith.mulf %658, %657 : vector<2x2x32xf32>
    %cst_153 = arith.constant 5.000000e-01 : f32
    %660 = vector.broadcast %cst_153 : f32 to vector<2x2x32xf32>
    %661 = arith.addf %659, %660 : vector<2x2x32xf32>
    %662 = vector.extract_strided_slice %562 {offsets = [2, 0], sizes = [2, 32], strides = [1, 1]} : vector<16x32xf32> to vector<2x32xf32>
    %663 = vector.extract_strided_slice %583 {offsets = [12, 0], sizes = [2, 32], strides = [1, 1]} : vector<16x32xf32> to vector<2x32xf32>
    %664 = vector.shape_cast %662 : vector<2x32xf32> to vector<1x2x32xf32>
    %665 = vector.shape_cast %663 : vector<2x32xf32> to vector<1x2x32xf32>
    %666 = tpu.concatenate %664, %665 in 0 : vector<1x2x32xf32>, vector<1x2x32xf32> -> vector<2x2x32xf32>
    %667 = arith.addf %666, %645 : vector<2x2x32xf32>
    %cst_154 = arith.constant 5.000000e-01 : f32
    %668 = vector.broadcast %cst_154 : f32 to vector<2x2x32xf32>
    %669 = arith.mulf %668, %667 : vector<2x2x32xf32>
    %670 = math.tanh %669 : vector<2x2x32xf32>
    %cst_155 = arith.constant 5.000000e-01 : f32
    %671 = vector.broadcast %cst_155 : f32 to vector<2x2x32xf32>
    %672 = arith.mulf %671, %670 : vector<2x2x32xf32>
    %cst_156 = arith.constant 5.000000e-01 : f32
    %673 = vector.broadcast %cst_156 : f32 to vector<2x2x32xf32>
    %674 = arith.addf %672, %673 : vector<2x2x32xf32>
    %675 = vector.extract_strided_slice %569 {offsets = [2, 0], sizes = [2, 32], strides = [1, 1]} : vector<16x32xf32> to vector<2x32xf32>
    %676 = vector.extract_strided_slice %590 {offsets = [12, 0], sizes = [2, 32], strides = [1, 1]} : vector<16x32xf32> to vector<2x32xf32>
    %677 = vector.shape_cast %675 : vector<2x32xf32> to vector<1x2x32xf32>
    %678 = vector.shape_cast %676 : vector<2x32xf32> to vector<1x2x32xf32>
    %679 = tpu.concatenate %677, %678 in 0 : vector<1x2x32xf32>, vector<1x2x32xf32> -> vector<2x2x32xf32>
    %680 = arith.mulf %661, %648 : vector<2x2x32xf32>
    %681 = arith.addf %679, %680 : vector<2x2x32xf32>
    %682 = math.tanh %681 : vector<2x2x32xf32>
    %cst_157 = arith.constant 1.000000e+00 : f32
    %683 = vector.broadcast %cst_157 : f32 to vector<2x2x32xf32>
    %684 = arith.subf %683, %674 : vector<2x2x32xf32>
    %685 = arith.mulf %684, %682 : vector<2x2x32xf32>
    %686 = arith.mulf %674, %639 : vector<2x2x32xf32>
    %687 = arith.addf %685, %686 : vector<2x2x32xf32>
    "tpu.trace_start"() <{level = 10 : i32, message = "dbh,dhk->dbk"}> : () -> ()
    %cst_158 = arith.constant dense<0.000000e+00> : vector<2x2x32xf32>
    %688 = tpu.matmul %687, %538, %cst_158 {dimension_numbers = #tpu.dot_dimension_numbers<[2], [1], [1], [2], [0, 0, 0, 1, 1, 2], [0], [0]>} : vector<2x2x32xf32>, vector<2x32x32xf32>, vector<2x2x32xf32> -> vector<2x2x32xf32>
    "tpu.trace_stop"() : () -> ()
    %689 = vector.broadcast %544 : vector<2x1x32xf32> to vector<2x2x32xf32>
    %690 = arith.addf %688, %689 : vector<2x2x32xf32>
    "tpu.trace_start"() <{level = 10 : i32, message = "dbh,dhk->dbk"}> : () -> ()
    %cst_159 = arith.constant dense<0.000000e+00> : vector<2x2x32xf32>
    %691 = tpu.matmul %687, %540, %cst_159 {dimension_numbers = #tpu.dot_dimension_numbers<[2], [1], [1], [2], [0, 0, 0, 1, 1, 2], [0], [0]>} : vector<2x2x32xf32>, vector<2x32x32xf32>, vector<2x2x32xf32> -> vector<2x2x32xf32>
    "tpu.trace_stop"() : () -> ()
    %692 = vector.broadcast %546 : vector<2x1x32xf32> to vector<2x2x32xf32>
    %693 = arith.addf %691, %692 : vector<2x2x32xf32>
    "tpu.trace_start"() <{level = 10 : i32, message = "dbh,dhk->dbk"}> : () -> ()
    %cst_160 = arith.constant dense<0.000000e+00> : vector<2x2x32xf32>
    %694 = tpu.matmul %687, %542, %cst_160 {dimension_numbers = #tpu.dot_dimension_numbers<[2], [1], [1], [2], [0, 0, 0, 1, 1, 2], [0], [0]>} : vector<2x2x32xf32>, vector<2x32x32xf32>, vector<2x2x32xf32> -> vector<2x2x32xf32>
    "tpu.trace_stop"() : () -> ()
    %695 = vector.broadcast %548 : vector<2x1x32xf32> to vector<2x2x32xf32>
    %696 = arith.addf %694, %695 : vector<2x2x32xf32>
    %697 = vector.extract_strided_slice %555 {offsets = [4, 0], sizes = [2, 32], strides = [1, 1]} : vector<16x32xf32> to vector<2x32xf32>
    %698 = vector.extract_strided_slice %576 {offsets = [10, 0], sizes = [2, 32], strides = [1, 1]} : vector<16x32xf32> to vector<2x32xf32>
    %699 = vector.shape_cast %697 : vector<2x32xf32> to vector<1x2x32xf32>
    %700 = vector.shape_cast %698 : vector<2x32xf32> to vector<1x2x32xf32>
    %701 = tpu.concatenate %699, %700 in 0 : vector<1x2x32xf32>, vector<1x2x32xf32> -> vector<2x2x32xf32>
    %702 = arith.addf %701, %690 : vector<2x2x32xf32>
    %cst_161 = arith.constant 5.000000e-01 : f32
    %703 = vector.broadcast %cst_161 : f32 to vector<2x2x32xf32>
    %704 = arith.mulf %703, %702 : vector<2x2x32xf32>
    %705 = math.tanh %704 : vector<2x2x32xf32>
    %cst_162 = arith.constant 5.000000e-01 : f32
    %706 = vector.broadcast %cst_162 : f32 to vector<2x2x32xf32>
    %707 = arith.mulf %706, %705 : vector<2x2x32xf32>
    %cst_163 = arith.constant 5.000000e-01 : f32
    %708 = vector.broadcast %cst_163 : f32 to vector<2x2x32xf32>
    %709 = arith.addf %707, %708 : vector<2x2x32xf32>
    %710 = vector.extract_strided_slice %562 {offsets = [4, 0], sizes = [2, 32], strides = [1, 1]} : vector<16x32xf32> to vector<2x32xf32>
    %711 = vector.extract_strided_slice %583 {offsets = [10, 0], sizes = [2, 32], strides = [1, 1]} : vector<16x32xf32> to vector<2x32xf32>
    %712 = vector.shape_cast %710 : vector<2x32xf32> to vector<1x2x32xf32>
    %713 = vector.shape_cast %711 : vector<2x32xf32> to vector<1x2x32xf32>
    %714 = tpu.concatenate %712, %713 in 0 : vector<1x2x32xf32>, vector<1x2x32xf32> -> vector<2x2x32xf32>
    %715 = arith.addf %714, %693 : vector<2x2x32xf32>
    %cst_164 = arith.constant 5.000000e-01 : f32
    %716 = vector.broadcast %cst_164 : f32 to vector<2x2x32xf32>
    %717 = arith.mulf %716, %715 : vector<2x2x32xf32>
    %718 = math.tanh %717 : vector<2x2x32xf32>
    %cst_165 = arith.constant 5.000000e-01 : f32
    %719 = vector.broadcast %cst_165 : f32 to vector<2x2x32xf32>
    %720 = arith.mulf %719, %718 : vector<2x2x32xf32>
    %cst_166 = arith.constant 5.000000e-01 : f32
    %721 = vector.broadcast %cst_166 : f32 to vector<2x2x32xf32>
    %722 = arith.addf %720, %721 : vector<2x2x32xf32>
    %723 = vector.extract_strided_slice %569 {offsets = [4, 0], sizes = [2, 32], strides = [1, 1]} : vector<16x32xf32> to vector<2x32xf32>
    %724 = vector.extract_strided_slice %590 {offsets = [10, 0], sizes = [2, 32], strides = [1, 1]} : vector<16x32xf32> to vector<2x32xf32>
    %725 = vector.shape_cast %723 : vector<2x32xf32> to vector<1x2x32xf32>
    %726 = vector.shape_cast %724 : vector<2x32xf32> to vector<1x2x32xf32>
    %727 = tpu.concatenate %725, %726 in 0 : vector<1x2x32xf32>, vector<1x2x32xf32> -> vector<2x2x32xf32>
    %728 = arith.mulf %709, %696 : vector<2x2x32xf32>
    %729 = arith.addf %727, %728 : vector<2x2x32xf32>
    %730 = math.tanh %729 : vector<2x2x32xf32>
    %cst_167 = arith.constant 1.000000e+00 : f32
    %731 = vector.broadcast %cst_167 : f32 to vector<2x2x32xf32>
    %732 = arith.subf %731, %722 : vector<2x2x32xf32>
    %733 = arith.mulf %732, %730 : vector<2x2x32xf32>
    %734 = arith.mulf %722, %687 : vector<2x2x32xf32>
    %735 = arith.addf %733, %734 : vector<2x2x32xf32>
    "tpu.trace_start"() <{level = 10 : i32, message = "dbh,dhk->dbk"}> : () -> ()
    %cst_168 = arith.constant dense<0.000000e+00> : vector<2x2x32xf32>
    %736 = tpu.matmul %735, %538, %cst_168 {dimension_numbers = #tpu.dot_dimension_numbers<[2], [1], [1], [2], [0, 0, 0, 1, 1, 2], [0], [0]>} : vector<2x2x32xf32>, vector<2x32x32xf32>, vector<2x2x32xf32> -> vector<2x2x32xf32>
    "tpu.trace_stop"() : () -> ()
    %737 = vector.broadcast %544 : vector<2x1x32xf32> to vector<2x2x32xf32>
    %738 = arith.addf %736, %737 : vector<2x2x32xf32>
    "tpu.trace_start"() <{level = 10 : i32, message = "dbh,dhk->dbk"}> : () -> ()
    %cst_169 = arith.constant dense<0.000000e+00> : vector<2x2x32xf32>
    %739 = tpu.matmul %735, %540, %cst_169 {dimension_numbers = #tpu.dot_dimension_numbers<[2], [1], [1], [2], [0, 0, 0, 1, 1, 2], [0], [0]>} : vector<2x2x32xf32>, vector<2x32x32xf32>, vector<2x2x32xf32> -> vector<2x2x32xf32>
    "tpu.trace_stop"() : () -> ()
    %740 = vector.broadcast %546 : vector<2x1x32xf32> to vector<2x2x32xf32>
    %741 = arith.addf %739, %740 : vector<2x2x32xf32>
    "tpu.trace_start"() <{level = 10 : i32, message = "dbh,dhk->dbk"}> : () -> ()
    %cst_170 = arith.constant dense<0.000000e+00> : vector<2x2x32xf32>
    %742 = tpu.matmul %735, %542, %cst_170 {dimension_numbers = #tpu.dot_dimension_numbers<[2], [1], [1], [2], [0, 0, 0, 1, 1, 2], [0], [0]>} : vector<2x2x32xf32>, vector<2x32x32xf32>, vector<2x2x32xf32> -> vector<2x2x32xf32>
    "tpu.trace_stop"() : () -> ()
    %743 = vector.broadcast %548 : vector<2x1x32xf32> to vector<2x2x32xf32>
    %744 = arith.addf %742, %743 : vector<2x2x32xf32>
    %745 = vector.extract_strided_slice %555 {offsets = [6, 0], sizes = [2, 32], strides = [1, 1]} : vector<16x32xf32> to vector<2x32xf32>
    %746 = vector.extract_strided_slice %576 {offsets = [8, 0], sizes = [2, 32], strides = [1, 1]} : vector<16x32xf32> to vector<2x32xf32>
    %747 = vector.shape_cast %745 : vector<2x32xf32> to vector<1x2x32xf32>
    %748 = vector.shape_cast %746 : vector<2x32xf32> to vector<1x2x32xf32>
    %749 = tpu.concatenate %747, %748 in 0 : vector<1x2x32xf32>, vector<1x2x32xf32> -> vector<2x2x32xf32>
    %750 = arith.addf %749, %738 : vector<2x2x32xf32>
    %cst_171 = arith.constant 5.000000e-01 : f32
    %751 = vector.broadcast %cst_171 : f32 to vector<2x2x32xf32>
    %752 = arith.mulf %751, %750 : vector<2x2x32xf32>
    %753 = math.tanh %752 : vector<2x2x32xf32>
    %cst_172 = arith.constant 5.000000e-01 : f32
    %754 = vector.broadcast %cst_172 : f32 to vector<2x2x32xf32>
    %755 = arith.mulf %754, %753 : vector<2x2x32xf32>
    %cst_173 = arith.constant 5.000000e-01 : f32
    %756 = vector.broadcast %cst_173 : f32 to vector<2x2x32xf32>
    %757 = arith.addf %755, %756 : vector<2x2x32xf32>
    %758 = vector.extract_strided_slice %562 {offsets = [6, 0], sizes = [2, 32], strides = [1, 1]} : vector<16x32xf32> to vector<2x32xf32>
    %759 = vector.extract_strided_slice %583 {offsets = [8, 0], sizes = [2, 32], strides = [1, 1]} : vector<16x32xf32> to vector<2x32xf32>
    %760 = vector.shape_cast %758 : vector<2x32xf32> to vector<1x2x32xf32>
    %761 = vector.shape_cast %759 : vector<2x32xf32> to vector<1x2x32xf32>
    %762 = tpu.concatenate %760, %761 in 0 : vector<1x2x32xf32>, vector<1x2x32xf32> -> vector<2x2x32xf32>
    %763 = arith.addf %762, %741 : vector<2x2x32xf32>
    %cst_174 = arith.constant 5.000000e-01 : f32
    %764 = vector.broadcast %cst_174 : f32 to vector<2x2x32xf32>
    %765 = arith.mulf %764, %763 : vector<2x2x32xf32>
    %766 = math.tanh %765 : vector<2x2x32xf32>
    %cst_175 = arith.constant 5.000000e-01 : f32
    %767 = vector.broadcast %cst_175 : f32 to vector<2x2x32xf32>
    %768 = arith.mulf %767, %766 : vector<2x2x32xf32>
    %cst_176 = arith.constant 5.000000e-01 : f32
    %769 = vector.broadcast %cst_176 : f32 to vector<2x2x32xf32>
    %770 = arith.addf %768, %769 : vector<2x2x32xf32>
    %771 = vector.extract_strided_slice %569 {offsets = [6, 0], sizes = [2, 32], strides = [1, 1]} : vector<16x32xf32> to vector<2x32xf32>
    %772 = vector.extract_strided_slice %590 {offsets = [8, 0], sizes = [2, 32], strides = [1, 1]} : vector<16x32xf32> to vector<2x32xf32>
    %773 = vector.shape_cast %771 : vector<2x32xf32> to vector<1x2x32xf32>
    %774 = vector.shape_cast %772 : vector<2x32xf32> to vector<1x2x32xf32>
    %775 = tpu.concatenate %773, %774 in 0 : vector<1x2x32xf32>, vector<1x2x32xf32> -> vector<2x2x32xf32>
    %776 = arith.mulf %757, %744 : vector<2x2x32xf32>
    %777 = arith.addf %775, %776 : vector<2x2x32xf32>
    %778 = math.tanh %777 : vector<2x2x32xf32>
    %cst_177 = arith.constant 1.000000e+00 : f32
    %779 = vector.broadcast %cst_177 : f32 to vector<2x2x32xf32>
    %780 = arith.subf %779, %770 : vector<2x2x32xf32>
    %781 = arith.mulf %780, %778 : vector<2x2x32xf32>
    %782 = arith.mulf %770, %735 : vector<2x2x32xf32>
    %783 = arith.addf %781, %782 : vector<2x2x32xf32>
    "tpu.trace_start"() <{level = 10 : i32, message = "dbh,dhk->dbk"}> : () -> ()
    %cst_178 = arith.constant dense<0.000000e+00> : vector<2x2x32xf32>
    %784 = tpu.matmul %783, %538, %cst_178 {dimension_numbers = #tpu.dot_dimension_numbers<[2], [1], [1], [2], [0, 0, 0, 1, 1, 2], [0], [0]>} : vector<2x2x32xf32>, vector<2x32x32xf32>, vector<2x2x32xf32> -> vector<2x2x32xf32>
    "tpu.trace_stop"() : () -> ()
    %785 = vector.broadcast %544 : vector<2x1x32xf32> to vector<2x2x32xf32>
    %786 = arith.addf %784, %785 : vector<2x2x32xf32>
    "tpu.trace_start"() <{level = 10 : i32, message = "dbh,dhk->dbk"}> : () -> ()
    %cst_179 = arith.constant dense<0.000000e+00> : vector<2x2x32xf32>
    %787 = tpu.matmul %783, %540, %cst_179 {dimension_numbers = #tpu.dot_dimension_numbers<[2], [1], [1], [2], [0, 0, 0, 1, 1, 2], [0], [0]>} : vector<2x2x32xf32>, vector<2x32x32xf32>, vector<2x2x32xf32> -> vector<2x2x32xf32>
    "tpu.trace_stop"() : () -> ()
    %788 = vector.broadcast %546 : vector<2x1x32xf32> to vector<2x2x32xf32>
    %789 = arith.addf %787, %788 : vector<2x2x32xf32>
    "tpu.trace_start"() <{level = 10 : i32, message = "dbh,dhk->dbk"}> : () -> ()
    %cst_180 = arith.constant dense<0.000000e+00> : vector<2x2x32xf32>
    %790 = tpu.matmul %783, %542, %cst_180 {dimension_numbers = #tpu.dot_dimension_numbers<[2], [1], [1], [2], [0, 0, 0, 1, 1, 2], [0], [0]>} : vector<2x2x32xf32>, vector<2x32x32xf32>, vector<2x2x32xf32> -> vector<2x2x32xf32>
    "tpu.trace_stop"() : () -> ()
    %791 = vector.broadcast %548 : vector<2x1x32xf32> to vector<2x2x32xf32>
    %792 = arith.addf %790, %791 : vector<2x2x32xf32>
    %793 = vector.extract_strided_slice %555 {offsets = [8, 0], sizes = [2, 32], strides = [1, 1]} : vector<16x32xf32> to vector<2x32xf32>
    %794 = vector.extract_strided_slice %576 {offsets = [6, 0], sizes = [2, 32], strides = [1, 1]} : vector<16x32xf32> to vector<2x32xf32>
    %795 = vector.shape_cast %793 : vector<2x32xf32> to vector<1x2x32xf32>
    %796 = vector.shape_cast %794 : vector<2x32xf32> to vector<1x2x32xf32>
    %797 = tpu.concatenate %795, %796 in 0 : vector<1x2x32xf32>, vector<1x2x32xf32> -> vector<2x2x32xf32>
    %798 = arith.addf %797, %786 : vector<2x2x32xf32>
    %cst_181 = arith.constant 5.000000e-01 : f32
    %799 = vector.broadcast %cst_181 : f32 to vector<2x2x32xf32>
    %800 = arith.mulf %799, %798 : vector<2x2x32xf32>
    %801 = math.tanh %800 : vector<2x2x32xf32>
    %cst_182 = arith.constant 5.000000e-01 : f32
    %802 = vector.broadcast %cst_182 : f32 to vector<2x2x32xf32>
    %803 = arith.mulf %802, %801 : vector<2x2x32xf32>
    %cst_183 = arith.constant 5.000000e-01 : f32
    %804 = vector.broadcast %cst_183 : f32 to vector<2x2x32xf32>
    %805 = arith.addf %803, %804 : vector<2x2x32xf32>
    %806 = vector.extract_strided_slice %562 {offsets = [8, 0], sizes = [2, 32], strides = [1, 1]} : vector<16x32xf32> to vector<2x32xf32>
    %807 = vector.extract_strided_slice %583 {offsets = [6, 0], sizes = [2, 32], strides = [1, 1]} : vector<16x32xf32> to vector<2x32xf32>
    %808 = vector.shape_cast %806 : vector<2x32xf32> to vector<1x2x32xf32>
    %809 = vector.shape_cast %807 : vector<2x32xf32> to vector<1x2x32xf32>
    %810 = tpu.concatenate %808, %809 in 0 : vector<1x2x32xf32>, vector<1x2x32xf32> -> vector<2x2x32xf32>
    %811 = arith.addf %810, %789 : vector<2x2x32xf32>
    %cst_184 = arith.constant 5.000000e-01 : f32
    %812 = vector.broadcast %cst_184 : f32 to vector<2x2x32xf32>
    %813 = arith.mulf %812, %811 : vector<2x2x32xf32>
    %814 = math.tanh %813 : vector<2x2x32xf32>
    %cst_185 = arith.constant 5.000000e-01 : f32
    %815 = vector.broadcast %cst_185 : f32 to vector<2x2x32xf32>
    %816 = arith.mulf %815, %814 : vector<2x2x32xf32>
    %cst_186 = arith.constant 5.000000e-01 : f32
    %817 = vector.broadcast %cst_186 : f32 to vector<2x2x32xf32>
    %818 = arith.addf %816, %817 : vector<2x2x32xf32>
    %819 = vector.extract_strided_slice %569 {offsets = [8, 0], sizes = [2, 32], strides = [1, 1]} : vector<16x32xf32> to vector<2x32xf32>
    %820 = vector.extract_strided_slice %590 {offsets = [6, 0], sizes = [2, 32], strides = [1, 1]} : vector<16x32xf32> to vector<2x32xf32>
    %821 = vector.shape_cast %819 : vector<2x32xf32> to vector<1x2x32xf32>
    %822 = vector.shape_cast %820 : vector<2x32xf32> to vector<1x2x32xf32>
    %823 = tpu.concatenate %821, %822 in 0 : vector<1x2x32xf32>, vector<1x2x32xf32> -> vector<2x2x32xf32>
    %824 = arith.mulf %805, %792 : vector<2x2x32xf32>
    %825 = arith.addf %823, %824 : vector<2x2x32xf32>
    %826 = math.tanh %825 : vector<2x2x32xf32>
    %cst_187 = arith.constant 1.000000e+00 : f32
    %827 = vector.broadcast %cst_187 : f32 to vector<2x2x32xf32>
    %828 = arith.subf %827, %818 : vector<2x2x32xf32>
    %829 = arith.mulf %828, %826 : vector<2x2x32xf32>
    %830 = arith.mulf %818, %783 : vector<2x2x32xf32>
    %831 = arith.addf %829, %830 : vector<2x2x32xf32>
    "tpu.trace_start"() <{level = 10 : i32, message = "dbh,dhk->dbk"}> : () -> ()
    %cst_188 = arith.constant dense<0.000000e+00> : vector<2x2x32xf32>
    %832 = tpu.matmul %831, %538, %cst_188 {dimension_numbers = #tpu.dot_dimension_numbers<[2], [1], [1], [2], [0, 0, 0, 1, 1, 2], [0], [0]>} : vector<2x2x32xf32>, vector<2x32x32xf32>, vector<2x2x32xf32> -> vector<2x2x32xf32>
    "tpu.trace_stop"() : () -> ()
    %833 = vector.broadcast %544 : vector<2x1x32xf32> to vector<2x2x32xf32>
    %834 = arith.addf %832, %833 : vector<2x2x32xf32>
    "tpu.trace_start"() <{level = 10 : i32, message = "dbh,dhk->dbk"}> : () -> ()
    %cst_189 = arith.constant dense<0.000000e+00> : vector<2x2x32xf32>
    %835 = tpu.matmul %831, %540, %cst_189 {dimension_numbers = #tpu.dot_dimension_numbers<[2], [1], [1], [2], [0, 0, 0, 1, 1, 2], [0], [0]>} : vector<2x2x32xf32>, vector<2x32x32xf32>, vector<2x2x32xf32> -> vector<2x2x32xf32>
    "tpu.trace_stop"() : () -> ()
    %836 = vector.broadcast %546 : vector<2x1x32xf32> to vector<2x2x32xf32>
    %837 = arith.addf %835, %836 : vector<2x2x32xf32>
    "tpu.trace_start"() <{level = 10 : i32, message = "dbh,dhk->dbk"}> : () -> ()
    %cst_190 = arith.constant dense<0.000000e+00> : vector<2x2x32xf32>
    %838 = tpu.matmul %831, %542, %cst_190 {dimension_numbers = #tpu.dot_dimension_numbers<[2], [1], [1], [2], [0, 0, 0, 1, 1, 2], [0], [0]>} : vector<2x2x32xf32>, vector<2x32x32xf32>, vector<2x2x32xf32> -> vector<2x2x32xf32>
    "tpu.trace_stop"() : () -> ()
    %839 = vector.broadcast %548 : vector<2x1x32xf32> to vector<2x2x32xf32>
    %840 = arith.addf %838, %839 : vector<2x2x32xf32>
    %841 = vector.extract_strided_slice %555 {offsets = [10, 0], sizes = [2, 32], strides = [1, 1]} : vector<16x32xf32> to vector<2x32xf32>
    %842 = vector.extract_strided_slice %576 {offsets = [4, 0], sizes = [2, 32], strides = [1, 1]} : vector<16x32xf32> to vector<2x32xf32>
    %843 = vector.shape_cast %841 : vector<2x32xf32> to vector<1x2x32xf32>
    %844 = vector.shape_cast %842 : vector<2x32xf32> to vector<1x2x32xf32>
    %845 = tpu.concatenate %843, %844 in 0 : vector<1x2x32xf32>, vector<1x2x32xf32> -> vector<2x2x32xf32>
    %846 = arith.addf %845, %834 : vector<2x2x32xf32>
    %cst_191 = arith.constant 5.000000e-01 : f32
    %847 = vector.broadcast %cst_191 : f32 to vector<2x2x32xf32>
    %848 = arith.mulf %847, %846 : vector<2x2x32xf32>
    %849 = math.tanh %848 : vector<2x2x32xf32>
    %cst_192 = arith.constant 5.000000e-01 : f32
    %850 = vector.broadcast %cst_192 : f32 to vector<2x2x32xf32>
    %851 = arith.mulf %850, %849 : vector<2x2x32xf32>
    %cst_193 = arith.constant 5.000000e-01 : f32
    %852 = vector.broadcast %cst_193 : f32 to vector<2x2x32xf32>
    %853 = arith.addf %851, %852 : vector<2x2x32xf32>
    %854 = vector.extract_strided_slice %562 {offsets = [10, 0], sizes = [2, 32], strides = [1, 1]} : vector<16x32xf32> to vector<2x32xf32>
    %855 = vector.extract_strided_slice %583 {offsets = [4, 0], sizes = [2, 32], strides = [1, 1]} : vector<16x32xf32> to vector<2x32xf32>
    %856 = vector.shape_cast %854 : vector<2x32xf32> to vector<1x2x32xf32>
    %857 = vector.shape_cast %855 : vector<2x32xf32> to vector<1x2x32xf32>
    %858 = tpu.concatenate %856, %857 in 0 : vector<1x2x32xf32>, vector<1x2x32xf32> -> vector<2x2x32xf32>
    %859 = arith.addf %858, %837 : vector<2x2x32xf32>
    %cst_194 = arith.constant 5.000000e-01 : f32
    %860 = vector.broadcast %cst_194 : f32 to vector<2x2x32xf32>
    %861 = arith.mulf %860, %859 : vector<2x2x32xf32>
    %862 = math.tanh %861 : vector<2x2x32xf32>
    %cst_195 = arith.constant 5.000000e-01 : f32
    %863 = vector.broadcast %cst_195 : f32 to vector<2x2x32xf32>
    %864 = arith.mulf %863, %862 : vector<2x2x32xf32>
    %cst_196 = arith.constant 5.000000e-01 : f32
    %865 = vector.broadcast %cst_196 : f32 to vector<2x2x32xf32>
    %866 = arith.addf %864, %865 : vector<2x2x32xf32>
    %867 = vector.extract_strided_slice %569 {offsets = [10, 0], sizes = [2, 32], strides = [1, 1]} : vector<16x32xf32> to vector<2x32xf32>
    %868 = vector.extract_strided_slice %590 {offsets = [4, 0], sizes = [2, 32], strides = [1, 1]} : vector<16x32xf32> to vector<2x32xf32>
    %869 = vector.shape_cast %867 : vector<2x32xf32> to vector<1x2x32xf32>
    %870 = vector.shape_cast %868 : vector<2x32xf32> to vector<1x2x32xf32>
    %871 = tpu.concatenate %869, %870 in 0 : vector<1x2x32xf32>, vector<1x2x32xf32> -> vector<2x2x32xf32>
    %872 = arith.mulf %853, %840 : vector<2x2x32xf32>
    %873 = arith.addf %871, %872 : vector<2x2x32xf32>
    %874 = math.tanh %873 : vector<2x2x32xf32>
    %cst_197 = arith.constant 1.000000e+00 : f32
    %875 = vector.broadcast %cst_197 : f32 to vector<2x2x32xf32>
    %876 = arith.subf %875, %866 : vector<2x2x32xf32>
    %877 = arith.mulf %876, %874 : vector<2x2x32xf32>
    %878 = arith.mulf %866, %831 : vector<2x2x32xf32>
    %879 = arith.addf %877, %878 : vector<2x2x32xf32>
    "tpu.trace_start"() <{level = 10 : i32, message = "dbh,dhk->dbk"}> : () -> ()
    %cst_198 = arith.constant dense<0.000000e+00> : vector<2x2x32xf32>
    %880 = tpu.matmul %879, %538, %cst_198 {dimension_numbers = #tpu.dot_dimension_numbers<[2], [1], [1], [2], [0, 0, 0, 1, 1, 2], [0], [0]>} : vector<2x2x32xf32>, vector<2x32x32xf32>, vector<2x2x32xf32> -> vector<2x2x32xf32>
    "tpu.trace_stop"() : () -> ()
    %881 = vector.broadcast %544 : vector<2x1x32xf32> to vector<2x2x32xf32>
    %882 = arith.addf %880, %881 : vector<2x2x32xf32>
    "tpu.trace_start"() <{level = 10 : i32, message = "dbh,dhk->dbk"}> : () -> ()
    %cst_199 = arith.constant dense<0.000000e+00> : vector<2x2x32xf32>
    %883 = tpu.matmul %879, %540, %cst_199 {dimension_numbers = #tpu.dot_dimension_numbers<[2], [1], [1], [2], [0, 0, 0, 1, 1, 2], [0], [0]>} : vector<2x2x32xf32>, vector<2x32x32xf32>, vector<2x2x32xf32> -> vector<2x2x32xf32>
    "tpu.trace_stop"() : () -> ()
    %884 = vector.broadcast %546 : vector<2x1x32xf32> to vector<2x2x32xf32>
    %885 = arith.addf %883, %884 : vector<2x2x32xf32>
    "tpu.trace_start"() <{level = 10 : i32, message = "dbh,dhk->dbk"}> : () -> ()
    %cst_200 = arith.constant dense<0.000000e+00> : vector<2x2x32xf32>
    %886 = tpu.matmul %879, %542, %cst_200 {dimension_numbers = #tpu.dot_dimension_numbers<[2], [1], [1], [2], [0, 0, 0, 1, 1, 2], [0], [0]>} : vector<2x2x32xf32>, vector<2x32x32xf32>, vector<2x2x32xf32> -> vector<2x2x32xf32>
    "tpu.trace_stop"() : () -> ()
    %887 = vector.broadcast %548 : vector<2x1x32xf32> to vector<2x2x32xf32>
    %888 = arith.addf %886, %887 : vector<2x2x32xf32>
    %889 = vector.extract_strided_slice %555 {offsets = [12, 0], sizes = [2, 32], strides = [1, 1]} : vector<16x32xf32> to vector<2x32xf32>
    %890 = vector.extract_strided_slice %576 {offsets = [2, 0], sizes = [2, 32], strides = [1, 1]} : vector<16x32xf32> to vector<2x32xf32>
    %891 = vector.shape_cast %889 : vector<2x32xf32> to vector<1x2x32xf32>
    %892 = vector.shape_cast %890 : vector<2x32xf32> to vector<1x2x32xf32>
    %893 = tpu.concatenate %891, %892 in 0 : vector<1x2x32xf32>, vector<1x2x32xf32> -> vector<2x2x32xf32>
    %894 = arith.addf %893, %882 : vector<2x2x32xf32>
    %cst_201 = arith.constant 5.000000e-01 : f32
    %895 = vector.broadcast %cst_201 : f32 to vector<2x2x32xf32>
    %896 = arith.mulf %895, %894 : vector<2x2x32xf32>
    %897 = math.tanh %896 : vector<2x2x32xf32>
    %cst_202 = arith.constant 5.000000e-01 : f32
    %898 = vector.broadcast %cst_202 : f32 to vector<2x2x32xf32>
    %899 = arith.mulf %898, %897 : vector<2x2x32xf32>
    %cst_203 = arith.constant 5.000000e-01 : f32
    %900 = vector.broadcast %cst_203 : f32 to vector<2x2x32xf32>
    %901 = arith.addf %899, %900 : vector<2x2x32xf32>
    %902 = vector.extract_strided_slice %562 {offsets = [12, 0], sizes = [2, 32], strides = [1, 1]} : vector<16x32xf32> to vector<2x32xf32>
    %903 = vector.extract_strided_slice %583 {offsets = [2, 0], sizes = [2, 32], strides = [1, 1]} : vector<16x32xf32> to vector<2x32xf32>
    %904 = vector.shape_cast %902 : vector<2x32xf32> to vector<1x2x32xf32>
    %905 = vector.shape_cast %903 : vector<2x32xf32> to vector<1x2x32xf32>
    %906 = tpu.concatenate %904, %905 in 0 : vector<1x2x32xf32>, vector<1x2x32xf32> -> vector<2x2x32xf32>
    %907 = arith.addf %906, %885 : vector<2x2x32xf32>
    %cst_204 = arith.constant 5.000000e-01 : f32
    %908 = vector.broadcast %cst_204 : f32 to vector<2x2x32xf32>
    %909 = arith.mulf %908, %907 : vector<2x2x32xf32>
    %910 = math.tanh %909 : vector<2x2x32xf32>
    %cst_205 = arith.constant 5.000000e-01 : f32
    %911 = vector.broadcast %cst_205 : f32 to vector<2x2x32xf32>
    %912 = arith.mulf %911, %910 : vector<2x2x32xf32>
    %cst_206 = arith.constant 5.000000e-01 : f32
    %913 = vector.broadcast %cst_206 : f32 to vector<2x2x32xf32>
    %914 = arith.addf %912, %913 : vector<2x2x32xf32>
    %915 = vector.extract_strided_slice %569 {offsets = [12, 0], sizes = [2, 32], strides = [1, 1]} : vector<16x32xf32> to vector<2x32xf32>
    %916 = vector.extract_strided_slice %590 {offsets = [2, 0], sizes = [2, 32], strides = [1, 1]} : vector<16x32xf32> to vector<2x32xf32>
    %917 = vector.shape_cast %915 : vector<2x32xf32> to vector<1x2x32xf32>
    %918 = vector.shape_cast %916 : vector<2x32xf32> to vector<1x2x32xf32>
    %919 = tpu.concatenate %917, %918 in 0 : vector<1x2x32xf32>, vector<1x2x32xf32> -> vector<2x2x32xf32>
    %920 = arith.mulf %901, %888 : vector<2x2x32xf32>
    %921 = arith.addf %919, %920 : vector<2x2x32xf32>
    %922 = math.tanh %921 : vector<2x2x32xf32>
    %cst_207 = arith.constant 1.000000e+00 : f32
    %923 = vector.broadcast %cst_207 : f32 to vector<2x2x32xf32>
    %924 = arith.subf %923, %914 : vector<2x2x32xf32>
    %925 = arith.mulf %924, %922 : vector<2x2x32xf32>
    %926 = arith.mulf %914, %879 : vector<2x2x32xf32>
    %927 = arith.addf %925, %926 : vector<2x2x32xf32>
    "tpu.trace_start"() <{level = 10 : i32, message = "dbh,dhk->dbk"}> : () -> ()
    %cst_208 = arith.constant dense<0.000000e+00> : vector<2x2x32xf32>
    %928 = tpu.matmul %927, %538, %cst_208 {dimension_numbers = #tpu.dot_dimension_numbers<[2], [1], [1], [2], [0, 0, 0, 1, 1, 2], [0], [0]>} : vector<2x2x32xf32>, vector<2x32x32xf32>, vector<2x2x32xf32> -> vector<2x2x32xf32>
    "tpu.trace_stop"() : () -> ()
    %929 = vector.broadcast %544 : vector<2x1x32xf32> to vector<2x2x32xf32>
    %930 = arith.addf %928, %929 : vector<2x2x32xf32>
    "tpu.trace_start"() <{level = 10 : i32, message = "dbh,dhk->dbk"}> : () -> ()
    %cst_209 = arith.constant dense<0.000000e+00> : vector<2x2x32xf32>
    %931 = tpu.matmul %927, %540, %cst_209 {dimension_numbers = #tpu.dot_dimension_numbers<[2], [1], [1], [2], [0, 0, 0, 1, 1, 2], [0], [0]>} : vector<2x2x32xf32>, vector<2x32x32xf32>, vector<2x2x32xf32> -> vector<2x2x32xf32>
    "tpu.trace_stop"() : () -> ()
    %932 = vector.broadcast %546 : vector<2x1x32xf32> to vector<2x2x32xf32>
    %933 = arith.addf %931, %932 : vector<2x2x32xf32>
    "tpu.trace_start"() <{level = 10 : i32, message = "dbh,dhk->dbk"}> : () -> ()
    %cst_210 = arith.constant dense<0.000000e+00> : vector<2x2x32xf32>
    %934 = tpu.matmul %927, %542, %cst_210 {dimension_numbers = #tpu.dot_dimension_numbers<[2], [1], [1], [2], [0, 0, 0, 1, 1, 2], [0], [0]>} : vector<2x2x32xf32>, vector<2x32x32xf32>, vector<2x2x32xf32> -> vector<2x2x32xf32>
    "tpu.trace_stop"() : () -> ()
    %935 = vector.broadcast %548 : vector<2x1x32xf32> to vector<2x2x32xf32>
    %936 = arith.addf %934, %935 : vector<2x2x32xf32>
    %937 = vector.extract_strided_slice %555 {offsets = [14, 0], sizes = [2, 32], strides = [1, 1]} : vector<16x32xf32> to vector<2x32xf32>
    %938 = vector.extract_strided_slice %576 {offsets = [0, 0], sizes = [2, 32], strides = [1, 1]} : vector<16x32xf32> to vector<2x32xf32>
    %939 = vector.shape_cast %937 : vector<2x32xf32> to vector<1x2x32xf32>
    %940 = vector.shape_cast %938 : vector<2x32xf32> to vector<1x2x32xf32>
    %941 = tpu.concatenate %939, %940 in 0 : vector<1x2x32xf32>, vector<1x2x32xf32> -> vector<2x2x32xf32>
    %942 = arith.addf %941, %930 : vector<2x2x32xf32>
    %cst_211 = arith.constant 5.000000e-01 : f32
    %943 = vector.broadcast %cst_211 : f32 to vector<2x2x32xf32>
    %944 = arith.mulf %943, %942 : vector<2x2x32xf32>
    %945 = math.tanh %944 : vector<2x2x32xf32>
    %cst_212 = arith.constant 5.000000e-01 : f32
    %946 = vector.broadcast %cst_212 : f32 to vector<2x2x32xf32>
    %947 = arith.mulf %946, %945 : vector<2x2x32xf32>
    %cst_213 = arith.constant 5.000000e-01 : f32
    %948 = vector.broadcast %cst_213 : f32 to vector<2x2x32xf32>
    %949 = arith.addf %947, %948 : vector<2x2x32xf32>
    %950 = vector.extract_strided_slice %562 {offsets = [14, 0], sizes = [2, 32], strides = [1, 1]} : vector<16x32xf32> to vector<2x32xf32>
    %951 = vector.extract_strided_slice %583 {offsets = [0, 0], sizes = [2, 32], strides = [1, 1]} : vector<16x32xf32> to vector<2x32xf32>
    %952 = vector.shape_cast %950 : vector<2x32xf32> to vector<1x2x32xf32>
    %953 = vector.shape_cast %951 : vector<2x32xf32> to vector<1x2x32xf32>
    %954 = tpu.concatenate %952, %953 in 0 : vector<1x2x32xf32>, vector<1x2x32xf32> -> vector<2x2x32xf32>
    %955 = arith.addf %954, %933 : vector<2x2x32xf32>
    %cst_214 = arith.constant 5.000000e-01 : f32
    %956 = vector.broadcast %cst_214 : f32 to vector<2x2x32xf32>
    %957 = arith.mulf %956, %955 : vector<2x2x32xf32>
    %958 = math.tanh %957 : vector<2x2x32xf32>
    %cst_215 = arith.constant 5.000000e-01 : f32
    %959 = vector.broadcast %cst_215 : f32 to vector<2x2x32xf32>
    %960 = arith.mulf %959, %958 : vector<2x2x32xf32>
    %cst_216 = arith.constant 5.000000e-01 : f32
    %961 = vector.broadcast %cst_216 : f32 to vector<2x2x32xf32>
    %962 = arith.addf %960, %961 : vector<2x2x32xf32>
    %963 = vector.extract_strided_slice %569 {offsets = [14, 0], sizes = [2, 32], strides = [1, 1]} : vector<16x32xf32> to vector<2x32xf32>
    %964 = vector.extract_strided_slice %590 {offsets = [0, 0], sizes = [2, 32], strides = [1, 1]} : vector<16x32xf32> to vector<2x32xf32>
    %965 = vector.shape_cast %963 : vector<2x32xf32> to vector<1x2x32xf32>
    %966 = vector.shape_cast %964 : vector<2x32xf32> to vector<1x2x32xf32>
    %967 = tpu.concatenate %965, %966 in 0 : vector<1x2x32xf32>, vector<1x2x32xf32> -> vector<2x2x32xf32>
    %968 = arith.mulf %949, %936 : vector<2x2x32xf32>
    %969 = arith.addf %967, %968 : vector<2x2x32xf32>
    %970 = math.tanh %969 : vector<2x2x32xf32>
    %cst_217 = arith.constant 1.000000e+00 : f32
    %971 = vector.broadcast %cst_217 : f32 to vector<2x2x32xf32>
    %972 = arith.subf %971, %962 : vector<2x2x32xf32>
    %973 = arith.mulf %972, %970 : vector<2x2x32xf32>
    %974 = arith.mulf %962, %927 : vector<2x2x32xf32>
    %975 = arith.addf %973, %974 : vector<2x2x32xf32>
    %976 = vector.extract_strided_slice %639 {offsets = [0, 0, 0], sizes = [1, 2, 32], strides = [1, 1, 1]} : vector<2x2x32xf32> to vector<1x2x32xf32>
    %977 = vector.shape_cast %976 : vector<1x2x32xf32> to vector<2x32xf32>
    %978 = vector.extract_strided_slice %975 {offsets = [1, 0, 0], sizes = [1, 2, 32], strides = [1, 1, 1]} : vector<2x2x32xf32> to vector<1x2x32xf32>
    %979 = vector.shape_cast %978 : vector<1x2x32xf32> to vector<2x32xf32>
    %980 = tpu.concatenate %977, %979 in 1 : vector<2x32xf32>, vector<2x32xf32> -> vector<2x64xf32>
    %981 = vector.extract_strided_slice %687 {offsets = [0, 0, 0], sizes = [1, 2, 32], strides = [1, 1, 1]} : vector<2x2x32xf32> to vector<1x2x32xf32>
    %982 = vector.shape_cast %981 : vector<1x2x32xf32> to vector<2x32xf32>
    %983 = vector.extract_strided_slice %927 {offsets = [1, 0, 0], sizes = [1, 2, 32], strides = [1, 1, 1]} : vector<2x2x32xf32> to vector<1x2x32xf32>
    %984 = vector.shape_cast %983 : vector<1x2x32xf32> to vector<2x32xf32>
    %985 = tpu.concatenate %982, %984 in 1 : vector<2x32xf32>, vector<2x32xf32> -> vector<2x64xf32>
    %986 = vector.extract_strided_slice %735 {offsets = [0, 0, 0], sizes = [1, 2, 32], strides = [1, 1, 1]} : vector<2x2x32xf32> to vector<1x2x32xf32>
    %987 = vector.shape_cast %986 : vector<1x2x32xf32> to vector<2x32xf32>
    %988 = vector.extract_strided_slice %879 {offsets = [1, 0, 0], sizes = [1, 2, 32], strides = [1, 1, 1]} : vector<2x2x32xf32> to vector<1x2x32xf32>
    %989 = vector.shape_cast %988 : vector<1x2x32xf32> to vector<2x32xf32>
    %990 = tpu.concatenate %987, %989 in 1 : vector<2x32xf32>, vector<2x32xf32> -> vector<2x64xf32>
    %991 = vector.extract_strided_slice %783 {offsets = [0, 0, 0], sizes = [1, 2, 32], strides = [1, 1, 1]} : vector<2x2x32xf32> to vector<1x2x32xf32>
    %992 = vector.shape_cast %991 : vector<1x2x32xf32> to vector<2x32xf32>
    %993 = vector.extract_strided_slice %831 {offsets = [1, 0, 0], sizes = [1, 2, 32], strides = [1, 1, 1]} : vector<2x2x32xf32> to vector<1x2x32xf32>
    %994 = vector.shape_cast %993 : vector<1x2x32xf32> to vector<2x32xf32>
    %995 = tpu.concatenate %992, %994 in 1 : vector<2x32xf32>, vector<2x32xf32> -> vector<2x64xf32>
    %996 = vector.extract_strided_slice %831 {offsets = [0, 0, 0], sizes = [1, 2, 32], strides = [1, 1, 1]} : vector<2x2x32xf32> to vector<1x2x32xf32>
    %997 = vector.shape_cast %996 : vector<1x2x32xf32> to vector<2x32xf32>
    %998 = vector.extract_strided_slice %783 {offsets = [1, 0, 0], sizes = [1, 2, 32], strides = [1, 1, 1]} : vector<2x2x32xf32> to vector<1x2x32xf32>
    %999 = vector.shape_cast %998 : vector<1x2x32xf32> to vector<2x32xf32>
    %1000 = tpu.concatenate %997, %999 in 1 : vector<2x32xf32>, vector<2x32xf32> -> vector<2x64xf32>
    %1001 = vector.extract_strided_slice %879 {offsets = [0, 0, 0], sizes = [1, 2, 32], strides = [1, 1, 1]} : vector<2x2x32xf32> to vector<1x2x32xf32>
    %1002 = vector.shape_cast %1001 : vector<1x2x32xf32> to vector<2x32xf32>
    %1003 = vector.extract_strided_slice %735 {offsets = [1, 0, 0], sizes = [1, 2, 32], strides = [1, 1, 1]} : vector<2x2x32xf32> to vector<1x2x32xf32>
    %1004 = vector.shape_cast %1003 : vector<1x2x32xf32> to vector<2x32xf32>
    %1005 = tpu.concatenate %1002, %1004 in 1 : vector<2x32xf32>, vector<2x32xf32> -> vector<2x64xf32>
    %1006 = vector.extract_strided_slice %927 {offsets = [0, 0, 0], sizes = [1, 2, 32], strides = [1, 1, 1]} : vector<2x2x32xf32> to vector<1x2x32xf32>
    %1007 = vector.shape_cast %1006 : vector<1x2x32xf32> to vector<2x32xf32>
    %1008 = vector.extract_strided_slice %687 {offsets = [1, 0, 0], sizes = [1, 2, 32], strides = [1, 1, 1]} : vector<2x2x32xf32> to vector<1x2x32xf32>
    %1009 = vector.shape_cast %1008 : vector<1x2x32xf32> to vector<2x32xf32>
    %1010 = tpu.concatenate %1007, %1009 in 1 : vector<2x32xf32>, vector<2x32xf32> -> vector<2x64xf32>
    %1011 = vector.extract_strided_slice %975 {offsets = [0, 0, 0], sizes = [1, 2, 32], strides = [1, 1, 1]} : vector<2x2x32xf32> to vector<1x2x32xf32>
    %1012 = vector.shape_cast %1011 : vector<1x2x32xf32> to vector<2x32xf32>
    %1013 = vector.extract_strided_slice %639 {offsets = [1, 0, 0], sizes = [1, 2, 32], strides = [1, 1, 1]} : vector<2x2x32xf32> to vector<1x2x32xf32>
    %1014 = vector.shape_cast %1013 : vector<1x2x32xf32> to vector<2x32xf32>
    %1015 = tpu.concatenate %1012, %1014 in 1 : vector<2x32xf32>, vector<2x32xf32> -> vector<2x64xf32>
    %1016 = tpu.concatenate %980, %985, %990, %995, %1000, %1005, %1010, %1015 in 0 : vector<2x64xf32>, vector<2x64xf32>, vector<2x64xf32>, vector<2x64xf32>, vector<2x64xf32>, vector<2x64xf32>, vector<2x64xf32>, vector<2x64xf32> -> vector<16x64xf32>
    %c0_218 = arith.constant 0 : index
    %c0_219 = arith.constant 0 : index
    %1017 = vector.load %arg13[%c0_218, %c0_219] : memref<64x3xf32, #tpu.memory_space<vmem>>, vector<64x3xf32>
    %cst_220 = arith.constant dense<0.000000e+00> : vector<16x3xf32>
    %1018 = tpu.matmul %1016, %1017, %cst_220 {dimension_numbers = #tpu.dot_dimension_numbers<[1], [0], [0], [1], [0, 0, 1, 1], [], []>} : vector<16x64xf32>, vector<64x3xf32>, vector<16x3xf32> -> vector<16x3xf32>
    %c0_221 = arith.constant 0 : index
    %c0_222 = arith.constant 0 : index
    %1019 = vector.load %arg14[%c0_221, %c0_222] : memref<1x3xf32, #tpu.memory_space<vmem>>, vector<1x3xf32>
    %1020 = vector.broadcast %1019 : vector<1x3xf32> to vector<16x3xf32>
    %1021 = arith.addf %1018, %1020 : vector<16x3xf32>
    %cst_223 = arith.constant 5.000000e-01 : f32
    %1022 = vector.broadcast %cst_223 : f32 to vector<16x3xf32>
    %1023 = arith.mulf %1022, %1021 : vector<16x3xf32>
    %1024 = math.tanh %1023 : vector<16x3xf32>
    %cst_224 = arith.constant 5.000000e-01 : f32
    %1025 = vector.broadcast %cst_224 : f32 to vector<16x3xf32>
    %1026 = arith.mulf %1025, %1024 : vector<16x3xf32>
    %cst_225 = arith.constant 5.000000e-01 : f32
    %1027 = vector.broadcast %cst_225 : f32 to vector<16x3xf32>
    %1028 = arith.addf %1026, %1027 : vector<16x3xf32>
    %c0_226 = arith.constant 0 : index
    %c0_227 = arith.constant 0 : index
    %1029 = vector.load %arg15[%c0_226, %c0_227] : memref<16x3xf32, #tpu.memory_space<vmem>>, vector<16x3xf32>
    tpu.vector_store %arg15[%c0_226, %c0_227], %1028 {strides = array<i32>} : memref<16x3xf32, #tpu.memory_space<vmem>>, vector<16x3xf32>,
    return
  }
}

</mosaic_0001>

<llo_original>
// kernel: _lambda_.1
$region0: #{_lambda_.1}
  #allocation0 [shape = 'u32[]', space=smem, size = 0x4, offset = 0x4, fixed_abs, tag = 'smem constant byte address 0x4 - core index']
  #allocation1 [shape = 'u32[144,128]{1,0:T(1,128)}', space=vmem, size = 0x12000, scoped, tag = 'internal scratch']
  %s0 = inlined_call_operand.vmem [shape: f32[16,9], index: 0, kind: input, shape index: {}]
  %s1 = inlined_call_operand.vmem [shape: f32[3,8], index: 1, kind: input, shape index: {}]
  %s2 = inlined_call_operand.vmem [shape: f32[1,8], index: 2, kind: input, shape index: {}]
  %s3 = inlined_call_operand.vmem [shape: f32[24,16], index: 3, kind: input, shape index: {}]
  %s4 = inlined_call_operand.vmem [shape: f32[1,16], index: 4, kind: input, shape index: {}]
  %s5 = inlined_call_operand.vmem [shape: f32[2,3,16,32], index: 5, kind: input, shape index: {}]
  %s6 = inlined_call_operand.vmem [shape: f32[2,3,32,32], index: 6, kind: input, shape index: {}]
  %s7 = inlined_call_operand.vmem [shape: f32[2,3,1,32], index: 7, kind: input, shape index: {}]
  %s8 = inlined_call_operand.vmem [shape: f32[2,3,1,32], index: 8, kind: input, shape index: {}]
  %s9 = inlined_call_operand.vmem [shape: f32[2,3,64,32], index: 9, kind: input, shape index: {}]
  %s10 = inlined_call_operand.vmem [shape: f32[2,3,32,32], index: 10, kind: input, shape index: {}]
  %s11 = inlined_call_operand.vmem [shape: f32[2,3,1,32], index: 11, kind: input, shape index: {}]
  %s12 = inlined_call_operand.vmem [shape: f32[2,3,1,32], index: 12, kind: input, shape index: {}]
  %s13 = inlined_call_operand.vmem [shape: f32[64,3], index: 13, kind: input, shape index: {}]
  %s14 = inlined_call_operand.vmem [shape: f32[1,3], index: 14, kind: input, shape index: {}]
  %s15 = inlined_call_operand.vmem [shape: f32[16,3], index: 15, kind: output, shape index: {}]
  %s16 = sld [smem:[#allocation0]]
  $region70: #{_lambda_.1} parent=0
    _
  %s18 = ssub.s32 1, %s16
  %s19 = scalar_select 0, %s18, %s16
  // Predicated region
  $region2: #{_lambda_.1} parent=0 // pred_check
    _
  $region3: #{_lambda_.1} parent=0 // pred_check_branch
    %21 = sbr.rel (0) target = $region5
  $region4: #{_lambda_.1} parent=0 // pred_region
    _
  $region5: #{_lambda_.1} parent=0 // pred_fallthru
    _
  // Predicated region
  $region6: #{_lambda_.1} parent=0 // pred_check
    _
  $region7: #{_lambda_.1} parent=0 // pred_check_branch
    %23 = sbr.rel (0) target = $region9
  $region8: #{_lambda_.1} parent=0 // pred_region
    _
  $region9: #{_lambda_.1} parent=0 // pred_fallthru
    _
  // Predicated region
  $region10: #{_lambda_.1} parent=0 // pred_check
    _
  $region11: #{_lambda_.1} parent=0 // pred_check_branch
    %25 = sbr.rel (0) target = $region13
  $region12: #{_lambda_.1} parent=0 // pred_region
    _
  $region13: #{_lambda_.1} parent=0 // pred_fallthru
    _
  // Predicated region
  $region14: #{_lambda_.1} parent=0 // pred_check
    _
  $region15: #{_lambda_.1} parent=0 // pred_check_branch
    %27 = sbr.rel (0) target = $region17
  $region16: #{_lambda_.1} parent=0 // pred_region
    _
  $region17: #{_lambda_.1} parent=0 // pred_fallthru
    _
  // Predicated region
  $region18: #{_lambda_.1} parent=0 // pred_check
    _
  $region19: #{_lambda_.1} parent=0 // pred_check_branch
    %29 = sbr.rel (0) target = $region21
  $region20: #{_lambda_.1} parent=0 // pred_region
    _
  $region21: #{_lambda_.1} parent=0 // pred_fallthru
    _
  // Predicated region
  $region22: #{_lambda_.1} parent=0 // pred_check
    _
  $region23: #{_lambda_.1} parent=0 // pred_check_branch
    %31 = sbr.rel (0) target = $region25
  $region24: #{_lambda_.1} parent=0 // pred_region
    _
  $region25: #{_lambda_.1} parent=0 // pred_fallthru
    _
  // Predicated region
  $region26: #{_lambda_.1} parent=0 // pred_check
    _
  $region27: #{_lambda_.1} parent=0 // pred_check_branch
    %33 = sbr.rel (0) target = $region29
  $region28: #{_lambda_.1} parent=0 // pred_region
    _
  $region29: #{_lambda_.1} parent=0 // pred_fallthru
    _
  // Predicated region
  $region30: #{_lambda_.1} parent=0 // pred_check
    _
  $region31: #{_lambda_.1} parent=0 // pred_check_branch
    %35 = sbr.rel (0) target = $region33
  $region32: #{_lambda_.1} parent=0 // pred_region
    _
  $region33: #{_lambda_.1} parent=0 // pred_fallthru
    _
  // Predicated region
  $region34: #{_lambda_.1} parent=0 // pred_check
    _
  $region35: #{_lambda_.1} parent=0 // pred_check_branch
    %37 = sbr.rel (0) target = $region37
  $region36: #{_lambda_.1} parent=0 // pred_region
    _
  $region37: #{_lambda_.1} parent=0 // pred_fallthru
    _
  // Predicated region
  $region38: #{_lambda_.1} parent=0 // pred_check
    _
  $region39: #{_lambda_.1} parent=0 // pred_check_branch
    %39 = sbr.rel (0) target = $region41
  $region40: #{_lambda_.1} parent=0 // pred_region
    _
  $region41: #{_lambda_.1} parent=0 // pred_fallthru
    _
  // Predicated region
  $region42: #{_lambda_.1} parent=0 // pred_check
    _
  $region43: #{_lambda_.1} parent=0 // pred_check_branch
    %41 = sbr.rel (0) target = $region45
  $region44: #{_lambda_.1} parent=0 // pred_region
    _
  $region45: #{_lambda_.1} parent=0 // pred_fallthru
    _
  // Predicated region
  $region46: #{_lambda_.1} parent=0 // pred_check
    _
  $region47: #{_lambda_.1} parent=0 // pred_check_branch
    %43 = sbr.rel (0) target = $region49
  $region48: #{_lambda_.1} parent=0 // pred_region
    _
  $region49: #{_lambda_.1} parent=0 // pred_fallthru
    _
  // Predicated region
  $region50: #{_lambda_.1} parent=0 // pred_check
    _
  $region51: #{_lambda_.1} parent=0 // pred_check_branch
    %45 = sbr.rel (0) target = $region53
  $region52: #{_lambda_.1} parent=0 // pred_region
    _
  $region53: #{_lambda_.1} parent=0 // pred_fallthru
    _
  // Predicated region
  $region54: #{_lambda_.1} parent=0 // pred_check
    _
  $region55: #{_lambda_.1} parent=0 // pred_check_branch
    %47 = sbr.rel (0) target = $region57
  $region56: #{_lambda_.1} parent=0 // pred_region
    _
  $region57: #{_lambda_.1} parent=0 // pred_fallthru
    _
  // Predicated region
  $region58: #{_lambda_.1} parent=0 // pred_check
    _
  $region59: #{_lambda_.1} parent=0 // pred_check_branch
    %49 = sbr.rel (0) target = $region61
  $region60: #{_lambda_.1} parent=0 // pred_region
    _
  $region61: #{_lambda_.1} parent=0 // pred_fallthru
    _
  %v50 = vld [vmem:[%s0] sm:$0xff]
  %v51 = vld [vmem:[%s0 + $0x8] sm:$0xff]
  %v52 = vld [vmem:[%s1] sm:$0x7]
  %v53 = vld [vmem:[%s2] sm:$0x1]
  %56 = vrot.lane.b32.xlu0 %v50, 127
  %v57 = vpop.permute.xlu0 %56
  %58 = vrot.lane.b32.xlu0 %v51, 127
  %v59 = vpop.permute.xlu0 %58
  %60 = vrot.lane.b32.xlu0 %v50, 126
  %v61 = vpop.permute.xlu0 %60
  %62 = vrot.lane.b32.xlu0 %v51, 126
  %v63 = vpop.permute.xlu0 %62
  %64 = vrot.lane.b32.xlu0 %v50, 125
  %v65 = vpop.permute.xlu0 %64
  %66 = vrot.lane.b32.xlu0 %v51, 125
  %v67 = vpop.permute.xlu0 %66
  %68 = vrot.lane.b32.xlu0 %v50, 124
  %v69 = vpop.permute.xlu0 %68
  %70 = vrot.lane.b32.xlu0 %v51, 124
  %v71 = vpop.permute.xlu0 %70
  %72 = vrot.lane.b32.xlu0 %v50, 123
  %v73 = vpop.permute.xlu0 %72
  %74 = vrot.lane.b32.xlu0 %v51, 123
  %v75 = vpop.permute.xlu0 %74
  %76 = vrot.lane.b32.xlu0 %v50, 122
  %v77 = vpop.permute.xlu0 %76
  %78 = vrot.lane.b32.xlu0 %v51, 122
  %v79 = vpop.permute.xlu0 %78
  %v81 = vlaneseq
  %v82 = vshrl.u32 %v81, 7
  %v83 = vsub.s32 0, %v82
  %v84 = vrot.slane %v53, %v83
  %vm86 = vcmask 23552
  %v87 = vsel %vm86, %v50, 0
  %v89 = vsel %vm86, %v51, 0
  %v91 = vsel %vm86, %v57, 0
  %v93 = vsel %vm86, %v59, 0
  %v95 = vsel %vm86, %v61, 0
  %v97 = vsel %vm86, %v63, 0
  %v99 = vsel %vm86, %v65, 0
  %v101 = vsel %vm86, %v67, 0
  %v103 = vsel %vm86, %v69, 0
  %v105 = vsel %vm86, %v71, 0
  %v107 = vsel %vm86, %v73, 0
  %v109 = vsel %vm86, %v75, 0
  %v111 = vsel %vm86, %v77, 0
  %v113 = vsel %vm86, %v79, 0
  %vm115 = vcmask 1042432
  %v117 = vsel %vm115, %v52, 0
  %119 = vmatprep.subr.mxu0 0.0
  %120 = vmatpush1.msra.mxu0 %v117
  %121 = vmatprep.subr.mxu0 0.0
  %122 = vmatpush1.msra.mxu0 0.0
  %123 = vmatprep.subr.mxu0 0.0
  %124 = vmatpush1.msra.mxu0 0.0
  %125 = vmatprep.subr.mxu0 0.0
  %126 = vmatpush1.msra.mxu0 0.0
  %127 = vmatprep.subr.mxu0 0.0
  %128 = vmatpush1.msra.mxu0 0.0
  %129 = vmatprep.subr.mxu0 0.0
  %130 = vmatpush1.msra.mxu0 0.0
  %131 = vmatprep.subr.mxu0 0.0
  %132 = vmatpush1.msra.mxu0 0.0
  %133 = vmatprep.subr.mxu0 0.0
  %134 = vmatpush1.msra.mxu0 0.0
  %135 = vmatprep.subr.mxu0 0.0
  %136 = vmatpush1.msra.mxu0 0.0
  %137 = vmatprep.subr.mxu0 0.0
  %138 = vmatpush1.msra.mxu0 0.0
  %139 = vmatprep.subr.mxu0 0.0
  %140 = vmatpush1.msra.mxu0 0.0
  %141 = vmatprep.subr.mxu0 0.0
  %142 = vmatpush1.msra.mxu0 0.0
  %143 = vmatprep.subr.mxu0 0.0
  %144 = vmatpush1.msra.mxu0 0.0
  %145 = vmatprep.subr.mxu0 0.0
  %146 = vmatpush1.msra.mxu0 0.0
  %147 = vmatprep.subr.mxu0 0.0
  %148 = vmatpush1.msra.mxu0 0.0
  %149 = vmatprep.subr.mxu0 0.0
  %150 = vmatpush1.msra.mxu0 0.0
  %151 = vmatprep.subr.mxu0 0.0
  %152 = vmatpush1.msra.mxu0 0.0
  %153 = vmatprep.subr.mxu0 0.0
  %154 = vmatpush1.msra.mxu0 0.0
  %155 = vmatprep.subr.mxu0 0.0
  %156 = vmatpush1.msra.mxu0 0.0
  %157 = vmatprep.subr.mxu0 0.0
  %158 = vmatpush1.msra.mxu0 0.0
  %159 = vmatprep.subr.mxu0 0.0
  %160 = vmatpush1.msra.mxu0 0.0
  %161 = vmatprep.subr.mxu0 0.0
  %162 = vmatpush1.msra.mxu0 0.0
  %163 = vmatprep.subr.mxu0 0.0
  %164 = vmatpush1.msra.mxu0 0.0
  %165 = vmatprep.subr.mxu0 0.0
  %166 = vmatpush1.msra.mxu0 0.0
  %167 = vmatprep.subr.mxu0 0.0
  %168 = vmatpush1.msra.mxu0 0.0
  %169 = vmatprep.subr.mxu0 0.0
  %170 = vmatpush1.msra.mxu0 0.0
  %171 = vmatprep.subr.mxu0 0.0
  %172 = vmatpush1.msra.mxu0 0.0
  %173 = vmatprep.subr.mxu0 0.0
  %174 = vmatpush1.msra.mxu0 0.0
  %175 = vmatprep.subr.mxu0 0.0
  %176 = vmatpush1.msra.mxu0 0.0
  %177 = vmatprep.subr.mxu0 0.0
  %178 = vmatpush1.msra.mxu0 0.0
  %179 = vmatprep.subr.mxu0 0.0
  %180 = vmatpush1.msra.mxu0 0.0
  %181 = vmatprep.subr.mxu0 0.0
  %182 = vmatpush1.msra.mxu0 0.0
  %183 = vmatprep.mubr.f32.mxu0 0.0
  %184 = vmatmul.mubr.f32.gmra.mrb[0].mxu0 %v87
  %v185 = vpop.f32.mrb[0].mxu0
  %v186 = vadd.f32 %v84, %v185
  %v187 = vpop.f32.mrb[0].mxu0
  %188 = vmatprep.mubr.f32.mxu0 0.0
  %189 = vmatmul.mubr.f32.gmra.mrb[0].mxu0 %v89
  %v190 = vpop.f32.mrb[0].mxu0
  %v191 = vadd.f32 %v84, %v190
  %v192 = vpop.f32.mrb[0].mxu0
  %193 = vmatprep.mubr.f32.mxu0 0.0
  %194 = vmatmul.mubr.f32.gmra.mrb[0].mxu0 %v91
  %v195 = vpop.f32.mrb[0].mxu0
  %v196 = vadd.f32 %v84, %v195
  %v197 = vpop.f32.mrb[0].mxu0
  %198 = vmatprep.mubr.f32.mxu0 0.0
  %199 = vmatmul.mubr.f32.gmra.mrb[0].mxu0 %v93
  %v200 = vpop.f32.mrb[0].mxu0
  %v201 = vadd.f32 %v84, %v200
  %v202 = vpop.f32.mrb[0].mxu0
  %203 = vmatprep.mubr.f32.mxu0 0.0
  %204 = vmatmul.mubr.f32.gmra.mrb[0].mxu0 %v95
  %v205 = vpop.f32.mrb[0].mxu0
  %v206 = vadd.f32 %v84, %v205
  %v207 = vpop.f32.mrb[0].mxu0
  %208 = vmatprep.mubr.f32.mxu0 0.0
  %209 = vmatmul.mubr.f32.gmra.mrb[0].mxu0 %v97
  %v210 = vpop.f32.mrb[0].mxu0
  %v211 = vadd.f32 %v84, %v210
  %v212 = vpop.f32.mrb[0].mxu0
  %213 = vmatprep.mubr.f32.mxu0 0.0
  %214 = vmatmul.mubr.f32.gmra.mrb[0].mxu0 %v99
  %v215 = vpop.f32.mrb[0].mxu0
  %v216 = vadd.f32 %v84, %v215
  %v217 = vpop.f32.mrb[0].mxu0
  %218 = vmatprep.mubr.f32.mxu0 0.0
  %219 = vmatmul.mubr.f32.gmra.mrb[0].mxu0 %v101
  %v220 = vpop.f32.mrb[0].mxu0
  %v221 = vadd.f32 %v84, %v220
  %v222 = vpop.f32.mrb[0].mxu0
  %223 = vmatprep.mubr.f32.mxu0 0.0
  %224 = vmatmul.mubr.f32.gmra.mrb[0].mxu0 %v103
  %v225 = vpop.f32.mrb[0].mxu0
  %v226 = vadd.f32 %v84, %v225
  %v227 = vpop.f32.mrb[0].mxu0
  %228 = vmatprep.mubr.f32.mxu0 0.0
  %229 = vmatmul.mubr.f32.gmra.mrb[0].mxu0 %v105
  %v230 = vpop.f32.mrb[0].mxu0
  %v231 = vadd.f32 %v84, %v230
  %v232 = vpop.f32.mrb[0].mxu0
  %233 = vmatprep.mubr.f32.mxu0 0.0
  %234 = vmatmul.mubr.f32.gmra.mrb[0].mxu0 %v107
  %v235 = vpop.f32.mrb[0].mxu0
  %v236 = vadd.f32 %v84, %v235
  %v237 = vpop.f32.mrb[0].mxu0
  %238 = vmatprep.mubr.f32.mxu0 0.0
  %239 = vmatmul.mubr.f32.gmra.mrb[0].mxu0 %v109
  %v240 = vpop.f32.mrb[0].mxu0
  %v241 = vadd.f32 %v84, %v240
  %v242 = vpop.f32.mrb[0].mxu0
  %243 = vmatprep.mubr.f32.mxu0 0.0
  %244 = vmatmul.mubr.f32.gmra.mrb[0].mxu0 %v111
  %v245 = vpop.f32.mrb[0].mxu0
  %v246 = vadd.f32 %v84, %v245
  %v247 = vpop.f32.mrb[0].mxu0
  %248 = vmatprep.mubr.f32.mxu0 0.0
  %249 = vmatmul.mubr.f32.gmra.mrb[0].mxu0 %v113
  %v250 = vpop.f32.mrb[0].mxu0
  %v251 = vadd.f32 %v84, %v250
  %v252 = vpop.f32.mrb[0].mxu0
  %253 = vdwg.mxu0
  %v254 = vmax.f32 %v186, 0.0
  %v255 = vmax.f32 %v191, 0.0
  %v256 = vmax.f32 %v196, 0.0
  %v257 = vmax.f32 %v201, 0.0
  %v258 = vmax.f32 %v206, 0.0
  %v259 = vmax.f32 %v211, 0.0
  %v260 = vmax.f32 %v216, 0.0
  %v261 = vmax.f32 %v221, 0.0
  %v262 = vmax.f32 %v226, 0.0
  %v263 = vmax.f32 %v231, 0.0
  %v264 = vmax.f32 %v236, 0.0
  %v265 = vmax.f32 %v241, 0.0
  %v266 = vmax.f32 %v246, 0.0
  %v267 = vmax.f32 %v251, 0.0
  %v268 = vmax.f32 %v254, %v256
  %v269 = vmax.f32 %v255, %v257
  %v270 = vmax.f32 %v268, %v258
  %v271 = vmax.f32 %v269, %v259
  %v272 = vmax.f32 %v256, %v258
  %v273 = vmax.f32 %v257, %v259
  %v274 = vmax.f32 %v272, %v260
  %v275 = vmax.f32 %v273, %v261
  %v276 = vmax.f32 %v258, %v260
  %v277 = vmax.f32 %v259, %v261
  %v278 = vmax.f32 %v276, %v262
  %v279 = vmax.f32 %v277, %v263
  %v280 = vmax.f32 %v260, %v262
  %v281 = vmax.f32 %v261, %v263
  %v282 = vmax.f32 %v280, %v264
  %v283 = vmax.f32 %v281, %v265
  %v284 = vmax.f32 %v262, %v264
  %v285 = vmax.f32 %v263, %v265
  %v286 = vmax.f32 %v284, %v266
  %v287 = vmax.f32 %v285, %v267
  %v288 = vld [vmem:[%s3] sm:$0xff]
  %v289 = vld [vmem:[%s3 + $0x8] sm:$0xff]
  %v290 = vld [vmem:[%s3 + $0x10] sm:$0xff]
  %v291 = vld [vmem:[%s4] sm:$0x1]
  %294 = vrot.lane.b32.xlu0 %v274, 8
  %v295 = vpop.permute.xlu0 %294
  %296 = vrot.lane.b32.xlu0 %v275, 8
  %v297 = vpop.permute.xlu0 %296
  %302 = vrot.lane.b32.xlu0 %v278, 16
  %v303 = vpop.permute.xlu0 %302
  %304 = vrot.lane.b32.xlu0 %v279, 16
  %v305 = vpop.permute.xlu0 %304
  %vm308 = vcmask 64512
  %v309 = vsel %vm308, %v270, %v295
  %v310 = vsel %vm308, %v271, %v297
  %vm311 = vcmask 130048
  %v312 = vsel %vm311, %v309, %v303
  %v313 = vsel %vm311, %v310, %v305
  %314 = vrot.lane.b32.xlu0 %v278, 8
  %v315 = vpop.permute.xlu0 %314
  %316 = vrot.lane.b32.xlu0 %v279, 8
  %v317 = vpop.permute.xlu0 %316
  %322 = vrot.lane.b32.xlu0 %v282, 16
  %v323 = vpop.permute.xlu0 %322
  %324 = vrot.lane.b32.xlu0 %v283, 16
  %v325 = vpop.permute.xlu0 %324
  %v328 = vsel %vm308, %v274, %v315
  %v329 = vsel %vm308, %v275, %v317
  %v330 = vsel %vm311, %v328, %v323
  %v331 = vsel %vm311, %v329, %v325
  %332 = vrot.lane.b32.xlu0 %v282, 8
  %v333 = vpop.permute.xlu0 %332
  %334 = vrot.lane.b32.xlu0 %v283, 8
  %v335 = vpop.permute.xlu0 %334
  %340 = vrot.lane.b32.xlu0 %v286, 16
  %v341 = vpop.permute.xlu0 %340
  %342 = vrot.lane.b32.xlu0 %v287, 16
  %v343 = vpop.permute.xlu0 %342
  %v346 = vsel %vm308, %v278, %v333
  %v347 = vsel %vm308, %v279, %v335
  %v348 = vsel %vm311, %v346, %v341
  %v349 = vsel %vm311, %v347, %v343
  %v351 = vlaneseq
  %v352 = vshrl.u32 %v351, 7
  %v353 = vsub.s32 0, %v352
  %v354 = vrot.slane %v291, %v353
  %vm356 = vcmask 195584
  %v358 = vsel %vm356, %v312, 0
  %v361 = vsel %vm356, %v313, 0
  %v364 = vsel %vm356, %v330, 0
  %v367 = vsel %vm356, %v331, 0
  %v370 = vsel %vm356, %v348, 0
  %v373 = vsel %vm356, %v349, 0
  %375 = vmatprep.subr.mxu0 0.0
  %376 = vmatpush1.msra.mxu0 %v288
  %377 = vmatprep.subr.mxu0 0.0
  %378 = vmatpush1.msra.mxu0 %v289
  %379 = vmatprep.subr.mxu0 0.0
  %380 = vmatpush1.msra.mxu0 %v290
  %381 = vmatprep.subr.mxu0 0.0
  %382 = vmatpush1.msra.mxu0 0.0
  %383 = vmatprep.subr.mxu0 0.0
  %384 = vmatpush1.msra.mxu0 0.0
  %385 = vmatprep.subr.mxu0 0.0
  %386 = vmatpush1.msra.mxu0 0.0
  %387 = vmatprep.subr.mxu0 0.0
  %388 = vmatpush1.msra.mxu0 0.0
  %389 = vmatprep.subr.mxu0 0.0
  %390 = vmatpush1.msra.mxu0 0.0
  %391 = vmatprep.subr.mxu0 0.0
  %392 = vmatpush1.msra.mxu0 0.0
  %393 = vmatprep.subr.mxu0 0.0
  %394 = vmatpush1.msra.mxu0 0.0
  %395 = vmatprep.subr.mxu0 0.0
  %396 = vmatpush1.msra.mxu0 0.0
  %397 = vmatprep.subr.mxu0 0.0
  %398 = vmatpush1.msra.mxu0 0.0
  %399 = vmatprep.subr.mxu0 0.0
  %400 = vmatpush1.msra.mxu0 0.0
  %401 = vmatprep.subr.mxu0 0.0
  %402 = vmatpush1.msra.mxu0 0.0
  %403 = vmatprep.subr.mxu0 0.0
  %404 = vmatpush1.msra.mxu0 0.0
  %405 = vmatprep.subr.mxu0 0.0
  %406 = vmatpush1.msra.mxu0 0.0
  %407 = vmatprep.subr.mxu0 0.0
  %408 = vmatpush1.msra.mxu0 0.0
  %409 = vmatprep.subr.mxu0 0.0
  %410 = vmatpush1.msra.mxu0 0.0
  %411 = vmatprep.subr.mxu0 0.0
  %412 = vmatpush1.msra.mxu0 0.0
  %413 = vmatprep.subr.mxu0 0.0
  %414 = vmatpush1.msra.mxu0 0.0
  %415 = vmatprep.subr.mxu0 0.0
  %416 = vmatpush1.msra.mxu0 0.0
  %417 = vmatprep.subr.mxu0 0.0
  %418 = vmatpush1.msra.mxu0 0.0
  %419 = vmatprep.subr.mxu0 0.0
  %420 = vmatpush1.msra.mxu0 0.0
  %421 = vmatprep.subr.mxu0 0.0
  %422 = vmatpush1.msra.mxu0 0.0
  %423 = vmatprep.subr.mxu0 0.0
  %424 = vmatpush1.msra.mxu0 0.0
  %425 = vmatprep.subr.mxu0 0.0
  %426 = vmatpush1.msra.mxu0 0.0
  %427 = vmatprep.subr.mxu0 0.0
  %428 = vmatpush1.msra.mxu0 0.0
  %429 = vmatprep.subr.mxu0 0.0
  %430 = vmatpush1.msra.mxu0 0.0
  %431 = vmatprep.subr.mxu0 0.0
  %432 = vmatpush1.msra.mxu0 0.0
  %433 = vmatprep.subr.mxu0 0.0
  %434 = vmatpush1.msra.mxu0 0.0
  %435 = vmatprep.subr.mxu0 0.0
  %436 = vmatpush1.msra.mxu0 0.0
  %437 = vmatprep.subr.mxu0 0.0
  %438 = vmatpush1.msra.mxu0 0.0
  %439 = vmatprep.mubr.f32.mxu0 0.0
  %440 = vmatmul.mubr.f32.gmra.mrb[0].mxu0 %v358
  %v441 = vpop.f32.mrb[0].mxu0
  %v442 = vadd.f32 %v354, %v441
  %v443 = vpop.f32.mrb[0].mxu0
  %444 = vmatprep.mubr.f32.mxu0 0.0
  %445 = vmatmul.mubr.f32.gmra.mrb[0].mxu0 %v361
  %v446 = vpop.f32.mrb[0].mxu0
  %v447 = vadd.f32 %v354, %v446
  %v448 = vpop.f32.mrb[0].mxu0
  %449 = vmatprep.mubr.f32.mxu0 0.0
  %450 = vmatmul.mubr.f32.gmra.mrb[0].mxu0 %v364
  %v451 = vpop.f32.mrb[0].mxu0
  %v452 = vadd.f32 %v354, %v451
  %v453 = vpop.f32.mrb[0].mxu0
  %454 = vmatprep.mubr.f32.mxu0 0.0
  %455 = vmatmul.mubr.f32.gmra.mrb[0].mxu0 %v367
  %v456 = vpop.f32.mrb[0].mxu0
  %v457 = vadd.f32 %v354, %v456
  %v458 = vpop.f32.mrb[0].mxu0
  %459 = vmatprep.mubr.f32.mxu0 0.0
  %460 = vmatmul.mubr.f32.gmra.mrb[0].mxu0 %v370
  %v461 = vpop.f32.mrb[0].mxu0
  %v462 = vadd.f32 %v354, %v461
  %v463 = vpop.f32.mrb[0].mxu0
  %464 = vmatprep.mubr.f32.mxu0 0.0
  %465 = vmatmul.mubr.f32.gmra.mrb[0].mxu0 %v373
  %v466 = vpop.f32.mrb[0].mxu0
  %v467 = vadd.f32 %v354, %v466
  %v468 = vpop.f32.mrb[0].mxu0
  %469 = vdwg.mxu0
  %v470 = vmax.f32 %v442, 0.0
  %v471 = vmax.f32 %v447, 0.0
  %v472 = vmax.f32 %v452, 0.0
  %v473 = vmax.f32 %v457, 0.0
  %v474 = vmax.f32 %v462, 0.0
  %v475 = vmax.f32 %v467, 0.0
  %v476 = vmax.f32 %v470, %v472
  %v477 = vmax.f32 %v471, %v473
  %v478 = vmax.f32 %v476, %v474
  %v479 = vmax.f32 %v477, %v475
  %v480 = vld [vmem:[%s5] sm:$0xff]
  %v481 = vld [vmem:[%s5 + $0x8] sm:$0xff]
  %v482 = vld [vmem:[%s5 + $0x10] sm:$0xff]
  %v483 = vld [vmem:[%s5 + $0x18] sm:$0xff]
  %v484 = vld [vmem:[%s5 + $0x20] sm:$0xff]
  %v485 = vld [vmem:[%s5 + $0x28] sm:$0xff]
  %v486 = vld [vmem:[%s5 + $0x30] sm:$0xff]
  %v487 = vld [vmem:[%s5 + $0x38] sm:$0xff]
  %v488 = vld [vmem:[%s5 + $0x40] sm:$0xff]
  %v489 = vld [vmem:[%s5 + $0x48] sm:$0xff]
  %v490 = vld [vmem:[%s5 + $0x50] sm:$0xff]
  %v491 = vld [vmem:[%s5 + $0x58] sm:$0xff]
  %v492 = vld [vmem:[%s6] sm:$0xff]
  %v493 = vld [vmem:[%s6 + $0x8] sm:$0xff]
  %v494 = vld [vmem:[%s6 + $0x10] sm:$0xff]
  %v495 = vld [vmem:[%s6 + $0x18] sm:$0xff]
  %v496 = vld [vmem:[%s6 + $0x20] sm:$0xff]
  %v497 = vld [vmem:[%s6 + $0x28] sm:$0xff]
  %v498 = vld [vmem:[%s6 + $0x30] sm:$0xff]
  %v499 = vld [vmem:[%s6 + $0x38] sm:$0xff]
  %v500 = vld [vmem:[%s6 + $0x40] sm:$0xff]
  %v501 = vld [vmem:[%s6 + $0x48] sm:$0xff]
  %v502 = vld [vmem:[%s6 + $0x50] sm:$0xff]
  %v503 = vld [vmem:[%s6 + $0x58] sm:$0xff]
  %v504 = vld [vmem:[%s6 + $0x60] sm:$0xff]
  %v505 = vld [vmem:[%s6 + $0x68] sm:$0xff]
  %v506 = vld [vmem:[%s6 + $0x70] sm:$0xff]
  %v507 = vld [vmem:[%s6 + $0x78] sm:$0xff]
  %v508 = vld [vmem:[%s6 + $0x80] sm:$0xff]
  %v509 = vld [vmem:[%s6 + $0x88] sm:$0xff]
  %v510 = vld [vmem:[%s6 + $0x90] sm:$0xff]
  %v511 = vld [vmem:[%s6 + $0x98] sm:$0xff]
  %v512 = vld [vmem:[%s6 + $0xa0] sm:$0xff]
  %v513 = vld [vmem:[%s6 + $0xa8] sm:$0xff]
  %v514 = vld [vmem:[%s6 + $0xb0] sm:$0xff]
  %v515 = vld [vmem:[%s6 + $0xb8] sm:$0xff]
  %v516 = vld [vmem:[%s7] sm:$0x1]
  %v517 = vld [vmem:[%s7 + $0x1] sm:$0x1]
  %v518 = vld [vmem:[%s7 + $0x2] sm:$0x1]
  %v519 = vld [vmem:[%s7 + $0x3] sm:$0x1]
  %v520 = vld [vmem:[%s7 + $0x4] sm:$0x1]
  %v521 = vld [vmem:[%s7 + $0x5] sm:$0x1]
  %v522 = vld [vmem:[%s8] sm:$0x1]
  %v523 = vld [vmem:[%s8 + $0x1] sm:$0x1]
  %v524 = vld [vmem:[%s8 + $0x2] sm:$0x1]
  %v525 = vld [vmem:[%s8 + $0x3] sm:$0x1]
  %v526 = vld [vmem:[%s8 + $0x4] sm:$0x1]
  %v527 = vld [vmem:[%s8 + $0x5] sm:$0x1]
  %v529 = vlaneseq
  %v530 = vshrl.u32 %v529, 7
  %v531 = vsub.s32 0, %v530
  %v532 = vrot.slane %v516, %v531
  %v535 = vsel %vm311, %v478, 0
  %v538 = vsel %vm311, %v479, 0
  %540 = vmatprep.subr.mxu0 0.0
  %541 = vmatpush1.msra.mxu0 %v480
  %542 = vmatprep.subr.mxu0 0.0
  %543 = vmatpush1.msra.mxu0 %v481
  %544 = vmatprep.subr.mxu0 0.0
  %545 = vmatpush1.msra.mxu0 0.0
  %546 = vmatprep.subr.mxu0 0.0
  %547 = vmatpush1.msra.mxu0 0.0
  %548 = vmatprep.subr.mxu0 0.0
  %549 = vmatpush1.msra.mxu0 0.0
  %550 = vmatprep.subr.mxu0 0.0
  %551 = vmatpush1.msra.mxu0 0.0
  %552 = vmatprep.subr.mxu0 0.0
  %553 = vmatpush1.msra.mxu0 0.0
  %554 = vmatprep.subr.mxu0 0.0
  %555 = vmatpush1.msra.mxu0 0.0
  %556 = vmatprep.subr.mxu0 0.0
  %557 = vmatpush1.msra.mxu0 0.0
  %558 = vmatprep.subr.mxu0 0.0
  %559 = vmatpush1.msra.mxu0 0.0
  %560 = vmatprep.subr.mxu0 0.0
  %561 = vmatpush1.msra.mxu0 0.0
  %562 = vmatprep.subr.mxu0 0.0
  %563 = vmatpush1.msra.mxu0 0.0
  %564 = vmatprep.subr.mxu0 0.0
  %565 = vmatpush1.msra.mxu0 0.0
  %566 = vmatprep.subr.mxu0 0.0
  %567 = vmatpush1.msra.mxu0 0.0
  %568 = vmatprep.subr.mxu0 0.0
  %569 = vmatpush1.msra.mxu0 0.0
  %570 = vmatprep.subr.mxu0 0.0
  %571 = vmatpush1.msra.mxu0 0.0
  %572 = vmatprep.subr.mxu0 0.0
  %573 = vmatpush1.msra.mxu0 0.0
  %574 = vmatprep.subr.mxu0 0.0
  %575 = vmatpush1.msra.mxu0 0.0
  %576 = vmatprep.subr.mxu0 0.0
  %577 = vmatpush1.msra.mxu0 0.0
  %578 = vmatprep.subr.mxu0 0.0
  %579 = vmatpush1.msra.mxu0 0.0
  %580 = vmatprep.subr.mxu0 0.0
  %581 = vmatpush1.msra.mxu0 0.0
  %582 = vmatprep.subr.mxu0 0.0
  %583 = vmatpush1.msra.mxu0 0.0
  %584 = vmatprep.subr.mxu0 0.0
  %585 = vmatpush1.msra.mxu0 0.0
  %586 = vmatprep.subr.mxu0 0.0
  %587 = vmatpush1.msra.mxu0 0.0
  %588 = vmatprep.subr.mxu0 0.0
  %589 = vmatpush1.msra.mxu0 0.0
  %590 = vmatprep.subr.mxu0 0.0
  %591 = vmatpush1.msra.mxu0 0.0
  %592 = vmatprep.subr.mxu0 0.0
  %593 = vmatpush1.msra.mxu0 0.0
  %594 = vmatprep.subr.mxu0 0.0
  %595 = vmatpush1.msra.mxu0 0.0
  %596 = vmatprep.subr.mxu0 0.0
  %597 = vmatpush1.msra.mxu0 0.0
  %598 = vmatprep.subr.mxu0 0.0
  %599 = vmatpush1.msra.mxu0 0.0
  %600 = vmatprep.subr.mxu0 0.0
  %601 = vmatpush1.msra.mxu0 0.0
  %602 = vmatprep.subr.mxu0 0.0
  %603 = vmatpush1.msra.mxu0 0.0
  %604 = vmatprep.mubr.f32.mxu0 0.0
  %605 = vmatmul.mubr.f32.gmra.mrb[0].mxu0 %v535
  %v606 = vpop.f32.mrb[0].mxu0
  %v607 = vadd.f32 %v532, %v606
  %v608 = vpop.f32.mrb[0].mxu0
  %609 = vmatprep.mubr.f32.mxu0 0.0
  %610 = vmatmul.mubr.f32.gmra.mrb[0].mxu0 %v538
  %v611 = vpop.f32.mrb[0].mxu0
  %v612 = vadd.f32 %v532, %v611
  %v613 = vpop.f32.mrb[0].mxu0
  %614 = vdwg.mxu0
  %v616 = vlaneseq
  %v617 = vshrl.u32 %v616, 7
  %v618 = vsub.s32 0, %v617
  %v619 = vrot.slane %v517, %v618
  %621 = vmatprep.subr.mxu0 0.0
  %622 = vmatpush1.msra.mxu0 %v482
  %623 = vmatprep.subr.mxu0 0.0
  %624 = vmatpush1.msra.mxu0 %v483
  %625 = vmatprep.subr.mxu0 0.0
  %626 = vmatpush1.msra.mxu0 0.0
  %627 = vmatprep.subr.mxu0 0.0
  %628 = vmatpush1.msra.mxu0 0.0
  %629 = vmatprep.subr.mxu0 0.0
  %630 = vmatpush1.msra.mxu0 0.0
  %631 = vmatprep.subr.mxu0 0.0
  %632 = vmatpush1.msra.mxu0 0.0
  %633 = vmatprep.subr.mxu0 0.0
  %634 = vmatpush1.msra.mxu0 0.0
  %635 = vmatprep.subr.mxu0 0.0
  %636 = vmatpush1.msra.mxu0 0.0
  %637 = vmatprep.subr.mxu0 0.0
  %638 = vmatpush1.msra.mxu0 0.0
  %639 = vmatprep.subr.mxu0 0.0
  %640 = vmatpush1.msra.mxu0 0.0
  %641 = vmatprep.subr.mxu0 0.0
  %642 = vmatpush1.msra.mxu0 0.0
  %643 = vmatprep.subr.mxu0 0.0
  %644 = vmatpush1.msra.mxu0 0.0
  %645 = vmatprep.subr.mxu0 0.0
  %646 = vmatpush1.msra.mxu0 0.0
  %647 = vmatprep.subr.mxu0 0.0
  %648 = vmatpush1.msra.mxu0 0.0
  %649 = vmatprep.subr.mxu0 0.0
  %650 = vmatpush1.msra.mxu0 0.0
  %651 = vmatprep.subr.mxu0 0.0
  %652 = vmatpush1.msra.mxu0 0.0
  %653 = vmatprep.subr.mxu0 0.0
  %654 = vmatpush1.msra.mxu0 0.0
  %655 = vmatprep.subr.mxu0 0.0
  %656 = vmatpush1.msra.mxu0 0.0
  %657 = vmatprep.subr.mxu0 0.0
  %658 = vmatpush1.msra.mxu0 0.0
  %659 = vmatprep.subr.mxu0 0.0
  %660 = vmatpush1.msra.mxu0 0.0
  %661 = vmatprep.subr.mxu0 0.0
  %662 = vmatpush1.msra.mxu0 0.0
  %663 = vmatprep.subr.mxu0 0.0
  %664 = vmatpush1.msra.mxu0 0.0
  %665 = vmatprep.subr.mxu0 0.0
  %666 = vmatpush1.msra.mxu0 0.0
  %667 = vmatprep.subr.mxu0 0.0
  %668 = vmatpush1.msra.mxu0 0.0
  %669 = vmatprep.subr.mxu0 0.0
  %670 = vmatpush1.msra.mxu0 0.0
  %671 = vmatprep.subr.mxu0 0.0
  %672 = vmatpush1.msra.mxu0 0.0
  %673 = vmatprep.subr.mxu0 0.0
  %674 = vmatpush1.msra.mxu0 0.0
  %675 = vmatprep.subr.mxu0 0.0
  %676 = vmatpush1.msra.mxu0 0.0
  %677 = vmatprep.subr.mxu0 0.0
  %678 = vmatpush1.msra.mxu0 0.0
  %679 = vmatprep.subr.mxu0 0.0
  %680 = vmatpush1.msra.mxu0 0.0
  %681 = vmatprep.subr.mxu0 0.0
  %682 = vmatpush1.msra.mxu0 0.0
  %683 = vmatprep.subr.mxu0 0.0
  %684 = vmatpush1.msra.mxu0 0.0
  %685 = vmatprep.mubr.f32.mxu0 0.0
  %686 = vmatmul.mubr.f32.gmra.mrb[0].mxu0 %v535
  %v687 = vpop.f32.mrb[0].mxu0
  %v688 = vadd.f32 %v619, %v687
  %v689 = vpop.f32.mrb[0].mxu0
  %690 = vmatprep.mubr.f32.mxu0 0.0
  %691 = vmatmul.mubr.f32.gmra.mrb[0].mxu0 %v538
  %v692 = vpop.f32.mrb[0].mxu0
  %v693 = vadd.f32 %v619, %v692
  %v694 = vpop.f32.mrb[0].mxu0
  %695 = vdwg.mxu0
  %v697 = vlaneseq
  %v698 = vshrl.u32 %v697, 7
  %v699 = vsub.s32 0, %v698
  %v700 = vrot.slane %v518, %v699
  %702 = vmatprep.subr.mxu0 0.0
  %703 = vmatpush1.msra.mxu0 %v484
  %704 = vmatprep.subr.mxu0 0.0
  %705 = vmatpush1.msra.mxu0 %v485
  %706 = vmatprep.subr.mxu0 0.0
  %707 = vmatpush1.msra.mxu0 0.0
  %708 = vmatprep.subr.mxu0 0.0
  %709 = vmatpush1.msra.mxu0 0.0
  %710 = vmatprep.subr.mxu0 0.0
  %711 = vmatpush1.msra.mxu0 0.0
  %712 = vmatprep.subr.mxu0 0.0
  %713 = vmatpush1.msra.mxu0 0.0
  %714 = vmatprep.subr.mxu0 0.0
  %715 = vmatpush1.msra.mxu0 0.0
  %716 = vmatprep.subr.mxu0 0.0
  %717 = vmatpush1.msra.mxu0 0.0
  %718 = vmatprep.subr.mxu0 0.0
  %719 = vmatpush1.msra.mxu0 0.0
  %720 = vmatprep.subr.mxu0 0.0
  %721 = vmatpush1.msra.mxu0 0.0
  %722 = vmatprep.subr.mxu0 0.0
  %723 = vmatpush1.msra.mxu0 0.0
  %724 = vmatprep.subr.mxu0 0.0
  %725 = vmatpush1.msra.mxu0 0.0
  %726 = vmatprep.subr.mxu0 0.0
  %727 = vmatpush1.msra.mxu0 0.0
  %728 = vmatprep.subr.mxu0 0.0
  %729 = vmatpush1.msra.mxu0 0.0
  %730 = vmatprep.subr.mxu0 0.0
  %731 = vmatpush1.msra.mxu0 0.0
  %732 = vmatprep.subr.mxu0 0.0
  %733 = vmatpush1.msra.mxu0 0.0
  %734 = vmatprep.subr.mxu0 0.0
  %735 = vmatpush1.msra.mxu0 0.0
  %736 = vmatprep.subr.mxu0 0.0
  %737 = vmatpush1.msra.mxu0 0.0
  %738 = vmatprep.subr.mxu0 0.0
  %739 = vmatpush1.msra.mxu0 0.0
  %740 = vmatprep.subr.mxu0 0.0
  %741 = vmatpush1.msra.mxu0 0.0
  %742 = vmatprep.subr.mxu0 0.0
  %743 = vmatpush1.msra.mxu0 0.0
  %744 = vmatprep.subr.mxu0 0.0
  %745 = vmatpush1.msra.mxu0 0.0
  %746 = vmatprep.subr.mxu0 0.0
  %747 = vmatpush1.msra.mxu0 0.0
  %748 = vmatprep.subr.mxu0 0.0
  %749 = vmatpush1.msra.mxu0 0.0
  %750 = vmatprep.subr.mxu0 0.0
  %751 = vmatpush1.msra.mxu0 0.0
  %752 = vmatprep.subr.mxu0 0.0
  %753 = vmatpush1.msra.mxu0 0.0
  %754 = vmatprep.subr.mxu0 0.0
  %755 = vmatpush1.msra.mxu0 0.0
  %756 = vmatprep.subr.mxu0 0.0
  %757 = vmatpush1.msra.mxu0 0.0
  %758 = vmatprep.subr.mxu0 0.0
  %759 = vmatpush1.msra.mxu0 0.0
  %760 = vmatprep.subr.mxu0 0.0
  %761 = vmatpush1.msra.mxu0 0.0
  %762 = vmatprep.subr.mxu0 0.0
  %763 = vmatpush1.msra.mxu0 0.0
  %764 = vmatprep.subr.mxu0 0.0
  %765 = vmatpush1.msra.mxu0 0.0
  %766 = vmatprep.mubr.f32.mxu0 0.0
  %767 = vmatmul.mubr.f32.gmra.mrb[0].mxu0 %v535
  %v768 = vpop.f32.mrb[0].mxu0
  %v769 = vadd.f32 %v700, %v768
  %v770 = vpop.f32.mrb[0].mxu0
  %771 = vmatprep.mubr.f32.mxu0 0.0
  %772 = vmatmul.mubr.f32.gmra.mrb[0].mxu0 %v538
  %v773 = vpop.f32.mrb[0].mxu0
  %v774 = vadd.f32 %v700, %v773
  %v775 = vpop.f32.mrb[0].mxu0
  %776 = vdwg.mxu0
  %v778 = vlaneseq
  %v779 = vshrl.u32 %v778, 7
  %v780 = vsub.s32 0, %v779
  %v781 = vrot.slane %v519, %v780
  %783 = vmatprep.subr.mxu0 0.0
  %784 = vmatpush1.msra.mxu0 %v486
  %785 = vmatprep.subr.mxu0 0.0
  %786 = vmatpush1.msra.mxu0 %v487
  %787 = vmatprep.subr.mxu0 0.0
  %788 = vmatpush1.msra.mxu0 0.0
  %789 = vmatprep.subr.mxu0 0.0
  %790 = vmatpush1.msra.mxu0 0.0
  %791 = vmatprep.subr.mxu0 0.0
  %792 = vmatpush1.msra.mxu0 0.0
  %793 = vmatprep.subr.mxu0 0.0
  %794 = vmatpush1.msra.mxu0 0.0
  %795 = vmatprep.subr.mxu0 0.0
  %796 = vmatpush1.msra.mxu0 0.0
  %797 = vmatprep.subr.mxu0 0.0
  %798 = vmatpush1.msra.mxu0 0.0
  %799 = vmatprep.subr.mxu0 0.0
  %800 = vmatpush1.msra.mxu0 0.0
  %801 = vmatprep.subr.mxu0 0.0
  %802 = vmatpush1.msra.mxu0 0.0
  %803 = vmatprep.subr.mxu0 0.0
  %804 = vmatpush1.msra.mxu0 0.0
  %805 = vmatprep.subr.mxu0 0.0
  %806 = vmatpush1.msra.mxu0 0.0
  %807 = vmatprep.subr.mxu0 0.0
  %808 = vmatpush1.msra.mxu0 0.0
  %809 = vmatprep.subr.mxu0 0.0
  %810 = vmatpush1.msra.mxu0 0.0
  %811 = vmatprep.subr.mxu0 0.0
  %812 = vmatpush1.msra.mxu0 0.0
  %813 = vmatprep.subr.mxu0 0.0
  %814 = vmatpush1.msra.mxu0 0.0
  %815 = vmatprep.subr.mxu0 0.0
  %816 = vmatpush1.msra.mxu0 0.0
  %817 = vmatprep.subr.mxu0 0.0
  %818 = vmatpush1.msra.mxu0 0.0
  %819 = vmatprep.subr.mxu0 0.0
  %820 = vmatpush1.msra.mxu0 0.0
  %821 = vmatprep.subr.mxu0 0.0
  %822 = vmatpush1.msra.mxu0 0.0
  %823 = vmatprep.subr.mxu0 0.0
  %824 = vmatpush1.msra.mxu0 0.0
  %825 = vmatprep.subr.mxu0 0.0
  %826 = vmatpush1.msra.mxu0 0.0
  %827 = vmatprep.subr.mxu0 0.0
  %828 = vmatpush1.msra.mxu0 0.0
  %829 = vmatprep.subr.mxu0 0.0
  %830 = vmatpush1.msra.mxu0 0.0
  %831 = vmatprep.subr.mxu0 0.0
  %832 = vmatpush1.msra.mxu0 0.0
  %833 = vmatprep.subr.mxu0 0.0
  %834 = vmatpush1.msra.mxu0 0.0
  %835 = vmatprep.subr.mxu0 0.0
  %836 = vmatpush1.msra.mxu0 0.0
  %837 = vmatprep.subr.mxu0 0.0
  %838 = vmatpush1.msra.mxu0 0.0
  %839 = vmatprep.subr.mxu0 0.0
  %840 = vmatpush1.msra.mxu0 0.0
  %841 = vmatprep.subr.mxu0 0.0
  %842 = vmatpush1.msra.mxu0 0.0
  %843 = vmatprep.subr.mxu0 0.0
  %844 = vmatpush1.msra.mxu0 0.0
  %845 = vmatprep.subr.mxu0 0.0
  %846 = vmatpush1.msra.mxu0 0.0
  %847 = vmatprep.mubr.f32.mxu0 0.0
  %848 = vmatmul.mubr.f32.gmra.mrb[0].mxu0 %v535
  %v849 = vpop.f32.mrb[0].mxu0
  %v850 = vadd.f32 %v781, %v849
  %v851 = vpop.f32.mrb[0].mxu0
  %852 = vmatprep.mubr.f32.mxu0 0.0
  %853 = vmatmul.mubr.f32.gmra.mrb[0].mxu0 %v538
  %v854 = vpop.f32.mrb[0].mxu0
  %v855 = vadd.f32 %v781, %v854
  %v856 = vpop.f32.mrb[0].mxu0
  %857 = vdwg.mxu0
  %v859 = vlaneseq
  %v860 = vshrl.u32 %v859, 7
  %v861 = vsub.s32 0, %v860
  %v862 = vrot.slane %v520, %v861
  %864 = vmatprep.subr.mxu0 0.0
  %865 = vmatpush1.msra.mxu0 %v488
  %866 = vmatprep.subr.mxu0 0.0
  %867 = vmatpush1.msra.mxu0 %v489
  %868 = vmatprep.subr.mxu0 0.0
  %869 = vmatpush1.msra.mxu0 0.0
  %870 = vmatprep.subr.mxu0 0.0
  %871 = vmatpush1.msra.mxu0 0.0
  %872 = vmatprep.subr.mxu0 0.0
  %873 = vmatpush1.msra.mxu0 0.0
  %874 = vmatprep.subr.mxu0 0.0
  %875 = vmatpush1.msra.mxu0 0.0
  %876 = vmatprep.subr.mxu0 0.0
  %877 = vmatpush1.msra.mxu0 0.0
  %878 = vmatprep.subr.mxu0 0.0
  %879 = vmatpush1.msra.mxu0 0.0
  %880 = vmatprep.subr.mxu0 0.0
  %881 = vmatpush1.msra.mxu0 0.0
  %882 = vmatprep.subr.mxu0 0.0
  %883 = vmatpush1.msra.mxu0 0.0
  %884 = vmatprep.subr.mxu0 0.0
  %885 = vmatpush1.msra.mxu0 0.0
  %886 = vmatprep.subr.mxu0 0.0
  %887 = vmatpush1.msra.mxu0 0.0
  %888 = vmatprep.subr.mxu0 0.0
  %889 = vmatpush1.msra.mxu0 0.0
  %890 = vmatprep.subr.mxu0 0.0
  %891 = vmatpush1.msra.mxu0 0.0
  %892 = vmatprep.subr.mxu0 0.0
  %893 = vmatpush1.msra.mxu0 0.0
  %894 = vmatprep.subr.mxu0 0.0
  %895 = vmatpush1.msra.mxu0 0.0
  %896 = vmatprep.subr.mxu0 0.0
  %897 = vmatpush1.msra.mxu0 0.0
  %898 = vmatprep.subr.mxu0 0.0
  %899 = vmatpush1.msra.mxu0 0.0
  %900 = vmatprep.subr.mxu0 0.0
  %901 = vmatpush1.msra.mxu0 0.0
  %902 = vmatprep.subr.mxu0 0.0
  %903 = vmatpush1.msra.mxu0 0.0
  %904 = vmatprep.subr.mxu0 0.0
  %905 = vmatpush1.msra.mxu0 0.0
  %906 = vmatprep.subr.mxu0 0.0
  %907 = vmatpush1.msra.mxu0 0.0
  %908 = vmatprep.subr.mxu0 0.0
  %909 = vmatpush1.msra.mxu0 0.0
  %910 = vmatprep.subr.mxu0 0.0
  %911 = vmatpush1.msra.mxu0 0.0
  %912 = vmatprep.subr.mxu0 0.0
  %913 = vmatpush1.msra.mxu0 0.0
  %914 = vmatprep.subr.mxu0 0.0
  %915 = vmatpush1.msra.mxu0 0.0
  %916 = vmatprep.subr.mxu0 0.0
  %917 = vmatpush1.msra.mxu0 0.0
  %918 = vmatprep.subr.mxu0 0.0
  %919 = vmatpush1.msra.mxu0 0.0
  %920 = vmatprep.subr.mxu0 0.0
  %921 = vmatpush1.msra.mxu0 0.0
  %922 = vmatprep.subr.mxu0 0.0
  %923 = vmatpush1.msra.mxu0 0.0
  %924 = vmatprep.subr.mxu0 0.0
  %925 = vmatpush1.msra.mxu0 0.0
  %926 = vmatprep.subr.mxu0 0.0
  %927 = vmatpush1.msra.mxu0 0.0
  %928 = vmatprep.mubr.f32.mxu0 0.0
  %929 = vmatmul.mubr.f32.gmra.mrb[0].mxu0 %v535
  %v930 = vpop.f32.mrb[0].mxu0
  %v931 = vadd.f32 %v862, %v930
  %v932 = vpop.f32.mrb[0].mxu0
  %933 = vmatprep.mubr.f32.mxu0 0.0
  %934 = vmatmul.mubr.f32.gmra.mrb[0].mxu0 %v538
  %v935 = vpop.f32.mrb[0].mxu0
  %v936 = vadd.f32 %v862, %v935
  %v937 = vpop.f32.mrb[0].mxu0
  %938 = vdwg.mxu0
  %v940 = vlaneseq
  %v941 = vshrl.u32 %v940, 7
  %v942 = vsub.s32 0, %v941
  %v943 = vrot.slane %v521, %v942
  %945 = vmatprep.subr.mxu0 0.0
  %946 = vmatpush1.msra.mxu0 %v490
  %947 = vmatprep.subr.mxu0 0.0
  %948 = vmatpush1.msra.mxu0 %v491
  %949 = vmatprep.subr.mxu0 0.0
  %950 = vmatpush1.msra.mxu0 0.0
  %951 = vmatprep.subr.mxu0 0.0
  %952 = vmatpush1.msra.mxu0 0.0
  %953 = vmatprep.subr.mxu0 0.0
  %954 = vmatpush1.msra.mxu0 0.0
  %955 = vmatprep.subr.mxu0 0.0
  %956 = vmatpush1.msra.mxu0 0.0
  %957 = vmatprep.subr.mxu0 0.0
  %958 = vmatpush1.msra.mxu0 0.0
  %959 = vmatprep.subr.mxu0 0.0
  %960 = vmatpush1.msra.mxu0 0.0
  %961 = vmatprep.subr.mxu0 0.0
  %962 = vmatpush1.msra.mxu0 0.0
  %963 = vmatprep.subr.mxu0 0.0
  %964 = vmatpush1.msra.mxu0 0.0
  %965 = vmatprep.subr.mxu0 0.0
  %966 = vmatpush1.msra.mxu0 0.0
  %967 = vmatprep.subr.mxu0 0.0
  %968 = vmatpush1.msra.mxu0 0.0
  %969 = vmatprep.subr.mxu0 0.0
  %970 = vmatpush1.msra.mxu0 0.0
  %971 = vmatprep.subr.mxu0 0.0
  %972 = vmatpush1.msra.mxu0 0.0
  %973 = vmatprep.subr.mxu0 0.0
  %974 = vmatpush1.msra.mxu0 0.0
  %975 = vmatprep.subr.mxu0 0.0
  %976 = vmatpush1.msra.mxu0 0.0
  %977 = vmatprep.subr.mxu0 0.0
  %978 = vmatpush1.msra.mxu0 0.0
  %979 = vmatprep.subr.mxu0 0.0
  %980 = vmatpush1.msra.mxu0 0.0
  %981 = vmatprep.subr.mxu0 0.0
  %982 = vmatpush1.msra.mxu0 0.0
  %983 = vmatprep.subr.mxu0 0.0
  %984 = vmatpush1.msra.mxu0 0.0
  %985 = vmatprep.subr.mxu0 0.0
  %986 = vmatpush1.msra.mxu0 0.0
  %987 = vmatprep.subr.mxu0 0.0
  %988 = vmatpush1.msra.mxu0 0.0
  %989 = vmatprep.subr.mxu0 0.0
  %990 = vmatpush1.msra.mxu0 0.0
  %991 = vmatprep.subr.mxu0 0.0
  %992 = vmatpush1.msra.mxu0 0.0
  %993 = vmatprep.subr.mxu0 0.0
  %994 = vmatpush1.msra.mxu0 0.0
  %995 = vmatprep.subr.mxu0 0.0
  %996 = vmatpush1.msra.mxu0 0.0
  %997 = vmatprep.subr.mxu0 0.0
  %998 = vmatpush1.msra.mxu0 0.0
  %999 = vmatprep.subr.mxu0 0.0
  %1000 = vmatpush1.msra.mxu0 0.0
  %1001 = vmatprep.subr.mxu0 0.0
  %1002 = vmatpush1.msra.mxu0 0.0
  %1003 = vmatprep.subr.mxu0 0.0
  %1004 = vmatpush1.msra.mxu0 0.0
  %1005 = vmatprep.subr.mxu0 0.0
  %1006 = vmatpush1.msra.mxu0 0.0
  %1007 = vmatprep.subr.mxu0 0.0
  %1008 = vmatpush1.msra.mxu0 0.0
  %1009 = vmatprep.mubr.f32.mxu0 0.0
  %1010 = vmatmul.mubr.f32.gmra.mrb[0].mxu0 %v535
  %v1011 = vpop.f32.mrb[0].mxu0
  %v1012 = vadd.f32 %v943, %v1011
  %v1013 = vpop.f32.mrb[0].mxu0
  %1014 = vmatprep.mubr.f32.mxu0 0.0
  %1015 = vmatmul.mubr.f32.gmra.mrb[0].mxu0 %v538
  %v1016 = vpop.f32.mrb[0].mxu0
  %v1017 = vadd.f32 %v943, %v1016
  %v1018 = vpop.f32.mrb[0].mxu0
  %1019 = vdwg.mxu0
  %v1022 = vlaneseq
  %v1023 = vshrl.u32 %v1022, 7
  %v1024 = vsub.s32 0, %v1023
  %v1025 = vrot.slane %v522, %v1024
  %v1026 = vlaneseq
  %v1027 = vshrl.u32 %v1026, 7
  %v1028 = vsub.s32 0, %v1027
  %v1029 = vrot.slane %v525, %v1028
  %vm1032 = vcmask 261120
  %v1034 = vsel %vm1032, 0.0, 0
  %1036 = vmatprep.subr.mxu0 0.0
  %1037 = vmatpush1.msra.mxu0 %v492
  %1038 = vmatprep.subr.mxu0 0.0
  %1039 = vmatpush1.msra.mxu0 %v493
  %1040 = vmatprep.subr.mxu0 0.0
  %1041 = vmatpush1.msra.mxu0 %v494
  %1042 = vmatprep.subr.mxu0 0.0
  %1043 = vmatpush1.msra.mxu0 %v495
  %1044 = vmatprep.subr.mxu0 0.0
  %1045 = vmatpush1.msra.mxu0 0.0
  %1046 = vmatprep.subr.mxu0 0.0
  %1047 = vmatpush1.msra.mxu0 0.0
  %1048 = vmatprep.subr.mxu0 0.0
  %1049 = vmatpush1.msra.mxu0 0.0
  %1050 = vmatprep.subr.mxu0 0.0
  %1051 = vmatpush1.msra.mxu0 0.0
  %1052 = vmatprep.subr.mxu0 0.0
  %1053 = vmatpush1.msra.mxu0 0.0
  %1054 = vmatprep.subr.mxu0 0.0
  %1055 = vmatpush1.msra.mxu0 0.0
  %1056 = vmatprep.subr.mxu0 0.0
  %1057 = vmatpush1.msra.mxu0 0.0
  %1058 = vmatprep.subr.mxu0 0.0
  %1059 = vmatpush1.msra.mxu0 0.0
  %1060 = vmatprep.subr.mxu0 0.0
  %1061 = vmatpush1.msra.mxu0 0.0
  %1062 = vmatprep.subr.mxu0 0.0
  %1063 = vmatpush1.msra.mxu0 0.0
  %1064 = vmatprep.subr.mxu0 0.0
  %1065 = vmatpush1.msra.mxu0 0.0
  %1066 = vmatprep.subr.mxu0 0.0
  %1067 = vmatpush1.msra.mxu0 0.0
  %1068 = vmatprep.subr.mxu0 0.0
  %1069 = vmatpush1.msra.mxu0 0.0
  %1070 = vmatprep.subr.mxu0 0.0
  %1071 = vmatpush1.msra.mxu0 0.0
  %1072 = vmatprep.subr.mxu0 0.0
  %1073 = vmatpush1.msra.mxu0 0.0
  %1074 = vmatprep.subr.mxu0 0.0
  %1075 = vmatpush1.msra.mxu0 0.0
  %1076 = vmatprep.subr.mxu0 0.0
  %1077 = vmatpush1.msra.mxu0 0.0
  %1078 = vmatprep.subr.mxu0 0.0
  %1079 = vmatpush1.msra.mxu0 0.0
  %1080 = vmatprep.subr.mxu0 0.0
  %1081 = vmatpush1.msra.mxu0 0.0
  %1082 = vmatprep.subr.mxu0 0.0
  %1083 = vmatpush1.msra.mxu0 0.0
  %1084 = vmatprep.subr.mxu0 0.0
  %1085 = vmatpush1.msra.mxu0 0.0
  %1086 = vmatprep.subr.mxu0 0.0
  %1087 = vmatpush1.msra.mxu0 0.0
  %1088 = vmatprep.subr.mxu0 0.0
  %1089 = vmatpush1.msra.mxu0 0.0
  %1090 = vmatprep.subr.mxu0 0.0
  %1091 = vmatpush1.msra.mxu0 0.0
  %1092 = vmatprep.subr.mxu0 0.0
  %1093 = vmatpush1.msra.mxu0 0.0
  %1094 = vmatprep.subr.mxu0 0.0
  %1095 = vmatpush1.msra.mxu0 0.0
  %1096 = vmatprep.subr.mxu0 0.0
  %1097 = vmatpush1.msra.mxu0 0.0
  %1098 = vmatprep.subr.mxu0 0.0
  %1099 = vmatpush1.msra.mxu0 0.0
  %1100 = vmatprep.mubr.f32.mxu0 0.0
  %1101 = vmatmul.mubr.f32.gmra.mrb[0].mxu0 %v1034
  %v1102 = vpop.f32.mrb[0].mxu0
  %v1103 = vadd.f32 %v1025, %v1102
  %v1104 = vpop.f32.mrb[0].mxu0
  %1105 = vdwg.mxu0
  %1106 = vmatprep.subr.mxu0 0.0
  %1107 = vmatpush1.msra.mxu0 %v504
  %1108 = vmatprep.subr.mxu0 0.0
  %1109 = vmatpush1.msra.mxu0 %v505
  %1110 = vmatprep.subr.mxu0 0.0
  %1111 = vmatpush1.msra.mxu0 %v506
  %1112 = vmatprep.subr.mxu0 0.0
  %1113 = vmatpush1.msra.mxu0 %v507
  %1114 = vmatprep.subr.mxu0 0.0
  %1115 = vmatpush1.msra.mxu0 0.0
  %1116 = vmatprep.subr.mxu0 0.0
  %1117 = vmatpush1.msra.mxu0 0.0
  %1118 = vmatprep.subr.mxu0 0.0
  %1119 = vmatpush1.msra.mxu0 0.0
  %1120 = vmatprep.subr.mxu0 0.0
  %1121 = vmatpush1.msra.mxu0 0.0
  %1122 = vmatprep.subr.mxu0 0.0
  %1123 = vmatpush1.msra.mxu0 0.0
  %1124 = vmatprep.subr.mxu0 0.0
  %1125 = vmatpush1.msra.mxu0 0.0
  %1126 = vmatprep.subr.mxu0 0.0
  %1127 = vmatpush1.msra.mxu0 0.0
  %1128 = vmatprep.subr.mxu0 0.0
  %1129 = vmatpush1.msra.mxu0 0.0
  %1130 = vmatprep.subr.mxu0 0.0
  %1131 = vmatpush1.msra.mxu0 0.0
  %1132 = vmatprep.subr.mxu0 0.0
  %1133 = vmatpush1.msra.mxu0 0.0
  %1134 = vmatprep.subr.mxu0 0.0
  %1135 = vmatpush1.msra.mxu0 0.0
  %1136 = vmatprep.subr.mxu0 0.0
  %1137 = vmatpush1.msra.mxu0 0.0
  %1138 = vmatprep.subr.mxu0 0.0
  %1139 = vmatpush1.msra.mxu0 0.0
  %1140 = vmatprep.subr.mxu0 0.0
  %1141 = vmatpush1.msra.mxu0 0.0
  %1142 = vmatprep.subr.mxu0 0.0
  %1143 = vmatpush1.msra.mxu0 0.0
  %1144 = vmatprep.subr.mxu0 0.0
  %1145 = vmatpush1.msra.mxu0 0.0
  %1146 = vmatprep.subr.mxu0 0.0
  %1147 = vmatpush1.msra.mxu0 0.0
  %1148 = vmatprep.subr.mxu0 0.0
  %1149 = vmatpush1.msra.mxu0 0.0
  %1150 = vmatprep.subr.mxu0 0.0
  %1151 = vmatpush1.msra.mxu0 0.0
  %1152 = vmatprep.subr.mxu0 0.0
  %1153 = vmatpush1.msra.mxu0 0.0
  %1154 = vmatprep.subr.mxu0 0.0
  %1155 = vmatpush1.msra.mxu0 0.0
  %1156 = vmatprep.subr.mxu0 0.0
  %1157 = vmatpush1.msra.mxu0 0.0
  %1158 = vmatprep.subr.mxu0 0.0
  %1159 = vmatpush1.msra.mxu0 0.0
  %1160 = vmatprep.subr.mxu0 0.0
  %1161 = vmatpush1.msra.mxu0 0.0
  %1162 = vmatprep.subr.mxu0 0.0
  %1163 = vmatpush1.msra.mxu0 0.0
  %1164 = vmatprep.subr.mxu0 0.0
  %1165 = vmatpush1.msra.mxu0 0.0
  %1166 = vmatprep.subr.mxu0 0.0
  %1167 = vmatpush1.msra.mxu0 0.0
  %1168 = vmatprep.subr.mxu0 0.0
  %1169 = vmatpush1.msra.mxu0 0.0
  %1170 = vmatprep.mubr.f32.mxu0 0.0
  %1171 = vmatmul.mubr.f32.gmra.mrb[0].mxu0 %v1034
  %v1172 = vpop.f32.mrb[0].mxu0
  %v1173 = vadd.f32 %v1029, %v1172
  %v1174 = vpop.f32.mrb[0].mxu0
  %1175 = vdwg.mxu0
  %v1178 = vlaneseq
  %v1179 = vshrl.u32 %v1178, 7
  %v1180 = vsub.s32 0, %v1179
  %v1181 = vrot.slane %v523, %v1180
  %v1182 = vlaneseq
  %v1183 = vshrl.u32 %v1182, 7
  %v1184 = vsub.s32 0, %v1183
  %v1185 = vrot.slane %v526, %v1184
  %1188 = vmatprep.subr.mxu0 0.0
  %1189 = vmatpush1.msra.mxu0 %v496
  %1190 = vmatprep.subr.mxu0 0.0
  %1191 = vmatpush1.msra.mxu0 %v497
  %1192 = vmatprep.subr.mxu0 0.0
  %1193 = vmatpush1.msra.mxu0 %v498
  %1194 = vmatprep.subr.mxu0 0.0
  %1195 = vmatpush1.msra.mxu0 %v499
  %1196 = vmatprep.subr.mxu0 0.0
  %1197 = vmatpush1.msra.mxu0 0.0
  %1198 = vmatprep.subr.mxu0 0.0
  %1199 = vmatpush1.msra.mxu0 0.0
  %1200 = vmatprep.subr.mxu0 0.0
  %1201 = vmatpush1.msra.mxu0 0.0
  %1202 = vmatprep.subr.mxu0 0.0
  %1203 = vmatpush1.msra.mxu0 0.0
  %1204 = vmatprep.subr.mxu0 0.0
  %1205 = vmatpush1.msra.mxu0 0.0
  %1206 = vmatprep.subr.mxu0 0.0
  %1207 = vmatpush1.msra.mxu0 0.0
  %1208 = vmatprep.subr.mxu0 0.0
  %1209 = vmatpush1.msra.mxu0 0.0
  %1210 = vmatprep.subr.mxu0 0.0
  %1211 = vmatpush1.msra.mxu0 0.0
  %1212 = vmatprep.subr.mxu0 0.0
  %1213 = vmatpush1.msra.mxu0 0.0
  %1214 = vmatprep.subr.mxu0 0.0
  %1215 = vmatpush1.msra.mxu0 0.0
  %1216 = vmatprep.subr.mxu0 0.0
  %1217 = vmatpush1.msra.mxu0 0.0
  %1218 = vmatprep.subr.mxu0 0.0
  %1219 = vmatpush1.msra.mxu0 0.0
  %1220 = vmatprep.subr.mxu0 0.0
  %1221 = vmatpush1.msra.mxu0 0.0
  %1222 = vmatprep.subr.mxu0 0.0
  %1223 = vmatpush1.msra.mxu0 0.0
  %1224 = vmatprep.subr.mxu0 0.0
  %1225 = vmatpush1.msra.mxu0 0.0
  %1226 = vmatprep.subr.mxu0 0.0
  %1227 = vmatpush1.msra.mxu0 0.0
  %1228 = vmatprep.subr.mxu0 0.0
  %1229 = vmatpush1.msra.mxu0 0.0
  %1230 = vmatprep.subr.mxu0 0.0
  %1231 = vmatpush1.msra.mxu0 0.0
  %1232 = vmatprep.subr.mxu0 0.0
  %1233 = vmatpush1.msra.mxu0 0.0
  %1234 = vmatprep.subr.mxu0 0.0
  %1235 = vmatpush1.msra.mxu0 0.0
  %1236 = vmatprep.subr.mxu0 0.0
  %1237 = vmatpush1.msra.mxu0 0.0
  %1238 = vmatprep.subr.mxu0 0.0
  %1239 = vmatpush1.msra.mxu0 0.0
  %1240 = vmatprep.subr.mxu0 0.0
  %1241 = vmatpush1.msra.mxu0 0.0
  %1242 = vmatprep.subr.mxu0 0.0
  %1243 = vmatpush1.msra.mxu0 0.0
  %1244 = vmatprep.subr.mxu0 0.0
  %1245 = vmatpush1.msra.mxu0 0.0
  %1246 = vmatprep.subr.mxu0 0.0
  %1247 = vmatpush1.msra.mxu0 0.0
  %1248 = vmatprep.subr.mxu0 0.0
  %1249 = vmatpush1.msra.mxu0 0.0
  %1250 = vmatprep.subr.mxu0 0.0
  %1251 = vmatpush1.msra.mxu0 0.0
  %1252 = vmatprep.mubr.f32.mxu0 0.0
  %1253 = vmatmul.mubr.f32.gmra.mrb[0].mxu0 %v1034
  %v1254 = vpop.f32.mrb[0].mxu0
  %v1255 = vadd.f32 %v1181, %v1254
  %v1256 = vpop.f32.mrb[0].mxu0
  %1257 = vdwg.mxu0
  %1258 = vmatprep.subr.mxu0 0.0
  %1259 = vmatpush1.msra.mxu0 %v508
  %1260 = vmatprep.subr.mxu0 0.0
  %1261 = vmatpush1.msra.mxu0 %v509
  %1262 = vmatprep.subr.mxu0 0.0
  %1263 = vmatpush1.msra.mxu0 %v510
  %1264 = vmatprep.subr.mxu0 0.0
  %1265 = vmatpush1.msra.mxu0 %v511
  %1266 = vmatprep.subr.mxu0 0.0
  %1267 = vmatpush1.msra.mxu0 0.0
  %1268 = vmatprep.subr.mxu0 0.0
  %1269 = vmatpush1.msra.mxu0 0.0
  %1270 = vmatprep.subr.mxu0 0.0
  %1271 = vmatpush1.msra.mxu0 0.0
  %1272 = vmatprep.subr.mxu0 0.0
  %1273 = vmatpush1.msra.mxu0 0.0
  %1274 = vmatprep.subr.mxu0 0.0
  %1275 = vmatpush1.msra.mxu0 0.0
  %1276 = vmatprep.subr.mxu0 0.0
  %1277 = vmatpush1.msra.mxu0 0.0
  %1278 = vmatprep.subr.mxu0 0.0
  %1279 = vmatpush1.msra.mxu0 0.0
  %1280 = vmatprep.subr.mxu0 0.0
  %1281 = vmatpush1.msra.mxu0 0.0
  %1282 = vmatprep.subr.mxu0 0.0
  %1283 = vmatpush1.msra.mxu0 0.0
  %1284 = vmatprep.subr.mxu0 0.0
  %1285 = vmatpush1.msra.mxu0 0.0
  %1286 = vmatprep.subr.mxu0 0.0
  %1287 = vmatpush1.msra.mxu0 0.0
  %1288 = vmatprep.subr.mxu0 0.0
  %1289 = vmatpush1.msra.mxu0 0.0
  %1290 = vmatprep.subr.mxu0 0.0
  %1291 = vmatpush1.msra.mxu0 0.0
  %1292 = vmatprep.subr.mxu0 0.0
  %1293 = vmatpush1.msra.mxu0 0.0
  %1294 = vmatprep.subr.mxu0 0.0
  %1295 = vmatpush1.msra.mxu0 0.0
  %1296 = vmatprep.subr.mxu0 0.0
  %1297 = vmatpush1.msra.mxu0 0.0
  %1298 = vmatprep.subr.mxu0 0.0
  %1299 = vmatpush1.msra.mxu0 0.0
  %1300 = vmatprep.subr.mxu0 0.0
  %1301 = vmatpush1.msra.mxu0 0.0
  %1302 = vmatprep.subr.mxu0 0.0
  %1303 = vmatpush1.msra.mxu0 0.0
  %1304 = vmatprep.subr.mxu0 0.0
  %1305 = vmatpush1.msra.mxu0 0.0
  %1306 = vmatprep.subr.mxu0 0.0
  %1307 = vmatpush1.msra.mxu0 0.0
  %1308 = vmatprep.subr.mxu0 0.0
  %1309 = vmatpush1.msra.mxu0 0.0
  %1310 = vmatprep.subr.mxu0 0.0
  %1311 = vmatpush1.msra.mxu0 0.0
  %1312 = vmatprep.subr.mxu0 0.0
  %1313 = vmatpush1.msra.mxu0 0.0
  %1314 = vmatprep.subr.mxu0 0.0
  %1315 = vmatpush1.msra.mxu0 0.0
  %1316 = vmatprep.subr.mxu0 0.0
  %1317 = vmatpush1.msra.mxu0 0.0
  %1318 = vmatprep.subr.mxu0 0.0
  %1319 = vmatpush1.msra.mxu0 0.0
  %1320 = vmatprep.subr.mxu0 0.0
  %1321 = vmatpush1.msra.mxu0 0.0
  %1322 = vmatprep.mubr.f32.mxu0 0.0
  %1323 = vmatmul.mubr.f32.gmra.mrb[0].mxu0 %v1034
  %v1324 = vpop.f32.mrb[0].mxu0
  %v1325 = vadd.f32 %v1185, %v1324
  %v1326 = vpop.f32.mrb[0].mxu0
  %1327 = vdwg.mxu0
  %v1330 = vlaneseq
  %v1331 = vshrl.u32 %v1330, 7
  %v1332 = vsub.s32 0, %v1331
  %v1333 = vrot.slane %v524, %v1332
  %v1334 = vlaneseq
  %v1335 = vshrl.u32 %v1334, 7
  %v1336 = vsub.s32 0, %v1335
  %v1337 = vrot.slane %v527, %v1336
  %1340 = vmatprep.subr.mxu0 0.0
  %1341 = vmatpush1.msra.mxu0 %v500
  %1342 = vmatprep.subr.mxu0 0.0
  %1343 = vmatpush1.msra.mxu0 %v501
  %1344 = vmatprep.subr.mxu0 0.0
  %1345 = vmatpush1.msra.mxu0 %v502
  %1346 = vmatprep.subr.mxu0 0.0
  %1347 = vmatpush1.msra.mxu0 %v503
  %1348 = vmatprep.subr.mxu0 0.0
  %1349 = vmatpush1.msra.mxu0 0.0
  %1350 = vmatprep.subr.mxu0 0.0
  %1351 = vmatpush1.msra.mxu0 0.0
  %1352 = vmatprep.subr.mxu0 0.0
  %1353 = vmatpush1.msra.mxu0 0.0
  %1354 = vmatprep.subr.mxu0 0.0
  %1355 = vmatpush1.msra.mxu0 0.0
  %1356 = vmatprep.subr.mxu0 0.0
  %1357 = vmatpush1.msra.mxu0 0.0
  %1358 = vmatprep.subr.mxu0 0.0
  %1359 = vmatpush1.msra.mxu0 0.0
  %1360 = vmatprep.subr.mxu0 0.0
  %1361 = vmatpush1.msra.mxu0 0.0
  %1362 = vmatprep.subr.mxu0 0.0
  %1363 = vmatpush1.msra.mxu0 0.0
  %1364 = vmatprep.subr.mxu0 0.0
  %1365 = vmatpush1.msra.mxu0 0.0
  %1366 = vmatprep.subr.mxu0 0.0
  %1367 = vmatpush1.msra.mxu0 0.0
  %1368 = vmatprep.subr.mxu0 0.0
  %1369 = vmatpush1.msra.mxu0 0.0
  %1370 = vmatprep.subr.mxu0 0.0
  %1371 = vmatpush1.msra.mxu0 0.0
  %1372 = vmatprep.subr.mxu0 0.0
  %1373 = vmatpush1.msra.mxu0 0.0
  %1374 = vmatprep.subr.mxu0 0.0
  %1375 = vmatpush1.msra.mxu0 0.0
  %1376 = vmatprep.subr.mxu0 0.0
  %1377 = vmatpush1.msra.mxu0 0.0
  %1378 = vmatprep.subr.mxu0 0.0
  %1379 = vmatpush1.msra.mxu0 0.0
  %1380 = vmatprep.subr.mxu0 0.0
  %1381 = vmatpush1.msra.mxu0 0.0
  %1382 = vmatprep.subr.mxu0 0.0
  %1383 = vmatpush1.msra.mxu0 0.0
  %1384 = vmatprep.subr.mxu0 0.0
  %1385 = vmatpush1.msra.mxu0 0.0
  %1386 = vmatprep.subr.mxu0 0.0
  %1387 = vmatpush1.msra.mxu0 0.0
  %1388 = vmatprep.subr.mxu0 0.0
  %1389 = vmatpush1.msra.mxu0 0.0
  %1390 = vmatprep.subr.mxu0 0.0
  %1391 = vmatpush1.msra.mxu0 0.0
  %1392 = vmatprep.subr.mxu0 0.0
  %1393 = vmatpush1.msra.mxu0 0.0
  %1394 = vmatprep.subr.mxu0 0.0
  %1395 = vmatpush1.msra.mxu0 0.0
  %1396 = vmatprep.subr.mxu0 0.0
  %1397 = vmatpush1.msra.mxu0 0.0
  %1398 = vmatprep.subr.mxu0 0.0
  %1399 = vmatpush1.msra.mxu0 0.0
  %1400 = vmatprep.subr.mxu0 0.0
  %1401 = vmatpush1.msra.mxu0 0.0
  %1402 = vmatprep.subr.mxu0 0.0
  %1403 = vmatpush1.msra.mxu0 0.0
  %1404 = vmatprep.mubr.f32.mxu0 0.0
  %1405 = vmatmul.mubr.f32.gmra.mrb[0].mxu0 %v1034
  %v1406 = vpop.f32.mrb[0].mxu0
  %v1407 = vadd.f32 %v1333, %v1406
  %v1408 = vpop.f32.mrb[0].mxu0
  %1409 = vdwg.mxu0
  %1410 = vmatprep.subr.mxu0 0.0
  %1411 = vmatpush1.msra.mxu0 %v512
  %1412 = vmatprep.subr.mxu0 0.0
  %1413 = vmatpush1.msra.mxu0 %v513
  %1414 = vmatprep.subr.mxu0 0.0
  %1415 = vmatpush1.msra.mxu0 %v514
  %1416 = vmatprep.subr.mxu0 0.0
  %1417 = vmatpush1.msra.mxu0 %v515
  %1418 = vmatprep.subr.mxu0 0.0
  %1419 = vmatpush1.msra.mxu0 0.0
  %1420 = vmatprep.subr.mxu0 0.0
  %1421 = vmatpush1.msra.mxu0 0.0
  %1422 = vmatprep.subr.mxu0 0.0
  %1423 = vmatpush1.msra.mxu0 0.0
  %1424 = vmatprep.subr.mxu0 0.0
  %1425 = vmatpush1.msra.mxu0 0.0
  %1426 = vmatprep.subr.mxu0 0.0
  %1427 = vmatpush1.msra.mxu0 0.0
  %1428 = vmatprep.subr.mxu0 0.0
  %1429 = vmatpush1.msra.mxu0 0.0
  %1430 = vmatprep.subr.mxu0 0.0
  %1431 = vmatpush1.msra.mxu0 0.0
  %1432 = vmatprep.subr.mxu0 0.0
  %1433 = vmatpush1.msra.mxu0 0.0
  %1434 = vmatprep.subr.mxu0 0.0
  %1435 = vmatpush1.msra.mxu0 0.0
  %1436 = vmatprep.subr.mxu0 0.0
  %1437 = vmatpush1.msra.mxu0 0.0
  %1438 = vmatprep.subr.mxu0 0.0
  %1439 = vmatpush1.msra.mxu0 0.0
  %1440 = vmatprep.subr.mxu0 0.0
  %1441 = vmatpush1.msra.mxu0 0.0
  %1442 = vmatprep.subr.mxu0 0.0
  %1443 = vmatpush1.msra.mxu0 0.0
  %1444 = vmatprep.subr.mxu0 0.0
  %1445 = vmatpush1.msra.mxu0 0.0
  %1446 = vmatprep.subr.mxu0 0.0
  %1447 = vmatpush1.msra.mxu0 0.0
  %1448 = vmatprep.subr.mxu0 0.0
  %1449 = vmatpush1.msra.mxu0 0.0
  %1450 = vmatprep.subr.mxu0 0.0
  %1451 = vmatpush1.msra.mxu0 0.0
  %1452 = vmatprep.subr.mxu0 0.0
  %1453 = vmatpush1.msra.mxu0 0.0
  %1454 = vmatprep.subr.mxu0 0.0
  %1455 = vmatpush1.msra.mxu0 0.0
  %1456 = vmatprep.subr.mxu0 0.0
  %1457 = vmatpush1.msra.mxu0 0.0
  %1458 = vmatprep.subr.mxu0 0.0
  %1459 = vmatpush1.msra.mxu0 0.0
  %1460 = vmatprep.subr.mxu0 0.0
  %1461 = vmatpush1.msra.mxu0 0.0
  %1462 = vmatprep.subr.mxu0 0.0
  %1463 = vmatpush1.msra.mxu0 0.0
  %1464 = vmatprep.subr.mxu0 0.0
  %1465 = vmatpush1.msra.mxu0 0.0
  %1466 = vmatprep.subr.mxu0 0.0
  %1467 = vmatpush1.msra.mxu0 0.0
  %1468 = vmatprep.subr.mxu0 0.0
  %1469 = vmatpush1.msra.mxu0 0.0
  %1470 = vmatprep.subr.mxu0 0.0
  %1471 = vmatpush1.msra.mxu0 0.0
  %1472 = vmatprep.subr.mxu0 0.0
  %1473 = vmatpush1.msra.mxu0 0.0
  %1474 = vmatprep.mubr.f32.mxu0 0.0
  %1475 = vmatmul.mubr.f32.gmra.mrb[0].mxu0 %v1034
  %v1476 = vpop.f32.mrb[0].mxu0
  %v1477 = vadd.f32 %v1337, %v1476
  %v1478 = vpop.f32.mrb[0].mxu0
  %1479 = vdwg.mxu0
  %v1481 = vrot.slane %v855, 6
  %v1483 = vadd.f32 %v607, %v1103
  %v1484 = vadd.f32 %v1481, %v1173
  %v1485 = vmul.f32 %v1483, 0.5
  %v1486 = vmul.f32 %v1484, 0.5
  %v1487 = vtanh.pop %v1485
  %v1488 = vtanh.pop %v1486
  %v1489 = vmul.f32 %v1487, 0.5
  %v1490 = vmul.f32 %v1488, 0.5
  %v1491 = vadd.f32 %v1489, 0.5
  %v1492 = vadd.f32 %v1490, 0.5
  %v1494 = vrot.slane %v936, 6
  %v1496 = vadd.f32 %v688, %v1255
  %v1497 = vadd.f32 %v1494, %v1325
  %v1498 = vmul.f32 %v1496, 0.5
  %v1499 = vmul.f32 %v1497, 0.5
  %v1500 = vtanh.pop %v1498
  %v1501 = vtanh.pop %v1499
  %v1502 = vmul.f32 %v1500, 0.5
  %v1503 = vmul.f32 %v1501, 0.5
  %v1504 = vadd.f32 %v1502, 0.5
  %v1505 = vadd.f32 %v1503, 0.5
  %v1507 = vrot.slane %v1017, 6
  %v1509 = vmul.f32 %v1491, %v1407
  %v1510 = vmul.f32 %v1492, %v1477
  %v1511 = vadd.f32 %v769, %v1509
  %v1512 = vadd.f32 %v1507, %v1510
  %v1513 = vtanh.pop %v1511
  %v1514 = vtanh.pop %v1512
  %v1515 = vsub.f32 1.0, %v1504
  %v1516 = vsub.f32 1.0, %v1505
  %v1517 = vmul.f32 %v1515, %v1513
  %v1518 = vmul.f32 %v1516, %v1514
  %v1519 = vmul.f32 %v1504, 0.0
  %v1520 = vmul.f32 %v1505, 0.0
  %v1521 = vadd.f32 %v1517, %v1519
  %v1522 = vadd.f32 %v1518, %v1520
  %v1524 = vsel %vm1032, %v1521, 0
  %1526 = vmatprep.subr.mxu0 0.0
  %1527 = vmatpush1.msra.mxu0 %v492
  %1528 = vmatprep.subr.mxu0 0.0
  %1529 = vmatpush1.msra.mxu0 %v493
  %1530 = vmatprep.subr.mxu0 0.0
  %1531 = vmatpush1.msra.mxu0 %v494
  %1532 = vmatprep.subr.mxu0 0.0
  %1533 = vmatpush1.msra.mxu0 %v495
  %1534 = vmatprep.subr.mxu0 0.0
  %1535 = vmatpush1.msra.mxu0 0.0
  %1536 = vmatprep.subr.mxu0 0.0
  %1537 = vmatpush1.msra.mxu0 0.0
  %1538 = vmatprep.subr.mxu0 0.0
  %1539 = vmatpush1.msra.mxu0 0.0
  %1540 = vmatprep.subr.mxu0 0.0
  %1541 = vmatpush1.msra.mxu0 0.0
  %1542 = vmatprep.subr.mxu0 0.0
  %1543 = vmatpush1.msra.mxu0 0.0
  %1544 = vmatprep.subr.mxu0 0.0
  %1545 = vmatpush1.msra.mxu0 0.0
  %1546 = vmatprep.subr.mxu0 0.0
  %1547 = vmatpush1.msra.mxu0 0.0
  %1548 = vmatprep.subr.mxu0 0.0
  %1549 = vmatpush1.msra.mxu0 0.0
  %1550 = vmatprep.subr.mxu0 0.0
  %1551 = vmatpush1.msra.mxu0 0.0
  %1552 = vmatprep.subr.mxu0 0.0
  %1553 = vmatpush1.msra.mxu0 0.0
  %1554 = vmatprep.subr.mxu0 0.0
  %1555 = vmatpush1.msra.mxu0 0.0
  %1556 = vmatprep.subr.mxu0 0.0
  %1557 = vmatpush1.msra.mxu0 0.0
  %1558 = vmatprep.subr.mxu0 0.0
  %1559 = vmatpush1.msra.mxu0 0.0
  %1560 = vmatprep.subr.mxu0 0.0
  %1561 = vmatpush1.msra.mxu0 0.0
  %1562 = vmatprep.subr.mxu0 0.0
  %1563 = vmatpush1.msra.mxu0 0.0
  %1564 = vmatprep.subr.mxu0 0.0
  %1565 = vmatpush1.msra.mxu0 0.0
  %1566 = vmatprep.subr.mxu0 0.0
  %1567 = vmatpush1.msra.mxu0 0.0
  %1568 = vmatprep.subr.mxu0 0.0
  %1569 = vmatpush1.msra.mxu0 0.0
  %1570 = vmatprep.subr.mxu0 0.0
  %1571 = vmatpush1.msra.mxu0 0.0
  %1572 = vmatprep.subr.mxu0 0.0
  %1573 = vmatpush1.msra.mxu0 0.0
  %1574 = vmatprep.subr.mxu0 0.0
  %1575 = vmatpush1.msra.mxu0 0.0
  %1576 = vmatprep.subr.mxu0 0.0
  %1577 = vmatpush1.msra.mxu0 0.0
  %1578 = vmatprep.subr.mxu0 0.0
  %1579 = vmatpush1.msra.mxu0 0.0
  %1580 = vmatprep.subr.mxu0 0.0
  %1581 = vmatpush1.msra.mxu0 0.0
  %1582 = vmatprep.subr.mxu0 0.0
  %1583 = vmatpush1.msra.mxu0 0.0
  %1584 = vmatprep.subr.mxu0 0.0
  %1585 = vmatpush1.msra.mxu0 0.0
  %1586 = vmatprep.subr.mxu0 0.0
  %1587 = vmatpush1.msra.mxu0 0.0
  %1588 = vmatprep.subr.mxu0 0.0
  %1589 = vmatpush1.msra.mxu0 0.0
  %1590 = vmatprep.mubr.f32.mxu0 0.0
  %1591 = vmatmul.mubr.f32.gmra.mrb[0].mxu0 %v1524
  %v1592 = vpop.f32.mrb[0].mxu0
  %v1593 = vadd.f32 %v1025, %v1592
  %v1594 = vpop.f32.mrb[0].mxu0
  %1595 = vdwg.mxu0
  %v1597 = vsel %vm1032, %v1522, 0
  %1599 = vmatprep.subr.mxu0 0.0
  %1600 = vmatpush1.msra.mxu0 %v504
  %1601 = vmatprep.subr.mxu0 0.0
  %1602 = vmatpush1.msra.mxu0 %v505
  %1603 = vmatprep.subr.mxu0 0.0
  %1604 = vmatpush1.msra.mxu0 %v506
  %1605 = vmatprep.subr.mxu0 0.0
  %1606 = vmatpush1.msra.mxu0 %v507
  %1607 = vmatprep.subr.mxu0 0.0
  %1608 = vmatpush1.msra.mxu0 0.0
  %1609 = vmatprep.subr.mxu0 0.0
  %1610 = vmatpush1.msra.mxu0 0.0
  %1611 = vmatprep.subr.mxu0 0.0
  %1612 = vmatpush1.msra.mxu0 0.0
  %1613 = vmatprep.subr.mxu0 0.0
  %1614 = vmatpush1.msra.mxu0 0.0
  %1615 = vmatprep.subr.mxu0 0.0
  %1616 = vmatpush1.msra.mxu0 0.0
  %1617 = vmatprep.subr.mxu0 0.0
  %1618 = vmatpush1.msra.mxu0 0.0
  %1619 = vmatprep.subr.mxu0 0.0
  %1620 = vmatpush1.msra.mxu0 0.0
  %1621 = vmatprep.subr.mxu0 0.0
  %1622 = vmatpush1.msra.mxu0 0.0
  %1623 = vmatprep.subr.mxu0 0.0
  %1624 = vmatpush1.msra.mxu0 0.0
  %1625 = vmatprep.subr.mxu0 0.0
  %1626 = vmatpush1.msra.mxu0 0.0
  %1627 = vmatprep.subr.mxu0 0.0
  %1628 = vmatpush1.msra.mxu0 0.0
  %1629 = vmatprep.subr.mxu0 0.0
  %1630 = vmatpush1.msra.mxu0 0.0
  %1631 = vmatprep.subr.mxu0 0.0
  %1632 = vmatpush1.msra.mxu0 0.0
  %1633 = vmatprep.subr.mxu0 0.0
  %1634 = vmatpush1.msra.mxu0 0.0
  %1635 = vmatprep.subr.mxu0 0.0
  %1636 = vmatpush1.msra.mxu0 0.0
  %1637 = vmatprep.subr.mxu0 0.0
  %1638 = vmatpush1.msra.mxu0 0.0
  %1639 = vmatprep.subr.mxu0 0.0
  %1640 = vmatpush1.msra.mxu0 0.0
  %1641 = vmatprep.subr.mxu0 0.0
  %1642 = vmatpush1.msra.mxu0 0.0
  %1643 = vmatprep.subr.mxu0 0.0
  %1644 = vmatpush1.msra.mxu0 0.0
  %1645 = vmatprep.subr.mxu0 0.0
  %1646 = vmatpush1.msra.mxu0 0.0
  %1647 = vmatprep.subr.mxu0 0.0
  %1648 = vmatpush1.msra.mxu0 0.0
  %1649 = vmatprep.subr.mxu0 0.0
  %1650 = vmatpush1.msra.mxu0 0.0
  %1651 = vmatprep.subr.mxu0 0.0
  %1652 = vmatpush1.msra.mxu0 0.0
  %1653 = vmatprep.subr.mxu0 0.0
  %1654 = vmatpush1.msra.mxu0 0.0
  %1655 = vmatprep.subr.mxu0 0.0
  %1656 = vmatpush1.msra.mxu0 0.0
  %1657 = vmatprep.subr.mxu0 0.0
  %1658 = vmatpush1.msra.mxu0 0.0
  %1659 = vmatprep.subr.mxu0 0.0
  %1660 = vmatpush1.msra.mxu0 0.0
  %1661 = vmatprep.subr.mxu0 0.0
  %1662 = vmatpush1.msra.mxu0 0.0
  %1663 = vmatprep.mubr.f32.mxu0 0.0
  %1664 = vmatmul.mubr.f32.gmra.mrb[0].mxu0 %v1597
  %v1665 = vpop.f32.mrb[0].mxu0
  %v1666 = vadd.f32 %v1029, %v1665
  %v1667 = vpop.f32.mrb[0].mxu0
  %1668 = vdwg.mxu0
  %1669 = vmatprep.subr.mxu0 0.0
  %1670 = vmatpush1.msra.mxu0 %v496
  %1671 = vmatprep.subr.mxu0 0.0
  %1672 = vmatpush1.msra.mxu0 %v497
  %1673 = vmatprep.subr.mxu0 0.0
  %1674 = vmatpush1.msra.mxu0 %v498
  %1675 = vmatprep.subr.mxu0 0.0
  %1676 = vmatpush1.msra.mxu0 %v499
  %1677 = vmatprep.subr.mxu0 0.0
  %1678 = vmatpush1.msra.mxu0 0.0
  %1679 = vmatprep.subr.mxu0 0.0
  %1680 = vmatpush1.msra.mxu0 0.0
  %1681 = vmatprep.subr.mxu0 0.0
  %1682 = vmatpush1.msra.mxu0 0.0
  %1683 = vmatprep.subr.mxu0 0.0
  %1684 = vmatpush1.msra.mxu0 0.0
  %1685 = vmatprep.subr.mxu0 0.0
  %1686 = vmatpush1.msra.mxu0 0.0
  %1687 = vmatprep.subr.mxu0 0.0
  %1688 = vmatpush1.msra.mxu0 0.0
  %1689 = vmatprep.subr.mxu0 0.0
  %1690 = vmatpush1.msra.mxu0 0.0
  %1691 = vmatprep.subr.mxu0 0.0
  %1692 = vmatpush1.msra.mxu0 0.0
  %1693 = vmatprep.subr.mxu0 0.0
  %1694 = vmatpush1.msra.mxu0 0.0
  %1695 = vmatprep.subr.mxu0 0.0
  %1696 = vmatpush1.msra.mxu0 0.0
  %1697 = vmatprep.subr.mxu0 0.0
  %1698 = vmatpush1.msra.mxu0 0.0
  %1699 = vmatprep.subr.mxu0 0.0
  %1700 = vmatpush1.msra.mxu0 0.0
  %1701 = vmatprep.subr.mxu0 0.0
  %1702 = vmatpush1.msra.mxu0 0.0
  %1703 = vmatprep.subr.mxu0 0.0
  %1704 = vmatpush1.msra.mxu0 0.0
  %1705 = vmatprep.subr.mxu0 0.0
  %1706 = vmatpush1.msra.mxu0 0.0
  %1707 = vmatprep.subr.mxu0 0.0
  %1708 = vmatpush1.msra.mxu0 0.0
  %1709 = vmatprep.subr.mxu0 0.0
  %1710 = vmatpush1.msra.mxu0 0.0
  %1711 = vmatprep.subr.mxu0 0.0
  %1712 = vmatpush1.msra.mxu0 0.0
  %1713 = vmatprep.subr.mxu0 0.0
  %1714 = vmatpush1.msra.mxu0 0.0
  %1715 = vmatprep.subr.mxu0 0.0
  %1716 = vmatpush1.msra.mxu0 0.0
  %1717 = vmatprep.subr.mxu0 0.0
  %1718 = vmatpush1.msra.mxu0 0.0
  %1719 = vmatprep.subr.mxu0 0.0
  %1720 = vmatpush1.msra.mxu0 0.0
  %1721 = vmatprep.subr.mxu0 0.0
  %1722 = vmatpush1.msra.mxu0 0.0
  %1723 = vmatprep.subr.mxu0 0.0
  %1724 = vmatpush1.msra.mxu0 0.0
  %1725 = vmatprep.subr.mxu0 0.0
  %1726 = vmatpush1.msra.mxu0 0.0
  %1727 = vmatprep.subr.mxu0 0.0
  %1728 = vmatpush1.msra.mxu0 0.0
  %1729 = vmatprep.subr.mxu0 0.0
  %1730 = vmatpush1.msra.mxu0 0.0
  %1731 = vmatprep.subr.mxu0 0.0
  %1732 = vmatpush1.msra.mxu0 0.0
  %1733 = vmatprep.mubr.f32.mxu0 0.0
  %1734 = vmatmul.mubr.f32.gmra.mrb[0].mxu0 %v1524
  %v1735 = vpop.f32.mrb[0].mxu0
  %v1736 = vadd.f32 %v1181, %v1735
  %v1737 = vpop.f32.mrb[0].mxu0
  %1738 = vdwg.mxu0
  %1739 = vmatprep.subr.mxu0 0.0
  %1740 = vmatpush1.msra.mxu0 %v508
  %1741 = vmatprep.subr.mxu0 0.0
  %1742 = vmatpush1.msra.mxu0 %v509
  %1743 = vmatprep.subr.mxu0 0.0
  %1744 = vmatpush1.msra.mxu0 %v510
  %1745 = vmatprep.subr.mxu0 0.0
  %1746 = vmatpush1.msra.mxu0 %v511
  %1747 = vmatprep.subr.mxu0 0.0
  %1748 = vmatpush1.msra.mxu0 0.0
  %1749 = vmatprep.subr.mxu0 0.0
  %1750 = vmatpush1.msra.mxu0 0.0
  %1751 = vmatprep.subr.mxu0 0.0
  %1752 = vmatpush1.msra.mxu0 0.0
  %1753 = vmatprep.subr.mxu0 0.0
  %1754 = vmatpush1.msra.mxu0 0.0
  %1755 = vmatprep.subr.mxu0 0.0
  %1756 = vmatpush1.msra.mxu0 0.0
  %1757 = vmatprep.subr.mxu0 0.0
  %1758 = vmatpush1.msra.mxu0 0.0
  %1759 = vmatprep.subr.mxu0 0.0
  %1760 = vmatpush1.msra.mxu0 0.0
  %1761 = vmatprep.subr.mxu0 0.0
  %1762 = vmatpush1.msra.mxu0 0.0
  %1763 = vmatprep.subr.mxu0 0.0
  %1764 = vmatpush1.msra.mxu0 0.0
  %1765 = vmatprep.subr.mxu0 0.0
  %1766 = vmatpush1.msra.mxu0 0.0
  %1767 = vmatprep.subr.mxu0 0.0
  %1768 = vmatpush1.msra.mxu0 0.0
  %1769 = vmatprep.subr.mxu0 0.0
  %1770 = vmatpush1.msra.mxu0 0.0
  %1771 = vmatprep.subr.mxu0 0.0
  %1772 = vmatpush1.msra.mxu0 0.0
  %1773 = vmatprep.subr.mxu0 0.0
  %1774 = vmatpush1.msra.mxu0 0.0
  %1775 = vmatprep.subr.mxu0 0.0
  %1776 = vmatpush1.msra.mxu0 0.0
  %1777 = vmatprep.subr.mxu0 0.0
  %1778 = vmatpush1.msra.mxu0 0.0
  %1779 = vmatprep.subr.mxu0 0.0
  %1780 = vmatpush1.msra.mxu0 0.0
  %1781 = vmatprep.subr.mxu0 0.0
  %1782 = vmatpush1.msra.mxu0 0.0
  %1783 = vmatprep.subr.mxu0 0.0
  %1784 = vmatpush1.msra.mxu0 0.0
  %1785 = vmatprep.subr.mxu0 0.0
  %1786 = vmatpush1.msra.mxu0 0.0
  %1787 = vmatprep.subr.mxu0 0.0
  %1788 = vmatpush1.msra.mxu0 0.0
  %1789 = vmatprep.subr.mxu0 0.0
  %1790 = vmatpush1.msra.mxu0 0.0
  %1791 = vmatprep.subr.mxu0 0.0
  %1792 = vmatpush1.msra.mxu0 0.0
  %1793 = vmatprep.subr.mxu0 0.0
  %1794 = vmatpush1.msra.mxu0 0.0
  %1795 = vmatprep.subr.mxu0 0.0
  %1796 = vmatpush1.msra.mxu0 0.0
  %1797 = vmatprep.subr.mxu0 0.0
  %1798 = vmatpush1.msra.mxu0 0.0
  %1799 = vmatprep.subr.mxu0 0.0
  %1800 = vmatpush1.msra.mxu0 0.0
  %1801 = vmatprep.subr.mxu0 0.0
  %1802 = vmatpush1.msra.mxu0 0.0
  %1803 = vmatprep.mubr.f32.mxu0 0.0
  %1804 = vmatmul.mubr.f32.gmra.mrb[0].mxu0 %v1597
  %v1805 = vpop.f32.mrb[0].mxu0
  %v1806 = vadd.f32 %v1185, %v1805
  %v1807 = vpop.f32.mrb[0].mxu0
  %1808 = vdwg.mxu0
  %1809 = vmatprep.subr.mxu0 0.0
  %1810 = vmatpush1.msra.mxu0 %v500
  %1811 = vmatprep.subr.mxu0 0.0
  %1812 = vmatpush1.msra.mxu0 %v501
  %1813 = vmatprep.subr.mxu0 0.0
  %1814 = vmatpush1.msra.mxu0 %v502
  %1815 = vmatprep.subr.mxu0 0.0
  %1816 = vmatpush1.msra.mxu0 %v503
  %1817 = vmatprep.subr.mxu0 0.0
  %1818 = vmatpush1.msra.mxu0 0.0
  %1819 = vmatprep.subr.mxu0 0.0
  %1820 = vmatpush1.msra.mxu0 0.0
  %1821 = vmatprep.subr.mxu0 0.0
  %1822 = vmatpush1.msra.mxu0 0.0
  %1823 = vmatprep.subr.mxu0 0.0
  %1824 = vmatpush1.msra.mxu0 0.0
  %1825 = vmatprep.subr.mxu0 0.0
  %1826 = vmatpush1.msra.mxu0 0.0
  %1827 = vmatprep.subr.mxu0 0.0
  %1828 = vmatpush1.msra.mxu0 0.0
  %1829 = vmatprep.subr.mxu0 0.0
  %1830 = vmatpush1.msra.mxu0 0.0
  %1831 = vmatprep.subr.mxu0 0.0
  %1832 = vmatpush1.msra.mxu0 0.0
  %1833 = vmatprep.subr.mxu0 0.0
  %1834 = vmatpush1.msra.mxu0 0.0
  %1835 = vmatprep.subr.mxu0 0.0
  %1836 = vmatpush1.msra.mxu0 0.0
  %1837 = vmatprep.subr.mxu0 0.0
  %1838 = vmatpush1.msra.mxu0 0.0
  %1839 = vmatprep.subr.mxu0 0.0
  %1840 = vmatpush1.msra.mxu0 0.0
  %1841 = vmatprep.subr.mxu0 0.0
  %1842 = vmatpush1.msra.mxu0 0.0
  %1843 = vmatprep.subr.mxu0 0.0
  %1844 = vmatpush1.msra.mxu0 0.0
  %1845 = vmatprep.subr.mxu0 0.0
  %1846 = vmatpush1.msra.mxu0 0.0
  %1847 = vmatprep.subr.mxu0 0.0
  %1848 = vmatpush1.msra.mxu0 0.0
  %1849 = vmatprep.subr.mxu0 0.0
  %1850 = vmatpush1.msra.mxu0 0.0
  %1851 = vmatprep.subr.mxu0 0.0
  %1852 = vmatpush1.msra.mxu0 0.0
  %1853 = vmatprep.subr.mxu0 0.0
  %1854 = vmatpush1.msra.mxu0 0.0
  %1855 = vmatprep.subr.mxu0 0.0
  %1856 = vmatpush1.msra.mxu0 0.0
  %1857 = vmatprep.subr.mxu0 0.0
  %1858 = vmatpush1.msra.mxu0 0.0
  %1859 = vmatprep.subr.mxu0 0.0
  %1860 = vmatpush1.msra.mxu0 0.0
  %1861 = vmatprep.subr.mxu0 0.0
  %1862 = vmatpush1.msra.mxu0 0.0
  %1863 = vmatprep.subr.mxu0 0.0
  %1864 = vmatpush1.msra.mxu0 0.0
  %1865 = vmatprep.subr.mxu0 0.0
  %1866 = vmatpush1.msra.mxu0 0.0
  %1867 = vmatprep.subr.mxu0 0.0
  %1868 = vmatpush1.msra.mxu0 0.0
  %1869 = vmatprep.subr.mxu0 0.0
  %1870 = vmatpush1.msra.mxu0 0.0
  %1871 = vmatprep.subr.mxu0 0.0
  %1872 = vmatpush1.msra.mxu0 0.0
  %1873 = vmatprep.mubr.f32.mxu0 0.0
  %1874 = vmatmul.mubr.f32.gmra.mrb[0].mxu0 %v1524
  %v1875 = vpop.f32.mrb[0].mxu0
  %v1876 = vadd.f32 %v1333, %v1875
  %v1877 = vpop.f32.mrb[0].mxu0
  %1878 = vdwg.mxu0
  %1879 = vmatprep.subr.mxu0 0.0
  %1880 = vmatpush1.msra.mxu0 %v512
  %1881 = vmatprep.subr.mxu0 0.0
  %1882 = vmatpush1.msra.mxu0 %v513
  %1883 = vmatprep.subr.mxu0 0.0
  %1884 = vmatpush1.msra.mxu0 %v514
  %1885 = vmatprep.subr.mxu0 0.0
  %1886 = vmatpush1.msra.mxu0 %v515
  %1887 = vmatprep.subr.mxu0 0.0
  %1888 = vmatpush1.msra.mxu0 0.0
  %1889 = vmatprep.subr.mxu0 0.0
  %1890 = vmatpush1.msra.mxu0 0.0
  %1891 = vmatprep.subr.mxu0 0.0
  %1892 = vmatpush1.msra.mxu0 0.0
  %1893 = vmatprep.subr.mxu0 0.0
  %1894 = vmatpush1.msra.mxu0 0.0
  %1895 = vmatprep.subr.mxu0 0.0
  %1896 = vmatpush1.msra.mxu0 0.0
  %1897 = vmatprep.subr.mxu0 0.0
  %1898 = vmatpush1.msra.mxu0 0.0
  %1899 = vmatprep.subr.mxu0 0.0
  %1900 = vmatpush1.msra.mxu0 0.0
  %1901 = vmatprep.subr.mxu0 0.0
  %1902 = vmatpush1.msra.mxu0 0.0
  %1903 = vmatprep.subr.mxu0 0.0
  %1904 = vmatpush1.msra.mxu0 0.0
  %1905 = vmatprep.subr.mxu0 0.0
  %1906 = vmatpush1.msra.mxu0 0.0
  %1907 = vmatprep.subr.mxu0 0.0
  %1908 = vmatpush1.msra.mxu0 0.0
  %1909 = vmatprep.subr.mxu0 0.0
  %1910 = vmatpush1.msra.mxu0 0.0
  %1911 = vmatprep.subr.mxu0 0.0
  %1912 = vmatpush1.msra.mxu0 0.0
  %1913 = vmatprep.subr.mxu0 0.0
  %1914 = vmatpush1.msra.mxu0 0.0
  %1915 = vmatprep.subr.mxu0 0.0
  %1916 = vmatpush1.msra.mxu0 0.0
  %1917 = vmatprep.subr.mxu0 0.0
  %1918 = vmatpush1.msra.mxu0 0.0
  %1919 = vmatprep.subr.mxu0 0.0
  %1920 = vmatpush1.msra.mxu0 0.0
  %1921 = vmatprep.subr.mxu0 0.0
  %1922 = vmatpush1.msra.mxu0 0.0
  %1923 = vmatprep.subr.mxu0 0.0
  %1924 = vmatpush1.msra.mxu0 0.0
  %1925 = vmatprep.subr.mxu0 0.0
  %1926 = vmatpush1.msra.mxu0 0.0
  %1927 = vmatprep.subr.mxu0 0.0
  %1928 = vmatpush1.msra.mxu0 0.0
  %1929 = vmatprep.subr.mxu0 0.0
  %1930 = vmatpush1.msra.mxu0 0.0
  %1931 = vmatprep.subr.mxu0 0.0
  %1932 = vmatpush1.msra.mxu0 0.0
  %1933 = vmatprep.subr.mxu0 0.0
  %1934 = vmatpush1.msra.mxu0 0.0
  %1935 = vmatprep.subr.mxu0 0.0
  %1936 = vmatpush1.msra.mxu0 0.0
  %1937 = vmatprep.subr.mxu0 0.0
  %1938 = vmatpush1.msra.mxu0 0.0
  %1939 = vmatprep.subr.mxu0 0.0
  %1940 = vmatpush1.msra.mxu0 0.0
  %1941 = vmatprep.subr.mxu0 0.0
  %1942 = vmatpush1.msra.mxu0 0.0
  %1943 = vmatprep.mubr.f32.mxu0 0.0
  %1944 = vmatmul.mubr.f32.gmra.mrb[0].mxu0 %v1597
  %v1945 = vpop.f32.mrb[0].mxu0
  %v1946 = vadd.f32 %v1337, %v1945
  %v1947 = vpop.f32.mrb[0].mxu0
  %1948 = vdwg.mxu0
  %v1949 = vrot.slane %v855, 2
  %v1953 = vrot.slane %v1593, 6
  %v1954 = vrot.slane %v1666, 6
  %v1957 = vadd.f32 %v607, %v1953
  %v1958 = vadd.f32 %v1949, %v1954
  %v1959 = vmul.f32 %v1957, 0.5
  %v1960 = vmul.f32 %v1958, 0.5
  %v1961 = vtanh.pop %v1959
  %v1962 = vtanh.pop %v1960
  %v1963 = vmul.f32 %v1961, 0.5
  %v1964 = vmul.f32 %v1962, 0.5
  %v1965 = vadd.f32 %v1963, 0.5
  %v1966 = vadd.f32 %v1964, 0.5
  %v1967 = vrot.slane %v936, 2
  %v1971 = vrot.slane %v1736, 6
  %v1972 = vrot.slane %v1806, 6
  %v1975 = vadd.f32 %v688, %v1971
  %v1976 = vadd.f32 %v1967, %v1972
  %v1977 = vmul.f32 %v1975, 0.5
  %v1978 = vmul.f32 %v1976, 0.5
  %v1979 = vtanh.pop %v1977
  %v1980 = vtanh.pop %v1978
  %v1981 = vmul.f32 %v1979, 0.5
  %v1982 = vmul.f32 %v1980, 0.5
  %v1983 = vadd.f32 %v1981, 0.5
  %v1984 = vadd.f32 %v1982, 0.5
  %v1985 = vrot.slane %v1017, 2
  %v1989 = vrot.slane %v1876, 6
  %v1990 = vrot.slane %v1946, 6
  %v1993 = vmul.f32 %v1965, %v1989
  %v1994 = vmul.f32 %v1966, %v1990
  %v1995 = vadd.f32 %v769, %v1993
  %v1996 = vadd.f32 %v1985, %v1994
  %v1997 = vtanh.pop %v1995
  %v1998 = vtanh.pop %v1996
  %v1999 = vsub.f32 1.0, %v1983
  %v2000 = vsub.f32 1.0, %v1984
  %v2001 = vmul.f32 %v1999, %v1997
  %v2002 = vmul.f32 %v2000, %v1998
  %v2003 = vrot.slane %v1521, 6
  %v2004 = vrot.slane %v1522, 6
  %v2007 = vmul.f32 %v1983, %v2003
  %v2008 = vmul.f32 %v1984, %v2004
  %v2009 = vadd.f32 %v2001, %v2007
  %v2010 = vadd.f32 %v2002, %v2008
  %v2012 = vrot.slane %v2009, 2
  %v2013 = vsel %vm1032, %v2012, 0
  %2015 = vmatprep.subr.mxu0 0.0
  %2016 = vmatpush1.msra.mxu0 %v492
  %2017 = vmatprep.subr.mxu0 0.0
  %2018 = vmatpush1.msra.mxu0 %v493
  %2019 = vmatprep.subr.mxu0 0.0
  %2020 = vmatpush1.msra.mxu0 %v494
  %2021 = vmatprep.subr.mxu0 0.0
  %2022 = vmatpush1.msra.mxu0 %v495
  %2023 = vmatprep.subr.mxu0 0.0
  %2024 = vmatpush1.msra.mxu0 0.0
  %2025 = vmatprep.subr.mxu0 0.0
  %2026 = vmatpush1.msra.mxu0 0.0
  %2027 = vmatprep.subr.mxu0 0.0
  %2028 = vmatpush1.msra.mxu0 0.0
  %2029 = vmatprep.subr.mxu0 0.0
  %2030 = vmatpush1.msra.mxu0 0.0
  %2031 = vmatprep.subr.mxu0 0.0
  %2032 = vmatpush1.msra.mxu0 0.0
  %2033 = vmatprep.subr.mxu0 0.0
  %2034 = vmatpush1.msra.mxu0 0.0
  %2035 = vmatprep.subr.mxu0 0.0
  %2036 = vmatpush1.msra.mxu0 0.0
  %2037 = vmatprep.subr.mxu0 0.0
  %2038 = vmatpush1.msra.mxu0 0.0
  %2039 = vmatprep.subr.mxu0 0.0
  %2040 = vmatpush1.msra.mxu0 0.0
  %2041 = vmatprep.subr.mxu0 0.0
  %2042 = vmatpush1.msra.mxu0 0.0
  %2043 = vmatprep.subr.mxu0 0.0
  %2044 = vmatpush1.msra.mxu0 0.0
  %2045 = vmatprep.subr.mxu0 0.0
  %2046 = vmatpush1.msra.mxu0 0.0
  %2047 = vmatprep.subr.mxu0 0.0
  %2048 = vmatpush1.msra.mxu0 0.0
  %2049 = vmatprep.subr.mxu0 0.0
  %2050 = vmatpush1.msra.mxu0 0.0
  %2051 = vmatprep.subr.mxu0 0.0
  %2052 = vmatpush1.msra.mxu0 0.0
  %2053 = vmatprep.subr.mxu0 0.0
  %2054 = vmatpush1.msra.mxu0 0.0
  %2055 = vmatprep.subr.mxu0 0.0
  %2056 = vmatpush1.msra.mxu0 0.0
  %2057 = vmatprep.subr.mxu0 0.0
  %2058 = vmatpush1.msra.mxu0 0.0
  %2059 = vmatprep.subr.mxu0 0.0
  %2060 = vmatpush1.msra.mxu0 0.0
  %2061 = vmatprep.subr.mxu0 0.0
  %2062 = vmatpush1.msra.mxu0 0.0
  %2063 = vmatprep.subr.mxu0 0.0
  %2064 = vmatpush1.msra.mxu0 0.0
  %2065 = vmatprep.subr.mxu0 0.0
  %2066 = vmatpush1.msra.mxu0 0.0
  %2067 = vmatprep.subr.mxu0 0.0
  %2068 = vmatpush1.msra.mxu0 0.0
  %2069 = vmatprep.subr.mxu0 0.0
  %2070 = vmatpush1.msra.mxu0 0.0
  %2071 = vmatprep.subr.mxu0 0.0
  %2072 = vmatpush1.msra.mxu0 0.0
  %2073 = vmatprep.subr.mxu0 0.0
  %2074 = vmatpush1.msra.mxu0 0.0
  %2075 = vmatprep.subr.mxu0 0.0
  %2076 = vmatpush1.msra.mxu0 0.0
  %2077 = vmatprep.subr.mxu0 0.0
  %2078 = vmatpush1.msra.mxu0 0.0
  %2079 = vmatprep.mubr.f32.mxu0 0.0
  %2080 = vmatmul.mubr.f32.gmra.mrb[0].mxu0 %v2013
  %v2081 = vpop.f32.mrb[0].mxu0
  %v2082 = vadd.f32 %v1025, %v2081
  %v2083 = vpop.f32.mrb[0].mxu0
  %2084 = vdwg.mxu0
  %v2086 = vrot.slane %v2010, 2
  %v2087 = vsel %vm1032, %v2086, 0
  %2089 = vmatprep.subr.mxu0 0.0
  %2090 = vmatpush1.msra.mxu0 %v504
  %2091 = vmatprep.subr.mxu0 0.0
  %2092 = vmatpush1.msra.mxu0 %v505
  %2093 = vmatprep.subr.mxu0 0.0
  %2094 = vmatpush1.msra.mxu0 %v506
  %2095 = vmatprep.subr.mxu0 0.0
  %2096 = vmatpush1.msra.mxu0 %v507
  %2097 = vmatprep.subr.mxu0 0.0
  %2098 = vmatpush1.msra.mxu0 0.0
  %2099 = vmatprep.subr.mxu0 0.0
  %2100 = vmatpush1.msra.mxu0 0.0
  %2101 = vmatprep.subr.mxu0 0.0
  %2102 = vmatpush1.msra.mxu0 0.0
  %2103 = vmatprep.subr.mxu0 0.0
  %2104 = vmatpush1.msra.mxu0 0.0
  %2105 = vmatprep.subr.mxu0 0.0
  %2106 = vmatpush1.msra.mxu0 0.0
  %2107 = vmatprep.subr.mxu0 0.0
  %2108 = vmatpush1.msra.mxu0 0.0
  %2109 = vmatprep.subr.mxu0 0.0
  %2110 = vmatpush1.msra.mxu0 0.0
  %2111 = vmatprep.subr.mxu0 0.0
  %2112 = vmatpush1.msra.mxu0 0.0
  %2113 = vmatprep.subr.mxu0 0.0
  %2114 = vmatpush1.msra.mxu0 0.0
  %2115 = vmatprep.subr.mxu0 0.0
  %2116 = vmatpush1.msra.mxu0 0.0
  %2117 = vmatprep.subr.mxu0 0.0
  %2118 = vmatpush1.msra.mxu0 0.0
  %2119 = vmatprep.subr.mxu0 0.0
  %2120 = vmatpush1.msra.mxu0 0.0
  %2121 = vmatprep.subr.mxu0 0.0
  %2122 = vmatpush1.msra.mxu0 0.0
  %2123 = vmatprep.subr.mxu0 0.0
  %2124 = vmatpush1.msra.mxu0 0.0
  %2125 = vmatprep.subr.mxu0 0.0
  %2126 = vmatpush1.msra.mxu0 0.0
  %2127 = vmatprep.subr.mxu0 0.0
  %2128 = vmatpush1.msra.mxu0 0.0
  %2129 = vmatprep.subr.mxu0 0.0
  %2130 = vmatpush1.msra.mxu0 0.0
  %2131 = vmatprep.subr.mxu0 0.0
  %2132 = vmatpush1.msra.mxu0 0.0
  %2133 = vmatprep.subr.mxu0 0.0
  %2134 = vmatpush1.msra.mxu0 0.0
  %2135 = vmatprep.subr.mxu0 0.0
  %2136 = vmatpush1.msra.mxu0 0.0
  %2137 = vmatprep.subr.mxu0 0.0
  %2138 = vmatpush1.msra.mxu0 0.0
  %2139 = vmatprep.subr.mxu0 0.0
  %2140 = vmatpush1.msra.mxu0 0.0
  %2141 = vmatprep.subr.mxu0 0.0
  %2142 = vmatpush1.msra.mxu0 0.0
  %2143 = vmatprep.subr.mxu0 0.0
  %2144 = vmatpush1.msra.mxu0 0.0
  %2145 = vmatprep.subr.mxu0 0.0
  %2146 = vmatpush1.msra.mxu0 0.0
  %2147 = vmatprep.subr.mxu0 0.0
  %2148 = vmatpush1.msra.mxu0 0.0
  %2149 = vmatprep.subr.mxu0 0.0
  %2150 = vmatpush1.msra.mxu0 0.0
  %2151 = vmatprep.subr.mxu0 0.0
  %2152 = vmatpush1.msra.mxu0 0.0
  %2153 = vmatprep.mubr.f32.mxu0 0.0
  %2154 = vmatmul.mubr.f32.gmra.mrb[0].mxu0 %v2087
  %v2155 = vpop.f32.mrb[0].mxu0
  %v2156 = vadd.f32 %v1029, %v2155
  %v2157 = vpop.f32.mrb[0].mxu0
  %2158 = vdwg.mxu0
  %2159 = vmatprep.subr.mxu0 0.0
  %2160 = vmatpush1.msra.mxu0 %v496
  %2161 = vmatprep.subr.mxu0 0.0
  %2162 = vmatpush1.msra.mxu0 %v497
  %2163 = vmatprep.subr.mxu0 0.0
  %2164 = vmatpush1.msra.mxu0 %v498
  %2165 = vmatprep.subr.mxu0 0.0
  %2166 = vmatpush1.msra.mxu0 %v499
  %2167 = vmatprep.subr.mxu0 0.0
  %2168 = vmatpush1.msra.mxu0 0.0
  %2169 = vmatprep.subr.mxu0 0.0
  %2170 = vmatpush1.msra.mxu0 0.0
  %2171 = vmatprep.subr.mxu0 0.0
  %2172 = vmatpush1.msra.mxu0 0.0
  %2173 = vmatprep.subr.mxu0 0.0
  %2174 = vmatpush1.msra.mxu0 0.0
  %2175 = vmatprep.subr.mxu0 0.0
  %2176 = vmatpush1.msra.mxu0 0.0
  %2177 = vmatprep.subr.mxu0 0.0
  %2178 = vmatpush1.msra.mxu0 0.0
  %2179 = vmatprep.subr.mxu0 0.0
  %2180 = vmatpush1.msra.mxu0 0.0
  %2181 = vmatprep.subr.mxu0 0.0
  %2182 = vmatpush1.msra.mxu0 0.0
  %2183 = vmatprep.subr.mxu0 0.0
  %2184 = vmatpush1.msra.mxu0 0.0
  %2185 = vmatprep.subr.mxu0 0.0
  %2186 = vmatpush1.msra.mxu0 0.0
  %2187 = vmatprep.subr.mxu0 0.0
  %2188 = vmatpush1.msra.mxu0 0.0
  %2189 = vmatprep.subr.mxu0 0.0
  %2190 = vmatpush1.msra.mxu0 0.0
  %2191 = vmatprep.subr.mxu0 0.0
  %2192 = vmatpush1.msra.mxu0 0.0
  %2193 = vmatprep.subr.mxu0 0.0
  %2194 = vmatpush1.msra.mxu0 0.0
  %2195 = vmatprep.subr.mxu0 0.0
  %2196 = vmatpush1.msra.mxu0 0.0
  %2197 = vmatprep.subr.mxu0 0.0
  %2198 = vmatpush1.msra.mxu0 0.0
  %2199 = vmatprep.subr.mxu0 0.0
  %2200 = vmatpush1.msra.mxu0 0.0
  %2201 = vmatprep.subr.mxu0 0.0
  %2202 = vmatpush1.msra.mxu0 0.0
  %2203 = vmatprep.subr.mxu0 0.0
  %2204 = vmatpush1.msra.mxu0 0.0
  %2205 = vmatprep.subr.mxu0 0.0
  %2206 = vmatpush1.msra.mxu0 0.0
  %2207 = vmatprep.subr.mxu0 0.0
  %2208 = vmatpush1.msra.mxu0 0.0
  %2209 = vmatprep.subr.mxu0 0.0
  %2210 = vmatpush1.msra.mxu0 0.0
  %2211 = vmatprep.subr.mxu0 0.0
  %2212 = vmatpush1.msra.mxu0 0.0
  %2213 = vmatprep.subr.mxu0 0.0
  %2214 = vmatpush1.msra.mxu0 0.0
  %2215 = vmatprep.subr.mxu0 0.0
  %2216 = vmatpush1.msra.mxu0 0.0
  %2217 = vmatprep.subr.mxu0 0.0
  %2218 = vmatpush1.msra.mxu0 0.0
  %2219 = vmatprep.subr.mxu0 0.0
  %2220 = vmatpush1.msra.mxu0 0.0
  %2221 = vmatprep.subr.mxu0 0.0
  %2222 = vmatpush1.msra.mxu0 0.0
  %2223 = vmatprep.mubr.f32.mxu0 0.0
  %2224 = vmatmul.mubr.f32.gmra.mrb[0].mxu0 %v2013
  %v2225 = vpop.f32.mrb[0].mxu0
  %v2226 = vadd.f32 %v1181, %v2225
  %v2227 = vpop.f32.mrb[0].mxu0
  %2228 = vdwg.mxu0
  %2229 = vmatprep.subr.mxu0 0.0
  %2230 = vmatpush1.msra.mxu0 %v508
  %2231 = vmatprep.subr.mxu0 0.0
  %2232 = vmatpush1.msra.mxu0 %v509
  %2233 = vmatprep.subr.mxu0 0.0
  %2234 = vmatpush1.msra.mxu0 %v510
  %2235 = vmatprep.subr.mxu0 0.0
  %2236 = vmatpush1.msra.mxu0 %v511
  %2237 = vmatprep.subr.mxu0 0.0
  %2238 = vmatpush1.msra.mxu0 0.0
  %2239 = vmatprep.subr.mxu0 0.0
  %2240 = vmatpush1.msra.mxu0 0.0
  %2241 = vmatprep.subr.mxu0 0.0
  %2242 = vmatpush1.msra.mxu0 0.0
  %2243 = vmatprep.subr.mxu0 0.0
  %2244 = vmatpush1.msra.mxu0 0.0
  %2245 = vmatprep.subr.mxu0 0.0
  %2246 = vmatpush1.msra.mxu0 0.0
  %2247 = vmatprep.subr.mxu0 0.0
  %2248 = vmatpush1.msra.mxu0 0.0
  %2249 = vmatprep.subr.mxu0 0.0
  %2250 = vmatpush1.msra.mxu0 0.0
  %2251 = vmatprep.subr.mxu0 0.0
  %2252 = vmatpush1.msra.mxu0 0.0
  %2253 = vmatprep.subr.mxu0 0.0
  %2254 = vmatpush1.msra.mxu0 0.0
  %2255 = vmatprep.subr.mxu0 0.0
  %2256 = vmatpush1.msra.mxu0 0.0
  %2257 = vmatprep.subr.mxu0 0.0
  %2258 = vmatpush1.msra.mxu0 0.0
  %2259 = vmatprep.subr.mxu0 0.0
  %2260 = vmatpush1.msra.mxu0 0.0
  %2261 = vmatprep.subr.mxu0 0.0
  %2262 = vmatpush1.msra.mxu0 0.0
  %2263 = vmatprep.subr.mxu0 0.0
  %2264 = vmatpush1.msra.mxu0 0.0
  %2265 = vmatprep.subr.mxu0 0.0
  %2266 = vmatpush1.msra.mxu0 0.0
  %2267 = vmatprep.subr.mxu0 0.0
  %2268 = vmatpush1.msra.mxu0 0.0
  %2269 = vmatprep.subr.mxu0 0.0
  %2270 = vmatpush1.msra.mxu0 0.0
  %2271 = vmatprep.subr.mxu0 0.0
  %2272 = vmatpush1.msra.mxu0 0.0
  %2273 = vmatprep.subr.mxu0 0.0
  %2274 = vmatpush1.msra.mxu0 0.0
  %2275 = vmatprep.subr.mxu0 0.0
  %2276 = vmatpush1.msra.mxu0 0.0
  %2277 = vmatprep.subr.mxu0 0.0
  %2278 = vmatpush1.msra.mxu0 0.0
  %2279 = vmatprep.subr.mxu0 0.0
  %2280 = vmatpush1.msra.mxu0 0.0
  %2281 = vmatprep.subr.mxu0 0.0
  %2282 = vmatpush1.msra.mxu0 0.0
  %2283 = vmatprep.subr.mxu0 0.0
  %2284 = vmatpush1.msra.mxu0 0.0
  %2285 = vmatprep.subr.mxu0 0.0
  %2286 = vmatpush1.msra.mxu0 0.0
  %2287 = vmatprep.subr.mxu0 0.0
  %2288 = vmatpush1.msra.mxu0 0.0
  %2289 = vmatprep.subr.mxu0 0.0
  %2290 = vmatpush1.msra.mxu0 0.0
  %2291 = vmatprep.subr.mxu0 0.0
  %2292 = vmatpush1.msra.mxu0 0.0
  %2293 = vmatprep.mubr.f32.mxu0 0.0
  %2294 = vmatmul.mubr.f32.gmra.mrb[0].mxu0 %v2087
  %v2295 = vpop.f32.mrb[0].mxu0
  %v2296 = vadd.f32 %v1185, %v2295
  %v2297 = vpop.f32.mrb[0].mxu0
  %2298 = vdwg.mxu0
  %2299 = vmatprep.subr.mxu0 0.0
  %2300 = vmatpush1.msra.mxu0 %v500
  %2301 = vmatprep.subr.mxu0 0.0
  %2302 = vmatpush1.msra.mxu0 %v501
  %2303 = vmatprep.subr.mxu0 0.0
  %2304 = vmatpush1.msra.mxu0 %v502
  %2305 = vmatprep.subr.mxu0 0.0
  %2306 = vmatpush1.msra.mxu0 %v503
  %2307 = vmatprep.subr.mxu0 0.0
  %2308 = vmatpush1.msra.mxu0 0.0
  %2309 = vmatprep.subr.mxu0 0.0
  %2310 = vmatpush1.msra.mxu0 0.0
  %2311 = vmatprep.subr.mxu0 0.0
  %2312 = vmatpush1.msra.mxu0 0.0
  %2313 = vmatprep.subr.mxu0 0.0
  %2314 = vmatpush1.msra.mxu0 0.0
  %2315 = vmatprep.subr.mxu0 0.0
  %2316 = vmatpush1.msra.mxu0 0.0
  %2317 = vmatprep.subr.mxu0 0.0
  %2318 = vmatpush1.msra.mxu0 0.0
  %2319 = vmatprep.subr.mxu0 0.0
  %2320 = vmatpush1.msra.mxu0 0.0
  %2321 = vmatprep.subr.mxu0 0.0
  %2322 = vmatpush1.msra.mxu0 0.0
  %2323 = vmatprep.subr.mxu0 0.0
  %2324 = vmatpush1.msra.mxu0 0.0
  %2325 = vmatprep.subr.mxu0 0.0
  %2326 = vmatpush1.msra.mxu0 0.0
  %2327 = vmatprep.subr.mxu0 0.0
  %2328 = vmatpush1.msra.mxu0 0.0
  %2329 = vmatprep.subr.mxu0 0.0
  %2330 = vmatpush1.msra.mxu0 0.0
  %2331 = vmatprep.subr.mxu0 0.0
  %2332 = vmatpush1.msra.mxu0 0.0
  %2333 = vmatprep.subr.mxu0 0.0
  %2334 = vmatpush1.msra.mxu0 0.0
  %2335 = vmatprep.subr.mxu0 0.0
  %2336 = vmatpush1.msra.mxu0 0.0
  %2337 = vmatprep.subr.mxu0 0.0
  %2338 = vmatpush1.msra.mxu0 0.0
  %2339 = vmatprep.subr.mxu0 0.0
  %2340 = vmatpush1.msra.mxu0 0.0
  %2341 = vmatprep.subr.mxu0 0.0
  %2342 = vmatpush1.msra.mxu0 0.0
  %2343 = vmatprep.subr.mxu0 0.0
  %2344 = vmatpush1.msra.mxu0 0.0
  %2345 = vmatprep.subr.mxu0 0.0
  %2346 = vmatpush1.msra.mxu0 0.0
  %2347 = vmatprep.subr.mxu0 0.0
  %2348 = vmatpush1.msra.mxu0 0.0
  %2349 = vmatprep.subr.mxu0 0.0
  %2350 = vmatpush1.msra.mxu0 0.0
  %2351 = vmatprep.subr.mxu0 0.0
  %2352 = vmatpush1.msra.mxu0 0.0
  %2353 = vmatprep.subr.mxu0 0.0
  %2354 = vmatpush1.msra.mxu0 0.0
  %2355 = vmatprep.subr.mxu0 0.0
  %2356 = vmatpush1.msra.mxu0 0.0
  %2357 = vmatprep.subr.mxu0 0.0
  %2358 = vmatpush1.msra.mxu0 0.0
  %2359 = vmatprep.subr.mxu0 0.0
  %2360 = vmatpush1.msra.mxu0 0.0
  %2361 = vmatprep.subr.mxu0 0.0
  %2362 = vmatpush1.msra.mxu0 0.0
  %2363 = vmatprep.mubr.f32.mxu0 0.0
  %2364 = vmatmul.mubr.f32.gmra.mrb[0].mxu0 %v2013
  %v2365 = vpop.f32.mrb[0].mxu0
  %v2366 = vadd.f32 %v1333, %v2365
  %v2367 = vpop.f32.mrb[0].mxu0
  %2368 = vdwg.mxu0
  %2369 = vmatprep.subr.mxu0 0.0
  %2370 = vmatpush1.msra.mxu0 %v512
  %2371 = vmatprep.subr.mxu0 0.0
  %2372 = vmatpush1.msra.mxu0 %v513
  %2373 = vmatprep.subr.mxu0 0.0
  %2374 = vmatpush1.msra.mxu0 %v514
  %2375 = vmatprep.subr.mxu0 0.0
  %2376 = vmatpush1.msra.mxu0 %v515
  %2377 = vmatprep.subr.mxu0 0.0
  %2378 = vmatpush1.msra.mxu0 0.0
  %2379 = vmatprep.subr.mxu0 0.0
  %2380 = vmatpush1.msra.mxu0 0.0
  %2381 = vmatprep.subr.mxu0 0.0
  %2382 = vmatpush1.msra.mxu0 0.0
  %2383 = vmatprep.subr.mxu0 0.0
  %2384 = vmatpush1.msra.mxu0 0.0
  %2385 = vmatprep.subr.mxu0 0.0
  %2386 = vmatpush1.msra.mxu0 0.0
  %2387 = vmatprep.subr.mxu0 0.0
  %2388 = vmatpush1.msra.mxu0 0.0
  %2389 = vmatprep.subr.mxu0 0.0
  %2390 = vmatpush1.msra.mxu0 0.0
  %2391 = vmatprep.subr.mxu0 0.0
  %2392 = vmatpush1.msra.mxu0 0.0
  %2393 = vmatprep.subr.mxu0 0.0
  %2394 = vmatpush1.msra.mxu0 0.0
  %2395 = vmatprep.subr.mxu0 0.0
  %2396 = vmatpush1.msra.mxu0 0.0
  %2397 = vmatprep.subr.mxu0 0.0
  %2398 = vmatpush1.msra.mxu0 0.0
  %2399 = vmatprep.subr.mxu0 0.0
  %2400 = vmatpush1.msra.mxu0 0.0
  %2401 = vmatprep.subr.mxu0 0.0
  %2402 = vmatpush1.msra.mxu0 0.0
  %2403 = vmatprep.subr.mxu0 0.0
  %2404 = vmatpush1.msra.mxu0 0.0
  %2405 = vmatprep.subr.mxu0 0.0
  %2406 = vmatpush1.msra.mxu0 0.0
  %2407 = vmatprep.subr.mxu0 0.0
  %2408 = vmatpush1.msra.mxu0 0.0
  %2409 = vmatprep.subr.mxu0 0.0
  %2410 = vmatpush1.msra.mxu0 0.0
  %2411 = vmatprep.subr.mxu0 0.0
  %2412 = vmatpush1.msra.mxu0 0.0
  %2413 = vmatprep.subr.mxu0 0.0
  %2414 = vmatpush1.msra.mxu0 0.0
  %2415 = vmatprep.subr.mxu0 0.0
  %2416 = vmatpush1.msra.mxu0 0.0
  %2417 = vmatprep.subr.mxu0 0.0
  %2418 = vmatpush1.msra.mxu0 0.0
  %2419 = vmatprep.subr.mxu0 0.0
  %2420 = vmatpush1.msra.mxu0 0.0
  %2421 = vmatprep.subr.mxu0 0.0
  %2422 = vmatpush1.msra.mxu0 0.0
  %2423 = vmatprep.subr.mxu0 0.0
  %2424 = vmatpush1.msra.mxu0 0.0
  %2425 = vmatprep.subr.mxu0 0.0
  %2426 = vmatpush1.msra.mxu0 0.0
  %2427 = vmatprep.subr.mxu0 0.0
  %2428 = vmatpush1.msra.mxu0 0.0
  %2429 = vmatprep.subr.mxu0 0.0
  %2430 = vmatpush1.msra.mxu0 0.0
  %2431 = vmatprep.subr.mxu0 0.0
  %2432 = vmatpush1.msra.mxu0 0.0
  %2433 = vmatprep.mubr.f32.mxu0 0.0
  %2434 = vmatmul.mubr.f32.gmra.mrb[0].mxu0 %v2087
  %v2435 = vpop.f32.mrb[0].mxu0
  %v2436 = vadd.f32 %v1337, %v2435
  %v2437 = vpop.f32.mrb[0].mxu0
  %2438 = vdwg.mxu0
  %v2441 = vrot.slane %v2082, 4
  %v2442 = vrot.slane %v2156, 4
  %v2445 = vadd.f32 %v607, %v2441
  %v2446 = vadd.f32 %v1481, %v2442
  %v2447 = vmul.f32 %v2445, 0.5
  %v2448 = vmul.f32 %v2446, 0.5
  %v2449 = vtanh.pop %v2447
  %v2450 = vtanh.pop %v2448
  %v2451 = vmul.f32 %v2449, 0.5
  %v2452 = vmul.f32 %v2450, 0.5
  %v2453 = vadd.f32 %v2451, 0.5
  %v2454 = vadd.f32 %v2452, 0.5
  %v2457 = vrot.slane %v2226, 4
  %v2458 = vrot.slane %v2296, 4
  %v2461 = vadd.f32 %v688, %v2457
  %v2462 = vadd.f32 %v1494, %v2458
  %v2463 = vmul.f32 %v2461, 0.5
  %v2464 = vmul.f32 %v2462, 0.5
  %v2465 = vtanh.pop %v2463
  %v2466 = vtanh.pop %v2464
  %v2467 = vmul.f32 %v2465, 0.5
  %v2468 = vmul.f32 %v2466, 0.5
  %v2469 = vadd.f32 %v2467, 0.5
  %v2470 = vadd.f32 %v2468, 0.5
  %v2473 = vrot.slane %v2366, 4
  %v2474 = vrot.slane %v2436, 4
  %v2477 = vmul.f32 %v2453, %v2473
  %v2478 = vmul.f32 %v2454, %v2474
  %v2479 = vadd.f32 %v769, %v2477
  %v2480 = vadd.f32 %v1507, %v2478
  %v2481 = vtanh.pop %v2479
  %v2482 = vtanh.pop %v2480
  %v2483 = vsub.f32 1.0, %v2469
  %v2484 = vsub.f32 1.0, %v2470
  %v2485 = vmul.f32 %v2483, %v2481
  %v2486 = vmul.f32 %v2484, %v2482
  %v2487 = vrot.slane %v2009, 6
  %v2488 = vrot.slane %v2010, 6
  %v2491 = vmul.f32 %v2469, %v2487
  %v2492 = vmul.f32 %v2470, %v2488
  %v2493 = vadd.f32 %v2485, %v2491
  %v2494 = vadd.f32 %v2486, %v2492
  %v2496 = vrot.slane %v2493, 4
  %v2497 = vsel %vm1032, %v2496, 0
  %2499 = vmatprep.subr.mxu0 0.0
  %2500 = vmatpush1.msra.mxu0 %v492
  %2501 = vmatprep.subr.mxu0 0.0
  %2502 = vmatpush1.msra.mxu0 %v493
  %2503 = vmatprep.subr.mxu0 0.0
  %2504 = vmatpush1.msra.mxu0 %v494
  %2505 = vmatprep.subr.mxu0 0.0
  %2506 = vmatpush1.msra.mxu0 %v495
  %2507 = vmatprep.subr.mxu0 0.0
  %2508 = vmatpush1.msra.mxu0 0.0
  %2509 = vmatprep.subr.mxu0 0.0
  %2510 = vmatpush1.msra.mxu0 0.0
  %2511 = vmatprep.subr.mxu0 0.0
  %2512 = vmatpush1.msra.mxu0 0.0
  %2513 = vmatprep.subr.mxu0 0.0
  %2514 = vmatpush1.msra.mxu0 0.0
  %2515 = vmatprep.subr.mxu0 0.0
  %2516 = vmatpush1.msra.mxu0 0.0
  %2517 = vmatprep.subr.mxu0 0.0
  %2518 = vmatpush1.msra.mxu0 0.0
  %2519 = vmatprep.subr.mxu0 0.0
  %2520 = vmatpush1.msra.mxu0 0.0
  %2521 = vmatprep.subr.mxu0 0.0
  %2522 = vmatpush1.msra.mxu0 0.0
  %2523 = vmatprep.subr.mxu0 0.0
  %2524 = vmatpush1.msra.mxu0 0.0
  %2525 = vmatprep.subr.mxu0 0.0
  %2526 = vmatpush1.msra.mxu0 0.0
  %2527 = vmatprep.subr.mxu0 0.0
  %2528 = vmatpush1.msra.mxu0 0.0
  %2529 = vmatprep.subr.mxu0 0.0
  %2530 = vmatpush1.msra.mxu0 0.0
  %2531 = vmatprep.subr.mxu0 0.0
  %2532 = vmatpush1.msra.mxu0 0.0
  %2533 = vmatprep.subr.mxu0 0.0
  %2534 = vmatpush1.msra.mxu0 0.0
  %2535 = vmatprep.subr.mxu0 0.0
  %2536 = vmatpush1.msra.mxu0 0.0
  %2537 = vmatprep.subr.mxu0 0.0
  %2538 = vmatpush1.msra.mxu0 0.0
  %2539 = vmatprep.subr.mxu0 0.0
  %2540 = vmatpush1.msra.mxu0 0.0
  %2541 = vmatprep.subr.mxu0 0.0
  %2542 = vmatpush1.msra.mxu0 0.0
  %2543 = vmatprep.subr.mxu0 0.0
  %2544 = vmatpush1.msra.mxu0 0.0
  %2545 = vmatprep.subr.mxu0 0.0
  %2546 = vmatpush1.msra.mxu0 0.0
  %2547 = vmatprep.subr.mxu0 0.0
  %2548 = vmatpush1.msra.mxu0 0.0
  %2549 = vmatprep.subr.mxu0 0.0
  %2550 = vmatpush1.msra.mxu0 0.0
  %2551 = vmatprep.subr.mxu0 0.0
  %2552 = vmatpush1.msra.mxu0 0.0
  %2553 = vmatprep.subr.mxu0 0.0
  %2554 = vmatpush1.msra.mxu0 0.0
  %2555 = vmatprep.subr.mxu0 0.0
  %2556 = vmatpush1.msra.mxu0 0.0
  %2557 = vmatprep.subr.mxu0 0.0
  %2558 = vmatpush1.msra.mxu0 0.0
  %2559 = vmatprep.subr.mxu0 0.0
  %2560 = vmatpush1.msra.mxu0 0.0
  %2561 = vmatprep.subr.mxu0 0.0
  %2562 = vmatpush1.msra.mxu0 0.0
  %2563 = vmatprep.mubr.f32.mxu0 0.0
  %2564 = vmatmul.mubr.f32.gmra.mrb[0].mxu0 %v2497
  %v2565 = vpop.f32.mrb[0].mxu0
  %v2566 = vadd.f32 %v1025, %v2565
  %v2567 = vpop.f32.mrb[0].mxu0
  %2568 = vdwg.mxu0
  %v2570 = vrot.slane %v2494, 4
  %v2571 = vsel %vm1032, %v2570, 0
  %2573 = vmatprep.subr.mxu0 0.0
  %2574 = vmatpush1.msra.mxu0 %v504
  %2575 = vmatprep.subr.mxu0 0.0
  %2576 = vmatpush1.msra.mxu0 %v505
  %2577 = vmatprep.subr.mxu0 0.0
  %2578 = vmatpush1.msra.mxu0 %v506
  %2579 = vmatprep.subr.mxu0 0.0
  %2580 = vmatpush1.msra.mxu0 %v507
  %2581 = vmatprep.subr.mxu0 0.0
  %2582 = vmatpush1.msra.mxu0 0.0
  %2583 = vmatprep.subr.mxu0 0.0
  %2584 = vmatpush1.msra.mxu0 0.0
  %2585 = vmatprep.subr.mxu0 0.0
  %2586 = vmatpush1.msra.mxu0 0.0
  %2587 = vmatprep.subr.mxu0 0.0
  %2588 = vmatpush1.msra.mxu0 0.0
  %2589 = vmatprep.subr.mxu0 0.0
  %2590 = vmatpush1.msra.mxu0 0.0
  %2591 = vmatprep.subr.mxu0 0.0
  %2592 = vmatpush1.msra.mxu0 0.0
  %2593 = vmatprep.subr.mxu0 0.0
  %2594 = vmatpush1.msra.mxu0 0.0
  %2595 = vmatprep.subr.mxu0 0.0
  %2596 = vmatpush1.msra.mxu0 0.0
  %2597 = vmatprep.subr.mxu0 0.0
  %2598 = vmatpush1.msra.mxu0 0.0
  %2599 = vmatprep.subr.mxu0 0.0
  %2600 = vmatpush1.msra.mxu0 0.0
  %2601 = vmatprep.subr.mxu0 0.0
  %2602 = vmatpush1.msra.mxu0 0.0
  %2603 = vmatprep.subr.mxu0 0.0
  %2604 = vmatpush1.msra.mxu0 0.0
  %2605 = vmatprep.subr.mxu0 0.0
  %2606 = vmatpush1.msra.mxu0 0.0
  %2607 = vmatprep.subr.mxu0 0.0
  %2608 = vmatpush1.msra.mxu0 0.0
  %2609 = vmatprep.subr.mxu0 0.0
  %2610 = vmatpush1.msra.mxu0 0.0
  %2611 = vmatprep.subr.mxu0 0.0
  %2612 = vmatpush1.msra.mxu0 0.0
  %2613 = vmatprep.subr.mxu0 0.0
  %2614 = vmatpush1.msra.mxu0 0.0
  %2615 = vmatprep.subr.mxu0 0.0
  %2616 = vmatpush1.msra.mxu0 0.0
  %2617 = vmatprep.subr.mxu0 0.0
  %2618 = vmatpush1.msra.mxu0 0.0
  %2619 = vmatprep.subr.mxu0 0.0
  %2620 = vmatpush1.msra.mxu0 0.0
  %2621 = vmatprep.subr.mxu0 0.0
  %2622 = vmatpush1.msra.mxu0 0.0
  %2623 = vmatprep.subr.mxu0 0.0
  %2624 = vmatpush1.msra.mxu0 0.0
  %2625 = vmatprep.subr.mxu0 0.0
  %2626 = vmatpush1.msra.mxu0 0.0
  %2627 = vmatprep.subr.mxu0 0.0
  %2628 = vmatpush1.msra.mxu0 0.0
  %2629 = vmatprep.subr.mxu0 0.0
  %2630 = vmatpush1.msra.mxu0 0.0
  %2631 = vmatprep.subr.mxu0 0.0
  %2632 = vmatpush1.msra.mxu0 0.0
  %2633 = vmatprep.subr.mxu0 0.0
  %2634 = vmatpush1.msra.mxu0 0.0
  %2635 = vmatprep.subr.mxu0 0.0
  %2636 = vmatpush1.msra.mxu0 0.0
  %2637 = vmatprep.mubr.f32.mxu0 0.0
  %2638 = vmatmul.mubr.f32.gmra.mrb[0].mxu0 %v2571
  %v2639 = vpop.f32.mrb[0].mxu0
  %v2640 = vadd.f32 %v1029, %v2639
  %v2641 = vpop.f32.mrb[0].mxu0
  %2642 = vdwg.mxu0
  %2643 = vmatprep.subr.mxu0 0.0
  %2644 = vmatpush1.msra.mxu0 %v496
  %2645 = vmatprep.subr.mxu0 0.0
  %2646 = vmatpush1.msra.mxu0 %v497
  %2647 = vmatprep.subr.mxu0 0.0
  %2648 = vmatpush1.msra.mxu0 %v498
  %2649 = vmatprep.subr.mxu0 0.0
  %2650 = vmatpush1.msra.mxu0 %v499
  %2651 = vmatprep.subr.mxu0 0.0
  %2652 = vmatpush1.msra.mxu0 0.0
  %2653 = vmatprep.subr.mxu0 0.0
  %2654 = vmatpush1.msra.mxu0 0.0
  %2655 = vmatprep.subr.mxu0 0.0
  %2656 = vmatpush1.msra.mxu0 0.0
  %2657 = vmatprep.subr.mxu0 0.0
  %2658 = vmatpush1.msra.mxu0 0.0
  %2659 = vmatprep.subr.mxu0 0.0
  %2660 = vmatpush1.msra.mxu0 0.0
  %2661 = vmatprep.subr.mxu0 0.0
  %2662 = vmatpush1.msra.mxu0 0.0
  %2663 = vmatprep.subr.mxu0 0.0
  %2664 = vmatpush1.msra.mxu0 0.0
  %2665 = vmatprep.subr.mxu0 0.0
  %2666 = vmatpush1.msra.mxu0 0.0
  %2667 = vmatprep.subr.mxu0 0.0
  %2668 = vmatpush1.msra.mxu0 0.0
  %2669 = vmatprep.subr.mxu0 0.0
  %2670 = vmatpush1.msra.mxu0 0.0
  %2671 = vmatprep.subr.mxu0 0.0
  %2672 = vmatpush1.msra.mxu0 0.0
  %2673 = vmatprep.subr.mxu0 0.0
  %2674 = vmatpush1.msra.mxu0 0.0
  %2675 = vmatprep.subr.mxu0 0.0
  %2676 = vmatpush1.msra.mxu0 0.0
  %2677 = vmatprep.subr.mxu0 0.0
  %2678 = vmatpush1.msra.mxu0 0.0
  %2679 = vmatprep.subr.mxu0 0.0
  %2680 = vmatpush1.msra.mxu0 0.0
  %2681 = vmatprep.subr.mxu0 0.0
  %2682 = vmatpush1.msra.mxu0 0.0
  %2683 = vmatprep.subr.mxu0 0.0
  %2684 = vmatpush1.msra.mxu0 0.0
  %2685 = vmatprep.subr.mxu0 0.0
  %2686 = vmatpush1.msra.mxu0 0.0
  %2687 = vmatprep.subr.mxu0 0.0
  %2688 = vmatpush1.msra.mxu0 0.0
  %2689 = vmatprep.subr.mxu0 0.0
  %2690 = vmatpush1.msra.mxu0 0.0
  %2691 = vmatprep.subr.mxu0 0.0
  %2692 = vmatpush1.msra.mxu0 0.0
  %2693 = vmatprep.subr.mxu0 0.0
  %2694 = vmatpush1.msra.mxu0 0.0
  %2695 = vmatprep.subr.mxu0 0.0
  %2696 = vmatpush1.msra.mxu0 0.0
  %2697 = vmatprep.subr.mxu0 0.0
  %2698 = vmatpush1.msra.mxu0 0.0
  %2699 = vmatprep.subr.mxu0 0.0
  %2700 = vmatpush1.msra.mxu0 0.0
  %2701 = vmatprep.subr.mxu0 0.0
  %2702 = vmatpush1.msra.mxu0 0.0
  %2703 = vmatprep.subr.mxu0 0.0
  %2704 = vmatpush1.msra.mxu0 0.0
  %2705 = vmatprep.subr.mxu0 0.0
  %2706 = vmatpush1.msra.mxu0 0.0
  %2707 = vmatprep.mubr.f32.mxu0 0.0
  %2708 = vmatmul.mubr.f32.gmra.mrb[0].mxu0 %v2497
  %v2709 = vpop.f32.mrb[0].mxu0
  %v2710 = vadd.f32 %v1181, %v2709
  %v2711 = vpop.f32.mrb[0].mxu0
  %2712 = vdwg.mxu0
  %2713 = vmatprep.subr.mxu0 0.0
  %2714 = vmatpush1.msra.mxu0 %v508
  %2715 = vmatprep.subr.mxu0 0.0
  %2716 = vmatpush1.msra.mxu0 %v509
  %2717 = vmatprep.subr.mxu0 0.0
  %2718 = vmatpush1.msra.mxu0 %v510
  %2719 = vmatprep.subr.mxu0 0.0
  %2720 = vmatpush1.msra.mxu0 %v511
  %2721 = vmatprep.subr.mxu0 0.0
  %2722 = vmatpush1.msra.mxu0 0.0
  %2723 = vmatprep.subr.mxu0 0.0
  %2724 = vmatpush1.msra.mxu0 0.0
  %2725 = vmatprep.subr.mxu0 0.0
  %2726 = vmatpush1.msra.mxu0 0.0
  %2727 = vmatprep.subr.mxu0 0.0
  %2728 = vmatpush1.msra.mxu0 0.0
  %2729 = vmatprep.subr.mxu0 0.0
  %2730 = vmatpush1.msra.mxu0 0.0
  %2731 = vmatprep.subr.mxu0 0.0
  %2732 = vmatpush1.msra.mxu0 0.0
  %2733 = vmatprep.subr.mxu0 0.0
  %2734 = vmatpush1.msra.mxu0 0.0
  %2735 = vmatprep.subr.mxu0 0.0
  %2736 = vmatpush1.msra.mxu0 0.0
  %2737 = vmatprep.subr.mxu0 0.0
  %2738 = vmatpush1.msra.mxu0 0.0
  %2739 = vmatprep.subr.mxu0 0.0
  %2740 = vmatpush1.msra.mxu0 0.0
  %2741 = vmatprep.subr.mxu0 0.0
  %2742 = vmatpush1.msra.mxu0 0.0
  %2743 = vmatprep.subr.mxu0 0.0
  %2744 = vmatpush1.msra.mxu0 0.0
  %2745 = vmatprep.subr.mxu0 0.0
  %2746 = vmatpush1.msra.mxu0 0.0
  %2747 = vmatprep.subr.mxu0 0.0
  %2748 = vmatpush1.msra.mxu0 0.0
  %2749 = vmatprep.subr.mxu0 0.0
  %2750 = vmatpush1.msra.mxu0 0.0
  %2751 = vmatprep.subr.mxu0 0.0
  %2752 = vmatpush1.msra.mxu0 0.0
  %2753 = vmatprep.subr.mxu0 0.0
  %2754 = vmatpush1.msra.mxu0 0.0
  %2755 = vmatprep.subr.mxu0 0.0
  %2756 = vmatpush1.msra.mxu0 0.0
  %2757 = vmatprep.subr.mxu0 0.0
  %2758 = vmatpush1.msra.mxu0 0.0
  %2759 = vmatprep.subr.mxu0 0.0
  %2760 = vmatpush1.msra.mxu0 0.0
  %2761 = vmatprep.subr.mxu0 0.0
  %2762 = vmatpush1.msra.mxu0 0.0
  %2763 = vmatprep.subr.mxu0 0.0
  %2764 = vmatpush1.msra.mxu0 0.0
  %2765 = vmatprep.subr.mxu0 0.0
  %2766 = vmatpush1.msra.mxu0 0.0
  %2767 = vmatprep.subr.mxu0 0.0
  %2768 = vmatpush1.msra.mxu0 0.0
  %2769 = vmatprep.subr.mxu0 0.0
  %2770 = vmatpush1.msra.mxu0 0.0
  %2771 = vmatprep.subr.mxu0 0.0
  %2772 = vmatpush1.msra.mxu0 0.0
  %2773 = vmatprep.subr.mxu0 0.0
  %2774 = vmatpush1.msra.mxu0 0.0
  %2775 = vmatprep.subr.mxu0 0.0
  %2776 = vmatpush1.msra.mxu0 0.0
  %2777 = vmatprep.mubr.f32.mxu0 0.0
  %2778 = vmatmul.mubr.f32.gmra.mrb[0].mxu0 %v2571
  %v2779 = vpop.f32.mrb[0].mxu0
  %v2780 = vadd.f32 %v1185, %v2779
  %v2781 = vpop.f32.mrb[0].mxu0
  %2782 = vdwg.mxu0
  %2783 = vmatprep.subr.mxu0 0.0
  %2784 = vmatpush1.msra.mxu0 %v500
  %2785 = vmatprep.subr.mxu0 0.0
  %2786 = vmatpush1.msra.mxu0 %v501
  %2787 = vmatprep.subr.mxu0 0.0
  %2788 = vmatpush1.msra.mxu0 %v502
  %2789 = vmatprep.subr.mxu0 0.0
  %2790 = vmatpush1.msra.mxu0 %v503
  %2791 = vmatprep.subr.mxu0 0.0
  %2792 = vmatpush1.msra.mxu0 0.0
  %2793 = vmatprep.subr.mxu0 0.0
  %2794 = vmatpush1.msra.mxu0 0.0
  %2795 = vmatprep.subr.mxu0 0.0
  %2796 = vmatpush1.msra.mxu0 0.0
  %2797 = vmatprep.subr.mxu0 0.0
  %2798 = vmatpush1.msra.mxu0 0.0
  %2799 = vmatprep.subr.mxu0 0.0
  %2800 = vmatpush1.msra.mxu0 0.0
  %2801 = vmatprep.subr.mxu0 0.0
  %2802 = vmatpush1.msra.mxu0 0.0
  %2803 = vmatprep.subr.mxu0 0.0
  %2804 = vmatpush1.msra.mxu0 0.0
  %2805 = vmatprep.subr.mxu0 0.0
  %2806 = vmatpush1.msra.mxu0 0.0
  %2807 = vmatprep.subr.mxu0 0.0
  %2808 = vmatpush1.msra.mxu0 0.0
  %2809 = vmatprep.subr.mxu0 0.0
  %2810 = vmatpush1.msra.mxu0 0.0
  %2811 = vmatprep.subr.mxu0 0.0
  %2812 = vmatpush1.msra.mxu0 0.0
  %2813 = vmatprep.subr.mxu0 0.0
  %2814 = vmatpush1.msra.mxu0 0.0
  %2815 = vmatprep.subr.mxu0 0.0
  %2816 = vmatpush1.msra.mxu0 0.0
  %2817 = vmatprep.subr.mxu0 0.0
  %2818 = vmatpush1.msra.mxu0 0.0
  %2819 = vmatprep.subr.mxu0 0.0
  %2820 = vmatpush1.msra.mxu0 0.0
  %2821 = vmatprep.subr.mxu0 0.0
  %2822 = vmatpush1.msra.mxu0 0.0
  %2823 = vmatprep.subr.mxu0 0.0
  %2824 = vmatpush1.msra.mxu0 0.0
  %2825 = vmatprep.subr.mxu0 0.0
  %2826 = vmatpush1.msra.mxu0 0.0
  %2827 = vmatprep.subr.mxu0 0.0
  %2828 = vmatpush1.msra.mxu0 0.0
  %2829 = vmatprep.subr.mxu0 0.0
  %2830 = vmatpush1.msra.mxu0 0.0
  %2831 = vmatprep.subr.mxu0 0.0
  %2832 = vmatpush1.msra.mxu0 0.0
  %2833 = vmatprep.subr.mxu0 0.0
  %2834 = vmatpush1.msra.mxu0 0.0
  %2835 = vmatprep.subr.mxu0 0.0
  %2836 = vmatpush1.msra.mxu0 0.0
  %2837 = vmatprep.subr.mxu0 0.0
  %2838 = vmatpush1.msra.mxu0 0.0
  %2839 = vmatprep.subr.mxu0 0.0
  %2840 = vmatpush1.msra.mxu0 0.0
  %2841 = vmatprep.subr.mxu0 0.0
  %2842 = vmatpush1.msra.mxu0 0.0
  %2843 = vmatprep.subr.mxu0 0.0
  %2844 = vmatpush1.msra.mxu0 0.0
  %2845 = vmatprep.subr.mxu0 0.0
  %2846 = vmatpush1.msra.mxu0 0.0
  %2847 = vmatprep.mubr.f32.mxu0 0.0
  %2848 = vmatmul.mubr.f32.gmra.mrb[0].mxu0 %v2497
  %v2849 = vpop.f32.mrb[0].mxu0
  %v2850 = vadd.f32 %v1333, %v2849
  %v2851 = vpop.f32.mrb[0].mxu0
  %2852 = vdwg.mxu0
  %2853 = vmatprep.subr.mxu0 0.0
  %2854 = vmatpush1.msra.mxu0 %v512
  %2855 = vmatprep.subr.mxu0 0.0
  %2856 = vmatpush1.msra.mxu0 %v513
  %2857 = vmatprep.subr.mxu0 0.0
  %2858 = vmatpush1.msra.mxu0 %v514
  %2859 = vmatprep.subr.mxu0 0.0
  %2860 = vmatpush1.msra.mxu0 %v515
  %2861 = vmatprep.subr.mxu0 0.0
  %2862 = vmatpush1.msra.mxu0 0.0
  %2863 = vmatprep.subr.mxu0 0.0
  %2864 = vmatpush1.msra.mxu0 0.0
  %2865 = vmatprep.subr.mxu0 0.0
  %2866 = vmatpush1.msra.mxu0 0.0
  %2867 = vmatprep.subr.mxu0 0.0
  %2868 = vmatpush1.msra.mxu0 0.0
  %2869 = vmatprep.subr.mxu0 0.0
  %2870 = vmatpush1.msra.mxu0 0.0
  %2871 = vmatprep.subr.mxu0 0.0
  %2872 = vmatpush1.msra.mxu0 0.0
  %2873 = vmatprep.subr.mxu0 0.0
  %2874 = vmatpush1.msra.mxu0 0.0
  %2875 = vmatprep.subr.mxu0 0.0
  %2876 = vmatpush1.msra.mxu0 0.0
  %2877 = vmatprep.subr.mxu0 0.0
  %2878 = vmatpush1.msra.mxu0 0.0
  %2879 = vmatprep.subr.mxu0 0.0
  %2880 = vmatpush1.msra.mxu0 0.0
  %2881 = vmatprep.subr.mxu0 0.0
  %2882 = vmatpush1.msra.mxu0 0.0
  %2883 = vmatprep.subr.mxu0 0.0
  %2884 = vmatpush1.msra.mxu0 0.0
  %2885 = vmatprep.subr.mxu0 0.0
  %2886 = vmatpush1.msra.mxu0 0.0
  %2887 = vmatprep.subr.mxu0 0.0
  %2888 = vmatpush1.msra.mxu0 0.0
  %2889 = vmatprep.subr.mxu0 0.0
  %2890 = vmatpush1.msra.mxu0 0.0
  %2891 = vmatprep.subr.mxu0 0.0
  %2892 = vmatpush1.msra.mxu0 0.0
  %2893 = vmatprep.subr.mxu0 0.0
  %2894 = vmatpush1.msra.mxu0 0.0
  %2895 = vmatprep.subr.mxu0 0.0
  %2896 = vmatpush1.msra.mxu0 0.0
  %2897 = vmatprep.subr.mxu0 0.0
  %2898 = vmatpush1.msra.mxu0 0.0
  %2899 = vmatprep.subr.mxu0 0.0
  %2900 = vmatpush1.msra.mxu0 0.0
  %2901 = vmatprep.subr.mxu0 0.0
  %2902 = vmatpush1.msra.mxu0 0.0
  %2903 = vmatprep.subr.mxu0 0.0
  %2904 = vmatpush1.msra.mxu0 0.0
  %2905 = vmatprep.subr.mxu0 0.0
  %2906 = vmatpush1.msra.mxu0 0.0
  %2907 = vmatprep.subr.mxu0 0.0
  %2908 = vmatpush1.msra.mxu0 0.0
  %2909 = vmatprep.subr.mxu0 0.0
  %2910 = vmatpush1.msra.mxu0 0.0
  %2911 = vmatprep.subr.mxu0 0.0
  %2912 = vmatpush1.msra.mxu0 0.0
  %2913 = vmatprep.subr.mxu0 0.0
  %2914 = vmatpush1.msra.mxu0 0.0
  %2915 = vmatprep.subr.mxu0 0.0
  %2916 = vmatpush1.msra.mxu0 0.0
  %2917 = vmatprep.mubr.f32.mxu0 0.0
  %2918 = vmatmul.mubr.f32.gmra.mrb[0].mxu0 %v2571
  %v2919 = vpop.f32.mrb[0].mxu0
  %v2920 = vadd.f32 %v1337, %v2919
  %v2921 = vpop.f32.mrb[0].mxu0
  %2922 = vdwg.mxu0
  %v2925 = vrot.slane %v2566, 2
  %v2926 = vrot.slane %v2640, 2
  %v2929 = vadd.f32 %v607, %v2925
  %v2930 = vadd.f32 %v1949, %v2926
  %v2931 = vmul.f32 %v2929, 0.5
  %v2932 = vmul.f32 %v2930, 0.5
  %v2933 = vtanh.pop %v2931
  %v2934 = vtanh.pop %v2932
  %v2935 = vmul.f32 %v2933, 0.5
  %v2936 = vmul.f32 %v2934, 0.5
  %v2937 = vadd.f32 %v2935, 0.5
  %v2938 = vadd.f32 %v2936, 0.5
  %v2941 = vrot.slane %v2710, 2
  %v2942 = vrot.slane %v2780, 2
  %v2945 = vadd.f32 %v688, %v2941
  %v2946 = vadd.f32 %v1967, %v2942
  %v2947 = vmul.f32 %v2945, 0.5
  %v2948 = vmul.f32 %v2946, 0.5
  %v2949 = vtanh.pop %v2947
  %v2950 = vtanh.pop %v2948
  %v2951 = vmul.f32 %v2949, 0.5
  %v2952 = vmul.f32 %v2950, 0.5
  %v2953 = vadd.f32 %v2951, 0.5
  %v2954 = vadd.f32 %v2952, 0.5
  %v2957 = vrot.slane %v2850, 2
  %v2958 = vrot.slane %v2920, 2
  %v2961 = vmul.f32 %v2937, %v2957
  %v2962 = vmul.f32 %v2938, %v2958
  %v2963 = vadd.f32 %v769, %v2961
  %v2964 = vadd.f32 %v1985, %v2962
  %v2965 = vtanh.pop %v2963
  %v2966 = vtanh.pop %v2964
  %v2967 = vsub.f32 1.0, %v2953
  %v2968 = vsub.f32 1.0, %v2954
  %v2969 = vmul.f32 %v2967, %v2965
  %v2970 = vmul.f32 %v2968, %v2966
  %v2971 = vrot.slane %v2493, 6
  %v2972 = vrot.slane %v2494, 6
  %v2975 = vmul.f32 %v2953, %v2971
  %v2976 = vmul.f32 %v2954, %v2972
  %v2977 = vadd.f32 %v2969, %v2975
  %v2978 = vadd.f32 %v2970, %v2976
  %v2980 = vrot.slane %v2977, 6
  %v2981 = vsel %vm1032, %v2980, 0
  %2983 = vmatprep.subr.mxu0 0.0
  %2984 = vmatpush1.msra.mxu0 %v492
  %2985 = vmatprep.subr.mxu0 0.0
  %2986 = vmatpush1.msra.mxu0 %v493
  %2987 = vmatprep.subr.mxu0 0.0
  %2988 = vmatpush1.msra.mxu0 %v494
  %2989 = vmatprep.subr.mxu0 0.0
  %2990 = vmatpush1.msra.mxu0 %v495
  %2991 = vmatprep.subr.mxu0 0.0
  %2992 = vmatpush1.msra.mxu0 0.0
  %2993 = vmatprep.subr.mxu0 0.0
  %2994 = vmatpush1.msra.mxu0 0.0
  %2995 = vmatprep.subr.mxu0 0.0
  %2996 = vmatpush1.msra.mxu0 0.0
  %2997 = vmatprep.subr.mxu0 0.0
  %2998 = vmatpush1.msra.mxu0 0.0
  %2999 = vmatprep.subr.mxu0 0.0
  %3000 = vmatpush1.msra.mxu0 0.0
  %3001 = vmatprep.subr.mxu0 0.0
  %3002 = vmatpush1.msra.mxu0 0.0
  %3003 = vmatprep.subr.mxu0 0.0
  %3004 = vmatpush1.msra.mxu0 0.0
  %3005 = vmatprep.subr.mxu0 0.0
  %3006 = vmatpush1.msra.mxu0 0.0
  %3007 = vmatprep.subr.mxu0 0.0
  %3008 = vmatpush1.msra.mxu0 0.0
  %3009 = vmatprep.subr.mxu0 0.0
  %3010 = vmatpush1.msra.mxu0 0.0
  %3011 = vmatprep.subr.mxu0 0.0
  %3012 = vmatpush1.msra.mxu0 0.0
  %3013 = vmatprep.subr.mxu0 0.0
  %3014 = vmatpush1.msra.mxu0 0.0
  %3015 = vmatprep.subr.mxu0 0.0
  %3016 = vmatpush1.msra.mxu0 0.0
  %3017 = vmatprep.subr.mxu0 0.0
  %3018 = vmatpush1.msra.mxu0 0.0
  %3019 = vmatprep.subr.mxu0 0.0
  %3020 = vmatpush1.msra.mxu0 0.0
  %3021 = vmatprep.subr.mxu0 0.0
  %3022 = vmatpush1.msra.mxu0 0.0
  %3023 = vmatprep.subr.mxu0 0.0
  %3024 = vmatpush1.msra.mxu0 0.0
  %3025 = vmatprep.subr.mxu0 0.0
  %3026 = vmatpush1.msra.mxu0 0.0
  %3027 = vmatprep.subr.mxu0 0.0
  %3028 = vmatpush1.msra.mxu0 0.0
  %3029 = vmatprep.subr.mxu0 0.0
  %3030 = vmatpush1.msra.mxu0 0.0
  %3031 = vmatprep.subr.mxu0 0.0
  %3032 = vmatpush1.msra.mxu0 0.0
  %3033 = vmatprep.subr.mxu0 0.0
  %3034 = vmatpush1.msra.mxu0 0.0
  %3035 = vmatprep.subr.mxu0 0.0
  %3036 = vmatpush1.msra.mxu0 0.0
  %3037 = vmatprep.subr.mxu0 0.0
  %3038 = vmatpush1.msra.mxu0 0.0
  %3039 = vmatprep.subr.mxu0 0.0
  %3040 = vmatpush1.msra.mxu0 0.0
  %3041 = vmatprep.subr.mxu0 0.0
  %3042 = vmatpush1.msra.mxu0 0.0
  %3043 = vmatprep.subr.mxu0 0.0
  %3044 = vmatpush1.msra.mxu0 0.0
  %3045 = vmatprep.subr.mxu0 0.0
  %3046 = vmatpush1.msra.mxu0 0.0
  %3047 = vmatprep.mubr.f32.mxu0 0.0
  %3048 = vmatmul.mubr.f32.gmra.mrb[0].mxu0 %v2981
  %v3049 = vpop.f32.mrb[0].mxu0
  %v3050 = vadd.f32 %v1025, %v3049
  %v3051 = vpop.f32.mrb[0].mxu0
  %3052 = vdwg.mxu0
  %v3054 = vrot.slane %v2978, 6
  %v3055 = vsel %vm1032, %v3054, 0
  %3057 = vmatprep.subr.mxu0 0.0
  %3058 = vmatpush1.msra.mxu0 %v504
  %3059 = vmatprep.subr.mxu0 0.0
  %3060 = vmatpush1.msra.mxu0 %v505
  %3061 = vmatprep.subr.mxu0 0.0
  %3062 = vmatpush1.msra.mxu0 %v506
  %3063 = vmatprep.subr.mxu0 0.0
  %3064 = vmatpush1.msra.mxu0 %v507
  %3065 = vmatprep.subr.mxu0 0.0
  %3066 = vmatpush1.msra.mxu0 0.0
  %3067 = vmatprep.subr.mxu0 0.0
  %3068 = vmatpush1.msra.mxu0 0.0
  %3069 = vmatprep.subr.mxu0 0.0
  %3070 = vmatpush1.msra.mxu0 0.0
  %3071 = vmatprep.subr.mxu0 0.0
  %3072 = vmatpush1.msra.mxu0 0.0
  %3073 = vmatprep.subr.mxu0 0.0
  %3074 = vmatpush1.msra.mxu0 0.0
  %3075 = vmatprep.subr.mxu0 0.0
  %3076 = vmatpush1.msra.mxu0 0.0
  %3077 = vmatprep.subr.mxu0 0.0
  %3078 = vmatpush1.msra.mxu0 0.0
  %3079 = vmatprep.subr.mxu0 0.0
  %3080 = vmatpush1.msra.mxu0 0.0
  %3081 = vmatprep.subr.mxu0 0.0
  %3082 = vmatpush1.msra.mxu0 0.0
  %3083 = vmatprep.subr.mxu0 0.0
  %3084 = vmatpush1.msra.mxu0 0.0
  %3085 = vmatprep.subr.mxu0 0.0
  %3086 = vmatpush1.msra.mxu0 0.0
  %3087 = vmatprep.subr.mxu0 0.0
  %3088 = vmatpush1.msra.mxu0 0.0
  %3089 = vmatprep.subr.mxu0 0.0
  %3090 = vmatpush1.msra.mxu0 0.0
  %3091 = vmatprep.subr.mxu0 0.0
  %3092 = vmatpush1.msra.mxu0 0.0
  %3093 = vmatprep.subr.mxu0 0.0
  %3094 = vmatpush1.msra.mxu0 0.0
  %3095 = vmatprep.subr.mxu0 0.0
  %3096 = vmatpush1.msra.mxu0 0.0
  %3097 = vmatprep.subr.mxu0 0.0
  %3098 = vmatpush1.msra.mxu0 0.0
  %3099 = vmatprep.subr.mxu0 0.0
  %3100 = vmatpush1.msra.mxu0 0.0
  %3101 = vmatprep.subr.mxu0 0.0
  %3102 = vmatpush1.msra.mxu0 0.0
  %3103 = vmatprep.subr.mxu0 0.0
  %3104 = vmatpush1.msra.mxu0 0.0
  %3105 = vmatprep.subr.mxu0 0.0
  %3106 = vmatpush1.msra.mxu0 0.0
  %3107 = vmatprep.subr.mxu0 0.0
  %3108 = vmatpush1.msra.mxu0 0.0
  %3109 = vmatprep.subr.mxu0 0.0
  %3110 = vmatpush1.msra.mxu0 0.0
  %3111 = vmatprep.subr.mxu0 0.0
  %3112 = vmatpush1.msra.mxu0 0.0
  %3113 = vmatprep.subr.mxu0 0.0
  %3114 = vmatpush1.msra.mxu0 0.0
  %3115 = vmatprep.subr.mxu0 0.0
  %3116 = vmatpush1.msra.mxu0 0.0
  %3117 = vmatprep.subr.mxu0 0.0
  %3118 = vmatpush1.msra.mxu0 0.0
  %3119 = vmatprep.subr.mxu0 0.0
  %3120 = vmatpush1.msra.mxu0 0.0
  %3121 = vmatprep.mubr.f32.mxu0 0.0
  %3122 = vmatmul.mubr.f32.gmra.mrb[0].mxu0 %v3055
  %v3123 = vpop.f32.mrb[0].mxu0
  %v3124 = vadd.f32 %v1029, %v3123
  %v3125 = vpop.f32.mrb[0].mxu0
  %3126 = vdwg.mxu0
  %3127 = vmatprep.subr.mxu0 0.0
  %3128 = vmatpush1.msra.mxu0 %v496
  %3129 = vmatprep.subr.mxu0 0.0
  %3130 = vmatpush1.msra.mxu0 %v497
  %3131 = vmatprep.subr.mxu0 0.0
  %3132 = vmatpush1.msra.mxu0 %v498
  %3133 = vmatprep.subr.mxu0 0.0
  %3134 = vmatpush1.msra.mxu0 %v499
  %3135 = vmatprep.subr.mxu0 0.0
  %3136 = vmatpush1.msra.mxu0 0.0
  %3137 = vmatprep.subr.mxu0 0.0
  %3138 = vmatpush1.msra.mxu0 0.0
  %3139 = vmatprep.subr.mxu0 0.0
  %3140 = vmatpush1.msra.mxu0 0.0
  %3141 = vmatprep.subr.mxu0 0.0
  %3142 = vmatpush1.msra.mxu0 0.0
  %3143 = vmatprep.subr.mxu0 0.0
  %3144 = vmatpush1.msra.mxu0 0.0
  %3145 = vmatprep.subr.mxu0 0.0
  %3146 = vmatpush1.msra.mxu0 0.0
  %3147 = vmatprep.subr.mxu0 0.0
  %3148 = vmatpush1.msra.mxu0 0.0
  %3149 = vmatprep.subr.mxu0 0.0
  %3150 = vmatpush1.msra.mxu0 0.0
  %3151 = vmatprep.subr.mxu0 0.0
  %3152 = vmatpush1.msra.mxu0 0.0
  %3153 = vmatprep.subr.mxu0 0.0
  %3154 = vmatpush1.msra.mxu0 0.0
  %3155 = vmatprep.subr.mxu0 0.0
  %3156 = vmatpush1.msra.mxu0 0.0
  %3157 = vmatprep.subr.mxu0 0.0
  %3158 = vmatpush1.msra.mxu0 0.0
  %3159 = vmatprep.subr.mxu0 0.0
  %3160 = vmatpush1.msra.mxu0 0.0
  %3161 = vmatprep.subr.mxu0 0.0
  %3162 = vmatpush1.msra.mxu0 0.0
  %3163 = vmatprep.subr.mxu0 0.0
  %3164 = vmatpush1.msra.mxu0 0.0
  %3165 = vmatprep.subr.mxu0 0.0
  %3166 = vmatpush1.msra.mxu0 0.0
  %3167 = vmatprep.subr.mxu0 0.0
  %3168 = vmatpush1.msra.mxu0 0.0
  %3169 = vmatprep.subr.mxu0 0.0
  %3170 = vmatpush1.msra.mxu0 0.0
  %3171 = vmatprep.subr.mxu0 0.0
  %3172 = vmatpush1.msra.mxu0 0.0
  %3173 = vmatprep.subr.mxu0 0.0
  %3174 = vmatpush1.msra.mxu0 0.0
  %3175 = vmatprep.subr.mxu0 0.0
  %3176 = vmatpush1.msra.mxu0 0.0
  %3177 = vmatprep.subr.mxu0 0.0
  %3178 = vmatpush1.msra.mxu0 0.0
  %3179 = vmatprep.subr.mxu0 0.0
  %3180 = vmatpush1.msra.mxu0 0.0
  %3181 = vmatprep.subr.mxu0 0.0
  %3182 = vmatpush1.msra.mxu0 0.0
  %3183 = vmatprep.subr.mxu0 0.0
  %3184 = vmatpush1.msra.mxu0 0.0
  %3185 = vmatprep.subr.mxu0 0.0
  %3186 = vmatpush1.msra.mxu0 0.0
  %3187 = vmatprep.subr.mxu0 0.0
  %3188 = vmatpush1.msra.mxu0 0.0
  %3189 = vmatprep.subr.mxu0 0.0
  %3190 = vmatpush1.msra.mxu0 0.0
  %3191 = vmatprep.mubr.f32.mxu0 0.0
  %3192 = vmatmul.mubr.f32.gmra.mrb[0].mxu0 %v2981
  %v3193 = vpop.f32.mrb[0].mxu0
  %v3194 = vadd.f32 %v1181, %v3193
  %v3195 = vpop.f32.mrb[0].mxu0
  %3196 = vdwg.mxu0
  %3197 = vmatprep.subr.mxu0 0.0
  %3198 = vmatpush1.msra.mxu0 %v508
  %3199 = vmatprep.subr.mxu0 0.0
  %3200 = vmatpush1.msra.mxu0 %v509
  %3201 = vmatprep.subr.mxu0 0.0
  %3202 = vmatpush1.msra.mxu0 %v510
  %3203 = vmatprep.subr.mxu0 0.0
  %3204 = vmatpush1.msra.mxu0 %v511
  %3205 = vmatprep.subr.mxu0 0.0
  %3206 = vmatpush1.msra.mxu0 0.0
  %3207 = vmatprep.subr.mxu0 0.0
  %3208 = vmatpush1.msra.mxu0 0.0
  %3209 = vmatprep.subr.mxu0 0.0
  %3210 = vmatpush1.msra.mxu0 0.0
  %3211 = vmatprep.subr.mxu0 0.0
  %3212 = vmatpush1.msra.mxu0 0.0
  %3213 = vmatprep.subr.mxu0 0.0
  %3214 = vmatpush1.msra.mxu0 0.0
  %3215 = vmatprep.subr.mxu0 0.0
  %3216 = vmatpush1.msra.mxu0 0.0
  %3217 = vmatprep.subr.mxu0 0.0
  %3218 = vmatpush1.msra.mxu0 0.0
  %3219 = vmatprep.subr.mxu0 0.0
  %3220 = vmatpush1.msra.mxu0 0.0
  %3221 = vmatprep.subr.mxu0 0.0
  %3222 = vmatpush1.msra.mxu0 0.0
  %3223 = vmatprep.subr.mxu0 0.0
  %3224 = vmatpush1.msra.mxu0 0.0
  %3225 = vmatprep.subr.mxu0 0.0
  %3226 = vmatpush1.msra.mxu0 0.0
  %3227 = vmatprep.subr.mxu0 0.0
  %3228 = vmatpush1.msra.mxu0 0.0
  %3229 = vmatprep.subr.mxu0 0.0
  %3230 = vmatpush1.msra.mxu0 0.0
  %3231 = vmatprep.subr.mxu0 0.0
  %3232 = vmatpush1.msra.mxu0 0.0
  %3233 = vmatprep.subr.mxu0 0.0
  %3234 = vmatpush1.msra.mxu0 0.0
  %3235 = vmatprep.subr.mxu0 0.0
  %3236 = vmatpush1.msra.mxu0 0.0
  %3237 = vmatprep.subr.mxu0 0.0
  %3238 = vmatpush1.msra.mxu0 0.0
  %3239 = vmatprep.subr.mxu0 0.0
  %3240 = vmatpush1.msra.mxu0 0.0
  %3241 = vmatprep.subr.mxu0 0.0
  %3242 = vmatpush1.msra.mxu0 0.0
  %3243 = vmatprep.subr.mxu0 0.0
  %3244 = vmatpush1.msra.mxu0 0.0
  %3245 = vmatprep.subr.mxu0 0.0
  %3246 = vmatpush1.msra.mxu0 0.0
  %3247 = vmatprep.subr.mxu0 0.0
  %3248 = vmatpush1.msra.mxu0 0.0
  %3249 = vmatprep.subr.mxu0 0.0
  %3250 = vmatpush1.msra.mxu0 0.0
  %3251 = vmatprep.subr.mxu0 0.0
  %3252 = vmatpush1.msra.mxu0 0.0
  %3253 = vmatprep.subr.mxu0 0.0
  %3254 = vmatpush1.msra.mxu0 0.0
  %3255 = vmatprep.subr.mxu0 0.0
  %3256 = vmatpush1.msra.mxu0 0.0
  %3257 = vmatprep.subr.mxu0 0.0
  %3258 = vmatpush1.msra.mxu0 0.0
  %3259 = vmatprep.subr.mxu0 0.0
  %3260 = vmatpush1.msra.mxu0 0.0
  %3261 = vmatprep.mubr.f32.mxu0 0.0
  %3262 = vmatmul.mubr.f32.gmra.mrb[0].mxu0 %v3055
  %v3263 = vpop.f32.mrb[0].mxu0
  %v3264 = vadd.f32 %v1185, %v3263
  %v3265 = vpop.f32.mrb[0].mxu0
  %3266 = vdwg.mxu0
  %3267 = vmatprep.subr.mxu0 0.0
  %3268 = vmatpush1.msra.mxu0 %v500
  %3269 = vmatprep.subr.mxu0 0.0
  %3270 = vmatpush1.msra.mxu0 %v501
  %3271 = vmatprep.subr.mxu0 0.0
  %3272 = vmatpush1.msra.mxu0 %v502
  %3273 = vmatprep.subr.mxu0 0.0
  %3274 = vmatpush1.msra.mxu0 %v503
  %3275 = vmatprep.subr.mxu0 0.0
  %3276 = vmatpush1.msra.mxu0 0.0
  %3277 = vmatprep.subr.mxu0 0.0
  %3278 = vmatpush1.msra.mxu0 0.0
  %3279 = vmatprep.subr.mxu0 0.0
  %3280 = vmatpush1.msra.mxu0 0.0
  %3281 = vmatprep.subr.mxu0 0.0
  %3282 = vmatpush1.msra.mxu0 0.0
  %3283 = vmatprep.subr.mxu0 0.0
  %3284 = vmatpush1.msra.mxu0 0.0
  %3285 = vmatprep.subr.mxu0 0.0
  %3286 = vmatpush1.msra.mxu0 0.0
  %3287 = vmatprep.subr.mxu0 0.0
  %3288 = vmatpush1.msra.mxu0 0.0
  %3289 = vmatprep.subr.mxu0 0.0
  %3290 = vmatpush1.msra.mxu0 0.0
  %3291 = vmatprep.subr.mxu0 0.0
  %3292 = vmatpush1.msra.mxu0 0.0
  %3293 = vmatprep.subr.mxu0 0.0
  %3294 = vmatpush1.msra.mxu0 0.0
  %3295 = vmatprep.subr.mxu0 0.0
  %3296 = vmatpush1.msra.mxu0 0.0
  %3297 = vmatprep.subr.mxu0 0.0
  %3298 = vmatpush1.msra.mxu0 0.0
  %3299 = vmatprep.subr.mxu0 0.0
  %3300 = vmatpush1.msra.mxu0 0.0
  %3301 = vmatprep.subr.mxu0 0.0
  %3302 = vmatpush1.msra.mxu0 0.0
  %3303 = vmatprep.subr.mxu0 0.0
  %3304 = vmatpush1.msra.mxu0 0.0
  %3305 = vmatprep.subr.mxu0 0.0
  %3306 = vmatpush1.msra.mxu0 0.0
  %3307 = vmatprep.subr.mxu0 0.0
  %3308 = vmatpush1.msra.mxu0 0.0
  %3309 = vmatprep.subr.mxu0 0.0
  %3310 = vmatpush1.msra.mxu0 0.0
  %3311 = vmatprep.subr.mxu0 0.0
  %3312 = vmatpush1.msra.mxu0 0.0
  %3313 = vmatprep.subr.mxu0 0.0
  %3314 = vmatpush1.msra.mxu0 0.0
  %3315 = vmatprep.subr.mxu0 0.0
  %3316 = vmatpush1.msra.mxu0 0.0
  %3317 = vmatprep.subr.mxu0 0.0
  %3318 = vmatpush1.msra.mxu0 0.0
  %3319 = vmatprep.subr.mxu0 0.0
  %3320 = vmatpush1.msra.mxu0 0.0
  %3321 = vmatprep.subr.mxu0 0.0
  %3322 = vmatpush1.msra.mxu0 0.0
  %3323 = vmatprep.subr.mxu0 0.0
  %3324 = vmatpush1.msra.mxu0 0.0
  %3325 = vmatprep.subr.mxu0 0.0
  %3326 = vmatpush1.msra.mxu0 0.0
  %3327 = vmatprep.subr.mxu0 0.0
  %3328 = vmatpush1.msra.mxu0 0.0
  %3329 = vmatprep.subr.mxu0 0.0
  %3330 = vmatpush1.msra.mxu0 0.0
  %3331 = vmatprep.mubr.f32.mxu0 0.0
  %3332 = vmatmul.mubr.f32.gmra.mrb[0].mxu0 %v2981
  %v3333 = vpop.f32.mrb[0].mxu0
  %v3334 = vadd.f32 %v1333, %v3333
  %v3335 = vpop.f32.mrb[0].mxu0
  %3336 = vdwg.mxu0
  %3337 = vmatprep.subr.mxu0 0.0
  %3338 = vmatpush1.msra.mxu0 %v512
  %3339 = vmatprep.subr.mxu0 0.0
  %3340 = vmatpush1.msra.mxu0 %v513
  %3341 = vmatprep.subr.mxu0 0.0
  %3342 = vmatpush1.msra.mxu0 %v514
  %3343 = vmatprep.subr.mxu0 0.0
  %3344 = vmatpush1.msra.mxu0 %v515
  %3345 = vmatprep.subr.mxu0 0.0
  %3346 = vmatpush1.msra.mxu0 0.0
  %3347 = vmatprep.subr.mxu0 0.0
  %3348 = vmatpush1.msra.mxu0 0.0
  %3349 = vmatprep.subr.mxu0 0.0
  %3350 = vmatpush1.msra.mxu0 0.0
  %3351 = vmatprep.subr.mxu0 0.0
  %3352 = vmatpush1.msra.mxu0 0.0
  %3353 = vmatprep.subr.mxu0 0.0
  %3354 = vmatpush1.msra.mxu0 0.0
  %3355 = vmatprep.subr.mxu0 0.0
  %3356 = vmatpush1.msra.mxu0 0.0
  %3357 = vmatprep.subr.mxu0 0.0
  %3358 = vmatpush1.msra.mxu0 0.0
  %3359 = vmatprep.subr.mxu0 0.0
  %3360 = vmatpush1.msra.mxu0 0.0
  %3361 = vmatprep.subr.mxu0 0.0
  %3362 = vmatpush1.msra.mxu0 0.0
  %3363 = vmatprep.subr.mxu0 0.0
  %3364 = vmatpush1.msra.mxu0 0.0
  %3365 = vmatprep.subr.mxu0 0.0
  %3366 = vmatpush1.msra.mxu0 0.0
  %3367 = vmatprep.subr.mxu0 0.0
  %3368 = vmatpush1.msra.mxu0 0.0
  %3369 = vmatprep.subr.mxu0 0.0
  %3370 = vmatpush1.msra.mxu0 0.0
  %3371 = vmatprep.subr.mxu0 0.0
  %3372 = vmatpush1.msra.mxu0 0.0
  %3373 = vmatprep.subr.mxu0 0.0
  %3374 = vmatpush1.msra.mxu0 0.0
  %3375 = vmatprep.subr.mxu0 0.0
  %3376 = vmatpush1.msra.mxu0 0.0
  %3377 = vmatprep.subr.mxu0 0.0
  %3378 = vmatpush1.msra.mxu0 0.0
  %3379 = vmatprep.subr.mxu0 0.0
  %3380 = vmatpush1.msra.mxu0 0.0
  %3381 = vmatprep.subr.mxu0 0.0
  %3382 = vmatpush1.msra.mxu0 0.0
  %3383 = vmatprep.subr.mxu0 0.0
  %3384 = vmatpush1.msra.mxu0 0.0
  %3385 = vmatprep.subr.mxu0 0.0
  %3386 = vmatpush1.msra.mxu0 0.0
  %3387 = vmatprep.subr.mxu0 0.0
  %3388 = vmatpush1.msra.mxu0 0.0
  %3389 = vmatprep.subr.mxu0 0.0
  %3390 = vmatpush1.msra.mxu0 0.0
  %3391 = vmatprep.subr.mxu0 0.0
  %3392 = vmatpush1.msra.mxu0 0.0
  %3393 = vmatprep.subr.mxu0 0.0
  %3394 = vmatpush1.msra.mxu0 0.0
  %3395 = vmatprep.subr.mxu0 0.0
  %3396 = vmatpush1.msra.mxu0 0.0
  %3397 = vmatprep.subr.mxu0 0.0
  %3398 = vmatpush1.msra.mxu0 0.0
  %3399 = vmatprep.subr.mxu0 0.0
  %3400 = vmatpush1.msra.mxu0 0.0
  %3401 = vmatprep.mubr.f32.mxu0 0.0
  %3402 = vmatmul.mubr.f32.gmra.mrb[0].mxu0 %v3055
  %v3403 = vpop.f32.mrb[0].mxu0
  %v3404 = vadd.f32 %v1337, %v3403
  %v3405 = vpop.f32.mrb[0].mxu0
  %3406 = vdwg.mxu0
  %v3408 = vrot.slane %v850, 6
  %v3410 = vadd.f32 %v612, %v3050
  %v3411 = vadd.f32 %v3408, %v3124
  %v3412 = vmul.f32 %v3410, 0.5
  %v3413 = vmul.f32 %v3411, 0.5
  %v3414 = vtanh.pop %v3412
  %v3415 = vtanh.pop %v3413
  %v3416 = vmul.f32 %v3414, 0.5
  %v3417 = vmul.f32 %v3415, 0.5
  %v3418 = vadd.f32 %v3416, 0.5
  %v3419 = vadd.f32 %v3417, 0.5
  %v3421 = vrot.slane %v931, 6
  %v3423 = vadd.f32 %v693, %v3194
  %v3424 = vadd.f32 %v3421, %v3264
  %v3425 = vmul.f32 %v3423, 0.5
  %v3426 = vmul.f32 %v3424, 0.5
  %v3427 = vtanh.pop %v3425
  %v3428 = vtanh.pop %v3426
  %v3429 = vmul.f32 %v3427, 0.5
  %v3430 = vmul.f32 %v3428, 0.5
  %v3431 = vadd.f32 %v3429, 0.5
  %v3432 = vadd.f32 %v3430, 0.5
  %v3434 = vrot.slane %v1012, 6
  %v3436 = vmul.f32 %v3418, %v3334
  %v3437 = vmul.f32 %v3419, %v3404
  %v3438 = vadd.f32 %v774, %v3436
  %v3439 = vadd.f32 %v3434, %v3437
  %v3440 = vtanh.pop %v3438
  %v3441 = vtanh.pop %v3439
  %v3442 = vsub.f32 1.0, %v3431
  %v3443 = vsub.f32 1.0, %v3432
  %v3444 = vmul.f32 %v3442, %v3440
  %v3445 = vmul.f32 %v3443, %v3441
  %v3448 = vmul.f32 %v3431, %v2980
  %v3449 = vmul.f32 %v3432, %v3054
  %v3450 = vadd.f32 %v3444, %v3448
  %v3451 = vadd.f32 %v3445, %v3449
  %v3453 = vsel %vm1032, %v3450, 0
  %3455 = vmatprep.subr.mxu0 0.0
  %3456 = vmatpush1.msra.mxu0 %v492
  %3457 = vmatprep.subr.mxu0 0.0
  %3458 = vmatpush1.msra.mxu0 %v493
  %3459 = vmatprep.subr.mxu0 0.0
  %3460 = vmatpush1.msra.mxu0 %v494
  %3461 = vmatprep.subr.mxu0 0.0
  %3462 = vmatpush1.msra.mxu0 %v495
  %3463 = vmatprep.subr.mxu0 0.0
  %3464 = vmatpush1.msra.mxu0 0.0
  %3465 = vmatprep.subr.mxu0 0.0
  %3466 = vmatpush1.msra.mxu0 0.0
  %3467 = vmatprep.subr.mxu0 0.0
  %3468 = vmatpush1.msra.mxu0 0.0
  %3469 = vmatprep.subr.mxu0 0.0
  %3470 = vmatpush1.msra.mxu0 0.0
  %3471 = vmatprep.subr.mxu0 0.0
  %3472 = vmatpush1.msra.mxu0 0.0
  %3473 = vmatprep.subr.mxu0 0.0
  %3474 = vmatpush1.msra.mxu0 0.0
  %3475 = vmatprep.subr.mxu0 0.0
  %3476 = vmatpush1.msra.mxu0 0.0
  %3477 = vmatprep.subr.mxu0 0.0
  %3478 = vmatpush1.msra.mxu0 0.0
  %3479 = vmatprep.subr.mxu0 0.0
  %3480 = vmatpush1.msra.mxu0 0.0
  %3481 = vmatprep.subr.mxu0 0.0
  %3482 = vmatpush1.msra.mxu0 0.0
  %3483 = vmatprep.subr.mxu0 0.0
  %3484 = vmatpush1.msra.mxu0 0.0
  %3485 = vmatprep.subr.mxu0 0.0
  %3486 = vmatpush1.msra.mxu0 0.0
  %3487 = vmatprep.subr.mxu0 0.0
  %3488 = vmatpush1.msra.mxu0 0.0
  %3489 = vmatprep.subr.mxu0 0.0
  %3490 = vmatpush1.msra.mxu0 0.0
  %3491 = vmatprep.subr.mxu0 0.0
  %3492 = vmatpush1.msra.mxu0 0.0
  %3493 = vmatprep.subr.mxu0 0.0
  %3494 = vmatpush1.msra.mxu0 0.0
  %3495 = vmatprep.subr.mxu0 0.0
  %3496 = vmatpush1.msra.mxu0 0.0
  %3497 = vmatprep.subr.mxu0 0.0
  %3498 = vmatpush1.msra.mxu0 0.0
  %3499 = vmatprep.subr.mxu0 0.0
  %3500 = vmatpush1.msra.mxu0 0.0
  %3501 = vmatprep.subr.mxu0 0.0
  %3502 = vmatpush1.msra.mxu0 0.0
  %3503 = vmatprep.subr.mxu0 0.0
  %3504 = vmatpush1.msra.mxu0 0.0
  %3505 = vmatprep.subr.mxu0 0.0
  %3506 = vmatpush1.msra.mxu0 0.0
  %3507 = vmatprep.subr.mxu0 0.0
  %3508 = vmatpush1.msra.mxu0 0.0
  %3509 = vmatprep.subr.mxu0 0.0
  %3510 = vmatpush1.msra.mxu0 0.0
  %3511 = vmatprep.subr.mxu0 0.0
  %3512 = vmatpush1.msra.mxu0 0.0
  %3513 = vmatprep.subr.mxu0 0.0
  %3514 = vmatpush1.msra.mxu0 0.0
  %3515 = vmatprep.subr.mxu0 0.0
  %3516 = vmatpush1.msra.mxu0 0.0
  %3517 = vmatprep.subr.mxu0 0.0
  %3518 = vmatpush1.msra.mxu0 0.0
  %3519 = vmatprep.mubr.f32.mxu0 0.0
  %3520 = vmatmul.mubr.f32.gmra.mrb[0].mxu0 %v3453
  %v3521 = vpop.f32.mrb[0].mxu0
  %v3522 = vadd.f32 %v1025, %v3521
  %v3523 = vpop.f32.mrb[0].mxu0
  %3524 = vdwg.mxu0
  %v3526 = vsel %vm1032, %v3451, 0
  %3528 = vmatprep.subr.mxu0 0.0
  %3529 = vmatpush1.msra.mxu0 %v504
  %3530 = vmatprep.subr.mxu0 0.0
  %3531 = vmatpush1.msra.mxu0 %v505
  %3532 = vmatprep.subr.mxu0 0.0
  %3533 = vmatpush1.msra.mxu0 %v506
  %3534 = vmatprep.subr.mxu0 0.0
  %3535 = vmatpush1.msra.mxu0 %v507
  %3536 = vmatprep.subr.mxu0 0.0
  %3537 = vmatpush1.msra.mxu0 0.0
  %3538 = vmatprep.subr.mxu0 0.0
  %3539 = vmatpush1.msra.mxu0 0.0
  %3540 = vmatprep.subr.mxu0 0.0
  %3541 = vmatpush1.msra.mxu0 0.0
  %3542 = vmatprep.subr.mxu0 0.0
  %3543 = vmatpush1.msra.mxu0 0.0
  %3544 = vmatprep.subr.mxu0 0.0
  %3545 = vmatpush1.msra.mxu0 0.0
  %3546 = vmatprep.subr.mxu0 0.0
  %3547 = vmatpush1.msra.mxu0 0.0
  %3548 = vmatprep.subr.mxu0 0.0
  %3549 = vmatpush1.msra.mxu0 0.0
  %3550 = vmatprep.subr.mxu0 0.0
  %3551 = vmatpush1.msra.mxu0 0.0
  %3552 = vmatprep.subr.mxu0 0.0
  %3553 = vmatpush1.msra.mxu0 0.0
  %3554 = vmatprep.subr.mxu0 0.0
  %3555 = vmatpush1.msra.mxu0 0.0
  %3556 = vmatprep.subr.mxu0 0.0
  %3557 = vmatpush1.msra.mxu0 0.0
  %3558 = vmatprep.subr.mxu0 0.0
  %3559 = vmatpush1.msra.mxu0 0.0
  %3560 = vmatprep.subr.mxu0 0.0
  %3561 = vmatpush1.msra.mxu0 0.0
  %3562 = vmatprep.subr.mxu0 0.0
  %3563 = vmatpush1.msra.mxu0 0.0
  %3564 = vmatprep.subr.mxu0 0.0
  %3565 = vmatpush1.msra.mxu0 0.0
  %3566 = vmatprep.subr.mxu0 0.0
  %3567 = vmatpush1.msra.mxu0 0.0
  %3568 = vmatprep.subr.mxu0 0.0
  %3569 = vmatpush1.msra.mxu0 0.0
  %3570 = vmatprep.subr.mxu0 0.0
  %3571 = vmatpush1.msra.mxu0 0.0
  %3572 = vmatprep.subr.mxu0 0.0
  %3573 = vmatpush1.msra.mxu0 0.0
  %3574 = vmatprep.subr.mxu0 0.0
  %3575 = vmatpush1.msra.mxu0 0.0
  %3576 = vmatprep.subr.mxu0 0.0
  %3577 = vmatpush1.msra.mxu0 0.0
  %3578 = vmatprep.subr.mxu0 0.0
  %3579 = vmatpush1.msra.mxu0 0.0
  %3580 = vmatprep.subr.mxu0 0.0
  %3581 = vmatpush1.msra.mxu0 0.0
  %3582 = vmatprep.subr.mxu0 0.0
  %3583 = vmatpush1.msra.mxu0 0.0
  %3584 = vmatprep.subr.mxu0 0.0
  %3585 = vmatpush1.msra.mxu0 0.0
  %3586 = vmatprep.subr.mxu0 0.0
  %3587 = vmatpush1.msra.mxu0 0.0
  %3588 = vmatprep.subr.mxu0 0.0
  %3589 = vmatpush1.msra.mxu0 0.0
  %3590 = vmatprep.subr.mxu0 0.0
  %3591 = vmatpush1.msra.mxu0 0.0
  %3592 = vmatprep.mubr.f32.mxu0 0.0
  %3593 = vmatmul.mubr.f32.gmra.mrb[0].mxu0 %v3526
  %v3594 = vpop.f32.mrb[0].mxu0
  %v3595 = vadd.f32 %v1029, %v3594
  %v3596 = vpop.f32.mrb[0].mxu0
  %3597 = vdwg.mxu0
  %3598 = vmatprep.subr.mxu0 0.0
  %3599 = vmatpush1.msra.mxu0 %v496
  %3600 = vmatprep.subr.mxu0 0.0
  %3601 = vmatpush1.msra.mxu0 %v497
  %3602 = vmatprep.subr.mxu0 0.0
  %3603 = vmatpush1.msra.mxu0 %v498
  %3604 = vmatprep.subr.mxu0 0.0
  %3605 = vmatpush1.msra.mxu0 %v499
  %3606 = vmatprep.subr.mxu0 0.0
  %3607 = vmatpush1.msra.mxu0 0.0
  %3608 = vmatprep.subr.mxu0 0.0
  %3609 = vmatpush1.msra.mxu0 0.0
  %3610 = vmatprep.subr.mxu0 0.0
  %3611 = vmatpush1.msra.mxu0 0.0
  %3612 = vmatprep.subr.mxu0 0.0
  %3613 = vmatpush1.msra.mxu0 0.0
  %3614 = vmatprep.subr.mxu0 0.0
  %3615 = vmatpush1.msra.mxu0 0.0
  %3616 = vmatprep.subr.mxu0 0.0
  %3617 = vmatpush1.msra.mxu0 0.0
  %3618 = vmatprep.subr.mxu0 0.0
  %3619 = vmatpush1.msra.mxu0 0.0
  %3620 = vmatprep.subr.mxu0 0.0
  %3621 = vmatpush1.msra.mxu0 0.0
  %3622 = vmatprep.subr.mxu0 0.0
  %3623 = vmatpush1.msra.mxu0 0.0
  %3624 = vmatprep.subr.mxu0 0.0
  %3625 = vmatpush1.msra.mxu0 0.0
  %3626 = vmatprep.subr.mxu0 0.0
  %3627 = vmatpush1.msra.mxu0 0.0
  %3628 = vmatprep.subr.mxu0 0.0
  %3629 = vmatpush1.msra.mxu0 0.0
  %3630 = vmatprep.subr.mxu0 0.0
  %3631 = vmatpush1.msra.mxu0 0.0
  %3632 = vmatprep.subr.mxu0 0.0
  %3633 = vmatpush1.msra.mxu0 0.0
  %3634 = vmatprep.subr.mxu0 0.0
  %3635 = vmatpush1.msra.mxu0 0.0
  %3636 = vmatprep.subr.mxu0 0.0
  %3637 = vmatpush1.msra.mxu0 0.0
  %3638 = vmatprep.subr.mxu0 0.0
  %3639 = vmatpush1.msra.mxu0 0.0
  %3640 = vmatprep.subr.mxu0 0.0
  %3641 = vmatpush1.msra.mxu0 0.0
  %3642 = vmatprep.subr.mxu0 0.0
  %3643 = vmatpush1.msra.mxu0 0.0
  %3644 = vmatprep.subr.mxu0 0.0
  %3645 = vmatpush1.msra.mxu0 0.0
  %3646 = vmatprep.subr.mxu0 0.0
  %3647 = vmatpush1.msra.mxu0 0.0
  %3648 = vmatprep.subr.mxu0 0.0
  %3649 = vmatpush1.msra.mxu0 0.0
  %3650 = vmatprep.subr.mxu0 0.0
  %3651 = vmatpush1.msra.mxu0 0.0
  %3652 = vmatprep.subr.mxu0 0.0
  %3653 = vmatpush1.msra.mxu0 0.0
  %3654 = vmatprep.subr.mxu0 0.0
  %3655 = vmatpush1.msra.mxu0 0.0
  %3656 = vmatprep.subr.mxu0 0.0
  %3657 = vmatpush1.msra.mxu0 0.0
  %3658 = vmatprep.subr.mxu0 0.0
  %3659 = vmatpush1.msra.mxu0 0.0
  %3660 = vmatprep.subr.mxu0 0.0
  %3661 = vmatpush1.msra.mxu0 0.0
  %3662 = vmatprep.mubr.f32.mxu0 0.0
  %3663 = vmatmul.mubr.f32.gmra.mrb[0].mxu0 %v3453
  %v3664 = vpop.f32.mrb[0].mxu0
  %v3665 = vadd.f32 %v1181, %v3664
  %v3666 = vpop.f32.mrb[0].mxu0
  %3667 = vdwg.mxu0
  %3668 = vmatprep.subr.mxu0 0.0
  %3669 = vmatpush1.msra.mxu0 %v508
  %3670 = vmatprep.subr.mxu0 0.0
  %3671 = vmatpush1.msra.mxu0 %v509
  %3672 = vmatprep.subr.mxu0 0.0
  %3673 = vmatpush1.msra.mxu0 %v510
  %3674 = vmatprep.subr.mxu0 0.0
  %3675 = vmatpush1.msra.mxu0 %v511
  %3676 = vmatprep.subr.mxu0 0.0
  %3677 = vmatpush1.msra.mxu0 0.0
  %3678 = vmatprep.subr.mxu0 0.0
  %3679 = vmatpush1.msra.mxu0 0.0
  %3680 = vmatprep.subr.mxu0 0.0
  %3681 = vmatpush1.msra.mxu0 0.0
  %3682 = vmatprep.subr.mxu0 0.0
  %3683 = vmatpush1.msra.mxu0 0.0
  %3684 = vmatprep.subr.mxu0 0.0
  %3685 = vmatpush1.msra.mxu0 0.0
  %3686 = vmatprep.subr.mxu0 0.0
  %3687 = vmatpush1.msra.mxu0 0.0
  %3688 = vmatprep.subr.mxu0 0.0
  %3689 = vmatpush1.msra.mxu0 0.0
  %3690 = vmatprep.subr.mxu0 0.0
  %3691 = vmatpush1.msra.mxu0 0.0
  %3692 = vmatprep.subr.mxu0 0.0
  %3693 = vmatpush1.msra.mxu0 0.0
  %3694 = vmatprep.subr.mxu0 0.0
  %3695 = vmatpush1.msra.mxu0 0.0
  %3696 = vmatprep.subr.mxu0 0.0
  %3697 = vmatpush1.msra.mxu0 0.0
  %3698 = vmatprep.subr.mxu0 0.0
  %3699 = vmatpush1.msra.mxu0 0.0
  %3700 = vmatprep.subr.mxu0 0.0
  %3701 = vmatpush1.msra.mxu0 0.0
  %3702 = vmatprep.subr.mxu0 0.0
  %3703 = vmatpush1.msra.mxu0 0.0
  %3704 = vmatprep.subr.mxu0 0.0
  %3705 = vmatpush1.msra.mxu0 0.0
  %3706 = vmatprep.subr.mxu0 0.0
  %3707 = vmatpush1.msra.mxu0 0.0
  %3708 = vmatprep.subr.mxu0 0.0
  %3709 = vmatpush1.msra.mxu0 0.0
  %3710 = vmatprep.subr.mxu0 0.0
  %3711 = vmatpush1.msra.mxu0 0.0
  %3712 = vmatprep.subr.mxu0 0.0
  %3713 = vmatpush1.msra.mxu0 0.0
  %3714 = vmatprep.subr.mxu0 0.0
  %3715 = vmatpush1.msra.mxu0 0.0
  %3716 = vmatprep.subr.mxu0 0.0
  %3717 = vmatpush1.msra.mxu0 0.0
  %3718 = vmatprep.subr.mxu0 0.0
  %3719 = vmatpush1.msra.mxu0 0.0
  %3720 = vmatprep.subr.mxu0 0.0
  %3721 = vmatpush1.msra.mxu0 0.0
  %3722 = vmatprep.subr.mxu0 0.0
  %3723 = vmatpush1.msra.mxu0 0.0
  %3724 = vmatprep.subr.mxu0 0.0
  %3725 = vmatpush1.msra.mxu0 0.0
  %3726 = vmatprep.subr.mxu0 0.0
  %3727 = vmatpush1.msra.mxu0 0.0
  %3728 = vmatprep.subr.mxu0 0.0
  %3729 = vmatpush1.msra.mxu0 0.0
  %3730 = vmatprep.subr.mxu0 0.0
  %3731 = vmatpush1.msra.mxu0 0.0
  %3732 = vmatprep.mubr.f32.mxu0 0.0
  %3733 = vmatmul.mubr.f32.gmra.mrb[0].mxu0 %v3526
  %v3734 = vpop.f32.mrb[0].mxu0
  %v3735 = vadd.f32 %v1185, %v3734
  %v3736 = vpop.f32.mrb[0].mxu0
  %3737 = vdwg.mxu0
  %3738 = vmatprep.subr.mxu0 0.0
  %3739 = vmatpush1.msra.mxu0 %v500
  %3740 = vmatprep.subr.mxu0 0.0
  %3741 = vmatpush1.msra.mxu0 %v501
  %3742 = vmatprep.subr.mxu0 0.0
  %3743 = vmatpush1.msra.mxu0 %v502
  %3744 = vmatprep.subr.mxu0 0.0
  %3745 = vmatpush1.msra.mxu0 %v503
  %3746 = vmatprep.subr.mxu0 0.0
  %3747 = vmatpush1.msra.mxu0 0.0
  %3748 = vmatprep.subr.mxu0 0.0
  %3749 = vmatpush1.msra.mxu0 0.0
  %3750 = vmatprep.subr.mxu0 0.0
  %3751 = vmatpush1.msra.mxu0 0.0
  %3752 = vmatprep.subr.mxu0 0.0
  %3753 = vmatpush1.msra.mxu0 0.0
  %3754 = vmatprep.subr.mxu0 0.0
  %3755 = vmatpush1.msra.mxu0 0.0
  %3756 = vmatprep.subr.mxu0 0.0
  %3757 = vmatpush1.msra.mxu0 0.0
  %3758 = vmatprep.subr.mxu0 0.0
  %3759 = vmatpush1.msra.mxu0 0.0
  %3760 = vmatprep.subr.mxu0 0.0
  %3761 = vmatpush1.msra.mxu0 0.0
  %3762 = vmatprep.subr.mxu0 0.0
  %3763 = vmatpush1.msra.mxu0 0.0
  %3764 = vmatprep.subr.mxu0 0.0
  %3765 = vmatpush1.msra.mxu0 0.0
  %3766 = vmatprep.subr.mxu0 0.0
  %3767 = vmatpush1.msra.mxu0 0.0
  %3768 = vmatprep.subr.mxu0 0.0
  %3769 = vmatpush1.msra.mxu0 0.0
  %3770 = vmatprep.subr.mxu0 0.0
  %3771 = vmatpush1.msra.mxu0 0.0
  %3772 = vmatprep.subr.mxu0 0.0
  %3773 = vmatpush1.msra.mxu0 0.0
  %3774 = vmatprep.subr.mxu0 0.0
  %3775 = vmatpush1.msra.mxu0 0.0
  %3776 = vmatprep.subr.mxu0 0.0
  %3777 = vmatpush1.msra.mxu0 0.0
  %3778 = vmatprep.subr.mxu0 0.0
  %3779 = vmatpush1.msra.mxu0 0.0
  %3780 = vmatprep.subr.mxu0 0.0
  %3781 = vmatpush1.msra.mxu0 0.0
  %3782 = vmatprep.subr.mxu0 0.0
  %3783 = vmatpush1.msra.mxu0 0.0
  %3784 = vmatprep.subr.mxu0 0.0
  %3785 = vmatpush1.msra.mxu0 0.0
  %3786 = vmatprep.subr.mxu0 0.0
  %3787 = vmatpush1.msra.mxu0 0.0
  %3788 = vmatprep.subr.mxu0 0.0
  %3789 = vmatpush1.msra.mxu0 0.0
  %3790 = vmatprep.subr.mxu0 0.0
  %3791 = vmatpush1.msra.mxu0 0.0
  %3792 = vmatprep.subr.mxu0 0.0
  %3793 = vmatpush1.msra.mxu0 0.0
  %3794 = vmatprep.subr.mxu0 0.0
  %3795 = vmatpush1.msra.mxu0 0.0
  %3796 = vmatprep.subr.mxu0 0.0
  %3797 = vmatpush1.msra.mxu0 0.0
  %3798 = vmatprep.subr.mxu0 0.0
  %3799 = vmatpush1.msra.mxu0 0.0
  %3800 = vmatprep.subr.mxu0 0.0
  %3801 = vmatpush1.msra.mxu0 0.0
  %3802 = vmatprep.mubr.f32.mxu0 0.0
  %3803 = vmatmul.mubr.f32.gmra.mrb[0].mxu0 %v3453
  %v3804 = vpop.f32.mrb[0].mxu0
  %v3805 = vadd.f32 %v1333, %v3804
  %v3806 = vpop.f32.mrb[0].mxu0
  %3807 = vdwg.mxu0
  %3808 = vmatprep.subr.mxu0 0.0
  %3809 = vmatpush1.msra.mxu0 %v512
  %3810 = vmatprep.subr.mxu0 0.0
  %3811 = vmatpush1.msra.mxu0 %v513
  %3812 = vmatprep.subr.mxu0 0.0
  %3813 = vmatpush1.msra.mxu0 %v514
  %3814 = vmatprep.subr.mxu0 0.0
  %3815 = vmatpush1.msra.mxu0 %v515
  %3816 = vmatprep.subr.mxu0 0.0
  %3817 = vmatpush1.msra.mxu0 0.0
  %3818 = vmatprep.subr.mxu0 0.0
  %3819 = vmatpush1.msra.mxu0 0.0
  %3820 = vmatprep.subr.mxu0 0.0
  %3821 = vmatpush1.msra.mxu0 0.0
  %3822 = vmatprep.subr.mxu0 0.0
  %3823 = vmatpush1.msra.mxu0 0.0
  %3824 = vmatprep.subr.mxu0 0.0
  %3825 = vmatpush1.msra.mxu0 0.0
  %3826 = vmatprep.subr.mxu0 0.0
  %3827 = vmatpush1.msra.mxu0 0.0
  %3828 = vmatprep.subr.mxu0 0.0
  %3829 = vmatpush1.msra.mxu0 0.0
  %3830 = vmatprep.subr.mxu0 0.0
  %3831 = vmatpush1.msra.mxu0 0.0
  %3832 = vmatprep.subr.mxu0 0.0
  %3833 = vmatpush1.msra.mxu0 0.0
  %3834 = vmatprep.subr.mxu0 0.0
  %3835 = vmatpush1.msra.mxu0 0.0
  %3836 = vmatprep.subr.mxu0 0.0
  %3837 = vmatpush1.msra.mxu0 0.0
  %3838 = vmatprep.subr.mxu0 0.0
  %3839 = vmatpush1.msra.mxu0 0.0
  %3840 = vmatprep.subr.mxu0 0.0
  %3841 = vmatpush1.msra.mxu0 0.0
  %3842 = vmatprep.subr.mxu0 0.0
  %3843 = vmatpush1.msra.mxu0 0.0
  %3844 = vmatprep.subr.mxu0 0.0
  %3845 = vmatpush1.msra.mxu0 0.0
  %3846 = vmatprep.subr.mxu0 0.0
  %3847 = vmatpush1.msra.mxu0 0.0
  %3848 = vmatprep.subr.mxu0 0.0
  %3849 = vmatpush1.msra.mxu0 0.0
  %3850 = vmatprep.subr.mxu0 0.0
  %3851 = vmatpush1.msra.mxu0 0.0
  %3852 = vmatprep.subr.mxu0 0.0
  %3853 = vmatpush1.msra.mxu0 0.0
  %3854 = vmatprep.subr.mxu0 0.0
  %3855 = vmatpush1.msra.mxu0 0.0
  %3856 = vmatprep.subr.mxu0 0.0
  %3857 = vmatpush1.msra.mxu0 0.0
  %3858 = vmatprep.subr.mxu0 0.0
  %3859 = vmatpush1.msra.mxu0 0.0
  %3860 = vmatprep.subr.mxu0 0.0
  %3861 = vmatpush1.msra.mxu0 0.0
  %3862 = vmatprep.subr.mxu0 0.0
  %3863 = vmatpush1.msra.mxu0 0.0
  %3864 = vmatprep.subr.mxu0 0.0
  %3865 = vmatpush1.msra.mxu0 0.0
  %3866 = vmatprep.subr.mxu0 0.0
  %3867 = vmatpush1.msra.mxu0 0.0
  %3868 = vmatprep.subr.mxu0 0.0
  %3869 = vmatpush1.msra.mxu0 0.0
  %3870 = vmatprep.subr.mxu0 0.0
  %3871 = vmatpush1.msra.mxu0 0.0
  %3872 = vmatprep.mubr.f32.mxu0 0.0
  %3873 = vmatmul.mubr.f32.gmra.mrb[0].mxu0 %v3526
  %v3874 = vpop.f32.mrb[0].mxu0
  %v3875 = vadd.f32 %v1337, %v3874
  %v3876 = vpop.f32.mrb[0].mxu0
  %3877 = vdwg.mxu0
  %v3878 = vrot.slane %v850, 2
  %v3882 = vrot.slane %v3522, 6
  %v3883 = vrot.slane %v3595, 6
  %v3886 = vadd.f32 %v612, %v3882
  %v3887 = vadd.f32 %v3878, %v3883
  %v3888 = vmul.f32 %v3886, 0.5
  %v3889 = vmul.f32 %v3887, 0.5
  %v3890 = vtanh.pop %v3888
  %v3891 = vtanh.pop %v3889
  %v3892 = vmul.f32 %v3890, 0.5
  %v3893 = vmul.f32 %v3891, 0.5
  %v3894 = vadd.f32 %v3892, 0.5
  %v3895 = vadd.f32 %v3893, 0.5
  %v3896 = vrot.slane %v931, 2
  %v3900 = vrot.slane %v3665, 6
  %v3901 = vrot.slane %v3735, 6
  %v3904 = vadd.f32 %v693, %v3900
  %v3905 = vadd.f32 %v3896, %v3901
  %v3906 = vmul.f32 %v3904, 0.5
  %v3907 = vmul.f32 %v3905, 0.5
  %v3908 = vtanh.pop %v3906
  %v3909 = vtanh.pop %v3907
  %v3910 = vmul.f32 %v3908, 0.5
  %v3911 = vmul.f32 %v3909, 0.5
  %v3912 = vadd.f32 %v3910, 0.5
  %v3913 = vadd.f32 %v3911, 0.5
  %v3914 = vrot.slane %v1012, 2
  %v3918 = vrot.slane %v3805, 6
  %v3919 = vrot.slane %v3875, 6
  %v3922 = vmul.f32 %v3894, %v3918
  %v3923 = vmul.f32 %v3895, %v3919
  %v3924 = vadd.f32 %v774, %v3922
  %v3925 = vadd.f32 %v3914, %v3923
  %v3926 = vtanh.pop %v3924
  %v3927 = vtanh.pop %v3925
  %v3928 = vsub.f32 1.0, %v3912
  %v3929 = vsub.f32 1.0, %v3913
  %v3930 = vmul.f32 %v3928, %v3926
  %v3931 = vmul.f32 %v3929, %v3927
  %v3932 = vrot.slane %v3450, 6
  %v3933 = vrot.slane %v3451, 6
  %v3936 = vmul.f32 %v3912, %v3932
  %v3937 = vmul.f32 %v3913, %v3933
  %v3938 = vadd.f32 %v3930, %v3936
  %v3939 = vadd.f32 %v3931, %v3937
  %v3941 = vrot.slane %v3938, 2
  %v3942 = vsel %vm1032, %v3941, 0
  %3944 = vmatprep.subr.mxu0 0.0
  %3945 = vmatpush1.msra.mxu0 %v492
  %3946 = vmatprep.subr.mxu0 0.0
  %3947 = vmatpush1.msra.mxu0 %v493
  %3948 = vmatprep.subr.mxu0 0.0
  %3949 = vmatpush1.msra.mxu0 %v494
  %3950 = vmatprep.subr.mxu0 0.0
  %3951 = vmatpush1.msra.mxu0 %v495
  %3952 = vmatprep.subr.mxu0 0.0
  %3953 = vmatpush1.msra.mxu0 0.0
  %3954 = vmatprep.subr.mxu0 0.0
  %3955 = vmatpush1.msra.mxu0 0.0
  %3956 = vmatprep.subr.mxu0 0.0
  %3957 = vmatpush1.msra.mxu0 0.0
  %3958 = vmatprep.subr.mxu0 0.0
  %3959 = vmatpush1.msra.mxu0 0.0
  %3960 = vmatprep.subr.mxu0 0.0
  %3961 = vmatpush1.msra.mxu0 0.0
  %3962 = vmatprep.subr.mxu0 0.0
  %3963 = vmatpush1.msra.mxu0 0.0
  %3964 = vmatprep.subr.mxu0 0.0
  %3965 = vmatpush1.msra.mxu0 0.0
  %3966 = vmatprep.subr.mxu0 0.0
  %3967 = vmatpush1.msra.mxu0 0.0
  %3968 = vmatprep.subr.mxu0 0.0
  %3969 = vmatpush1.msra.mxu0 0.0
  %3970 = vmatprep.subr.mxu0 0.0
  %3971 = vmatpush1.msra.mxu0 0.0
  %3972 = vmatprep.subr.mxu0 0.0
  %3973 = vmatpush1.msra.mxu0 0.0
  %3974 = vmatprep.subr.mxu0 0.0
  %3975 = vmatpush1.msra.mxu0 0.0
  %3976 = vmatprep.subr.mxu0 0.0
  %3977 = vmatpush1.msra.mxu0 0.0
  %3978 = vmatprep.subr.mxu0 0.0
  %3979 = vmatpush1.msra.mxu0 0.0
  %3980 = vmatprep.subr.mxu0 0.0
  %3981 = vmatpush1.msra.mxu0 0.0
  %3982 = vmatprep.subr.mxu0 0.0
  %3983 = vmatpush1.msra.mxu0 0.0
  %3984 = vmatprep.subr.mxu0 0.0
  %3985 = vmatpush1.msra.mxu0 0.0
  %3986 = vmatprep.subr.mxu0 0.0
  %3987 = vmatpush1.msra.mxu0 0.0
  %3988 = vmatprep.subr.mxu0 0.0
  %3989 = vmatpush1.msra.mxu0 0.0
  %3990 = vmatprep.subr.mxu0 0.0
  %3991 = vmatpush1.msra.mxu0 0.0
  %3992 = vmatprep.subr.mxu0 0.0
  %3993 = vmatpush1.msra.mxu0 0.0
  %3994 = vmatprep.subr.mxu0 0.0
  %3995 = vmatpush1.msra.mxu0 0.0
  %3996 = vmatprep.subr.mxu0 0.0
  %3997 = vmatpush1.msra.mxu0 0.0
  %3998 = vmatprep.subr.mxu0 0.0
  %3999 = vmatpush1.msra.mxu0 0.0
  %4000 = vmatprep.subr.mxu0 0.0
  %4001 = vmatpush1.msra.mxu0 0.0
  %4002 = vmatprep.subr.mxu0 0.0
  %4003 = vmatpush1.msra.mxu0 0.0
  %4004 = vmatprep.subr.mxu0 0.0
  %4005 = vmatpush1.msra.mxu0 0.0
  %4006 = vmatprep.subr.mxu0 0.0
  %4007 = vmatpush1.msra.mxu0 0.0
  %4008 = vmatprep.mubr.f32.mxu0 0.0
  %4009 = vmatmul.mubr.f32.gmra.mrb[0].mxu0 %v3942
  %v4010 = vpop.f32.mrb[0].mxu0
  %v4011 = vadd.f32 %v1025, %v4010
  %v4012 = vpop.f32.mrb[0].mxu0
  %4013 = vdwg.mxu0
  %v4015 = vrot.slane %v3939, 2
  %v4016 = vsel %vm1032, %v4015, 0
  %4018 = vmatprep.subr.mxu0 0.0
  %4019 = vmatpush1.msra.mxu0 %v504
  %4020 = vmatprep.subr.mxu0 0.0
  %4021 = vmatpush1.msra.mxu0 %v505
  %4022 = vmatprep.subr.mxu0 0.0
  %4023 = vmatpush1.msra.mxu0 %v506
  %4024 = vmatprep.subr.mxu0 0.0
  %4025 = vmatpush1.msra.mxu0 %v507
  %4026 = vmatprep.subr.mxu0 0.0
  %4027 = vmatpush1.msra.mxu0 0.0
  %4028 = vmatprep.subr.mxu0 0.0
  %4029 = vmatpush1.msra.mxu0 0.0
  %4030 = vmatprep.subr.mxu0 0.0
  %4031 = vmatpush1.msra.mxu0 0.0
  %4032 = vmatprep.subr.mxu0 0.0
  %4033 = vmatpush1.msra.mxu0 0.0
  %4034 = vmatprep.subr.mxu0 0.0
  %4035 = vmatpush1.msra.mxu0 0.0
  %4036 = vmatprep.subr.mxu0 0.0
  %4037 = vmatpush1.msra.mxu0 0.0
  %4038 = vmatprep.subr.mxu0 0.0
  %4039 = vmatpush1.msra.mxu0 0.0
  %4040 = vmatprep.subr.mxu0 0.0
  %4041 = vmatpush1.msra.mxu0 0.0
  %4042 = vmatprep.subr.mxu0 0.0
  %4043 = vmatpush1.msra.mxu0 0.0
  %4044 = vmatprep.subr.mxu0 0.0
  %4045 = vmatpush1.msra.mxu0 0.0
  %4046 = vmatprep.subr.mxu0 0.0
  %4047 = vmatpush1.msra.mxu0 0.0
  %4048 = vmatprep.subr.mxu0 0.0
  %4049 = vmatpush1.msra.mxu0 0.0
  %4050 = vmatprep.subr.mxu0 0.0
  %4051 = vmatpush1.msra.mxu0 0.0
  %4052 = vmatprep.subr.mxu0 0.0
  %4053 = vmatpush1.msra.mxu0 0.0
  %4054 = vmatprep.subr.mxu0 0.0
  %4055 = vmatpush1.msra.mxu0 0.0
  %4056 = vmatprep.subr.mxu0 0.0
  %4057 = vmatpush1.msra.mxu0 0.0
  %4058 = vmatprep.subr.mxu0 0.0
  %4059 = vmatpush1.msra.mxu0 0.0
  %4060 = vmatprep.subr.mxu0 0.0
  %4061 = vmatpush1.msra.mxu0 0.0
  %4062 = vmatprep.subr.mxu0 0.0
  %4063 = vmatpush1.msra.mxu0 0.0
  %4064 = vmatprep.subr.mxu0 0.0
  %4065 = vmatpush1.msra.mxu0 0.0
  %4066 = vmatprep.subr.mxu0 0.0
  %4067 = vmatpush1.msra.mxu0 0.0
  %4068 = vmatprep.subr.mxu0 0.0
  %4069 = vmatpush1.msra.mxu0 0.0
  %4070 = vmatprep.subr.mxu0 0.0
  %4071 = vmatpush1.msra.mxu0 0.0
  %4072 = vmatprep.subr.mxu0 0.0
  %4073 = vmatpush1.msra.mxu0 0.0
  %4074 = vmatprep.subr.mxu0 0.0
  %4075 = vmatpush1.msra.mxu0 0.0
  %4076 = vmatprep.subr.mxu0 0.0
  %4077 = vmatpush1.msra.mxu0 0.0
  %4078 = vmatprep.subr.mxu0 0.0
  %4079 = vmatpush1.msra.mxu0 0.0
  %4080 = vmatprep.subr.mxu0 0.0
  %4081 = vmatpush1.msra.mxu0 0.0
  %4082 = vmatprep.mubr.f32.mxu0 0.0
  %4083 = vmatmul.mubr.f32.gmra.mrb[0].mxu0 %v4016
  %v4084 = vpop.f32.mrb[0].mxu0
  %v4085 = vadd.f32 %v1029, %v4084
  %v4086 = vpop.f32.mrb[0].mxu0
  %4087 = vdwg.mxu0
  %4088 = vmatprep.subr.mxu0 0.0
  %4089 = vmatpush1.msra.mxu0 %v496
  %4090 = vmatprep.subr.mxu0 0.0
  %4091 = vmatpush1.msra.mxu0 %v497
  %4092 = vmatprep.subr.mxu0 0.0
  %4093 = vmatpush1.msra.mxu0 %v498
  %4094 = vmatprep.subr.mxu0 0.0
  %4095 = vmatpush1.msra.mxu0 %v499
  %4096 = vmatprep.subr.mxu0 0.0
  %4097 = vmatpush1.msra.mxu0 0.0
  %4098 = vmatprep.subr.mxu0 0.0
  %4099 = vmatpush1.msra.mxu0 0.0
  %4100 = vmatprep.subr.mxu0 0.0
  %4101 = vmatpush1.msra.mxu0 0.0
  %4102 = vmatprep.subr.mxu0 0.0
  %4103 = vmatpush1.msra.mxu0 0.0
  %4104 = vmatprep.subr.mxu0 0.0
  %4105 = vmatpush1.msra.mxu0 0.0
  %4106 = vmatprep.subr.mxu0 0.0
  %4107 = vmatpush1.msra.mxu0 0.0
  %4108 = vmatprep.subr.mxu0 0.0
  %4109 = vmatpush1.msra.mxu0 0.0
  %4110 = vmatprep.subr.mxu0 0.0
  %4111 = vmatpush1.msra.mxu0 0.0
  %4112 = vmatprep.subr.mxu0 0.0
  %4113 = vmatpush1.msra.mxu0 0.0
  %4114 = vmatprep.subr.mxu0 0.0
  %4115 = vmatpush1.msra.mxu0 0.0
  %4116 = vmatprep.subr.mxu0 0.0
  %4117 = vmatpush1.msra.mxu0 0.0
  %4118 = vmatprep.subr.mxu0 0.0
  %4119 = vmatpush1.msra.mxu0 0.0
  %4120 = vmatprep.subr.mxu0 0.0
  %4121 = vmatpush1.msra.mxu0 0.0
  %4122 = vmatprep.subr.mxu0 0.0
  %4123 = vmatpush1.msra.mxu0 0.0
  %4124 = vmatprep.subr.mxu0 0.0
  %4125 = vmatpush1.msra.mxu0 0.0
  %4126 = vmatprep.subr.mxu0 0.0
  %4127 = vmatpush1.msra.mxu0 0.0
  %4128 = vmatprep.subr.mxu0 0.0
  %4129 = vmatpush1.msra.mxu0 0.0
  %4130 = vmatprep.subr.mxu0 0.0
  %4131 = vmatpush1.msra.mxu0 0.0
  %4132 = vmatprep.subr.mxu0 0.0
  %4133 = vmatpush1.msra.mxu0 0.0
  %4134 = vmatprep.subr.mxu0 0.0
  %4135 = vmatpush1.msra.mxu0 0.0
  %4136 = vmatprep.subr.mxu0 0.0
  %4137 = vmatpush1.msra.mxu0 0.0
  %4138 = vmatprep.subr.mxu0 0.0
  %4139 = vmatpush1.msra.mxu0 0.0
  %4140 = vmatprep.subr.mxu0 0.0
  %4141 = vmatpush1.msra.mxu0 0.0
  %4142 = vmatprep.subr.mxu0 0.0
  %4143 = vmatpush1.msra.mxu0 0.0
  %4144 = vmatprep.subr.mxu0 0.0
  %4145 = vmatpush1.msra.mxu0 0.0
  %4146 = vmatprep.subr.mxu0 0.0
  %4147 = vmatpush1.msra.mxu0 0.0
  %4148 = vmatprep.subr.mxu0 0.0
  %4149 = vmatpush1.msra.mxu0 0.0
  %4150 = vmatprep.subr.mxu0 0.0
  %4151 = vmatpush1.msra.mxu0 0.0
  %4152 = vmatprep.mubr.f32.mxu0 0.0
  %4153 = vmatmul.mubr.f32.gmra.mrb[0].mxu0 %v3942
  %v4154 = vpop.f32.mrb[0].mxu0
  %v4155 = vadd.f32 %v1181, %v4154
  %v4156 = vpop.f32.mrb[0].mxu0
  %4157 = vdwg.mxu0
  %4158 = vmatprep.subr.mxu0 0.0
  %4159 = vmatpush1.msra.mxu0 %v508
  %4160 = vmatprep.subr.mxu0 0.0
  %4161 = vmatpush1.msra.mxu0 %v509
  %4162 = vmatprep.subr.mxu0 0.0
  %4163 = vmatpush1.msra.mxu0 %v510
  %4164 = vmatprep.subr.mxu0 0.0
  %4165 = vmatpush1.msra.mxu0 %v511
  %4166 = vmatprep.subr.mxu0 0.0
  %4167 = vmatpush1.msra.mxu0 0.0
  %4168 = vmatprep.subr.mxu0 0.0
  %4169 = vmatpush1.msra.mxu0 0.0
  %4170 = vmatprep.subr.mxu0 0.0
  %4171 = vmatpush1.msra.mxu0 0.0
  %4172 = vmatprep.subr.mxu0 0.0
  %4173 = vmatpush1.msra.mxu0 0.0
  %4174 = vmatprep.subr.mxu0 0.0
  %4175 = vmatpush1.msra.mxu0 0.0
  %4176 = vmatprep.subr.mxu0 0.0
  %4177 = vmatpush1.msra.mxu0 0.0
  %4178 = vmatprep.subr.mxu0 0.0
  %4179 = vmatpush1.msra.mxu0 0.0
  %4180 = vmatprep.subr.mxu0 0.0
  %4181 = vmatpush1.msra.mxu0 0.0
  %4182 = vmatprep.subr.mxu0 0.0
  %4183 = vmatpush1.msra.mxu0 0.0
  %4184 = vmatprep.subr.mxu0 0.0
  %4185 = vmatpush1.msra.mxu0 0.0
  %4186 = vmatprep.subr.mxu0 0.0
  %4187 = vmatpush1.msra.mxu0 0.0
  %4188 = vmatprep.subr.mxu0 0.0
  %4189 = vmatpush1.msra.mxu0 0.0
  %4190 = vmatprep.subr.mxu0 0.0
  %4191 = vmatpush1.msra.mxu0 0.0
  %4192 = vmatprep.subr.mxu0 0.0
  %4193 = vmatpush1.msra.mxu0 0.0
  %4194 = vmatprep.subr.mxu0 0.0
  %4195 = vmatpush1.msra.mxu0 0.0
  %4196 = vmatprep.subr.mxu0 0.0
  %4197 = vmatpush1.msra.mxu0 0.0
  %4198 = vmatprep.subr.mxu0 0.0
  %4199 = vmatpush1.msra.mxu0 0.0
  %4200 = vmatprep.subr.mxu0 0.0
  %4201 = vmatpush1.msra.mxu0 0.0
  %4202 = vmatprep.subr.mxu0 0.0
  %4203 = vmatpush1.msra.mxu0 0.0
  %4204 = vmatprep.subr.mxu0 0.0
  %4205 = vmatpush1.msra.mxu0 0.0
  %4206 = vmatprep.subr.mxu0 0.0
  %4207 = vmatpush1.msra.mxu0 0.0
  %4208 = vmatprep.subr.mxu0 0.0
  %4209 = vmatpush1.msra.mxu0 0.0
  %4210 = vmatprep.subr.mxu0 0.0
  %4211 = vmatpush1.msra.mxu0 0.0
  %4212 = vmatprep.subr.mxu0 0.0
  %4213 = vmatpush1.msra.mxu0 0.0
  %4214 = vmatprep.subr.mxu0 0.0
  %4215 = vmatpush1.msra.mxu0 0.0
  %4216 = vmatprep.subr.mxu0 0.0
  %4217 = vmatpush1.msra.mxu0 0.0
  %4218 = vmatprep.subr.mxu0 0.0
  %4219 = vmatpush1.msra.mxu0 0.0
  %4220 = vmatprep.subr.mxu0 0.0
  %4221 = vmatpush1.msra.mxu0 0.0
  %4222 = vmatprep.mubr.f32.mxu0 0.0
  %4223 = vmatmul.mubr.f32.gmra.mrb[0].mxu0 %v4016
  %v4224 = vpop.f32.mrb[0].mxu0
  %v4225 = vadd.f32 %v1185, %v4224
  %v4226 = vpop.f32.mrb[0].mxu0
  %4227 = vdwg.mxu0
  %4228 = vmatprep.subr.mxu0 0.0
  %4229 = vmatpush1.msra.mxu0 %v500
  %4230 = vmatprep.subr.mxu0 0.0
  %4231 = vmatpush1.msra.mxu0 %v501
  %4232 = vmatprep.subr.mxu0 0.0
  %4233 = vmatpush1.msra.mxu0 %v502
  %4234 = vmatprep.subr.mxu0 0.0
  %4235 = vmatpush1.msra.mxu0 %v503
  %4236 = vmatprep.subr.mxu0 0.0
  %4237 = vmatpush1.msra.mxu0 0.0
  %4238 = vmatprep.subr.mxu0 0.0
  %4239 = vmatpush1.msra.mxu0 0.0
  %4240 = vmatprep.subr.mxu0 0.0
  %4241 = vmatpush1.msra.mxu0 0.0
  %4242 = vmatprep.subr.mxu0 0.0
  %4243 = vmatpush1.msra.mxu0 0.0
  %4244 = vmatprep.subr.mxu0 0.0
  %4245 = vmatpush1.msra.mxu0 0.0
  %4246 = vmatprep.subr.mxu0 0.0
  %4247 = vmatpush1.msra.mxu0 0.0
  %4248 = vmatprep.subr.mxu0 0.0
  %4249 = vmatpush1.msra.mxu0 0.0
  %4250 = vmatprep.subr.mxu0 0.0
  %4251 = vmatpush1.msra.mxu0 0.0
  %4252 = vmatprep.subr.mxu0 0.0
  %4253 = vmatpush1.msra.mxu0 0.0
  %4254 = vmatprep.subr.mxu0 0.0
  %4255 = vmatpush1.msra.mxu0 0.0
  %4256 = vmatprep.subr.mxu0 0.0
  %4257 = vmatpush1.msra.mxu0 0.0
  %4258 = vmatprep.subr.mxu0 0.0
  %4259 = vmatpush1.msra.mxu0 0.0
  %4260 = vmatprep.subr.mxu0 0.0
  %4261 = vmatpush1.msra.mxu0 0.0
  %4262 = vmatprep.subr.mxu0 0.0
  %4263 = vmatpush1.msra.mxu0 0.0
  %4264 = vmatprep.subr.mxu0 0.0
  %4265 = vmatpush1.msra.mxu0 0.0
  %4266 = vmatprep.subr.mxu0 0.0
  %4267 = vmatpush1.msra.mxu0 0.0
  %4268 = vmatprep.subr.mxu0 0.0
  %4269 = vmatpush1.msra.mxu0 0.0
  %4270 = vmatprep.subr.mxu0 0.0
  %4271 = vmatpush1.msra.mxu0 0.0
  %4272 = vmatprep.subr.mxu0 0.0
  %4273 = vmatpush1.msra.mxu0 0.0
  %4274 = vmatprep.subr.mxu0 0.0
  %4275 = vmatpush1.msra.mxu0 0.0
  %4276 = vmatprep.subr.mxu0 0.0
  %4277 = vmatpush1.msra.mxu0 0.0
  %4278 = vmatprep.subr.mxu0 0.0
  %4279 = vmatpush1.msra.mxu0 0.0
  %4280 = vmatprep.subr.mxu0 0.0
  %4281 = vmatpush1.msra.mxu0 0.0
  %4282 = vmatprep.subr.mxu0 0.0
  %4283 = vmatpush1.msra.mxu0 0.0
  %4284 = vmatprep.subr.mxu0 0.0
  %4285 = vmatpush1.msra.mxu0 0.0
  %4286 = vmatprep.subr.mxu0 0.0
  %4287 = vmatpush1.msra.mxu0 0.0
  %4288 = vmatprep.subr.mxu0 0.0
  %4289 = vmatpush1.msra.mxu0 0.0
  %4290 = vmatprep.subr.mxu0 0.0
  %4291 = vmatpush1.msra.mxu0 0.0
  %4292 = vmatprep.mubr.f32.mxu0 0.0
  %4293 = vmatmul.mubr.f32.gmra.mrb[0].mxu0 %v3942
  %v4294 = vpop.f32.mrb[0].mxu0
  %v4295 = vadd.f32 %v1333, %v4294
  %v4296 = vpop.f32.mrb[0].mxu0
  %4297 = vdwg.mxu0
  %4298 = vmatprep.subr.mxu0 0.0
  %4299 = vmatpush1.msra.mxu0 %v512
  %4300 = vmatprep.subr.mxu0 0.0
  %4301 = vmatpush1.msra.mxu0 %v513
  %4302 = vmatprep.subr.mxu0 0.0
  %4303 = vmatpush1.msra.mxu0 %v514
  %4304 = vmatprep.subr.mxu0 0.0
  %4305 = vmatpush1.msra.mxu0 %v515
  %4306 = vmatprep.subr.mxu0 0.0
  %4307 = vmatpush1.msra.mxu0 0.0
  %4308 = vmatprep.subr.mxu0 0.0
  %4309 = vmatpush1.msra.mxu0 0.0
  %4310 = vmatprep.subr.mxu0 0.0
  %4311 = vmatpush1.msra.mxu0 0.0
  %4312 = vmatprep.subr.mxu0 0.0
  %4313 = vmatpush1.msra.mxu0 0.0
  %4314 = vmatprep.subr.mxu0 0.0
  %4315 = vmatpush1.msra.mxu0 0.0
  %4316 = vmatprep.subr.mxu0 0.0
  %4317 = vmatpush1.msra.mxu0 0.0
  %4318 = vmatprep.subr.mxu0 0.0
  %4319 = vmatpush1.msra.mxu0 0.0
  %4320 = vmatprep.subr.mxu0 0.0
  %4321 = vmatpush1.msra.mxu0 0.0
  %4322 = vmatprep.subr.mxu0 0.0
  %4323 = vmatpush1.msra.mxu0 0.0
  %4324 = vmatprep.subr.mxu0 0.0
  %4325 = vmatpush1.msra.mxu0 0.0
  %4326 = vmatprep.subr.mxu0 0.0
  %4327 = vmatpush1.msra.mxu0 0.0
  %4328 = vmatprep.subr.mxu0 0.0
  %4329 = vmatpush1.msra.mxu0 0.0
  %4330 = vmatprep.subr.mxu0 0.0
  %4331 = vmatpush1.msra.mxu0 0.0
  %4332 = vmatprep.subr.mxu0 0.0
  %4333 = vmatpush1.msra.mxu0 0.0
  %4334 = vmatprep.subr.mxu0 0.0
  %4335 = vmatpush1.msra.mxu0 0.0
  %4336 = vmatprep.subr.mxu0 0.0
  %4337 = vmatpush1.msra.mxu0 0.0
  %4338 = vmatprep.subr.mxu0 0.0
  %4339 = vmatpush1.msra.mxu0 0.0
  %4340 = vmatprep.subr.mxu0 0.0
  %4341 = vmatpush1.msra.mxu0 0.0
  %4342 = vmatprep.subr.mxu0 0.0
  %4343 = vmatpush1.msra.mxu0 0.0
  %4344 = vmatprep.subr.mxu0 0.0
  %4345 = vmatpush1.msra.mxu0 0.0
  %4346 = vmatprep.subr.mxu0 0.0
  %4347 = vmatpush1.msra.mxu0 0.0
  %4348 = vmatprep.subr.mxu0 0.0
  %4349 = vmatpush1.msra.mxu0 0.0
  %4350 = vmatprep.subr.mxu0 0.0
  %4351 = vmatpush1.msra.mxu0 0.0
  %4352 = vmatprep.subr.mxu0 0.0
  %4353 = vmatpush1.msra.mxu0 0.0
  %4354 = vmatprep.subr.mxu0 0.0
  %4355 = vmatpush1.msra.mxu0 0.0
  %4356 = vmatprep.subr.mxu0 0.0
  %4357 = vmatpush1.msra.mxu0 0.0
  %4358 = vmatprep.subr.mxu0 0.0
  %4359 = vmatpush1.msra.mxu0 0.0
  %4360 = vmatprep.subr.mxu0 0.0
  %4361 = vmatpush1.msra.mxu0 0.0
  %4362 = vmatprep.mubr.f32.mxu0 0.0
  %4363 = vmatmul.mubr.f32.gmra.mrb[0].mxu0 %v4016
  %v4364 = vpop.f32.mrb[0].mxu0
  %v4365 = vadd.f32 %v1337, %v4364
  %v4366 = vpop.f32.mrb[0].mxu0
  %4367 = vdwg.mxu0
  %v4370 = vrot.slane %v4011, 4
  %v4371 = vrot.slane %v4085, 4
  %v4374 = vadd.f32 %v612, %v4370
  %v4375 = vadd.f32 %v3408, %v4371
  %v4376 = vmul.f32 %v4374, 0.5
  %v4377 = vmul.f32 %v4375, 0.5
  %v4378 = vtanh.pop %v4376
  %v4379 = vtanh.pop %v4377
  %v4380 = vmul.f32 %v4378, 0.5
  %v4381 = vmul.f32 %v4379, 0.5
  %v4382 = vadd.f32 %v4380, 0.5
  %v4383 = vadd.f32 %v4381, 0.5
  %v4386 = vrot.slane %v4155, 4
  %v4387 = vrot.slane %v4225, 4
  %v4390 = vadd.f32 %v693, %v4386
  %v4391 = vadd.f32 %v3421, %v4387
  %v4392 = vmul.f32 %v4390, 0.5
  %v4393 = vmul.f32 %v4391, 0.5
  %v4394 = vtanh.pop %v4392
  %v4395 = vtanh.pop %v4393
  %v4396 = vmul.f32 %v4394, 0.5
  %v4397 = vmul.f32 %v4395, 0.5
  %v4398 = vadd.f32 %v4396, 0.5
  %v4399 = vadd.f32 %v4397, 0.5
  %v4402 = vrot.slane %v4295, 4
  %v4403 = vrot.slane %v4365, 4
  %v4406 = vmul.f32 %v4382, %v4402
  %v4407 = vmul.f32 %v4383, %v4403
  %v4408 = vadd.f32 %v774, %v4406
  %v4409 = vadd.f32 %v3434, %v4407
  %v4410 = vtanh.pop %v4408
  %v4411 = vtanh.pop %v4409
  %v4412 = vsub.f32 1.0, %v4398
  %v4413 = vsub.f32 1.0, %v4399
  %v4414 = vmul.f32 %v4412, %v4410
  %v4415 = vmul.f32 %v4413, %v4411
  %v4416 = vrot.slane %v3938, 6
  %v4417 = vrot.slane %v3939, 6
  %v4420 = vmul.f32 %v4398, %v4416
  %v4421 = vmul.f32 %v4399, %v4417
  %v4422 = vadd.f32 %v4414, %v4420
  %v4423 = vadd.f32 %v4415, %v4421
  %v4425 = vrot.slane %v4422, 4
  %v4426 = vsel %vm1032, %v4425, 0
  %4428 = vmatprep.subr.mxu0 0.0
  %4429 = vmatpush1.msra.mxu0 %v492
  %4430 = vmatprep.subr.mxu0 0.0
  %4431 = vmatpush1.msra.mxu0 %v493
  %4432 = vmatprep.subr.mxu0 0.0
  %4433 = vmatpush1.msra.mxu0 %v494
  %4434 = vmatprep.subr.mxu0 0.0
  %4435 = vmatpush1.msra.mxu0 %v495
  %4436 = vmatprep.subr.mxu0 0.0
  %4437 = vmatpush1.msra.mxu0 0.0
  %4438 = vmatprep.subr.mxu0 0.0
  %4439 = vmatpush1.msra.mxu0 0.0
  %4440 = vmatprep.subr.mxu0 0.0
  %4441 = vmatpush1.msra.mxu0 0.0
  %4442 = vmatprep.subr.mxu0 0.0
  %4443 = vmatpush1.msra.mxu0 0.0
  %4444 = vmatprep.subr.mxu0 0.0
  %4445 = vmatpush1.msra.mxu0 0.0
  %4446 = vmatprep.subr.mxu0 0.0
  %4447 = vmatpush1.msra.mxu0 0.0
  %4448 = vmatprep.subr.mxu0 0.0
  %4449 = vmatpush1.msra.mxu0 0.0
  %4450 = vmatprep.subr.mxu0 0.0
  %4451 = vmatpush1.msra.mxu0 0.0
  %4452 = vmatprep.subr.mxu0 0.0
  %4453 = vmatpush1.msra.mxu0 0.0
  %4454 = vmatprep.subr.mxu0 0.0
  %4455 = vmatpush1.msra.mxu0 0.0
  %4456 = vmatprep.subr.mxu0 0.0
  %4457 = vmatpush1.msra.mxu0 0.0
  %4458 = vmatprep.subr.mxu0 0.0
  %4459 = vmatpush1.msra.mxu0 0.0
  %4460 = vmatprep.subr.mxu0 0.0
  %4461 = vmatpush1.msra.mxu0 0.0
  %4462 = vmatprep.subr.mxu0 0.0
  %4463 = vmatpush1.msra.mxu0 0.0
  %4464 = vmatprep.subr.mxu0 0.0
  %4465 = vmatpush1.msra.mxu0 0.0
  %4466 = vmatprep.subr.mxu0 0.0
  %4467 = vmatpush1.msra.mxu0 0.0
  %4468 = vmatprep.subr.mxu0 0.0
  %4469 = vmatpush1.msra.mxu0 0.0
  %4470 = vmatprep.subr.mxu0 0.0
  %4471 = vmatpush1.msra.mxu0 0.0
  %4472 = vmatprep.subr.mxu0 0.0
  %4473 = vmatpush1.msra.mxu0 0.0
  %4474 = vmatprep.subr.mxu0 0.0
  %4475 = vmatpush1.msra.mxu0 0.0
  %4476 = vmatprep.subr.mxu0 0.0
  %4477 = vmatpush1.msra.mxu0 0.0
  %4478 = vmatprep.subr.mxu0 0.0
  %4479 = vmatpush1.msra.mxu0 0.0
  %4480 = vmatprep.subr.mxu0 0.0
  %4481 = vmatpush1.msra.mxu0 0.0
  %4482 = vmatprep.subr.mxu0 0.0
  %4483 = vmatpush1.msra.mxu0 0.0
  %4484 = vmatprep.subr.mxu0 0.0
  %4485 = vmatpush1.msra.mxu0 0.0
  %4486 = vmatprep.subr.mxu0 0.0
  %4487 = vmatpush1.msra.mxu0 0.0
  %4488 = vmatprep.subr.mxu0 0.0
  %4489 = vmatpush1.msra.mxu0 0.0
  %4490 = vmatprep.subr.mxu0 0.0
  %4491 = vmatpush1.msra.mxu0 0.0
  %4492 = vmatprep.mubr.f32.mxu0 0.0
  %4493 = vmatmul.mubr.f32.gmra.mrb[0].mxu0 %v4426
  %v4494 = vpop.f32.mrb[0].mxu0
  %v4495 = vadd.f32 %v1025, %v4494
  %v4496 = vpop.f32.mrb[0].mxu0
  %4497 = vdwg.mxu0
  %v4499 = vrot.slane %v4423, 4
  %v4500 = vsel %vm1032, %v4499, 0
  %4502 = vmatprep.subr.mxu0 0.0
  %4503 = vmatpush1.msra.mxu0 %v504
  %4504 = vmatprep.subr.mxu0 0.0
  %4505 = vmatpush1.msra.mxu0 %v505
  %4506 = vmatprep.subr.mxu0 0.0
  %4507 = vmatpush1.msra.mxu0 %v506
  %4508 = vmatprep.subr.mxu0 0.0
  %4509 = vmatpush1.msra.mxu0 %v507
  %4510 = vmatprep.subr.mxu0 0.0
  %4511 = vmatpush1.msra.mxu0 0.0
  %4512 = vmatprep.subr.mxu0 0.0
  %4513 = vmatpush1.msra.mxu0 0.0
  %4514 = vmatprep.subr.mxu0 0.0
  %4515 = vmatpush1.msra.mxu0 0.0
  %4516 = vmatprep.subr.mxu0 0.0
  %4517 = vmatpush1.msra.mxu0 0.0
  %4518 = vmatprep.subr.mxu0 0.0
  %4519 = vmatpush1.msra.mxu0 0.0
  %4520 = vmatprep.subr.mxu0 0.0
  %4521 = vmatpush1.msra.mxu0 0.0
  %4522 = vmatprep.subr.mxu0 0.0
  %4523 = vmatpush1.msra.mxu0 0.0
  %4524 = vmatprep.subr.mxu0 0.0
  %4525 = vmatpush1.msra.mxu0 0.0
  %4526 = vmatprep.subr.mxu0 0.0
  %4527 = vmatpush1.msra.mxu0 0.0
  %4528 = vmatprep.subr.mxu0 0.0
  %4529 = vmatpush1.msra.mxu0 0.0
  %4530 = vmatprep.subr.mxu0 0.0
  %4531 = vmatpush1.msra.mxu0 0.0
  %4532 = vmatprep.subr.mxu0 0.0
  %4533 = vmatpush1.msra.mxu0 0.0
  %4534 = vmatprep.subr.mxu0 0.0
  %4535 = vmatpush1.msra.mxu0 0.0
  %4536 = vmatprep.subr.mxu0 0.0
  %4537 = vmatpush1.msra.mxu0 0.0
  %4538 = vmatprep.subr.mxu0 0.0
  %4539 = vmatpush1.msra.mxu0 0.0
  %4540 = vmatprep.subr.mxu0 0.0
  %4541 = vmatpush1.msra.mxu0 0.0
  %4542 = vmatprep.subr.mxu0 0.0
  %4543 = vmatpush1.msra.mxu0 0.0
  %4544 = vmatprep.subr.mxu0 0.0
  %4545 = vmatpush1.msra.mxu0 0.0
  %4546 = vmatprep.subr.mxu0 0.0
  %4547 = vmatpush1.msra.mxu0 0.0
  %4548 = vmatprep.subr.mxu0 0.0
  %4549 = vmatpush1.msra.mxu0 0.0
  %4550 = vmatprep.subr.mxu0 0.0
  %4551 = vmatpush1.msra.mxu0 0.0
  %4552 = vmatprep.subr.mxu0 0.0
  %4553 = vmatpush1.msra.mxu0 0.0
  %4554 = vmatprep.subr.mxu0 0.0
  %4555 = vmatpush1.msra.mxu0 0.0
  %4556 = vmatprep.subr.mxu0 0.0
  %4557 = vmatpush1.msra.mxu0 0.0
  %4558 = vmatprep.subr.mxu0 0.0
  %4559 = vmatpush1.msra.mxu0 0.0
  %4560 = vmatprep.subr.mxu0 0.0
  %4561 = vmatpush1.msra.mxu0 0.0
  %4562 = vmatprep.subr.mxu0 0.0
  %4563 = vmatpush1.msra.mxu0 0.0
  %4564 = vmatprep.subr.mxu0 0.0
  %4565 = vmatpush1.msra.mxu0 0.0
  %4566 = vmatprep.mubr.f32.mxu0 0.0
  %4567 = vmatmul.mubr.f32.gmra.mrb[0].mxu0 %v4500
  %v4568 = vpop.f32.mrb[0].mxu0
  %v4569 = vadd.f32 %v1029, %v4568
  %v4570 = vpop.f32.mrb[0].mxu0
  %4571 = vdwg.mxu0
  %4572 = vmatprep.subr.mxu0 0.0
  %4573 = vmatpush1.msra.mxu0 %v496
  %4574 = vmatprep.subr.mxu0 0.0
  %4575 = vmatpush1.msra.mxu0 %v497
  %4576 = vmatprep.subr.mxu0 0.0
  %4577 = vmatpush1.msra.mxu0 %v498
  %4578 = vmatprep.subr.mxu0 0.0
  %4579 = vmatpush1.msra.mxu0 %v499
  %4580 = vmatprep.subr.mxu0 0.0
  %4581 = vmatpush1.msra.mxu0 0.0
  %4582 = vmatprep.subr.mxu0 0.0
  %4583 = vmatpush1.msra.mxu0 0.0
  %4584 = vmatprep.subr.mxu0 0.0
  %4585 = vmatpush1.msra.mxu0 0.0
  %4586 = vmatprep.subr.mxu0 0.0
  %4587 = vmatpush1.msra.mxu0 0.0
  %4588 = vmatprep.subr.mxu0 0.0
  %4589 = vmatpush1.msra.mxu0 0.0
  %4590 = vmatprep.subr.mxu0 0.0
  %4591 = vmatpush1.msra.mxu0 0.0
  %4592 = vmatprep.subr.mxu0 0.0
  %4593 = vmatpush1.msra.mxu0 0.0
  %4594 = vmatprep.subr.mxu0 0.0
  %4595 = vmatpush1.msra.mxu0 0.0
  %4596 = vmatprep.subr.mxu0 0.0
  %4597 = vmatpush1.msra.mxu0 0.0
  %4598 = vmatprep.subr.mxu0 0.0
  %4599 = vmatpush1.msra.mxu0 0.0
  %4600 = vmatprep.subr.mxu0 0.0
  %4601 = vmatpush1.msra.mxu0 0.0
  %4602 = vmatprep.subr.mxu0 0.0
  %4603 = vmatpush1.msra.mxu0 0.0
  %4604 = vmatprep.subr.mxu0 0.0
  %4605 = vmatpush1.msra.mxu0 0.0
  %4606 = vmatprep.subr.mxu0 0.0
  %4607 = vmatpush1.msra.mxu0 0.0
  %4608 = vmatprep.subr.mxu0 0.0
  %4609 = vmatpush1.msra.mxu0 0.0
  %4610 = vmatprep.subr.mxu0 0.0
  %4611 = vmatpush1.msra.mxu0 0.0
  %4612 = vmatprep.subr.mxu0 0.0
  %4613 = vmatpush1.msra.mxu0 0.0
  %4614 = vmatprep.subr.mxu0 0.0
  %4615 = vmatpush1.msra.mxu0 0.0
  %4616 = vmatprep.subr.mxu0 0.0
  %4617 = vmatpush1.msra.mxu0 0.0
  %4618 = vmatprep.subr.mxu0 0.0
  %4619 = vmatpush1.msra.mxu0 0.0
  %4620 = vmatprep.subr.mxu0 0.0
  %4621 = vmatpush1.msra.mxu0 0.0
  %4622 = vmatprep.subr.mxu0 0.0
  %4623 = vmatpush1.msra.mxu0 0.0
  %4624 = vmatprep.subr.mxu0 0.0
  %4625 = vmatpush1.msra.mxu0 0.0
  %4626 = vmatprep.subr.mxu0 0.0
  %4627 = vmatpush1.msra.mxu0 0.0
  %4628 = vmatprep.subr.mxu0 0.0
  %4629 = vmatpush1.msra.mxu0 0.0
  %4630 = vmatprep.subr.mxu0 0.0
  %4631 = vmatpush1.msra.mxu0 0.0
  %4632 = vmatprep.subr.mxu0 0.0
  %4633 = vmatpush1.msra.mxu0 0.0
  %4634 = vmatprep.subr.mxu0 0.0
  %4635 = vmatpush1.msra.mxu0 0.0
  %4636 = vmatprep.mubr.f32.mxu0 0.0
  %4637 = vmatmul.mubr.f32.gmra.mrb[0].mxu0 %v4426
  %v4638 = vpop.f32.mrb[0].mxu0
  %v4639 = vadd.f32 %v1181, %v4638
  %v4640 = vpop.f32.mrb[0].mxu0
  %4641 = vdwg.mxu0
  %4642 = vmatprep.subr.mxu0 0.0
  %4643 = vmatpush1.msra.mxu0 %v508
  %4644 = vmatprep.subr.mxu0 0.0
  %4645 = vmatpush1.msra.mxu0 %v509
  %4646 = vmatprep.subr.mxu0 0.0
  %4647 = vmatpush1.msra.mxu0 %v510
  %4648 = vmatprep.subr.mxu0 0.0
  %4649 = vmatpush1.msra.mxu0 %v511
  %4650 = vmatprep.subr.mxu0 0.0
  %4651 = vmatpush1.msra.mxu0 0.0
  %4652 = vmatprep.subr.mxu0 0.0
  %4653 = vmatpush1.msra.mxu0 0.0
  %4654 = vmatprep.subr.mxu0 0.0
  %4655 = vmatpush1.msra.mxu0 0.0
  %4656 = vmatprep.subr.mxu0 0.0
  %4657 = vmatpush1.msra.mxu0 0.0
  %4658 = vmatprep.subr.mxu0 0.0
  %4659 = vmatpush1.msra.mxu0 0.0
  %4660 = vmatprep.subr.mxu0 0.0
  %4661 = vmatpush1.msra.mxu0 0.0
  %4662 = vmatprep.subr.mxu0 0.0
  %4663 = vmatpush1.msra.mxu0 0.0
  %4664 = vmatprep.subr.mxu0 0.0
  %4665 = vmatpush1.msra.mxu0 0.0
  %4666 = vmatprep.subr.mxu0 0.0
  %4667 = vmatpush1.msra.mxu0 0.0
  %4668 = vmatprep.subr.mxu0 0.0
  %4669 = vmatpush1.msra.mxu0 0.0
  %4670 = vmatprep.subr.mxu0 0.0
  %4671 = vmatpush1.msra.mxu0 0.0
  %4672 = vmatprep.subr.mxu0 0.0
  %4673 = vmatpush1.msra.mxu0 0.0
  %4674 = vmatprep.subr.mxu0 0.0
  %4675 = vmatpush1.msra.mxu0 0.0
  %4676 = vmatprep.subr.mxu0 0.0
  %4677 = vmatpush1.msra.mxu0 0.0
  %4678 = vmatprep.subr.mxu0 0.0
  %4679 = vmatpush1.msra.mxu0 0.0
  %4680 = vmatprep.subr.mxu0 0.0
  %4681 = vmatpush1.msra.mxu0 0.0
  %4682 = vmatprep.subr.mxu0 0.0
  %4683 = vmatpush1.msra.mxu0 0.0
  %4684 = vmatprep.subr.mxu0 0.0
  %4685 = vmatpush1.msra.mxu0 0.0
  %4686 = vmatprep.subr.mxu0 0.0
  %4687 = vmatpush1.msra.mxu0 0.0
  %4688 = vmatprep.subr.mxu0 0.0
  %4689 = vmatpush1.msra.mxu0 0.0
  %4690 = vmatprep.subr.mxu0 0.0
  %4691 = vmatpush1.msra.mxu0 0.0
  %4692 = vmatprep.subr.mxu0 0.0
  %4693 = vmatpush1.msra.mxu0 0.0
  %4694 = vmatprep.subr.mxu0 0.0
  %4695 = vmatpush1.msra.mxu0 0.0
  %4696 = vmatprep.subr.mxu0 0.0
  %4697 = vmatpush1.msra.mxu0 0.0
  %4698 = vmatprep.subr.mxu0 0.0
  %4699 = vmatpush1.msra.mxu0 0.0
  %4700 = vmatprep.subr.mxu0 0.0
  %4701 = vmatpush1.msra.mxu0 0.0
  %4702 = vmatprep.subr.mxu0 0.0
  %4703 = vmatpush1.msra.mxu0 0.0
  %4704 = vmatprep.subr.mxu0 0.0
  %4705 = vmatpush1.msra.mxu0 0.0
  %4706 = vmatprep.mubr.f32.mxu0 0.0
  %4707 = vmatmul.mubr.f32.gmra.mrb[0].mxu0 %v4500
  %v4708 = vpop.f32.mrb[0].mxu0
  %v4709 = vadd.f32 %v1185, %v4708
  %v4710 = vpop.f32.mrb[0].mxu0
  %4711 = vdwg.mxu0
  %4712 = vmatprep.subr.mxu0 0.0
  %4713 = vmatpush1.msra.mxu0 %v500
  %4714 = vmatprep.subr.mxu0 0.0
  %4715 = vmatpush1.msra.mxu0 %v501
  %4716 = vmatprep.subr.mxu0 0.0
  %4717 = vmatpush1.msra.mxu0 %v502
  %4718 = vmatprep.subr.mxu0 0.0
  %4719 = vmatpush1.msra.mxu0 %v503
  %4720 = vmatprep.subr.mxu0 0.0
  %4721 = vmatpush1.msra.mxu0 0.0
  %4722 = vmatprep.subr.mxu0 0.0
  %4723 = vmatpush1.msra.mxu0 0.0
  %4724 = vmatprep.subr.mxu0 0.0
  %4725 = vmatpush1.msra.mxu0 0.0
  %4726 = vmatprep.subr.mxu0 0.0
  %4727 = vmatpush1.msra.mxu0 0.0
  %4728 = vmatprep.subr.mxu0 0.0
  %4729 = vmatpush1.msra.mxu0 0.0
  %4730 = vmatprep.subr.mxu0 0.0
  %4731 = vmatpush1.msra.mxu0 0.0
  %4732 = vmatprep.subr.mxu0 0.0
  %4733 = vmatpush1.msra.mxu0 0.0
  %4734 = vmatprep.subr.mxu0 0.0
  %4735 = vmatpush1.msra.mxu0 0.0
  %4736 = vmatprep.subr.mxu0 0.0
  %4737 = vmatpush1.msra.mxu0 0.0
  %4738 = vmatprep.subr.mxu0 0.0
  %4739 = vmatpush1.msra.mxu0 0.0
  %4740 = vmatprep.subr.mxu0 0.0
  %4741 = vmatpush1.msra.mxu0 0.0
  %4742 = vmatprep.subr.mxu0 0.0
  %4743 = vmatpush1.msra.mxu0 0.0
  %4744 = vmatprep.subr.mxu0 0.0
  %4745 = vmatpush1.msra.mxu0 0.0
  %4746 = vmatprep.subr.mxu0 0.0
  %4747 = vmatpush1.msra.mxu0 0.0
  %4748 = vmatprep.subr.mxu0 0.0
  %4749 = vmatpush1.msra.mxu0 0.0
  %4750 = vmatprep.subr.mxu0 0.0
  %4751 = vmatpush1.msra.mxu0 0.0
  %4752 = vmatprep.subr.mxu0 0.0
  %4753 = vmatpush1.msra.mxu0 0.0
  %4754 = vmatprep.subr.mxu0 0.0
  %4755 = vmatpush1.msra.mxu0 0.0
  %4756 = vmatprep.subr.mxu0 0.0
  %4757 = vmatpush1.msra.mxu0 0.0
  %4758 = vmatprep.subr.mxu0 0.0
  %4759 = vmatpush1.msra.mxu0 0.0
  %4760 = vmatprep.subr.mxu0 0.0
  %4761 = vmatpush1.msra.mxu0 0.0
  %4762 = vmatprep.subr.mxu0 0.0
  %4763 = vmatpush1.msra.mxu0 0.0
  %4764 = vmatprep.subr.mxu0 0.0
  %4765 = vmatpush1.msra.mxu0 0.0
  %4766 = vmatprep.subr.mxu0 0.0
  %4767 = vmatpush1.msra.mxu0 0.0
  %4768 = vmatprep.subr.mxu0 0.0
  %4769 = vmatpush1.msra.mxu0 0.0
  %4770 = vmatprep.subr.mxu0 0.0
  %4771 = vmatpush1.msra.mxu0 0.0
  %4772 = vmatprep.subr.mxu0 0.0
  %4773 = vmatpush1.msra.mxu0 0.0
  %4774 = vmatprep.subr.mxu0 0.0
  %4775 = vmatpush1.msra.mxu0 0.0
  %4776 = vmatprep.mubr.f32.mxu0 0.0
  %4777 = vmatmul.mubr.f32.gmra.mrb[0].mxu0 %v4426
  %v4778 = vpop.f32.mrb[0].mxu0
  %v4779 = vadd.f32 %v1333, %v4778
  %v4780 = vpop.f32.mrb[0].mxu0
  %4781 = vdwg.mxu0
  %4782 = vmatprep.subr.mxu0 0.0
  %4783 = vmatpush1.msra.mxu0 %v512
  %4784 = vmatprep.subr.mxu0 0.0
  %4785 = vmatpush1.msra.mxu0 %v513
  %4786 = vmatprep.subr.mxu0 0.0
  %4787 = vmatpush1.msra.mxu0 %v514
  %4788 = vmatprep.subr.mxu0 0.0
  %4789 = vmatpush1.msra.mxu0 %v515
  %4790 = vmatprep.subr.mxu0 0.0
  %4791 = vmatpush1.msra.mxu0 0.0
  %4792 = vmatprep.subr.mxu0 0.0
  %4793 = vmatpush1.msra.mxu0 0.0
  %4794 = vmatprep.subr.mxu0 0.0
  %4795 = vmatpush1.msra.mxu0 0.0
  %4796 = vmatprep.subr.mxu0 0.0
  %4797 = vmatpush1.msra.mxu0 0.0
  %4798 = vmatprep.subr.mxu0 0.0
  %4799 = vmatpush1.msra.mxu0 0.0
  %4800 = vmatprep.subr.mxu0 0.0
  %4801 = vmatpush1.msra.mxu0 0.0
  %4802 = vmatprep.subr.mxu0 0.0
  %4803 = vmatpush1.msra.mxu0 0.0
  %4804 = vmatprep.subr.mxu0 0.0
  %4805 = vmatpush1.msra.mxu0 0.0
  %4806 = vmatprep.subr.mxu0 0.0
  %4807 = vmatpush1.msra.mxu0 0.0
  %4808 = vmatprep.subr.mxu0 0.0
  %4809 = vmatpush1.msra.mxu0 0.0
  %4810 = vmatprep.subr.mxu0 0.0
  %4811 = vmatpush1.msra.mxu0 0.0
  %4812 = vmatprep.subr.mxu0 0.0
  %4813 = vmatpush1.msra.mxu0 0.0
  %4814 = vmatprep.subr.mxu0 0.0
  %4815 = vmatpush1.msra.mxu0 0.0
  %4816 = vmatprep.subr.mxu0 0.0
  %4817 = vmatpush1.msra.mxu0 0.0
  %4818 = vmatprep.subr.mxu0 0.0
  %4819 = vmatpush1.msra.mxu0 0.0
  %4820 = vmatprep.subr.mxu0 0.0
  %4821 = vmatpush1.msra.mxu0 0.0
  %4822 = vmatprep.subr.mxu0 0.0
  %4823 = vmatpush1.msra.mxu0 0.0
  %4824 = vmatprep.subr.mxu0 0.0
  %4825 = vmatpush1.msra.mxu0 0.0
  %4826 = vmatprep.subr.mxu0 0.0
  %4827 = vmatpush1.msra.mxu0 0.0
  %4828 = vmatprep.subr.mxu0 0.0
  %4829 = vmatpush1.msra.mxu0 0.0
  %4830 = vmatprep.subr.mxu0 0.0
  %4831 = vmatpush1.msra.mxu0 0.0
  %4832 = vmatprep.subr.mxu0 0.0
  %4833 = vmatpush1.msra.mxu0 0.0
  %4834 = vmatprep.subr.mxu0 0.0
  %4835 = vmatpush1.msra.mxu0 0.0
  %4836 = vmatprep.subr.mxu0 0.0
  %4837 = vmatpush1.msra.mxu0 0.0
  %4838 = vmatprep.subr.mxu0 0.0
  %4839 = vmatpush1.msra.mxu0 0.0
  %4840 = vmatprep.subr.mxu0 0.0
  %4841 = vmatpush1.msra.mxu0 0.0
  %4842 = vmatprep.subr.mxu0 0.0
  %4843 = vmatpush1.msra.mxu0 0.0
  %4844 = vmatprep.subr.mxu0 0.0
  %4845 = vmatpush1.msra.mxu0 0.0
  %4846 = vmatprep.mubr.f32.mxu0 0.0
  %4847 = vmatmul.mubr.f32.gmra.mrb[0].mxu0 %v4500
  %v4848 = vpop.f32.mrb[0].mxu0
  %v4849 = vadd.f32 %v1337, %v4848
  %v4850 = vpop.f32.mrb[0].mxu0
  %4851 = vdwg.mxu0
  %v4854 = vrot.slane %v4495, 2
  %v4855 = vrot.slane %v4569, 2
  %v4858 = vadd.f32 %v612, %v4854
  %v4859 = vadd.f32 %v3878, %v4855
  %v4860 = vmul.f32 %v4858, 0.5
  %v4861 = vmul.f32 %v4859, 0.5
  %v4862 = vtanh.pop %v4860
  %v4863 = vtanh.pop %v4861
  %v4864 = vmul.f32 %v4862, 0.5
  %v4865 = vmul.f32 %v4863, 0.5
  %v4866 = vadd.f32 %v4864, 0.5
  %v4867 = vadd.f32 %v4865, 0.5
  %v4870 = vrot.slane %v4639, 2
  %v4871 = vrot.slane %v4709, 2
  %v4874 = vadd.f32 %v693, %v4870
  %v4875 = vadd.f32 %v3896, %v4871
  %v4876 = vmul.f32 %v4874, 0.5
  %v4877 = vmul.f32 %v4875, 0.5
  %v4878 = vtanh.pop %v4876
  %v4879 = vtanh.pop %v4877
  %v4880 = vmul.f32 %v4878, 0.5
  %v4881 = vmul.f32 %v4879, 0.5
  %v4882 = vadd.f32 %v4880, 0.5
  %v4883 = vadd.f32 %v4881, 0.5
  %v4886 = vrot.slane %v4779, 2
  %v4887 = vrot.slane %v4849, 2
  %v4890 = vmul.f32 %v4866, %v4886
  %v4891 = vmul.f32 %v4867, %v4887
  %v4892 = vadd.f32 %v774, %v4890
  %v4893 = vadd.f32 %v3914, %v4891
  %v4894 = vtanh.pop %v4892
  %v4895 = vtanh.pop %v4893
  %v4896 = vsub.f32 1.0, %v4882
  %v4897 = vsub.f32 1.0, %v4883
  %v4898 = vmul.f32 %v4896, %v4894
  %v4899 = vmul.f32 %v4897, %v4895
  %v4900 = vrot.slane %v4422, 6
  %v4901 = vrot.slane %v4423, 6
  %v4904 = vmul.f32 %v4882, %v4900
  %v4905 = vmul.f32 %v4883, %v4901
  %v4906 = vadd.f32 %v4898, %v4904
  %v4907 = vadd.f32 %v4899, %v4905
  %v4909 = vrot.slane %v4907, 6
  %4910 = vrot.lane.b32.xlu0 %v4909, 32
  %v4911 = vpop.permute.xlu0 %4910
  %v4913 = vsel %vm1032, %v1521, %v4911
  %v4914 = vrot.slane %v4423, 2
  %4915 = vrot.lane.b32.xlu0 %v4914, 32
  %v4916 = vpop.permute.xlu0 %4915
  %v4918 = vsel %vm1032, %v2009, %v4916
  %4919 = vrot.lane.b32.xlu0 %v4417, 32
  %v4920 = vpop.permute.xlu0 %4919
  %v4922 = vsel %vm1032, %v2493, %v4920
  %v4923 = vrot.slane %v3451, 2
  %4924 = vrot.lane.b32.xlu0 %v4923, 32
  %v4925 = vpop.permute.xlu0 %4924
  %v4927 = vsel %vm1032, %v2977, %v4925
  %4928 = vrot.lane.b32.xlu0 %v3054, 32
  %v4929 = vpop.permute.xlu0 %4928
  %v4931 = vsel %vm1032, %v3450, %v4929
  %v4932 = vrot.slane %v2494, 2
  %4933 = vrot.lane.b32.xlu0 %v4932, 32
  %v4934 = vpop.permute.xlu0 %4933
  %v4936 = vsel %vm1032, %v3938, %v4934
  %4937 = vrot.lane.b32.xlu0 %v2488, 32
  %v4938 = vpop.permute.xlu0 %4937
  %v4940 = vsel %vm1032, %v4422, %v4938
  %v4941 = vrot.slane %v1522, 2
  %4942 = vrot.lane.b32.xlu0 %v4941, 32
  %v4943 = vpop.permute.xlu0 %4942
  %v4945 = vsel %vm1032, %v4906, %v4943
  %vm4946 = vcmask 1041408
  %v4947 = vsel %vm4946, %v4913, %v4918
  %vm4948 = vcmask 1043456
  %v4949 = vsel %vm4948, %v4947, %v4922
  %vm4950 = vcmask 1045504
  %v4951 = vsel %vm4950, %v4949, %v4927
  %v4952 = vsel %vm4946, %v4931, %v4936
  %v4953 = vsel %vm4948, %v4952, %v4940
  %v4954 = vsel %vm4950, %v4953, %v4945
  %v4955 = vld [vmem:[%s9] sm:$0xff]
  %v4956 = vld [vmem:[%s9 + $0x8] sm:$0xff]
  %v4957 = vld [vmem:[%s9 + $0x10] sm:$0xff]
  %v4958 = vld [vmem:[%s9 + $0x18] sm:$0xff]
  %v4959 = vld [vmem:[%s9 + $0x20] sm:$0xff]
  %v4960 = vld [vmem:[%s9 + $0x28] sm:$0xff]
  %v4961 = vld [vmem:[%s9 + $0x30] sm:$0xff]
  %v4962 = vld [vmem:[%s9 + $0x38] sm:$0xff]
  %v4963 = vld [vmem:[%s9 + $0x40] sm:$0xff]
  %v4964 = vld [vmem:[%s9 + $0x48] sm:$0xff]
  %v4965 = vld [vmem:[%s9 + $0x50] sm:$0xff]
  %v4966 = vld [vmem:[%s9 + $0x58] sm:$0xff]
  %v4967 = vld [vmem:[%s9 + $0x60] sm:$0xff]
  %v4968 = vld [vmem:[%s9 + $0x68] sm:$0xff]
  %v4969 = vld [vmem:[%s9 + $0x70] sm:$0xff]
  %v4970 = vld [vmem:[%s9 + $0x78] sm:$0xff]
  %v4971 = vld [vmem:[%s9 + $0x80] sm:$0xff]
  %v4972 = vld [vmem:[%s9 + $0x88] sm:$0xff]
  %v4973 = vld [vmem:[%s9 + $0x90] sm:$0xff]
  %v4974 = vld [vmem:[%s9 + $0x98] sm:$0xff]
  %v4975 = vld [vmem:[%s9 + $0xa0] sm:$0xff]
  %v4976 = vld [vmem:[%s9 + $0xa8] sm:$0xff]
  %v4977 = vld [vmem:[%s9 + $0xb0] sm:$0xff]
  %v4978 = vld [vmem:[%s9 + $0xb8] sm:$0xff]
  %v4979 = vld [vmem:[%s9 + $0xc0] sm:$0xff]
  %v4980 = vld [vmem:[%s9 + $0xc8] sm:$0xff]
  %v4981 = vld [vmem:[%s9 + $0xd0] sm:$0xff]
  %v4982 = vld [vmem:[%s9 + $0xd8] sm:$0xff]
  %v4983 = vld [vmem:[%s9 + $0xe0] sm:$0xff]
  %v4984 = vld [vmem:[%s9 + $0xe8] sm:$0xff]
  %v4985 = vld [vmem:[%s9 + $0xf0] sm:$0xff]
  %v4986 = vld [vmem:[%s9 + $0xf8] sm:$0xff]
  %v4987 = vld [vmem:[%s9 + $0x100] sm:$0xff]
  %v4988 = vld [vmem:[%s9 + $0x108] sm:$0xff]
  %v4989 = vld [vmem:[%s9 + $0x110] sm:$0xff]
  %v4990 = vld [vmem:[%s9 + $0x118] sm:$0xff]
  %v4991 = vld [vmem:[%s9 + $0x120] sm:$0xff]
  %v4992 = vld [vmem:[%s9 + $0x128] sm:$0xff]
  %v4993 = vld [vmem:[%s9 + $0x130] sm:$0xff]
  %v4994 = vld [vmem:[%s9 + $0x138] sm:$0xff]
  %v4995 = vld [vmem:[%s9 + $0x140] sm:$0xff]
  %v4996 = vld [vmem:[%s9 + $0x148] sm:$0xff]
  %v4997 = vld [vmem:[%s9 + $0x150] sm:$0xff]
  %v4998 = vld [vmem:[%s9 + $0x158] sm:$0xff]
  %v4999 = vld [vmem:[%s9 + $0x160] sm:$0xff]
  %v5000 = vld [vmem:[%s9 + $0x168] sm:$0xff]
  %v5001 = vld [vmem:[%s9 + $0x170] sm:$0xff]
  %v5002 = vld [vmem:[%s9 + $0x178] sm:$0xff]
  %v5003 = vld [vmem:[%s10] sm:$0xff]
  %v5004 = vld [vmem:[%s10 + $0x8] sm:$0xff]
  %v5005 = vld [vmem:[%s10 + $0x10] sm:$0xff]
  %v5006 = vld [vmem:[%s10 + $0x18] sm:$0xff]
  %v5007 = vld [vmem:[%s10 + $0x20] sm:$0xff]
  %v5008 = vld [vmem:[%s10 + $0x28] sm:$0xff]
  %v5009 = vld [vmem:[%s10 + $0x30] sm:$0xff]
  %v5010 = vld [vmem:[%s10 + $0x38] sm:$0xff]
  %v5011 = vld [vmem:[%s10 + $0x40] sm:$0xff]
  %v5012 = vld [vmem:[%s10 + $0x48] sm:$0xff]
  %v5013 = vld [vmem:[%s10 + $0x50] sm:$0xff]
  %v5014 = vld [vmem:[%s10 + $0x58] sm:$0xff]
  %v5015 = vld [vmem:[%s10 + $0x60] sm:$0xff]
  %v5016 = vld [vmem:[%s10 + $0x68] sm:$0xff]
  %v5017 = vld [vmem:[%s10 + $0x70] sm:$0xff]
  %v5018 = vld [vmem:[%s10 + $0x78] sm:$0xff]
  %v5019 = vld [vmem:[%s10 + $0x80] sm:$0xff]
  %v5020 = vld [vmem:[%s10 + $0x88] sm:$0xff]
  %v5021 = vld [vmem:[%s10 + $0x90] sm:$0xff]
  %v5022 = vld [vmem:[%s10 + $0x98] sm:$0xff]
  %v5023 = vld [vmem:[%s10 + $0xa0] sm:$0xff]
  %v5024 = vld [vmem:[%s10 + $0xa8] sm:$0xff]
  %v5025 = vld [vmem:[%s10 + $0xb0] sm:$0xff]
  %v5026 = vld [vmem:[%s10 + $0xb8] sm:$0xff]
  %v5027 = vld [vmem:[%s11] sm:$0x1]
  %v5028 = vld [vmem:[%s11 + $0x1] sm:$0x1]
  %v5029 = vld [vmem:[%s11 + $0x2] sm:$0x1]
  %v5030 = vld [vmem:[%s11 + $0x3] sm:$0x1]
  %v5031 = vld [vmem:[%s11 + $0x4] sm:$0x1]
  %v5032 = vld [vmem:[%s11 + $0x5] sm:$0x1]
  %v5033 = vld [vmem:[%s12] sm:$0x1]
  %v5034 = vld [vmem:[%s12 + $0x1] sm:$0x1]
  %v5035 = vld [vmem:[%s12 + $0x2] sm:$0x1]
  %v5036 = vld [vmem:[%s12 + $0x3] sm:$0x1]
  %v5037 = vld [vmem:[%s12 + $0x4] sm:$0x1]
  %v5038 = vld [vmem:[%s12 + $0x5] sm:$0x1]
  %v5040 = vlaneseq
  %v5041 = vshrl.u32 %v5040, 7
  %v5042 = vsub.s32 0, %v5041
  %v5043 = vrot.slane %v5027, %v5042
  %vm5045 = vcmask 523264
  %v5047 = vsel %vm5045, %v4951, 0
  %v5050 = vsel %vm5045, %v4954, 0
  %5052 = vmatprep.subr.mxu0 0.0
  %5053 = vmatpush1.msra.mxu0 %v4955
  %5054 = vmatprep.subr.mxu0 0.0
  %5055 = vmatpush1.msra.mxu0 %v4956
  %5056 = vmatprep.subr.mxu0 0.0
  %5057 = vmatpush1.msra.mxu0 %v4957
  %5058 = vmatprep.subr.mxu0 0.0
  %5059 = vmatpush1.msra.mxu0 %v4958
  %5060 = vmatprep.subr.mxu0 0.0
  %5061 = vmatpush1.msra.mxu0 %v4959
  %5062 = vmatprep.subr.mxu0 0.0
  %5063 = vmatpush1.msra.mxu0 %v4960
  %5064 = vmatprep.subr.mxu0 0.0
  %5065 = vmatpush1.msra.mxu0 %v4961
  %5066 = vmatprep.subr.mxu0 0.0
  %5067 = vmatpush1.msra.mxu0 %v4962
  %5068 = vmatprep.subr.mxu0 0.0
  %5069 = vmatpush1.msra.mxu0 0.0
  %5070 = vmatprep.subr.mxu0 0.0
  %5071 = vmatpush1.msra.mxu0 0.0
  %5072 = vmatprep.subr.mxu0 0.0
  %5073 = vmatpush1.msra.mxu0 0.0
  %5074 = vmatprep.subr.mxu0 0.0
  %5075 = vmatpush1.msra.mxu0 0.0
  %5076 = vmatprep.subr.mxu0 0.0
  %5077 = vmatpush1.msra.mxu0 0.0
  %5078 = vmatprep.subr.mxu0 0.0
  %5079 = vmatpush1.msra.mxu0 0.0
  %5080 = vmatprep.subr.mxu0 0.0
  %5081 = vmatpush1.msra.mxu0 0.0
  %5082 = vmatprep.subr.mxu0 0.0
  %5083 = vmatpush1.msra.mxu0 0.0
  %5084 = vmatprep.subr.mxu0 0.0
  %5085 = vmatpush1.msra.mxu0 0.0
  %5086 = vmatprep.subr.mxu0 0.0
  %5087 = vmatpush1.msra.mxu0 0.0
  %5088 = vmatprep.subr.mxu0 0.0
  %5089 = vmatpush1.msra.mxu0 0.0
  %5090 = vmatprep.subr.mxu0 0.0
  %5091 = vmatpush1.msra.mxu0 0.0
  %5092 = vmatprep.subr.mxu0 0.0
  %5093 = vmatpush1.msra.mxu0 0.0
  %5094 = vmatprep.subr.mxu0 0.0
  %5095 = vmatpush1.msra.mxu0 0.0
  %5096 = vmatprep.subr.mxu0 0.0
  %5097 = vmatpush1.msra.mxu0 0.0
  %5098 = vmatprep.subr.mxu0 0.0
  %5099 = vmatpush1.msra.mxu0 0.0
  %5100 = vmatprep.subr.mxu0 0.0
  %5101 = vmatpush1.msra.mxu0 0.0
  %5102 = vmatprep.subr.mxu0 0.0
  %5103 = vmatpush1.msra.mxu0 0.0
  %5104 = vmatprep.subr.mxu0 0.0
  %5105 = vmatpush1.msra.mxu0 0.0
  %5106 = vmatprep.subr.mxu0 0.0
  %5107 = vmatpush1.msra.mxu0 0.0
  %5108 = vmatprep.subr.mxu0 0.0
  %5109 = vmatpush1.msra.mxu0 0.0
  %5110 = vmatprep.subr.mxu0 0.0
  %5111 = vmatpush1.msra.mxu0 0.0
  %5112 = vmatprep.subr.mxu0 0.0
  %5113 = vmatpush1.msra.mxu0 0.0
  %5114 = vmatprep.subr.mxu0 0.0
  %5115 = vmatpush1.msra.mxu0 0.0
  %5116 = vmatprep.mubr.f32.mxu0 0.0
  %5117 = vmatmul.mubr.f32.gmra.mrb[0].mxu0 %v5047
  %v5118 = vpop.f32.mrb[0].mxu0
  %v5119 = vadd.f32 %v5043, %v5118
  %v5120 = vpop.f32.mrb[0].mxu0
  %5121 = vmatprep.mubr.f32.mxu0 0.0
  %5122 = vmatmul.mubr.f32.gmra.mrb[0].mxu0 %v5050
  %v5123 = vpop.f32.mrb[0].mxu0
  %v5124 = vadd.f32 %v5043, %v5123
  %v5125 = vpop.f32.mrb[0].mxu0
  %5126 = vdwg.mxu0
  %v5128 = vlaneseq
  %v5129 = vshrl.u32 %v5128, 7
  %v5130 = vsub.s32 0, %v5129
  %v5131 = vrot.slane %v5028, %v5130
  %5133 = vmatprep.subr.mxu0 0.0
  %5134 = vmatpush1.msra.mxu0 %v4963
  %5135 = vmatprep.subr.mxu0 0.0
  %5136 = vmatpush1.msra.mxu0 %v4964
  %5137 = vmatprep.subr.mxu0 0.0
  %5138 = vmatpush1.msra.mxu0 %v4965
  %5139 = vmatprep.subr.mxu0 0.0
  %5140 = vmatpush1.msra.mxu0 %v4966
  %5141 = vmatprep.subr.mxu0 0.0
  %5142 = vmatpush1.msra.mxu0 %v4967
  %5143 = vmatprep.subr.mxu0 0.0
  %5144 = vmatpush1.msra.mxu0 %v4968
  %5145 = vmatprep.subr.mxu0 0.0
  %5146 = vmatpush1.msra.mxu0 %v4969
  %5147 = vmatprep.subr.mxu0 0.0
  %5148 = vmatpush1.msra.mxu0 %v4970
  %5149 = vmatprep.subr.mxu0 0.0
  %5150 = vmatpush1.msra.mxu0 0.0
  %5151 = vmatprep.subr.mxu0 0.0
  %5152 = vmatpush1.msra.mxu0 0.0
  %5153 = vmatprep.subr.mxu0 0.0
  %5154 = vmatpush1.msra.mxu0 0.0
  %5155 = vmatprep.subr.mxu0 0.0
  %5156 = vmatpush1.msra.mxu0 0.0
  %5157 = vmatprep.subr.mxu0 0.0
  %5158 = vmatpush1.msra.mxu0 0.0
  %5159 = vmatprep.subr.mxu0 0.0
  %5160 = vmatpush1.msra.mxu0 0.0
  %5161 = vmatprep.subr.mxu0 0.0
  %5162 = vmatpush1.msra.mxu0 0.0
  %5163 = vmatprep.subr.mxu0 0.0
  %5164 = vmatpush1.msra.mxu0 0.0
  %5165 = vmatprep.subr.mxu0 0.0
  %5166 = vmatpush1.msra.mxu0 0.0
  %5167 = vmatprep.subr.mxu0 0.0
  %5168 = vmatpush1.msra.mxu0 0.0
  %5169 = vmatprep.subr.mxu0 0.0
  %5170 = vmatpush1.msra.mxu0 0.0
  %5171 = vmatprep.subr.mxu0 0.0
  %5172 = vmatpush1.msra.mxu0 0.0
  %5173 = vmatprep.subr.mxu0 0.0
  %5174 = vmatpush1.msra.mxu0 0.0
  %5175 = vmatprep.subr.mxu0 0.0
  %5176 = vmatpush1.msra.mxu0 0.0
  %5177 = vmatprep.subr.mxu0 0.0
  %5178 = vmatpush1.msra.mxu0 0.0
  %5179 = vmatprep.subr.mxu0 0.0
  %5180 = vmatpush1.msra.mxu0 0.0
  %5181 = vmatprep.subr.mxu0 0.0
  %5182 = vmatpush1.msra.mxu0 0.0
  %5183 = vmatprep.subr.mxu0 0.0
  %5184 = vmatpush1.msra.mxu0 0.0
  %5185 = vmatprep.subr.mxu0 0.0
  %5186 = vmatpush1.msra.mxu0 0.0
  %5187 = vmatprep.subr.mxu0 0.0
  %5188 = vmatpush1.msra.mxu0 0.0
  %5189 = vmatprep.subr.mxu0 0.0
  %5190 = vmatpush1.msra.mxu0 0.0
  %5191 = vmatprep.subr.mxu0 0.0
  %5192 = vmatpush1.msra.mxu0 0.0
  %5193 = vmatprep.subr.mxu0 0.0
  %5194 = vmatpush1.msra.mxu0 0.0
  %5195 = vmatprep.subr.mxu0 0.0
  %5196 = vmatpush1.msra.mxu0 0.0
  %5197 = vmatprep.mubr.f32.mxu0 0.0
  %5198 = vmatmul.mubr.f32.gmra.mrb[0].mxu0 %v5047
  %v5199 = vpop.f32.mrb[0].mxu0
  %v5200 = vadd.f32 %v5131, %v5199
  %v5201 = vpop.f32.mrb[0].mxu0
  %5202 = vmatprep.mubr.f32.mxu0 0.0
  %5203 = vmatmul.mubr.f32.gmra.mrb[0].mxu0 %v5050
  %v5204 = vpop.f32.mrb[0].mxu0
  %v5205 = vadd.f32 %v5131, %v5204
  %v5206 = vpop.f32.mrb[0].mxu0
  %5207 = vdwg.mxu0
  %v5209 = vlaneseq
  %v5210 = vshrl.u32 %v5209, 7
  %v5211 = vsub.s32 0, %v5210
  %v5212 = vrot.slane %v5029, %v5211
  %5214 = vmatprep.subr.mxu0 0.0
  %5215 = vmatpush1.msra.mxu0 %v4971
  %5216 = vmatprep.subr.mxu0 0.0
  %5217 = vmatpush1.msra.mxu0 %v4972
  %5218 = vmatprep.subr.mxu0 0.0
  %5219 = vmatpush1.msra.mxu0 %v4973
  %5220 = vmatprep.subr.mxu0 0.0
  %5221 = vmatpush1.msra.mxu0 %v4974
  %5222 = vmatprep.subr.mxu0 0.0
  %5223 = vmatpush1.msra.mxu0 %v4975
  %5224 = vmatprep.subr.mxu0 0.0
  %5225 = vmatpush1.msra.mxu0 %v4976
  %5226 = vmatprep.subr.mxu0 0.0
  %5227 = vmatpush1.msra.mxu0 %v4977
  %5228 = vmatprep.subr.mxu0 0.0
  %5229 = vmatpush1.msra.mxu0 %v4978
  %5230 = vmatprep.subr.mxu0 0.0
  %5231 = vmatpush1.msra.mxu0 0.0
  %5232 = vmatprep.subr.mxu0 0.0
  %5233 = vmatpush1.msra.mxu0 0.0
  %5234 = vmatprep.subr.mxu0 0.0
  %5235 = vmatpush1.msra.mxu0 0.0
  %5236 = vmatprep.subr.mxu0 0.0
  %5237 = vmatpush1.msra.mxu0 0.0
  %5238 = vmatprep.subr.mxu0 0.0
  %5239 = vmatpush1.msra.mxu0 0.0
  %5240 = vmatprep.subr.mxu0 0.0
  %5241 = vmatpush1.msra.mxu0 0.0
  %5242 = vmatprep.subr.mxu0 0.0
  %5243 = vmatpush1.msra.mxu0 0.0
  %5244 = vmatprep.subr.mxu0 0.0
  %5245 = vmatpush1.msra.mxu0 0.0
  %5246 = vmatprep.subr.mxu0 0.0
  %5247 = vmatpush1.msra.mxu0 0.0
  %5248 = vmatprep.subr.mxu0 0.0
  %5249 = vmatpush1.msra.mxu0 0.0
  %5250 = vmatprep.subr.mxu0 0.0
  %5251 = vmatpush1.msra.mxu0 0.0
  %5252 = vmatprep.subr.mxu0 0.0
  %5253 = vmatpush1.msra.mxu0 0.0
  %5254 = vmatprep.subr.mxu0 0.0
  %5255 = vmatpush1.msra.mxu0 0.0
  %5256 = vmatprep.subr.mxu0 0.0
  %5257 = vmatpush1.msra.mxu0 0.0
  %5258 = vmatprep.subr.mxu0 0.0
  %5259 = vmatpush1.msra.mxu0 0.0
  %5260 = vmatprep.subr.mxu0 0.0
  %5261 = vmatpush1.msra.mxu0 0.0
  %5262 = vmatprep.subr.mxu0 0.0
  %5263 = vmatpush1.msra.mxu0 0.0
  %5264 = vmatprep.subr.mxu0 0.0
  %5265 = vmatpush1.msra.mxu0 0.0
  %5266 = vmatprep.subr.mxu0 0.0
  %5267 = vmatpush1.msra.mxu0 0.0
  %5268 = vmatprep.subr.mxu0 0.0
  %5269 = vmatpush1.msra.mxu0 0.0
  %5270 = vmatprep.subr.mxu0 0.0
  %5271 = vmatpush1.msra.mxu0 0.0
  %5272 = vmatprep.subr.mxu0 0.0
  %5273 = vmatpush1.msra.mxu0 0.0
  %5274 = vmatprep.subr.mxu0 0.0
  %5275 = vmatpush1.msra.mxu0 0.0
  %5276 = vmatprep.subr.mxu0 0.0
  %5277 = vmatpush1.msra.mxu0 0.0
  %5278 = vmatprep.mubr.f32.mxu0 0.0
  %5279 = vmatmul.mubr.f32.gmra.mrb[0].mxu0 %v5047
  %v5280 = vpop.f32.mrb[0].mxu0
  %v5281 = vadd.f32 %v5212, %v5280
  %v5282 = vpop.f32.mrb[0].mxu0
  %5283 = vmatprep.mubr.f32.mxu0 0.0
  %5284 = vmatmul.mubr.f32.gmra.mrb[0].mxu0 %v5050
  %v5285 = vpop.f32.mrb[0].mxu0
  %v5286 = vadd.f32 %v5212, %v5285
  %v5287 = vpop.f32.mrb[0].mxu0
  %5288 = vdwg.mxu0
  %v5290 = vlaneseq
  %v5291 = vshrl.u32 %v5290, 7
  %v5292 = vsub.s32 0, %v5291
  %v5293 = vrot.slane %v5030, %v5292
  %5295 = vmatprep.subr.mxu0 0.0
  %5296 = vmatpush1.msra.mxu0 %v4979
  %5297 = vmatprep.subr.mxu0 0.0
  %5298 = vmatpush1.msra.mxu0 %v4980
  %5299 = vmatprep.subr.mxu0 0.0
  %5300 = vmatpush1.msra.mxu0 %v4981
  %5301 = vmatprep.subr.mxu0 0.0
  %5302 = vmatpush1.msra.mxu0 %v4982
  %5303 = vmatprep.subr.mxu0 0.0
  %5304 = vmatpush1.msra.mxu0 %v4983
  %5305 = vmatprep.subr.mxu0 0.0
  %5306 = vmatpush1.msra.mxu0 %v4984
  %5307 = vmatprep.subr.mxu0 0.0
  %5308 = vmatpush1.msra.mxu0 %v4985
  %5309 = vmatprep.subr.mxu0 0.0
  %5310 = vmatpush1.msra.mxu0 %v4986
  %5311 = vmatprep.subr.mxu0 0.0
  %5312 = vmatpush1.msra.mxu0 0.0
  %5313 = vmatprep.subr.mxu0 0.0
  %5314 = vmatpush1.msra.mxu0 0.0
  %5315 = vmatprep.subr.mxu0 0.0
  %5316 = vmatpush1.msra.mxu0 0.0
  %5317 = vmatprep.subr.mxu0 0.0
  %5318 = vmatpush1.msra.mxu0 0.0
  %5319 = vmatprep.subr.mxu0 0.0
  %5320 = vmatpush1.msra.mxu0 0.0
  %5321 = vmatprep.subr.mxu0 0.0
  %5322 = vmatpush1.msra.mxu0 0.0
  %5323 = vmatprep.subr.mxu0 0.0
  %5324 = vmatpush1.msra.mxu0 0.0
  %5325 = vmatprep.subr.mxu0 0.0
  %5326 = vmatpush1.msra.mxu0 0.0
  %5327 = vmatprep.subr.mxu0 0.0
  %5328 = vmatpush1.msra.mxu0 0.0
  %5329 = vmatprep.subr.mxu0 0.0
  %5330 = vmatpush1.msra.mxu0 0.0
  %5331 = vmatprep.subr.mxu0 0.0
  %5332 = vmatpush1.msra.mxu0 0.0
  %5333 = vmatprep.subr.mxu0 0.0
  %5334 = vmatpush1.msra.mxu0 0.0
  %5335 = vmatprep.subr.mxu0 0.0
  %5336 = vmatpush1.msra.mxu0 0.0
  %5337 = vmatprep.subr.mxu0 0.0
  %5338 = vmatpush1.msra.mxu0 0.0
  %5339 = vmatprep.subr.mxu0 0.0
  %5340 = vmatpush1.msra.mxu0 0.0
  %5341 = vmatprep.subr.mxu0 0.0
  %5342 = vmatpush1.msra.mxu0 0.0
  %5343 = vmatprep.subr.mxu0 0.0
  %5344 = vmatpush1.msra.mxu0 0.0
  %5345 = vmatprep.subr.mxu0 0.0
  %5346 = vmatpush1.msra.mxu0 0.0
  %5347 = vmatprep.subr.mxu0 0.0
  %5348 = vmatpush1.msra.mxu0 0.0
  %5349 = vmatprep.subr.mxu0 0.0
  %5350 = vmatpush1.msra.mxu0 0.0
  %5351 = vmatprep.subr.mxu0 0.0
  %5352 = vmatpush1.msra.mxu0 0.0
  %5353 = vmatprep.subr.mxu0 0.0
  %5354 = vmatpush1.msra.mxu0 0.0
  %5355 = vmatprep.subr.mxu0 0.0
  %5356 = vmatpush1.msra.mxu0 0.0
  %5357 = vmatprep.subr.mxu0 0.0
  %5358 = vmatpush1.msra.mxu0 0.0
  %5359 = vmatprep.mubr.f32.mxu0 0.0
  %5360 = vmatmul.mubr.f32.gmra.mrb[0].mxu0 %v5047
  %v5361 = vpop.f32.mrb[0].mxu0
  %v5362 = vadd.f32 %v5293, %v5361
  %v5363 = vpop.f32.mrb[0].mxu0
  %5364 = vmatprep.mubr.f32.mxu0 0.0
  %5365 = vmatmul.mubr.f32.gmra.mrb[0].mxu0 %v5050
  %v5366 = vpop.f32.mrb[0].mxu0
  %v5367 = vadd.f32 %v5293, %v5366
  %v5368 = vpop.f32.mrb[0].mxu0
  %5369 = vdwg.mxu0
  %v5371 = vlaneseq
  %v5372 = vshrl.u32 %v5371, 7
  %v5373 = vsub.s32 0, %v5372
  %v5374 = vrot.slane %v5031, %v5373
  %5376 = vmatprep.subr.mxu0 0.0
  %5377 = vmatpush1.msra.mxu0 %v4987
  %5378 = vmatprep.subr.mxu0 0.0
  %5379 = vmatpush1.msra.mxu0 %v4988
  %5380 = vmatprep.subr.mxu0 0.0
  %5381 = vmatpush1.msra.mxu0 %v4989
  %5382 = vmatprep.subr.mxu0 0.0
  %5383 = vmatpush1.msra.mxu0 %v4990
  %5384 = vmatprep.subr.mxu0 0.0
  %5385 = vmatpush1.msra.mxu0 %v4991
  %5386 = vmatprep.subr.mxu0 0.0
  %5387 = vmatpush1.msra.mxu0 %v4992
  %5388 = vmatprep.subr.mxu0 0.0
  %5389 = vmatpush1.msra.mxu0 %v4993
  %5390 = vmatprep.subr.mxu0 0.0
  %5391 = vmatpush1.msra.mxu0 %v4994
  %5392 = vmatprep.subr.mxu0 0.0
  %5393 = vmatpush1.msra.mxu0 0.0
  %5394 = vmatprep.subr.mxu0 0.0
  %5395 = vmatpush1.msra.mxu0 0.0
  %5396 = vmatprep.subr.mxu0 0.0
  %5397 = vmatpush1.msra.mxu0 0.0
  %5398 = vmatprep.subr.mxu0 0.0
  %5399 = vmatpush1.msra.mxu0 0.0
  %5400 = vmatprep.subr.mxu0 0.0
  %5401 = vmatpush1.msra.mxu0 0.0
  %5402 = vmatprep.subr.mxu0 0.0
  %5403 = vmatpush1.msra.mxu0 0.0
  %5404 = vmatprep.subr.mxu0 0.0
  %5405 = vmatpush1.msra.mxu0 0.0
  %5406 = vmatprep.subr.mxu0 0.0
  %5407 = vmatpush1.msra.mxu0 0.0
  %5408 = vmatprep.subr.mxu0 0.0
  %5409 = vmatpush1.msra.mxu0 0.0
  %5410 = vmatprep.subr.mxu0 0.0
  %5411 = vmatpush1.msra.mxu0 0.0
  %5412 = vmatprep.subr.mxu0 0.0
  %5413 = vmatpush1.msra.mxu0 0.0
  %5414 = vmatprep.subr.mxu0 0.0
  %5415 = vmatpush1.msra.mxu0 0.0
  %5416 = vmatprep.subr.mxu0 0.0
  %5417 = vmatpush1.msra.mxu0 0.0
  %5418 = vmatprep.subr.mxu0 0.0
  %5419 = vmatpush1.msra.mxu0 0.0
  %5420 = vmatprep.subr.mxu0 0.0
  %5421 = vmatpush1.msra.mxu0 0.0
  %5422 = vmatprep.subr.mxu0 0.0
  %5423 = vmatpush1.msra.mxu0 0.0
  %5424 = vmatprep.subr.mxu0 0.0
  %5425 = vmatpush1.msra.mxu0 0.0
  %5426 = vmatprep.subr.mxu0 0.0
  %5427 = vmatpush1.msra.mxu0 0.0
  %5428 = vmatprep.subr.mxu0 0.0
  %5429 = vmatpush1.msra.mxu0 0.0
  %5430 = vmatprep.subr.mxu0 0.0
  %5431 = vmatpush1.msra.mxu0 0.0
  %5432 = vmatprep.subr.mxu0 0.0
  %5433 = vmatpush1.msra.mxu0 0.0
  %5434 = vmatprep.subr.mxu0 0.0
  %5435 = vmatpush1.msra.mxu0 0.0
  %5436 = vmatprep.subr.mxu0 0.0
  %5437 = vmatpush1.msra.mxu0 0.0
  %5438 = vmatprep.subr.mxu0 0.0
  %5439 = vmatpush1.msra.mxu0 0.0
  %5440 = vmatprep.mubr.f32.mxu0 0.0
  %5441 = vmatmul.mubr.f32.gmra.mrb[0].mxu0 %v5047
  %v5442 = vpop.f32.mrb[0].mxu0
  %v5443 = vadd.f32 %v5374, %v5442
  %v5444 = vpop.f32.mrb[0].mxu0
  %5445 = vmatprep.mubr.f32.mxu0 0.0
  %5446 = vmatmul.mubr.f32.gmra.mrb[0].mxu0 %v5050
  %v5447 = vpop.f32.mrb[0].mxu0
  %v5448 = vadd.f32 %v5374, %v5447
  %v5449 = vpop.f32.mrb[0].mxu0
  %5450 = vdwg.mxu0
  %v5452 = vlaneseq
  %v5453 = vshrl.u32 %v5452, 7
  %v5454 = vsub.s32 0, %v5453
  %v5455 = vrot.slane %v5032, %v5454
  %5457 = vmatprep.subr.mxu0 0.0
  %5458 = vmatpush1.msra.mxu0 %v4995
  %5459 = vmatprep.subr.mxu0 0.0
  %5460 = vmatpush1.msra.mxu0 %v4996
  %5461 = vmatprep.subr.mxu0 0.0
  %5462 = vmatpush1.msra.mxu0 %v4997
  %5463 = vmatprep.subr.mxu0 0.0
  %5464 = vmatpush1.msra.mxu0 %v4998
  %5465 = vmatprep.subr.mxu0 0.0
  %5466 = vmatpush1.msra.mxu0 %v4999
  %5467 = vmatprep.subr.mxu0 0.0
  %5468 = vmatpush1.msra.mxu0 %v5000
  %5469 = vmatprep.subr.mxu0 0.0
  %5470 = vmatpush1.msra.mxu0 %v5001
  %5471 = vmatprep.subr.mxu0 0.0
  %5472 = vmatpush1.msra.mxu0 %v5002
  %5473 = vmatprep.subr.mxu0 0.0
  %5474 = vmatpush1.msra.mxu0 0.0
  %5475 = vmatprep.subr.mxu0 0.0
  %5476 = vmatpush1.msra.mxu0 0.0
  %5477 = vmatprep.subr.mxu0 0.0
  %5478 = vmatpush1.msra.mxu0 0.0
  %5479 = vmatprep.subr.mxu0 0.0
  %5480 = vmatpush1.msra.mxu0 0.0
  %5481 = vmatprep.subr.mxu0 0.0
  %5482 = vmatpush1.msra.mxu0 0.0
  %5483 = vmatprep.subr.mxu0 0.0
  %5484 = vmatpush1.msra.mxu0 0.0
  %5485 = vmatprep.subr.mxu0 0.0
  %5486 = vmatpush1.msra.mxu0 0.0
  %5487 = vmatprep.subr.mxu0 0.0
  %5488 = vmatpush1.msra.mxu0 0.0
  %5489 = vmatprep.subr.mxu0 0.0
  %5490 = vmatpush1.msra.mxu0 0.0
  %5491 = vmatprep.subr.mxu0 0.0
  %5492 = vmatpush1.msra.mxu0 0.0
  %5493 = vmatprep.subr.mxu0 0.0
  %5494 = vmatpush1.msra.mxu0 0.0
  %5495 = vmatprep.subr.mxu0 0.0
  %5496 = vmatpush1.msra.mxu0 0.0
  %5497 = vmatprep.subr.mxu0 0.0
  %5498 = vmatpush1.msra.mxu0 0.0
  %5499 = vmatprep.subr.mxu0 0.0
  %5500 = vmatpush1.msra.mxu0 0.0
  %5501 = vmatprep.subr.mxu0 0.0
  %5502 = vmatpush1.msra.mxu0 0.0
  %5503 = vmatprep.subr.mxu0 0.0
  %5504 = vmatpush1.msra.mxu0 0.0
  %5505 = vmatprep.subr.mxu0 0.0
  %5506 = vmatpush1.msra.mxu0 0.0
  %5507 = vmatprep.subr.mxu0 0.0
  %5508 = vmatpush1.msra.mxu0 0.0
  %5509 = vmatprep.subr.mxu0 0.0
  %5510 = vmatpush1.msra.mxu0 0.0
  %5511 = vmatprep.subr.mxu0 0.0
  %5512 = vmatpush1.msra.mxu0 0.0
  %5513 = vmatprep.subr.mxu0 0.0
  %5514 = vmatpush1.msra.mxu0 0.0
  %5515 = vmatprep.subr.mxu0 0.0
  %5516 = vmatpush1.msra.mxu0 0.0
  %5517 = vmatprep.subr.mxu0 0.0
  %5518 = vmatpush1.msra.mxu0 0.0
  %5519 = vmatprep.subr.mxu0 0.0
  %5520 = vmatpush1.msra.mxu0 0.0
  %5521 = vmatprep.mubr.f32.mxu0 0.0
  %5522 = vmatmul.mubr.f32.gmra.mrb[0].mxu0 %v5047
  %v5523 = vpop.f32.mrb[0].mxu0
  %v5524 = vadd.f32 %v5455, %v5523
  %v5525 = vpop.f32.mrb[0].mxu0
  %5526 = vmatprep.mubr.f32.mxu0 0.0
  %5527 = vmatmul.mubr.f32.gmra.mrb[0].mxu0 %v5050
  %v5528 = vpop.f32.mrb[0].mxu0
  %v5529 = vadd.f32 %v5455, %v5528
  %v5530 = vpop.f32.mrb[0].mxu0
  %5531 = vdwg.mxu0
  %v5534 = vlaneseq
  %v5535 = vshrl.u32 %v5534, 7
  %v5536 = vsub.s32 0, %v5535
  %v5537 = vrot.slane %v5033, %v5536
  %v5538 = vlaneseq
  %v5539 = vshrl.u32 %v5538, 7
  %v5540 = vsub.s32 0, %v5539
  %v5541 = vrot.slane %v5036, %v5540
  %5544 = vmatprep.subr.mxu0 0.0
  %5545 = vmatpush1.msra.mxu0 %v5003
  %5546 = vmatprep.subr.mxu0 0.0
  %5547 = vmatpush1.msra.mxu0 %v5004
  %5548 = vmatprep.subr.mxu0 0.0
  %5549 = vmatpush1.msra.mxu0 %v5005
  %5550 = vmatprep.subr.mxu0 0.0
  %5551 = vmatpush1.msra.mxu0 %v5006
  %5552 = vmatprep.subr.mxu0 0.0
  %5553 = vmatpush1.msra.mxu0 0.0
  %5554 = vmatprep.subr.mxu0 0.0
  %5555 = vmatpush1.msra.mxu0 0.0
  %5556 = vmatprep.subr.mxu0 0.0
  %5557 = vmatpush1.msra.mxu0 0.0
  %5558 = vmatprep.subr.mxu0 0.0
  %5559 = vmatpush1.msra.mxu0 0.0
  %5560 = vmatprep.subr.mxu0 0.0
  %5561 = vmatpush1.msra.mxu0 0.0
  %5562 = vmatprep.subr.mxu0 0.0
  %5563 = vmatpush1.msra.mxu0 0.0
  %5564 = vmatprep.subr.mxu0 0.0
  %5565 = vmatpush1.msra.mxu0 0.0
  %5566 = vmatprep.subr.mxu0 0.0
  %5567 = vmatpush1.msra.mxu0 0.0
  %5568 = vmatprep.subr.mxu0 0.0
  %5569 = vmatpush1.msra.mxu0 0.0
  %5570 = vmatprep.subr.mxu0 0.0
  %5571 = vmatpush1.msra.mxu0 0.0
  %5572 = vmatprep.subr.mxu0 0.0
  %5573 = vmatpush1.msra.mxu0 0.0
  %5574 = vmatprep.subr.mxu0 0.0
  %5575 = vmatpush1.msra.mxu0 0.0
  %5576 = vmatprep.subr.mxu0 0.0
  %5577 = vmatpush1.msra.mxu0 0.0
  %5578 = vmatprep.subr.mxu0 0.0
  %5579 = vmatpush1.msra.mxu0 0.0
  %5580 = vmatprep.subr.mxu0 0.0
  %5581 = vmatpush1.msra.mxu0 0.0
  %5582 = vmatprep.subr.mxu0 0.0
  %5583 = vmatpush1.msra.mxu0 0.0
  %5584 = vmatprep.subr.mxu0 0.0
  %5585 = vmatpush1.msra.mxu0 0.0
  %5586 = vmatprep.subr.mxu0 0.0
  %5587 = vmatpush1.msra.mxu0 0.0
  %5588 = vmatprep.subr.mxu0 0.0
  %5589 = vmatpush1.msra.mxu0 0.0
  %5590 = vmatprep.subr.mxu0 0.0
  %5591 = vmatpush1.msra.mxu0 0.0
  %5592 = vmatprep.subr.mxu0 0.0
  %5593 = vmatpush1.msra.mxu0 0.0
  %5594 = vmatprep.subr.mxu0 0.0
  %5595 = vmatpush1.msra.mxu0 0.0
  %5596 = vmatprep.subr.mxu0 0.0
  %5597 = vmatpush1.msra.mxu0 0.0
  %5598 = vmatprep.subr.mxu0 0.0
  %5599 = vmatpush1.msra.mxu0 0.0
  %5600 = vmatprep.subr.mxu0 0.0
  %5601 = vmatpush1.msra.mxu0 0.0
  %5602 = vmatprep.subr.mxu0 0.0
  %5603 = vmatpush1.msra.mxu0 0.0
  %5604 = vmatprep.subr.mxu0 0.0
  %5605 = vmatpush1.msra.mxu0 0.0
  %5606 = vmatprep.subr.mxu0 0.0
  %5607 = vmatpush1.msra.mxu0 0.0
  %5608 = vmatprep.mubr.f32.mxu0 0.0
  %5609 = vmatmul.mubr.f32.gmra.mrb[0].mxu0 %v1034
  %v5610 = vpop.f32.mrb[0].mxu0
  %v5611 = vadd.f32 %v5537, %v5610
  %v5612 = vpop.f32.mrb[0].mxu0
  %5613 = vdwg.mxu0
  %5614 = vmatprep.subr.mxu0 0.0
  %5615 = vmatpush1.msra.mxu0 %v5015
  %5616 = vmatprep.subr.mxu0 0.0
  %5617 = vmatpush1.msra.mxu0 %v5016
  %5618 = vmatprep.subr.mxu0 0.0
  %5619 = vmatpush1.msra.mxu0 %v5017
  %5620 = vmatprep.subr.mxu0 0.0
  %5621 = vmatpush1.msra.mxu0 %v5018
  %5622 = vmatprep.subr.mxu0 0.0
  %5623 = vmatpush1.msra.mxu0 0.0
  %5624 = vmatprep.subr.mxu0 0.0
  %5625 = vmatpush1.msra.mxu0 0.0
  %5626 = vmatprep.subr.mxu0 0.0
  %5627 = vmatpush1.msra.mxu0 0.0
  %5628 = vmatprep.subr.mxu0 0.0
  %5629 = vmatpush1.msra.mxu0 0.0
  %5630 = vmatprep.subr.mxu0 0.0
  %5631 = vmatpush1.msra.mxu0 0.0
  %5632 = vmatprep.subr.mxu0 0.0
  %5633 = vmatpush1.msra.mxu0 0.0
  %5634 = vmatprep.subr.mxu0 0.0
  %5635 = vmatpush1.msra.mxu0 0.0
  %5636 = vmatprep.subr.mxu0 0.0
  %5637 = vmatpush1.msra.mxu0 0.0
  %5638 = vmatprep.subr.mxu0 0.0
  %5639 = vmatpush1.msra.mxu0 0.0
  %5640 = vmatprep.subr.mxu0 0.0
  %5641 = vmatpush1.msra.mxu0 0.0
  %5642 = vmatprep.subr.mxu0 0.0
  %5643 = vmatpush1.msra.mxu0 0.0
  %5644 = vmatprep.subr.mxu0 0.0
  %5645 = vmatpush1.msra.mxu0 0.0
  %5646 = vmatprep.subr.mxu0 0.0
  %5647 = vmatpush1.msra.mxu0 0.0
  %5648 = vmatprep.subr.mxu0 0.0
  %5649 = vmatpush1.msra.mxu0 0.0
  %5650 = vmatprep.subr.mxu0 0.0
  %5651 = vmatpush1.msra.mxu0 0.0
  %5652 = vmatprep.subr.mxu0 0.0
  %5653 = vmatpush1.msra.mxu0 0.0
  %5654 = vmatprep.subr.mxu0 0.0
  %5655 = vmatpush1.msra.mxu0 0.0
  %5656 = vmatprep.subr.mxu0 0.0
  %5657 = vmatpush1.msra.mxu0 0.0
  %5658 = vmatprep.subr.mxu0 0.0
  %5659 = vmatpush1.msra.mxu0 0.0
  %5660 = vmatprep.subr.mxu0 0.0
  %5661 = vmatpush1.msra.mxu0 0.0
  %5662 = vmatprep.subr.mxu0 0.0
  %5663 = vmatpush1.msra.mxu0 0.0
  %5664 = vmatprep.subr.mxu0 0.0
  %5665 = vmatpush1.msra.mxu0 0.0
  %5666 = vmatprep.subr.mxu0 0.0
  %5667 = vmatpush1.msra.mxu0 0.0
  %5668 = vmatprep.subr.mxu0 0.0
  %5669 = vmatpush1.msra.mxu0 0.0
  %5670 = vmatprep.subr.mxu0 0.0
  %5671 = vmatpush1.msra.mxu0 0.0
  %5672 = vmatprep.subr.mxu0 0.0
  %5673 = vmatpush1.msra.mxu0 0.0
  %5674 = vmatprep.subr.mxu0 0.0
  %5675 = vmatpush1.msra.mxu0 0.0
  %5676 = vmatprep.subr.mxu0 0.0
  %5677 = vmatpush1.msra.mxu0 0.0
  %5678 = vmatprep.mubr.f32.mxu0 0.0
  %5679 = vmatmul.mubr.f32.gmra.mrb[0].mxu0 %v1034
  %v5680 = vpop.f32.mrb[0].mxu0
  %v5681 = vadd.f32 %v5541, %v5680
  %v5682 = vpop.f32.mrb[0].mxu0
  %5683 = vdwg.mxu0
  %v5686 = vlaneseq
  %v5687 = vshrl.u32 %v5686, 7
  %v5688 = vsub.s32 0, %v5687
  %v5689 = vrot.slane %v5034, %v5688
  %v5690 = vlaneseq
  %v5691 = vshrl.u32 %v5690, 7
  %v5692 = vsub.s32 0, %v5691
  %v5693 = vrot.slane %v5037, %v5692
  %5696 = vmatprep.subr.mxu0 0.0
  %5697 = vmatpush1.msra.mxu0 %v5007
  %5698 = vmatprep.subr.mxu0 0.0
  %5699 = vmatpush1.msra.mxu0 %v5008
  %5700 = vmatprep.subr.mxu0 0.0
  %5701 = vmatpush1.msra.mxu0 %v5009
  %5702 = vmatprep.subr.mxu0 0.0
  %5703 = vmatpush1.msra.mxu0 %v5010
  %5704 = vmatprep.subr.mxu0 0.0
  %5705 = vmatpush1.msra.mxu0 0.0
  %5706 = vmatprep.subr.mxu0 0.0
  %5707 = vmatpush1.msra.mxu0 0.0
  %5708 = vmatprep.subr.mxu0 0.0
  %5709 = vmatpush1.msra.mxu0 0.0
  %5710 = vmatprep.subr.mxu0 0.0
  %5711 = vmatpush1.msra.mxu0 0.0
  %5712 = vmatprep.subr.mxu0 0.0
  %5713 = vmatpush1.msra.mxu0 0.0
  %5714 = vmatprep.subr.mxu0 0.0
  %5715 = vmatpush1.msra.mxu0 0.0
  %5716 = vmatprep.subr.mxu0 0.0
  %5717 = vmatpush1.msra.mxu0 0.0
  %5718 = vmatprep.subr.mxu0 0.0
  %5719 = vmatpush1.msra.mxu0 0.0
  %5720 = vmatprep.subr.mxu0 0.0
  %5721 = vmatpush1.msra.mxu0 0.0
  %5722 = vmatprep.subr.mxu0 0.0
  %5723 = vmatpush1.msra.mxu0 0.0
  %5724 = vmatprep.subr.mxu0 0.0
  %5725 = vmatpush1.msra.mxu0 0.0
  %5726 = vmatprep.subr.mxu0 0.0
  %5727 = vmatpush1.msra.mxu0 0.0
  %5728 = vmatprep.subr.mxu0 0.0
  %5729 = vmatpush1.msra.mxu0 0.0
  %5730 = vmatprep.subr.mxu0 0.0
  %5731 = vmatpush1.msra.mxu0 0.0
  %5732 = vmatprep.subr.mxu0 0.0
  %5733 = vmatpush1.msra.mxu0 0.0
  %5734 = vmatprep.subr.mxu0 0.0
  %5735 = vmatpush1.msra.mxu0 0.0
  %5736 = vmatprep.subr.mxu0 0.0
  %5737 = vmatpush1.msra.mxu0 0.0
  %5738 = vmatprep.subr.mxu0 0.0
  %5739 = vmatpush1.msra.mxu0 0.0
  %5740 = vmatprep.subr.mxu0 0.0
  %5741 = vmatpush1.msra.mxu0 0.0
  %5742 = vmatprep.subr.mxu0 0.0
  %5743 = vmatpush1.msra.mxu0 0.0
  %5744 = vmatprep.subr.mxu0 0.0
  %5745 = vmatpush1.msra.mxu0 0.0
  %5746 = vmatprep.subr.mxu0 0.0
  %5747 = vmatpush1.msra.mxu0 0.0
  %5748 = vmatprep.subr.mxu0 0.0
  %5749 = vmatpush1.msra.mxu0 0.0
  %5750 = vmatprep.subr.mxu0 0.0
  %5751 = vmatpush1.msra.mxu0 0.0
  %5752 = vmatprep.subr.mxu0 0.0
  %5753 = vmatpush1.msra.mxu0 0.0
  %5754 = vmatprep.subr.mxu0 0.0
  %5755 = vmatpush1.msra.mxu0 0.0
  %5756 = vmatprep.subr.mxu0 0.0
  %5757 = vmatpush1.msra.mxu0 0.0
  %5758 = vmatprep.subr.mxu0 0.0
  %5759 = vmatpush1.msra.mxu0 0.0
  %5760 = vmatprep.mubr.f32.mxu0 0.0
  %5761 = vmatmul.mubr.f32.gmra.mrb[0].mxu0 %v1034
  %v5762 = vpop.f32.mrb[0].mxu0
  %v5763 = vadd.f32 %v5689, %v5762
  %v5764 = vpop.f32.mrb[0].mxu0
  %5765 = vdwg.mxu0
  %5766 = vmatprep.subr.mxu0 0.0
  %5767 = vmatpush1.msra.mxu0 %v5019
  %5768 = vmatprep.subr.mxu0 0.0
  %5769 = vmatpush1.msra.mxu0 %v5020
  %5770 = vmatprep.subr.mxu0 0.0
  %5771 = vmatpush1.msra.mxu0 %v5021
  %5772 = vmatprep.subr.mxu0 0.0
  %5773 = vmatpush1.msra.mxu0 %v5022
  %5774 = vmatprep.subr.mxu0 0.0
  %5775 = vmatpush1.msra.mxu0 0.0
  %5776 = vmatprep.subr.mxu0 0.0
  %5777 = vmatpush1.msra.mxu0 0.0
  %5778 = vmatprep.subr.mxu0 0.0
  %5779 = vmatpush1.msra.mxu0 0.0
  %5780 = vmatprep.subr.mxu0 0.0
  %5781 = vmatpush1.msra.mxu0 0.0
  %5782 = vmatprep.subr.mxu0 0.0
  %5783 = vmatpush1.msra.mxu0 0.0
  %5784 = vmatprep.subr.mxu0 0.0
  %5785 = vmatpush1.msra.mxu0 0.0
  %5786 = vmatprep.subr.mxu0 0.0
  %5787 = vmatpush1.msra.mxu0 0.0
  %5788 = vmatprep.subr.mxu0 0.0
  %5789 = vmatpush1.msra.mxu0 0.0
  %5790 = vmatprep.subr.mxu0 0.0
  %5791 = vmatpush1.msra.mxu0 0.0
  %5792 = vmatprep.subr.mxu0 0.0
  %5793 = vmatpush1.msra.mxu0 0.0
  %5794 = vmatprep.subr.mxu0 0.0
  %5795 = vmatpush1.msra.mxu0 0.0
  %5796 = vmatprep.subr.mxu0 0.0
  %5797 = vmatpush1.msra.mxu0 0.0
  %5798 = vmatprep.subr.mxu0 0.0
  %5799 = vmatpush1.msra.mxu0 0.0
  %5800 = vmatprep.subr.mxu0 0.0
  %5801 = vmatpush1.msra.mxu0 0.0
  %5802 = vmatprep.subr.mxu0 0.0
  %5803 = vmatpush1.msra.mxu0 0.0
  %5804 = vmatprep.subr.mxu0 0.0
  %5805 = vmatpush1.msra.mxu0 0.0
  %5806 = vmatprep.subr.mxu0 0.0
  %5807 = vmatpush1.msra.mxu0 0.0
  %5808 = vmatprep.subr.mxu0 0.0
  %5809 = vmatpush1.msra.mxu0 0.0
  %5810 = vmatprep.subr.mxu0 0.0
  %5811 = vmatpush1.msra.mxu0 0.0
  %5812 = vmatprep.subr.mxu0 0.0
  %5813 = vmatpush1.msra.mxu0 0.0
  %5814 = vmatprep.subr.mxu0 0.0
  %5815 = vmatpush1.msra.mxu0 0.0
  %5816 = vmatprep.subr.mxu0 0.0
  %5817 = vmatpush1.msra.mxu0 0.0
  %5818 = vmatprep.subr.mxu0 0.0
  %5819 = vmatpush1.msra.mxu0 0.0
  %5820 = vmatprep.subr.mxu0 0.0
  %5821 = vmatpush1.msra.mxu0 0.0
  %5822 = vmatprep.subr.mxu0 0.0
  %5823 = vmatpush1.msra.mxu0 0.0
  %5824 = vmatprep.subr.mxu0 0.0
  %5825 = vmatpush1.msra.mxu0 0.0
  %5826 = vmatprep.subr.mxu0 0.0
  %5827 = vmatpush1.msra.mxu0 0.0
  %5828 = vmatprep.subr.mxu0 0.0
  %5829 = vmatpush1.msra.mxu0 0.0
  %5830 = vmatprep.mubr.f32.mxu0 0.0
  %5831 = vmatmul.mubr.f32.gmra.mrb[0].mxu0 %v1034
  %v5832 = vpop.f32.mrb[0].mxu0
  %v5833 = vadd.f32 %v5693, %v5832
  %v5834 = vpop.f32.mrb[0].mxu0
  %5835 = vdwg.mxu0
  %v5838 = vlaneseq
  %v5839 = vshrl.u32 %v5838, 7
  %v5840 = vsub.s32 0, %v5839
  %v5841 = vrot.slane %v5035, %v5840
  %v5842 = vlaneseq
  %v5843 = vshrl.u32 %v5842, 7
  %v5844 = vsub.s32 0, %v5843
  %v5845 = vrot.slane %v5038, %v5844
  %5848 = vmatprep.subr.mxu0 0.0
  %5849 = vmatpush1.msra.mxu0 %v5011
  %5850 = vmatprep.subr.mxu0 0.0
  %5851 = vmatpush1.msra.mxu0 %v5012
  %5852 = vmatprep.subr.mxu0 0.0
  %5853 = vmatpush1.msra.mxu0 %v5013
  %5854 = vmatprep.subr.mxu0 0.0
  %5855 = vmatpush1.msra.mxu0 %v5014
  %5856 = vmatprep.subr.mxu0 0.0
  %5857 = vmatpush1.msra.mxu0 0.0
  %5858 = vmatprep.subr.mxu0 0.0
  %5859 = vmatpush1.msra.mxu0 0.0
  %5860 = vmatprep.subr.mxu0 0.0
  %5861 = vmatpush1.msra.mxu0 0.0
  %5862 = vmatprep.subr.mxu0 0.0
  %5863 = vmatpush1.msra.mxu0 0.0
  %5864 = vmatprep.subr.mxu0 0.0
  %5865 = vmatpush1.msra.mxu0 0.0
  %5866 = vmatprep.subr.mxu0 0.0
  %5867 = vmatpush1.msra.mxu0 0.0
  %5868 = vmatprep.subr.mxu0 0.0
  %5869 = vmatpush1.msra.mxu0 0.0
  %5870 = vmatprep.subr.mxu0 0.0
  %5871 = vmatpush1.msra.mxu0 0.0
  %5872 = vmatprep.subr.mxu0 0.0
  %5873 = vmatpush1.msra.mxu0 0.0
  %5874 = vmatprep.subr.mxu0 0.0
  %5875 = vmatpush1.msra.mxu0 0.0
  %5876 = vmatprep.subr.mxu0 0.0
  %5877 = vmatpush1.msra.mxu0 0.0
  %5878 = vmatprep.subr.mxu0 0.0
  %5879 = vmatpush1.msra.mxu0 0.0
  %5880 = vmatprep.subr.mxu0 0.0
  %5881 = vmatpush1.msra.mxu0 0.0
  %5882 = vmatprep.subr.mxu0 0.0
  %5883 = vmatpush1.msra.mxu0 0.0
  %5884 = vmatprep.subr.mxu0 0.0
  %5885 = vmatpush1.msra.mxu0 0.0
  %5886 = vmatprep.subr.mxu0 0.0
  %5887 = vmatpush1.msra.mxu0 0.0
  %5888 = vmatprep.subr.mxu0 0.0
  %5889 = vmatpush1.msra.mxu0 0.0
  %5890 = vmatprep.subr.mxu0 0.0
  %5891 = vmatpush1.msra.mxu0 0.0
  %5892 = vmatprep.subr.mxu0 0.0
  %5893 = vmatpush1.msra.mxu0 0.0
  %5894 = vmatprep.subr.mxu0 0.0
  %5895 = vmatpush1.msra.mxu0 0.0
  %5896 = vmatprep.subr.mxu0 0.0
  %5897 = vmatpush1.msra.mxu0 0.0
  %5898 = vmatprep.subr.mxu0 0.0
  %5899 = vmatpush1.msra.mxu0 0.0
  %5900 = vmatprep.subr.mxu0 0.0
  %5901 = vmatpush1.msra.mxu0 0.0
  %5902 = vmatprep.subr.mxu0 0.0
  %5903 = vmatpush1.msra.mxu0 0.0
  %5904 = vmatprep.subr.mxu0 0.0
  %5905 = vmatpush1.msra.mxu0 0.0
  %5906 = vmatprep.subr.mxu0 0.0
  %5907 = vmatpush1.msra.mxu0 0.0
  %5908 = vmatprep.subr.mxu0 0.0
  %5909 = vmatpush1.msra.mxu0 0.0
  %5910 = vmatprep.subr.mxu0 0.0
  %5911 = vmatpush1.msra.mxu0 0.0
  %5912 = vmatprep.mubr.f32.mxu0 0.0
  %5913 = vmatmul.mubr.f32.gmra.mrb[0].mxu0 %v1034
  %v5914 = vpop.f32.mrb[0].mxu0
  %v5915 = vadd.f32 %v5841, %v5914
  %v5916 = vpop.f32.mrb[0].mxu0
  %5917 = vdwg.mxu0
  %5918 = vmatprep.subr.mxu0 0.0
  %5919 = vmatpush1.msra.mxu0 %v5023
  %5920 = vmatprep.subr.mxu0 0.0
  %5921 = vmatpush1.msra.mxu0 %v5024
  %5922 = vmatprep.subr.mxu0 0.0
  %5923 = vmatpush1.msra.mxu0 %v5025
  %5924 = vmatprep.subr.mxu0 0.0
  %5925 = vmatpush1.msra.mxu0 %v5026
  %5926 = vmatprep.subr.mxu0 0.0
  %5927 = vmatpush1.msra.mxu0 0.0
  %5928 = vmatprep.subr.mxu0 0.0
  %5929 = vmatpush1.msra.mxu0 0.0
  %5930 = vmatprep.subr.mxu0 0.0
  %5931 = vmatpush1.msra.mxu0 0.0
  %5932 = vmatprep.subr.mxu0 0.0
  %5933 = vmatpush1.msra.mxu0 0.0
  %5934 = vmatprep.subr.mxu0 0.0
  %5935 = vmatpush1.msra.mxu0 0.0
  %5936 = vmatprep.subr.mxu0 0.0
  %5937 = vmatpush1.msra.mxu0 0.0
  %5938 = vmatprep.subr.mxu0 0.0
  %5939 = vmatpush1.msra.mxu0 0.0
  %5940 = vmatprep.subr.mxu0 0.0
  %5941 = vmatpush1.msra.mxu0 0.0
  %5942 = vmatprep.subr.mxu0 0.0
  %5943 = vmatpush1.msra.mxu0 0.0
  %5944 = vmatprep.subr.mxu0 0.0
  %5945 = vmatpush1.msra.mxu0 0.0
  %5946 = vmatprep.subr.mxu0 0.0
  %5947 = vmatpush1.msra.mxu0 0.0
  %5948 = vmatprep.subr.mxu0 0.0
  %5949 = vmatpush1.msra.mxu0 0.0
  %5950 = vmatprep.subr.mxu0 0.0
  %5951 = vmatpush1.msra.mxu0 0.0
  %5952 = vmatprep.subr.mxu0 0.0
  %5953 = vmatpush1.msra.mxu0 0.0
  %5954 = vmatprep.subr.mxu0 0.0
  %5955 = vmatpush1.msra.mxu0 0.0
  %5956 = vmatprep.subr.mxu0 0.0
  %5957 = vmatpush1.msra.mxu0 0.0
  %5958 = vmatprep.subr.mxu0 0.0
  %5959 = vmatpush1.msra.mxu0 0.0
  %5960 = vmatprep.subr.mxu0 0.0
  %5961 = vmatpush1.msra.mxu0 0.0
  %5962 = vmatprep.subr.mxu0 0.0
  %5963 = vmatpush1.msra.mxu0 0.0
  %5964 = vmatprep.subr.mxu0 0.0
  %5965 = vmatpush1.msra.mxu0 0.0
  %5966 = vmatprep.subr.mxu0 0.0
  %5967 = vmatpush1.msra.mxu0 0.0
  %5968 = vmatprep.subr.mxu0 0.0
  %5969 = vmatpush1.msra.mxu0 0.0
  %5970 = vmatprep.subr.mxu0 0.0
  %5971 = vmatpush1.msra.mxu0 0.0
  %5972 = vmatprep.subr.mxu0 0.0
  %5973 = vmatpush1.msra.mxu0 0.0
  %5974 = vmatprep.subr.mxu0 0.0
  %5975 = vmatpush1.msra.mxu0 0.0
  %5976 = vmatprep.subr.mxu0 0.0
  %5977 = vmatpush1.msra.mxu0 0.0
  %5978 = vmatprep.subr.mxu0 0.0
  %5979 = vmatpush1.msra.mxu0 0.0
  %5980 = vmatprep.subr.mxu0 0.0
  %5981 = vmatpush1.msra.mxu0 0.0
  %5982 = vmatprep.mubr.f32.mxu0 0.0
  %5983 = vmatmul.mubr.f32.gmra.mrb[0].mxu0 %v1034
  %v5984 = vpop.f32.mrb[0].mxu0
  %v5985 = vadd.f32 %v5845, %v5984
  %v5986 = vpop.f32.mrb[0].mxu0
  %5987 = vdwg.mxu0
  %v5989 = vrot.slane %v5367, 6
  %v5991 = vadd.f32 %v5119, %v5611
  %v5992 = vadd.f32 %v5989, %v5681
  %v5993 = vmul.f32 %v5991, 0.5
  %v5994 = vmul.f32 %v5992, 0.5
  %v5995 = vtanh.pop %v5993
  %v5996 = vtanh.pop %v5994
  %v5997 = vmul.f32 %v5995, 0.5
  %v5998 = vmul.f32 %v5996, 0.5
  %v5999 = vadd.f32 %v5997, 0.5
  %v6000 = vadd.f32 %v5998, 0.5
  %v6002 = vrot.slane %v5448, 6
  %v6004 = vadd.f32 %v5200, %v5763
  %v6005 = vadd.f32 %v6002, %v5833
  %v6006 = vmul.f32 %v6004, 0.5
  %v6007 = vmul.f32 %v6005, 0.5
  %v6008 = vtanh.pop %v6006
  %v6009 = vtanh.pop %v6007
  %v6010 = vmul.f32 %v6008, 0.5
  %v6011 = vmul.f32 %v6009, 0.5
  %v6012 = vadd.f32 %v6010, 0.5
  %v6013 = vadd.f32 %v6011, 0.5
  %v6015 = vrot.slane %v5529, 6
  %v6017 = vmul.f32 %v5999, %v5915
  %v6018 = vmul.f32 %v6000, %v5985
  %v6019 = vadd.f32 %v5281, %v6017
  %v6020 = vadd.f32 %v6015, %v6018
  %v6021 = vtanh.pop %v6019
  %v6022 = vtanh.pop %v6020
  %v6023 = vsub.f32 1.0, %v6012
  %v6024 = vsub.f32 1.0, %v6013
  %v6025 = vmul.f32 %v6023, %v6021
  %v6026 = vmul.f32 %v6024, %v6022
  %v6027 = vmul.f32 %v6012, 0.0
  %v6028 = vmul.f32 %v6013, 0.0
  %v6029 = vadd.f32 %v6025, %v6027
  %v6030 = vadd.f32 %v6026, %v6028
  %v6032 = vsel %vm1032, %v6029, 0
  %6034 = vmatprep.subr.mxu0 0.0
  %6035 = vmatpush1.msra.mxu0 %v5003
  %6036 = vmatprep.subr.mxu0 0.0
  %6037 = vmatpush1.msra.mxu0 %v5004
  %6038 = vmatprep.subr.mxu0 0.0
  %6039 = vmatpush1.msra.mxu0 %v5005
  %6040 = vmatprep.subr.mxu0 0.0
  %6041 = vmatpush1.msra.mxu0 %v5006
  %6042 = vmatprep.subr.mxu0 0.0
  %6043 = vmatpush1.msra.mxu0 0.0
  %6044 = vmatprep.subr.mxu0 0.0
  %6045 = vmatpush1.msra.mxu0 0.0
  %6046 = vmatprep.subr.mxu0 0.0
  %6047 = vmatpush1.msra.mxu0 0.0
  %6048 = vmatprep.subr.mxu0 0.0
  %6049 = vmatpush1.msra.mxu0 0.0
  %6050 = vmatprep.subr.mxu0 0.0
  %6051 = vmatpush1.msra.mxu0 0.0
  %6052 = vmatprep.subr.mxu0 0.0
  %6053 = vmatpush1.msra.mxu0 0.0
  %6054 = vmatprep.subr.mxu0 0.0
  %6055 = vmatpush1.msra.mxu0 0.0
  %6056 = vmatprep.subr.mxu0 0.0
  %6057 = vmatpush1.msra.mxu0 0.0
  %6058 = vmatprep.subr.mxu0 0.0
  %6059 = vmatpush1.msra.mxu0 0.0
  %6060 = vmatprep.subr.mxu0 0.0
  %6061 = vmatpush1.msra.mxu0 0.0
  %6062 = vmatprep.subr.mxu0 0.0
  %6063 = vmatpush1.msra.mxu0 0.0
  %6064 = vmatprep.subr.mxu0 0.0
  %6065 = vmatpush1.msra.mxu0 0.0
  %6066 = vmatprep.subr.mxu0 0.0
  %6067 = vmatpush1.msra.mxu0 0.0
  %6068 = vmatprep.subr.mxu0 0.0
  %6069 = vmatpush1.msra.mxu0 0.0
  %6070 = vmatprep.subr.mxu0 0.0
  %6071 = vmatpush1.msra.mxu0 0.0
  %6072 = vmatprep.subr.mxu0 0.0
  %6073 = vmatpush1.msra.mxu0 0.0
  %6074 = vmatprep.subr.mxu0 0.0
  %6075 = vmatpush1.msra.mxu0 0.0
  %6076 = vmatprep.subr.mxu0 0.0
  %6077 = vmatpush1.msra.mxu0 0.0
  %6078 = vmatprep.subr.mxu0 0.0
  %6079 = vmatpush1.msra.mxu0 0.0
  %6080 = vmatprep.subr.mxu0 0.0
  %6081 = vmatpush1.msra.mxu0 0.0
  %6082 = vmatprep.subr.mxu0 0.0
  %6083 = vmatpush1.msra.mxu0 0.0
  %6084 = vmatprep.subr.mxu0 0.0
  %6085 = vmatpush1.msra.mxu0 0.0
  %6086 = vmatprep.subr.mxu0 0.0
  %6087 = vmatpush1.msra.mxu0 0.0
  %6088 = vmatprep.subr.mxu0 0.0
  %6089 = vmatpush1.msra.mxu0 0.0
  %6090 = vmatprep.subr.mxu0 0.0
  %6091 = vmatpush1.msra.mxu0 0.0
  %6092 = vmatprep.subr.mxu0 0.0
  %6093 = vmatpush1.msra.mxu0 0.0
  %6094 = vmatprep.subr.mxu0 0.0
  %6095 = vmatpush1.msra.mxu0 0.0
  %6096 = vmatprep.subr.mxu0 0.0
  %6097 = vmatpush1.msra.mxu0 0.0
  %6098 = vmatprep.mubr.f32.mxu0 0.0
  %6099 = vmatmul.mubr.f32.gmra.mrb[0].mxu0 %v6032
  %v6100 = vpop.f32.mrb[0].mxu0
  %v6101 = vadd.f32 %v5537, %v6100
  %v6102 = vpop.f32.mrb[0].mxu0
  %6103 = vdwg.mxu0
  %v6105 = vsel %vm1032, %v6030, 0
  %6107 = vmatprep.subr.mxu0 0.0
  %6108 = vmatpush1.msra.mxu0 %v5015
  %6109 = vmatprep.subr.mxu0 0.0
  %6110 = vmatpush1.msra.mxu0 %v5016
  %6111 = vmatprep.subr.mxu0 0.0
  %6112 = vmatpush1.msra.mxu0 %v5017
  %6113 = vmatprep.subr.mxu0 0.0
  %6114 = vmatpush1.msra.mxu0 %v5018
  %6115 = vmatprep.subr.mxu0 0.0
  %6116 = vmatpush1.msra.mxu0 0.0
  %6117 = vmatprep.subr.mxu0 0.0
  %6118 = vmatpush1.msra.mxu0 0.0
  %6119 = vmatprep.subr.mxu0 0.0
  %6120 = vmatpush1.msra.mxu0 0.0
  %6121 = vmatprep.subr.mxu0 0.0
  %6122 = vmatpush1.msra.mxu0 0.0
  %6123 = vmatprep.subr.mxu0 0.0
  %6124 = vmatpush1.msra.mxu0 0.0
  %6125 = vmatprep.subr.mxu0 0.0
  %6126 = vmatpush1.msra.mxu0 0.0
  %6127 = vmatprep.subr.mxu0 0.0
  %6128 = vmatpush1.msra.mxu0 0.0
  %6129 = vmatprep.subr.mxu0 0.0
  %6130 = vmatpush1.msra.mxu0 0.0
  %6131 = vmatprep.subr.mxu0 0.0
  %6132 = vmatpush1.msra.mxu0 0.0
  %6133 = vmatprep.subr.mxu0 0.0
  %6134 = vmatpush1.msra.mxu0 0.0
  %6135 = vmatprep.subr.mxu0 0.0
  %6136 = vmatpush1.msra.mxu0 0.0
  %6137 = vmatprep.subr.mxu0 0.0
  %6138 = vmatpush1.msra.mxu0 0.0
  %6139 = vmatprep.subr.mxu0 0.0
  %6140 = vmatpush1.msra.mxu0 0.0
  %6141 = vmatprep.subr.mxu0 0.0
  %6142 = vmatpush1.msra.mxu0 0.0
  %6143 = vmatprep.subr.mxu0 0.0
  %6144 = vmatpush1.msra.mxu0 0.0
  %6145 = vmatprep.subr.mxu0 0.0
  %6146 = vmatpush1.msra.mxu0 0.0
  %6147 = vmatprep.subr.mxu0 0.0
  %6148 = vmatpush1.msra.mxu0 0.0
  %6149 = vmatprep.subr.mxu0 0.0
  %6150 = vmatpush1.msra.mxu0 0.0
  %6151 = vmatprep.subr.mxu0 0.0
  %6152 = vmatpush1.msra.mxu0 0.0
  %6153 = vmatprep.subr.mxu0 0.0
  %6154 = vmatpush1.msra.mxu0 0.0
  %6155 = vmatprep.subr.mxu0 0.0
  %6156 = vmatpush1.msra.mxu0 0.0
  %6157 = vmatprep.subr.mxu0 0.0
  %6158 = vmatpush1.msra.mxu0 0.0
  %6159 = vmatprep.subr.mxu0 0.0
  %6160 = vmatpush1.msra.mxu0 0.0
  %6161 = vmatprep.subr.mxu0 0.0
  %6162 = vmatpush1.msra.mxu0 0.0
  %6163 = vmatprep.subr.mxu0 0.0
  %6164 = vmatpush1.msra.mxu0 0.0
  %6165 = vmatprep.subr.mxu0 0.0
  %6166 = vmatpush1.msra.mxu0 0.0
  %6167 = vmatprep.subr.mxu0 0.0
  %6168 = vmatpush1.msra.mxu0 0.0
  %6169 = vmatprep.subr.mxu0 0.0
  %6170 = vmatpush1.msra.mxu0 0.0
  %6171 = vmatprep.mubr.f32.mxu0 0.0
  %6172 = vmatmul.mubr.f32.gmra.mrb[0].mxu0 %v6105
  %v6173 = vpop.f32.mrb[0].mxu0
  %v6174 = vadd.f32 %v5541, %v6173
  %v6175 = vpop.f32.mrb[0].mxu0
  %6176 = vdwg.mxu0
  %6177 = vmatprep.subr.mxu0 0.0
  %6178 = vmatpush1.msra.mxu0 %v5007
  %6179 = vmatprep.subr.mxu0 0.0
  %6180 = vmatpush1.msra.mxu0 %v5008
  %6181 = vmatprep.subr.mxu0 0.0
  %6182 = vmatpush1.msra.mxu0 %v5009
  %6183 = vmatprep.subr.mxu0 0.0
  %6184 = vmatpush1.msra.mxu0 %v5010
  %6185 = vmatprep.subr.mxu0 0.0
  %6186 = vmatpush1.msra.mxu0 0.0
  %6187 = vmatprep.subr.mxu0 0.0
  %6188 = vmatpush1.msra.mxu0 0.0
  %6189 = vmatprep.subr.mxu0 0.0
  %6190 = vmatpush1.msra.mxu0 0.0
  %6191 = vmatprep.subr.mxu0 0.0
  %6192 = vmatpush1.msra.mxu0 0.0
  %6193 = vmatprep.subr.mxu0 0.0
  %6194 = vmatpush1.msra.mxu0 0.0
  %6195 = vmatprep.subr.mxu0 0.0
  %6196 = vmatpush1.msra.mxu0 0.0
  %6197 = vmatprep.subr.mxu0 0.0
  %6198 = vmatpush1.msra.mxu0 0.0
  %6199 = vmatprep.subr.mxu0 0.0
  %6200 = vmatpush1.msra.mxu0 0.0
  %6201 = vmatprep.subr.mxu0 0.0
  %6202 = vmatpush1.msra.mxu0 0.0
  %6203 = vmatprep.subr.mxu0 0.0
  %6204 = vmatpush1.msra.mxu0 0.0
  %6205 = vmatprep.subr.mxu0 0.0
  %6206 = vmatpush1.msra.mxu0 0.0
  %6207 = vmatprep.subr.mxu0 0.0
  %6208 = vmatpush1.msra.mxu0 0.0
  %6209 = vmatprep.subr.mxu0 0.0
  %6210 = vmatpush1.msra.mxu0 0.0
  %6211 = vmatprep.subr.mxu0 0.0
  %6212 = vmatpush1.msra.mxu0 0.0
  %6213 = vmatprep.subr.mxu0 0.0
  %6214 = vmatpush1.msra.mxu0 0.0
  %6215 = vmatprep.subr.mxu0 0.0
  %6216 = vmatpush1.msra.mxu0 0.0
  %6217 = vmatprep.subr.mxu0 0.0
  %6218 = vmatpush1.msra.mxu0 0.0
  %6219 = vmatprep.subr.mxu0 0.0
  %6220 = vmatpush1.msra.mxu0 0.0
  %6221 = vmatprep.subr.mxu0 0.0
  %6222 = vmatpush1.msra.mxu0 0.0
  %6223 = vmatprep.subr.mxu0 0.0
  %6224 = vmatpush1.msra.mxu0 0.0
  %6225 = vmatprep.subr.mxu0 0.0
  %6226 = vmatpush1.msra.mxu0 0.0
  %6227 = vmatprep.subr.mxu0 0.0
  %6228 = vmatpush1.msra.mxu0 0.0
  %6229 = vmatprep.subr.mxu0 0.0
  %6230 = vmatpush1.msra.mxu0 0.0
  %6231 = vmatprep.subr.mxu0 0.0
  %6232 = vmatpush1.msra.mxu0 0.0
  %6233 = vmatprep.subr.mxu0 0.0
  %6234 = vmatpush1.msra.mxu0 0.0
  %6235 = vmatprep.subr.mxu0 0.0
  %6236 = vmatpush1.msra.mxu0 0.0
  %6237 = vmatprep.subr.mxu0 0.0
  %6238 = vmatpush1.msra.mxu0 0.0
  %6239 = vmatprep.subr.mxu0 0.0
  %6240 = vmatpush1.msra.mxu0 0.0
  %6241 = vmatprep.mubr.f32.mxu0 0.0
  %6242 = vmatmul.mubr.f32.gmra.mrb[0].mxu0 %v6032
  %v6243 = vpop.f32.mrb[0].mxu0
  %v6244 = vadd.f32 %v5689, %v6243
  %v6245 = vpop.f32.mrb[0].mxu0
  %6246 = vdwg.mxu0
  %6247 = vmatprep.subr.mxu0 0.0
  %6248 = vmatpush1.msra.mxu0 %v5019
  %6249 = vmatprep.subr.mxu0 0.0
  %6250 = vmatpush1.msra.mxu0 %v5020
  %6251 = vmatprep.subr.mxu0 0.0
  %6252 = vmatpush1.msra.mxu0 %v5021
  %6253 = vmatprep.subr.mxu0 0.0
  %6254 = vmatpush1.msra.mxu0 %v5022
  %6255 = vmatprep.subr.mxu0 0.0
  %6256 = vmatpush1.msra.mxu0 0.0
  %6257 = vmatprep.subr.mxu0 0.0
  %6258 = vmatpush1.msra.mxu0 0.0
  %6259 = vmatprep.subr.mxu0 0.0
  %6260 = vmatpush1.msra.mxu0 0.0
  %6261 = vmatprep.subr.mxu0 0.0
  %6262 = vmatpush1.msra.mxu0 0.0
  %6263 = vmatprep.subr.mxu0 0.0
  %6264 = vmatpush1.msra.mxu0 0.0
  %6265 = vmatprep.subr.mxu0 0.0
  %6266 = vmatpush1.msra.mxu0 0.0
  %6267 = vmatprep.subr.mxu0 0.0
  %6268 = vmatpush1.msra.mxu0 0.0
  %6269 = vmatprep.subr.mxu0 0.0
  %6270 = vmatpush1.msra.mxu0 0.0
  %6271 = vmatprep.subr.mxu0 0.0
  %6272 = vmatpush1.msra.mxu0 0.0
  %6273 = vmatprep.subr.mxu0 0.0
  %6274 = vmatpush1.msra.mxu0 0.0
  %6275 = vmatprep.subr.mxu0 0.0
  %6276 = vmatpush1.msra.mxu0 0.0
  %6277 = vmatprep.subr.mxu0 0.0
  %6278 = vmatpush1.msra.mxu0 0.0
  %6279 = vmatprep.subr.mxu0 0.0
  %6280 = vmatpush1.msra.mxu0 0.0
  %6281 = vmatprep.subr.mxu0 0.0
  %6282 = vmatpush1.msra.mxu0 0.0
  %6283 = vmatprep.subr.mxu0 0.0
  %6284 = vmatpush1.msra.mxu0 0.0
  %6285 = vmatprep.subr.mxu0 0.0
  %6286 = vmatpush1.msra.mxu0 0.0
  %6287 = vmatprep.subr.mxu0 0.0
  %6288 = vmatpush1.msra.mxu0 0.0
  %6289 = vmatprep.subr.mxu0 0.0
  %6290 = vmatpush1.msra.mxu0 0.0
  %6291 = vmatprep.subr.mxu0 0.0
  %6292 = vmatpush1.msra.mxu0 0.0
  %6293 = vmatprep.subr.mxu0 0.0
  %6294 = vmatpush1.msra.mxu0 0.0
  %6295 = vmatprep.subr.mxu0 0.0
  %6296 = vmatpush1.msra.mxu0 0.0
  %6297 = vmatprep.subr.mxu0 0.0
  %6298 = vmatpush1.msra.mxu0 0.0
  %6299 = vmatprep.subr.mxu0 0.0
  %6300 = vmatpush1.msra.mxu0 0.0
  %6301 = vmatprep.subr.mxu0 0.0
  %6302 = vmatpush1.msra.mxu0 0.0
  %6303 = vmatprep.subr.mxu0 0.0
  %6304 = vmatpush1.msra.mxu0 0.0
  %6305 = vmatprep.subr.mxu0 0.0
  %6306 = vmatpush1.msra.mxu0 0.0
  %6307 = vmatprep.subr.mxu0 0.0
  %6308 = vmatpush1.msra.mxu0 0.0
  %6309 = vmatprep.subr.mxu0 0.0
  %6310 = vmatpush1.msra.mxu0 0.0
  %6311 = vmatprep.mubr.f32.mxu0 0.0
  %6312 = vmatmul.mubr.f32.gmra.mrb[0].mxu0 %v6105
  %v6313 = vpop.f32.mrb[0].mxu0
  %v6314 = vadd.f32 %v5693, %v6313
  %v6315 = vpop.f32.mrb[0].mxu0
  %6316 = vdwg.mxu0
  %6317 = vmatprep.subr.mxu0 0.0
  %6318 = vmatpush1.msra.mxu0 %v5011
  %6319 = vmatprep.subr.mxu0 0.0
  %6320 = vmatpush1.msra.mxu0 %v5012
  %6321 = vmatprep.subr.mxu0 0.0
  %6322 = vmatpush1.msra.mxu0 %v5013
  %6323 = vmatprep.subr.mxu0 0.0
  %6324 = vmatpush1.msra.mxu0 %v5014
  %6325 = vmatprep.subr.mxu0 0.0
  %6326 = vmatpush1.msra.mxu0 0.0
  %6327 = vmatprep.subr.mxu0 0.0
  %6328 = vmatpush1.msra.mxu0 0.0
  %6329 = vmatprep.subr.mxu0 0.0
  %6330 = vmatpush1.msra.mxu0 0.0
  %6331 = vmatprep.subr.mxu0 0.0
  %6332 = vmatpush1.msra.mxu0 0.0
  %6333 = vmatprep.subr.mxu0 0.0
  %6334 = vmatpush1.msra.mxu0 0.0
  %6335 = vmatprep.subr.mxu0 0.0
  %6336 = vmatpush1.msra.mxu0 0.0
  %6337 = vmatprep.subr.mxu0 0.0
  %6338 = vmatpush1.msra.mxu0 0.0
  %6339 = vmatprep.subr.mxu0 0.0
  %6340 = vmatpush1.msra.mxu0 0.0
  %6341 = vmatprep.subr.mxu0 0.0
  %6342 = vmatpush1.msra.mxu0 0.0
  %6343 = vmatprep.subr.mxu0 0.0
  %6344 = vmatpush1.msra.mxu0 0.0
  %6345 = vmatprep.subr.mxu0 0.0
  %6346 = vmatpush1.msra.mxu0 0.0
  %6347 = vmatprep.subr.mxu0 0.0
  %6348 = vmatpush1.msra.mxu0 0.0
  %6349 = vmatprep.subr.mxu0 0.0
  %6350 = vmatpush1.msra.mxu0 0.0
  %6351 = vmatprep.subr.mxu0 0.0
  %6352 = vmatpush1.msra.mxu0 0.0
  %6353 = vmatprep.subr.mxu0 0.0
  %6354 = vmatpush1.msra.mxu0 0.0
  %6355 = vmatprep.subr.mxu0 0.0
  %6356 = vmatpush1.msra.mxu0 0.0
  %6357 = vmatprep.subr.mxu0 0.0
  %6358 = vmatpush1.msra.mxu0 0.0
  %6359 = vmatprep.subr.mxu0 0.0
  %6360 = vmatpush1.msra.mxu0 0.0
  %6361 = vmatprep.subr.mxu0 0.0
  %6362 = vmatpush1.msra.mxu0 0.0
  %6363 = vmatprep.subr.mxu0 0.0
  %6364 = vmatpush1.msra.mxu0 0.0
  %6365 = vmatprep.subr.mxu0 0.0
  %6366 = vmatpush1.msra.mxu0 0.0
  %6367 = vmatprep.subr.mxu0 0.0
  %6368 = vmatpush1.msra.mxu0 0.0
  %6369 = vmatprep.subr.mxu0 0.0
  %6370 = vmatpush1.msra.mxu0 0.0
  %6371 = vmatprep.subr.mxu0 0.0
  %6372 = vmatpush1.msra.mxu0 0.0
  %6373 = vmatprep.subr.mxu0 0.0
  %6374 = vmatpush1.msra.mxu0 0.0
  %6375 = vmatprep.subr.mxu0 0.0
  %6376 = vmatpush1.msra.mxu0 0.0
  %6377 = vmatprep.subr.mxu0 0.0
  %6378 = vmatpush1.msra.mxu0 0.0
  %6379 = vmatprep.subr.mxu0 0.0
  %6380 = vmatpush1.msra.mxu0 0.0
  %6381 = vmatprep.mubr.f32.mxu0 0.0
  %6382 = vmatmul.mubr.f32.gmra.mrb[0].mxu0 %v6032
  %v6383 = vpop.f32.mrb[0].mxu0
  %v6384 = vadd.f32 %v5841, %v6383
  %v6385 = vpop.f32.mrb[0].mxu0
  %6386 = vdwg.mxu0
  %6387 = vmatprep.subr.mxu0 0.0
  %6388 = vmatpush1.msra.mxu0 %v5023
  %6389 = vmatprep.subr.mxu0 0.0
  %6390 = vmatpush1.msra.mxu0 %v5024
  %6391 = vmatprep.subr.mxu0 0.0
  %6392 = vmatpush1.msra.mxu0 %v5025
  %6393 = vmatprep.subr.mxu0 0.0
  %6394 = vmatpush1.msra.mxu0 %v5026
  %6395 = vmatprep.subr.mxu0 0.0
  %6396 = vmatpush1.msra.mxu0 0.0
  %6397 = vmatprep.subr.mxu0 0.0
  %6398 = vmatpush1.msra.mxu0 0.0
  %6399 = vmatprep.subr.mxu0 0.0
  %6400 = vmatpush1.msra.mxu0 0.0
  %6401 = vmatprep.subr.mxu0 0.0
  %6402 = vmatpush1.msra.mxu0 0.0
  %6403 = vmatprep.subr.mxu0 0.0
  %6404 = vmatpush1.msra.mxu0 0.0
  %6405 = vmatprep.subr.mxu0 0.0
  %6406 = vmatpush1.msra.mxu0 0.0
  %6407 = vmatprep.subr.mxu0 0.0
  %6408 = vmatpush1.msra.mxu0 0.0
  %6409 = vmatprep.subr.mxu0 0.0
  %6410 = vmatpush1.msra.mxu0 0.0
  %6411 = vmatprep.subr.mxu0 0.0
  %6412 = vmatpush1.msra.mxu0 0.0
  %6413 = vmatprep.subr.mxu0 0.0
  %6414 = vmatpush1.msra.mxu0 0.0
  %6415 = vmatprep.subr.mxu0 0.0
  %6416 = vmatpush1.msra.mxu0 0.0
  %6417 = vmatprep.subr.mxu0 0.0
  %6418 = vmatpush1.msra.mxu0 0.0
  %6419 = vmatprep.subr.mxu0 0.0
  %6420 = vmatpush1.msra.mxu0 0.0
  %6421 = vmatprep.subr.mxu0 0.0
  %6422 = vmatpush1.msra.mxu0 0.0
  %6423 = vmatprep.subr.mxu0 0.0
  %6424 = vmatpush1.msra.mxu0 0.0
  %6425 = vmatprep.subr.mxu0 0.0
  %6426 = vmatpush1.msra.mxu0 0.0
  %6427 = vmatprep.subr.mxu0 0.0
  %6428 = vmatpush1.msra.mxu0 0.0
  %6429 = vmatprep.subr.mxu0 0.0
  %6430 = vmatpush1.msra.mxu0 0.0
  %6431 = vmatprep.subr.mxu0 0.0
  %6432 = vmatpush1.msra.mxu0 0.0
  %6433 = vmatprep.subr.mxu0 0.0
  %6434 = vmatpush1.msra.mxu0 0.0
  %6435 = vmatprep.subr.mxu0 0.0
  %6436 = vmatpush1.msra.mxu0 0.0
  %6437 = vmatprep.subr.mxu0 0.0
  %6438 = vmatpush1.msra.mxu0 0.0
  %6439 = vmatprep.subr.mxu0 0.0
  %6440 = vmatpush1.msra.mxu0 0.0
  %6441 = vmatprep.subr.mxu0 0.0
  %6442 = vmatpush1.msra.mxu0 0.0
  %6443 = vmatprep.subr.mxu0 0.0
  %6444 = vmatpush1.msra.mxu0 0.0
  %6445 = vmatprep.subr.mxu0 0.0
  %6446 = vmatpush1.msra.mxu0 0.0
  %6447 = vmatprep.subr.mxu0 0.0
  %6448 = vmatpush1.msra.mxu0 0.0
  %6449 = vmatprep.subr.mxu0 0.0
  %6450 = vmatpush1.msra.mxu0 0.0
  %6451 = vmatprep.mubr.f32.mxu0 0.0
  %6452 = vmatmul.mubr.f32.gmra.mrb[0].mxu0 %v6105
  %v6453 = vpop.f32.mrb[0].mxu0
  %v6454 = vadd.f32 %v5845, %v6453
  %v6455 = vpop.f32.mrb[0].mxu0
  %6456 = vdwg.mxu0
  %v6457 = vrot.slane %v5367, 2
  %v6461 = vrot.slane %v6101, 6
  %v6462 = vrot.slane %v6174, 6
  %v6465 = vadd.f32 %v5119, %v6461
  %v6466 = vadd.f32 %v6457, %v6462
  %v6467 = vmul.f32 %v6465, 0.5
  %v6468 = vmul.f32 %v6466, 0.5
  %v6469 = vtanh.pop %v6467
  %v6470 = vtanh.pop %v6468
  %v6471 = vmul.f32 %v6469, 0.5
  %v6472 = vmul.f32 %v6470, 0.5
  %v6473 = vadd.f32 %v6471, 0.5
  %v6474 = vadd.f32 %v6472, 0.5
  %v6475 = vrot.slane %v5448, 2
  %v6479 = vrot.slane %v6244, 6
  %v6480 = vrot.slane %v6314, 6
  %v6483 = vadd.f32 %v5200, %v6479
  %v6484 = vadd.f32 %v6475, %v6480
  %v6485 = vmul.f32 %v6483, 0.5
  %v6486 = vmul.f32 %v6484, 0.5
  %v6487 = vtanh.pop %v6485
  %v6488 = vtanh.pop %v6486
  %v6489 = vmul.f32 %v6487, 0.5
  %v6490 = vmul.f32 %v6488, 0.5
  %v6491 = vadd.f32 %v6489, 0.5
  %v6492 = vadd.f32 %v6490, 0.5
  %v6493 = vrot.slane %v5529, 2
  %v6497 = vrot.slane %v6384, 6
  %v6498 = vrot.slane %v6454, 6
  %v6501 = vmul.f32 %v6473, %v6497
  %v6502 = vmul.f32 %v6474, %v6498
  %v6503 = vadd.f32 %v5281, %v6501
  %v6504 = vadd.f32 %v6493, %v6502
  %v6505 = vtanh.pop %v6503
  %v6506 = vtanh.pop %v6504
  %v6507 = vsub.f32 1.0, %v6491
  %v6508 = vsub.f32 1.0, %v6492
  %v6509 = vmul.f32 %v6507, %v6505
  %v6510 = vmul.f32 %v6508, %v6506
  %v6511 = vrot.slane %v6029, 6
  %v6512 = vrot.slane %v6030, 6
  %v6515 = vmul.f32 %v6491, %v6511
  %v6516 = vmul.f32 %v6492, %v6512
  %v6517 = vadd.f32 %v6509, %v6515
  %v6518 = vadd.f32 %v6510, %v6516
  %v6520 = vrot.slane %v6517, 2
  %v6521 = vsel %vm1032, %v6520, 0
  %6523 = vmatprep.subr.mxu0 0.0
  %6524 = vmatpush1.msra.mxu0 %v5003
  %6525 = vmatprep.subr.mxu0 0.0
  %6526 = vmatpush1.msra.mxu0 %v5004
  %6527 = vmatprep.subr.mxu0 0.0
  %6528 = vmatpush1.msra.mxu0 %v5005
  %6529 = vmatprep.subr.mxu0 0.0
  %6530 = vmatpush1.msra.mxu0 %v5006
  %6531 = vmatprep.subr.mxu0 0.0
  %6532 = vmatpush1.msra.mxu0 0.0
  %6533 = vmatprep.subr.mxu0 0.0
  %6534 = vmatpush1.msra.mxu0 0.0
  %6535 = vmatprep.subr.mxu0 0.0
  %6536 = vmatpush1.msra.mxu0 0.0
  %6537 = vmatprep.subr.mxu0 0.0
  %6538 = vmatpush1.msra.mxu0 0.0
  %6539 = vmatprep.subr.mxu0 0.0
  %6540 = vmatpush1.msra.mxu0 0.0
  %6541 = vmatprep.subr.mxu0 0.0
  %6542 = vmatpush1.msra.mxu0 0.0
  %6543 = vmatprep.subr.mxu0 0.0
  %6544 = vmatpush1.msra.mxu0 0.0
  %6545 = vmatprep.subr.mxu0 0.0
  %6546 = vmatpush1.msra.mxu0 0.0
  %6547 = vmatprep.subr.mxu0 0.0
  %6548 = vmatpush1.msra.mxu0 0.0
  %6549 = vmatprep.subr.mxu0 0.0
  %6550 = vmatpush1.msra.mxu0 0.0
  %6551 = vmatprep.subr.mxu0 0.0
  %6552 = vmatpush1.msra.mxu0 0.0
  %6553 = vmatprep.subr.mxu0 0.0
  %6554 = vmatpush1.msra.mxu0 0.0
  %6555 = vmatprep.subr.mxu0 0.0
  %6556 = vmatpush1.msra.mxu0 0.0
  %6557 = vmatprep.subr.mxu0 0.0
  %6558 = vmatpush1.msra.mxu0 0.0
  %6559 = vmatprep.subr.mxu0 0.0
  %6560 = vmatpush1.msra.mxu0 0.0
  %6561 = vmatprep.subr.mxu0 0.0
  %6562 = vmatpush1.msra.mxu0 0.0
  %6563 = vmatprep.subr.mxu0 0.0
  %6564 = vmatpush1.msra.mxu0 0.0
  %6565 = vmatprep.subr.mxu0 0.0
  %6566 = vmatpush1.msra.mxu0 0.0
  %6567 = vmatprep.subr.mxu0 0.0
  %6568 = vmatpush1.msra.mxu0 0.0
  %6569 = vmatprep.subr.mxu0 0.0
  %6570 = vmatpush1.msra.mxu0 0.0
  %6571 = vmatprep.subr.mxu0 0.0
  %6572 = vmatpush1.msra.mxu0 0.0
  %6573 = vmatprep.subr.mxu0 0.0
  %6574 = vmatpush1.msra.mxu0 0.0
  %6575 = vmatprep.subr.mxu0 0.0
  %6576 = vmatpush1.msra.mxu0 0.0
  %6577 = vmatprep.subr.mxu0 0.0
  %6578 = vmatpush1.msra.mxu0 0.0
  %6579 = vmatprep.subr.mxu0 0.0
  %6580 = vmatpush1.msra.mxu0 0.0
  %6581 = vmatprep.subr.mxu0 0.0
  %6582 = vmatpush1.msra.mxu0 0.0
  %6583 = vmatprep.subr.mxu0 0.0
  %6584 = vmatpush1.msra.mxu0 0.0
  %6585 = vmatprep.subr.mxu0 0.0
  %6586 = vmatpush1.msra.mxu0 0.0
  %6587 = vmatprep.mubr.f32.mxu0 0.0
  %6588 = vmatmul.mubr.f32.gmra.mrb[0].mxu0 %v6521
  %v6589 = vpop.f32.mrb[0].mxu0
  %v6590 = vadd.f32 %v5537, %v6589
  %v6591 = vpop.f32.mrb[0].mxu0
  %6592 = vdwg.mxu0
  %v6594 = vrot.slane %v6518, 2
  %v6595 = vsel %vm1032, %v6594, 0
  %6597 = vmatprep.subr.mxu0 0.0
  %6598 = vmatpush1.msra.mxu0 %v5015
  %6599 = vmatprep.subr.mxu0 0.0
  %6600 = vmatpush1.msra.mxu0 %v5016
  %6601 = vmatprep.subr.mxu0 0.0
  %6602 = vmatpush1.msra.mxu0 %v5017
  %6603 = vmatprep.subr.mxu0 0.0
  %6604 = vmatpush1.msra.mxu0 %v5018
  %6605 = vmatprep.subr.mxu0 0.0
  %6606 = vmatpush1.msra.mxu0 0.0
  %6607 = vmatprep.subr.mxu0 0.0
  %6608 = vmatpush1.msra.mxu0 0.0
  %6609 = vmatprep.subr.mxu0 0.0
  %6610 = vmatpush1.msra.mxu0 0.0
  %6611 = vmatprep.subr.mxu0 0.0
  %6612 = vmatpush1.msra.mxu0 0.0
  %6613 = vmatprep.subr.mxu0 0.0
  %6614 = vmatpush1.msra.mxu0 0.0
  %6615 = vmatprep.subr.mxu0 0.0
  %6616 = vmatpush1.msra.mxu0 0.0
  %6617 = vmatprep.subr.mxu0 0.0
  %6618 = vmatpush1.msra.mxu0 0.0
  %6619 = vmatprep.subr.mxu0 0.0
  %6620 = vmatpush1.msra.mxu0 0.0
  %6621 = vmatprep.subr.mxu0 0.0
  %6622 = vmatpush1.msra.mxu0 0.0
  %6623 = vmatprep.subr.mxu0 0.0
  %6624 = vmatpush1.msra.mxu0 0.0
  %6625 = vmatprep.subr.mxu0 0.0
  %6626 = vmatpush1.msra.mxu0 0.0
  %6627 = vmatprep.subr.mxu0 0.0
  %6628 = vmatpush1.msra.mxu0 0.0
  %6629 = vmatprep.subr.mxu0 0.0
  %6630 = vmatpush1.msra.mxu0 0.0
  %6631 = vmatprep.subr.mxu0 0.0
  %6632 = vmatpush1.msra.mxu0 0.0
  %6633 = vmatprep.subr.mxu0 0.0
  %6634 = vmatpush1.msra.mxu0 0.0
  %6635 = vmatprep.subr.mxu0 0.0
  %6636 = vmatpush1.msra.mxu0 0.0
  %6637 = vmatprep.subr.mxu0 0.0
  %6638 = vmatpush1.msra.mxu0 0.0
  %6639 = vmatprep.subr.mxu0 0.0
  %6640 = vmatpush1.msra.mxu0 0.0
  %6641 = vmatprep.subr.mxu0 0.0
  %6642 = vmatpush1.msra.mxu0 0.0
  %6643 = vmatprep.subr.mxu0 0.0
  %6644 = vmatpush1.msra.mxu0 0.0
  %6645 = vmatprep.subr.mxu0 0.0
  %6646 = vmatpush1.msra.mxu0 0.0
  %6647 = vmatprep.subr.mxu0 0.0
  %6648 = vmatpush1.msra.mxu0 0.0
  %6649 = vmatprep.subr.mxu0 0.0
  %6650 = vmatpush1.msra.mxu0 0.0
  %6651 = vmatprep.subr.mxu0 0.0
  %6652 = vmatpush1.msra.mxu0 0.0
  %6653 = vmatprep.subr.mxu0 0.0
  %6654 = vmatpush1.msra.mxu0 0.0
  %6655 = vmatprep.subr.mxu0 0.0
  %6656 = vmatpush1.msra.mxu0 0.0
  %6657 = vmatprep.subr.mxu0 0.0
  %6658 = vmatpush1.msra.mxu0 0.0
  %6659 = vmatprep.subr.mxu0 0.0
  %6660 = vmatpush1.msra.mxu0 0.0
  %6661 = vmatprep.mubr.f32.mxu0 0.0
  %6662 = vmatmul.mubr.f32.gmra.mrb[0].mxu0 %v6595
  %v6663 = vpop.f32.mrb[0].mxu0
  %v6664 = vadd.f32 %v5541, %v6663
  %v6665 = vpop.f32.mrb[0].mxu0
  %6666 = vdwg.mxu0
  %6667 = vmatprep.subr.mxu0 0.0
  %6668 = vmatpush1.msra.mxu0 %v5007
  %6669 = vmatprep.subr.mxu0 0.0
  %6670 = vmatpush1.msra.mxu0 %v5008
  %6671 = vmatprep.subr.mxu0 0.0
  %6672 = vmatpush1.msra.mxu0 %v5009
  %6673 = vmatprep.subr.mxu0 0.0
  %6674 = vmatpush1.msra.mxu0 %v5010
  %6675 = vmatprep.subr.mxu0 0.0
  %6676 = vmatpush1.msra.mxu0 0.0
  %6677 = vmatprep.subr.mxu0 0.0
  %6678 = vmatpush1.msra.mxu0 0.0
  %6679 = vmatprep.subr.mxu0 0.0
  %6680 = vmatpush1.msra.mxu0 0.0
  %6681 = vmatprep.subr.mxu0 0.0
  %6682 = vmatpush1.msra.mxu0 0.0
  %6683 = vmatprep.subr.mxu0 0.0
  %6684 = vmatpush1.msra.mxu0 0.0
  %6685 = vmatprep.subr.mxu0 0.0
  %6686 = vmatpush1.msra.mxu0 0.0
  %6687 = vmatprep.subr.mxu0 0.0
  %6688 = vmatpush1.msra.mxu0 0.0
  %6689 = vmatprep.subr.mxu0 0.0
  %6690 = vmatpush1.msra.mxu0 0.0
  %6691 = vmatprep.subr.mxu0 0.0
  %6692 = vmatpush1.msra.mxu0 0.0
  %6693 = vmatprep.subr.mxu0 0.0
  %6694 = vmatpush1.msra.mxu0 0.0
  %6695 = vmatprep.subr.mxu0 0.0
  %6696 = vmatpush1.msra.mxu0 0.0
  %6697 = vmatprep.subr.mxu0 0.0
  %6698 = vmatpush1.msra.mxu0 0.0
  %6699 = vmatprep.subr.mxu0 0.0
  %6700 = vmatpush1.msra.mxu0 0.0
  %6701 = vmatprep.subr.mxu0 0.0
  %6702 = vmatpush1.msra.mxu0 0.0
  %6703 = vmatprep.subr.mxu0 0.0
  %6704 = vmatpush1.msra.mxu0 0.0
  %6705 = vmatprep.subr.mxu0 0.0
  %6706 = vmatpush1.msra.mxu0 0.0
  %6707 = vmatprep.subr.mxu0 0.0
  %6708 = vmatpush1.msra.mxu0 0.0
  %6709 = vmatprep.subr.mxu0 0.0
  %6710 = vmatpush1.msra.mxu0 0.0
  %6711 = vmatprep.subr.mxu0 0.0
  %6712 = vmatpush1.msra.mxu0 0.0
  %6713 = vmatprep.subr.mxu0 0.0
  %6714 = vmatpush1.msra.mxu0 0.0
  %6715 = vmatprep.subr.mxu0 0.0
  %6716 = vmatpush1.msra.mxu0 0.0
  %6717 = vmatprep.subr.mxu0 0.0
  %6718 = vmatpush1.msra.mxu0 0.0
  %6719 = vmatprep.subr.mxu0 0.0
  %6720 = vmatpush1.msra.mxu0 0.0
  %6721 = vmatprep.subr.mxu0 0.0
  %6722 = vmatpush1.msra.mxu0 0.0
  %6723 = vmatprep.subr.mxu0 0.0
  %6724 = vmatpush1.msra.mxu0 0.0
  %6725 = vmatprep.subr.mxu0 0.0
  %6726 = vmatpush1.msra.mxu0 0.0
  %6727 = vmatprep.subr.mxu0 0.0
  %6728 = vmatpush1.msra.mxu0 0.0
  %6729 = vmatprep.subr.mxu0 0.0
  %6730 = vmatpush1.msra.mxu0 0.0
  %6731 = vmatprep.mubr.f32.mxu0 0.0
  %6732 = vmatmul.mubr.f32.gmra.mrb[0].mxu0 %v6521
  %v6733 = vpop.f32.mrb[0].mxu0
  %v6734 = vadd.f32 %v5689, %v6733
  %v6735 = vpop.f32.mrb[0].mxu0
  %6736 = vdwg.mxu0
  %6737 = vmatprep.subr.mxu0 0.0
  %6738 = vmatpush1.msra.mxu0 %v5019
  %6739 = vmatprep.subr.mxu0 0.0
  %6740 = vmatpush1.msra.mxu0 %v5020
  %6741 = vmatprep.subr.mxu0 0.0
  %6742 = vmatpush1.msra.mxu0 %v5021
  %6743 = vmatprep.subr.mxu0 0.0
  %6744 = vmatpush1.msra.mxu0 %v5022
  %6745 = vmatprep.subr.mxu0 0.0
  %6746 = vmatpush1.msra.mxu0 0.0
  %6747 = vmatprep.subr.mxu0 0.0
  %6748 = vmatpush1.msra.mxu0 0.0
  %6749 = vmatprep.subr.mxu0 0.0
  %6750 = vmatpush1.msra.mxu0 0.0
  %6751 = vmatprep.subr.mxu0 0.0
  %6752 = vmatpush1.msra.mxu0 0.0
  %6753 = vmatprep.subr.mxu0 0.0
  %6754 = vmatpush1.msra.mxu0 0.0
  %6755 = vmatprep.subr.mxu0 0.0
  %6756 = vmatpush1.msra.mxu0 0.0
  %6757 = vmatprep.subr.mxu0 0.0
  %6758 = vmatpush1.msra.mxu0 0.0
  %6759 = vmatprep.subr.mxu0 0.0
  %6760 = vmatpush1.msra.mxu0 0.0
  %6761 = vmatprep.subr.mxu0 0.0
  %6762 = vmatpush1.msra.mxu0 0.0
  %6763 = vmatprep.subr.mxu0 0.0
  %6764 = vmatpush1.msra.mxu0 0.0
  %6765 = vmatprep.subr.mxu0 0.0
  %6766 = vmatpush1.msra.mxu0 0.0
  %6767 = vmatprep.subr.mxu0 0.0
  %6768 = vmatpush1.msra.mxu0 0.0
  %6769 = vmatprep.subr.mxu0 0.0
  %6770 = vmatpush1.msra.mxu0 0.0
  %6771 = vmatprep.subr.mxu0 0.0
  %6772 = vmatpush1.msra.mxu0 0.0
  %6773 = vmatprep.subr.mxu0 0.0
  %6774 = vmatpush1.msra.mxu0 0.0
  %6775 = vmatprep.subr.mxu0 0.0
  %6776 = vmatpush1.msra.mxu0 0.0
  %6777 = vmatprep.subr.mxu0 0.0
  %6778 = vmatpush1.msra.mxu0 0.0
  %6779 = vmatprep.subr.mxu0 0.0
  %6780 = vmatpush1.msra.mxu0 0.0
  %6781 = vmatprep.subr.mxu0 0.0
  %6782 = vmatpush1.msra.mxu0 0.0
  %6783 = vmatprep.subr.mxu0 0.0
  %6784 = vmatpush1.msra.mxu0 0.0
  %6785 = vmatprep.subr.mxu0 0.0
  %6786 = vmatpush1.msra.mxu0 0.0
  %6787 = vmatprep.subr.mxu0 0.0
  %6788 = vmatpush1.msra.mxu0 0.0
  %6789 = vmatprep.subr.mxu0 0.0
  %6790 = vmatpush1.msra.mxu0 0.0
  %6791 = vmatprep.subr.mxu0 0.0
  %6792 = vmatpush1.msra.mxu0 0.0
  %6793 = vmatprep.subr.mxu0 0.0
  %6794 = vmatpush1.msra.mxu0 0.0
  %6795 = vmatprep.subr.mxu0 0.0
  %6796 = vmatpush1.msra.mxu0 0.0
  %6797 = vmatprep.subr.mxu0 0.0
  %6798 = vmatpush1.msra.mxu0 0.0
  %6799 = vmatprep.subr.mxu0 0.0
  %6800 = vmatpush1.msra.mxu0 0.0
  %6801 = vmatprep.mubr.f32.mxu0 0.0
  %6802 = vmatmul.mubr.f32.gmra.mrb[0].mxu0 %v6595
  %v6803 = vpop.f32.mrb[0].mxu0
  %v6804 = vadd.f32 %v5693, %v6803
  %v6805 = vpop.f32.mrb[0].mxu0
  %6806 = vdwg.mxu0
  %6807 = vmatprep.subr.mxu0 0.0
  %6808 = vmatpush1.msra.mxu0 %v5011
  %6809 = vmatprep.subr.mxu0 0.0
  %6810 = vmatpush1.msra.mxu0 %v5012
  %6811 = vmatprep.subr.mxu0 0.0
  %6812 = vmatpush1.msra.mxu0 %v5013
  %6813 = vmatprep.subr.mxu0 0.0
  %6814 = vmatpush1.msra.mxu0 %v5014
  %6815 = vmatprep.subr.mxu0 0.0
  %6816 = vmatpush1.msra.mxu0 0.0
  %6817 = vmatprep.subr.mxu0 0.0
  %6818 = vmatpush1.msra.mxu0 0.0
  %6819 = vmatprep.subr.mxu0 0.0
  %6820 = vmatpush1.msra.mxu0 0.0
  %6821 = vmatprep.subr.mxu0 0.0
  %6822 = vmatpush1.msra.mxu0 0.0
  %6823 = vmatprep.subr.mxu0 0.0
  %6824 = vmatpush1.msra.mxu0 0.0
  %6825 = vmatprep.subr.mxu0 0.0
  %6826 = vmatpush1.msra.mxu0 0.0
  %6827 = vmatprep.subr.mxu0 0.0
  %6828 = vmatpush1.msra.mxu0 0.0
  %6829 = vmatprep.subr.mxu0 0.0
  %6830 = vmatpush1.msra.mxu0 0.0
  %6831 = vmatprep.subr.mxu0 0.0
  %6832 = vmatpush1.msra.mxu0 0.0
  %6833 = vmatprep.subr.mxu0 0.0
  %6834 = vmatpush1.msra.mxu0 0.0
  %6835 = vmatprep.subr.mxu0 0.0
  %6836 = vmatpush1.msra.mxu0 0.0
  %6837 = vmatprep.subr.mxu0 0.0
  %6838 = vmatpush1.msra.mxu0 0.0
  %6839 = vmatprep.subr.mxu0 0.0
  %6840 = vmatpush1.msra.mxu0 0.0
  %6841 = vmatprep.subr.mxu0 0.0
  %6842 = vmatpush1.msra.mxu0 0.0
  %6843 = vmatprep.subr.mxu0 0.0
  %6844 = vmatpush1.msra.mxu0 0.0
  %6845 = vmatprep.subr.mxu0 0.0
  %6846 = vmatpush1.msra.mxu0 0.0
  %6847 = vmatprep.subr.mxu0 0.0
  %6848 = vmatpush1.msra.mxu0 0.0
  %6849 = vmatprep.subr.mxu0 0.0
  %6850 = vmatpush1.msra.mxu0 0.0
  %6851 = vmatprep.subr.mxu0 0.0
  %6852 = vmatpush1.msra.mxu0 0.0
  %6853 = vmatprep.subr.mxu0 0.0
  %6854 = vmatpush1.msra.mxu0 0.0
  %6855 = vmatprep.subr.mxu0 0.0
  %6856 = vmatpush1.msra.mxu0 0.0
  %6857 = vmatprep.subr.mxu0 0.0
  %6858 = vmatpush1.msra.mxu0 0.0
  %6859 = vmatprep.subr.mxu0 0.0
  %6860 = vmatpush1.msra.mxu0 0.0
  %6861 = vmatprep.subr.mxu0 0.0
  %6862 = vmatpush1.msra.mxu0 0.0
  %6863 = vmatprep.subr.mxu0 0.0
  %6864 = vmatpush1.msra.mxu0 0.0
  %6865 = vmatprep.subr.mxu0 0.0
  %6866 = vmatpush1.msra.mxu0 0.0
  %6867 = vmatprep.subr.mxu0 0.0
  %6868 = vmatpush1.msra.mxu0 0.0
  %6869 = vmatprep.subr.mxu0 0.0
  %6870 = vmatpush1.msra.mxu0 0.0
  %6871 = vmatprep.mubr.f32.mxu0 0.0
  %6872 = vmatmul.mubr.f32.gmra.mrb[0].mxu0 %v6521
  %v6873 = vpop.f32.mrb[0].mxu0
  %v6874 = vadd.f32 %v5841, %v6873
  %v6875 = vpop.f32.mrb[0].mxu0
  %6876 = vdwg.mxu0
  %6877 = vmatprep.subr.mxu0 0.0
  %6878 = vmatpush1.msra.mxu0 %v5023
  %6879 = vmatprep.subr.mxu0 0.0
  %6880 = vmatpush1.msra.mxu0 %v5024
  %6881 = vmatprep.subr.mxu0 0.0
  %6882 = vmatpush1.msra.mxu0 %v5025
  %6883 = vmatprep.subr.mxu0 0.0
  %6884 = vmatpush1.msra.mxu0 %v5026
  %6885 = vmatprep.subr.mxu0 0.0
  %6886 = vmatpush1.msra.mxu0 0.0
  %6887 = vmatprep.subr.mxu0 0.0
  %6888 = vmatpush1.msra.mxu0 0.0
  %6889 = vmatprep.subr.mxu0 0.0
  %6890 = vmatpush1.msra.mxu0 0.0
  %6891 = vmatprep.subr.mxu0 0.0
  %6892 = vmatpush1.msra.mxu0 0.0
  %6893 = vmatprep.subr.mxu0 0.0
  %6894 = vmatpush1.msra.mxu0 0.0
  %6895 = vmatprep.subr.mxu0 0.0
  %6896 = vmatpush1.msra.mxu0 0.0
  %6897 = vmatprep.subr.mxu0 0.0
  %6898 = vmatpush1.msra.mxu0 0.0
  %6899 = vmatprep.subr.mxu0 0.0
  %6900 = vmatpush1.msra.mxu0 0.0
  %6901 = vmatprep.subr.mxu0 0.0
  %6902 = vmatpush1.msra.mxu0 0.0
  %6903 = vmatprep.subr.mxu0 0.0
  %6904 = vmatpush1.msra.mxu0 0.0
  %6905 = vmatprep.subr.mxu0 0.0
  %6906 = vmatpush1.msra.mxu0 0.0
  %6907 = vmatprep.subr.mxu0 0.0
  %6908 = vmatpush1.msra.mxu0 0.0
  %6909 = vmatprep.subr.mxu0 0.0
  %6910 = vmatpush1.msra.mxu0 0.0
  %6911 = vmatprep.subr.mxu0 0.0
  %6912 = vmatpush1.msra.mxu0 0.0
  %6913 = vmatprep.subr.mxu0 0.0
  %6914 = vmatpush1.msra.mxu0 0.0
  %6915 = vmatprep.subr.mxu0 0.0
  %6916 = vmatpush1.msra.mxu0 0.0
  %6917 = vmatprep.subr.mxu0 0.0
  %6918 = vmatpush1.msra.mxu0 0.0
  %6919 = vmatprep.subr.mxu0 0.0
  %6920 = vmatpush1.msra.mxu0 0.0
  %6921 = vmatprep.subr.mxu0 0.0
  %6922 = vmatpush1.msra.mxu0 0.0
  %6923 = vmatprep.subr.mxu0 0.0
  %6924 = vmatpush1.msra.mxu0 0.0
  %6925 = vmatprep.subr.mxu0 0.0
  %6926 = vmatpush1.msra.mxu0 0.0
  %6927 = vmatprep.subr.mxu0 0.0
  %6928 = vmatpush1.msra.mxu0 0.0
  %6929 = vmatprep.subr.mxu0 0.0
  %6930 = vmatpush1.msra.mxu0 0.0
  %6931 = vmatprep.subr.mxu0 0.0
  %6932 = vmatpush1.msra.mxu0 0.0
  %6933 = vmatprep.subr.mxu0 0.0
  %6934 = vmatpush1.msra.mxu0 0.0
  %6935 = vmatprep.subr.mxu0 0.0
  %6936 = vmatpush1.msra.mxu0 0.0
  %6937 = vmatprep.subr.mxu0 0.0
  %6938 = vmatpush1.msra.mxu0 0.0
  %6939 = vmatprep.subr.mxu0 0.0
  %6940 = vmatpush1.msra.mxu0 0.0
  %6941 = vmatprep.mubr.f32.mxu0 0.0
  %6942 = vmatmul.mubr.f32.gmra.mrb[0].mxu0 %v6595
  %v6943 = vpop.f32.mrb[0].mxu0
  %v6944 = vadd.f32 %v5845, %v6943
  %v6945 = vpop.f32.mrb[0].mxu0
  %6946 = vdwg.mxu0
  %v6949 = vrot.slane %v6590, 4
  %v6950 = vrot.slane %v6664, 4
  %v6953 = vadd.f32 %v5119, %v6949
  %v6954 = vadd.f32 %v5989, %v6950
  %v6955 = vmul.f32 %v6953, 0.5
  %v6956 = vmul.f32 %v6954, 0.5
  %v6957 = vtanh.pop %v6955
  %v6958 = vtanh.pop %v6956
  %v6959 = vmul.f32 %v6957, 0.5
  %v6960 = vmul.f32 %v6958, 0.5
  %v6961 = vadd.f32 %v6959, 0.5
  %v6962 = vadd.f32 %v6960, 0.5
  %v6965 = vrot.slane %v6734, 4
  %v6966 = vrot.slane %v6804, 4
  %v6969 = vadd.f32 %v5200, %v6965
  %v6970 = vadd.f32 %v6002, %v6966
  %v6971 = vmul.f32 %v6969, 0.5
  %v6972 = vmul.f32 %v6970, 0.5
  %v6973 = vtanh.pop %v6971
  %v6974 = vtanh.pop %v6972
  %v6975 = vmul.f32 %v6973, 0.5
  %v6976 = vmul.f32 %v6974, 0.5
  %v6977 = vadd.f32 %v6975, 0.5
  %v6978 = vadd.f32 %v6976, 0.5
  %v6981 = vrot.slane %v6874, 4
  %v6982 = vrot.slane %v6944, 4
  %v6985 = vmul.f32 %v6961, %v6981
  %v6986 = vmul.f32 %v6962, %v6982
  %v6987 = vadd.f32 %v5281, %v6985
  %v6988 = vadd.f32 %v6015, %v6986
  %v6989 = vtanh.pop %v6987
  %v6990 = vtanh.pop %v6988
  %v6991 = vsub.f32 1.0, %v6977
  %v6992 = vsub.f32 1.0, %v6978
  %v6993 = vmul.f32 %v6991, %v6989
  %v6994 = vmul.f32 %v6992, %v6990
  %v6995 = vrot.slane %v6517, 6
  %v6996 = vrot.slane %v6518, 6
  %v6999 = vmul.f32 %v6977, %v6995
  %v7000 = vmul.f32 %v6978, %v6996
  %v7001 = vadd.f32 %v6993, %v6999
  %v7002 = vadd.f32 %v6994, %v7000
  %v7004 = vrot.slane %v7001, 4
  %v7005 = vsel %vm1032, %v7004, 0
  %7007 = vmatprep.subr.mxu0 0.0
  %7008 = vmatpush1.msra.mxu0 %v5003
  %7009 = vmatprep.subr.mxu0 0.0
  %7010 = vmatpush1.msra.mxu0 %v5004
  %7011 = vmatprep.subr.mxu0 0.0
  %7012 = vmatpush1.msra.mxu0 %v5005
  %7013 = vmatprep.subr.mxu0 0.0
  %7014 = vmatpush1.msra.mxu0 %v5006
  %7015 = vmatprep.subr.mxu0 0.0
  %7016 = vmatpush1.msra.mxu0 0.0
  %7017 = vmatprep.subr.mxu0 0.0
  %7018 = vmatpush1.msra.mxu0 0.0
  %7019 = vmatprep.subr.mxu0 0.0
  %7020 = vmatpush1.msra.mxu0 0.0
  %7021 = vmatprep.subr.mxu0 0.0
  %7022 = vmatpush1.msra.mxu0 0.0
  %7023 = vmatprep.subr.mxu0 0.0
  %7024 = vmatpush1.msra.mxu0 0.0
  %7025 = vmatprep.subr.mxu0 0.0
  %7026 = vmatpush1.msra.mxu0 0.0
  %7027 = vmatprep.subr.mxu0 0.0
  %7028 = vmatpush1.msra.mxu0 0.0
  %7029 = vmatprep.subr.mxu0 0.0
  %7030 = vmatpush1.msra.mxu0 0.0
  %7031 = vmatprep.subr.mxu0 0.0
  %7032 = vmatpush1.msra.mxu0 0.0
  %7033 = vmatprep.subr.mxu0 0.0
  %7034 = vmatpush1.msra.mxu0 0.0
  %7035 = vmatprep.subr.mxu0 0.0
  %7036 = vmatpush1.msra.mxu0 0.0
  %7037 = vmatprep.subr.mxu0 0.0
  %7038 = vmatpush1.msra.mxu0 0.0
  %7039 = vmatprep.subr.mxu0 0.0
  %7040 = vmatpush1.msra.mxu0 0.0
  %7041 = vmatprep.subr.mxu0 0.0
  %7042 = vmatpush1.msra.mxu0 0.0
  %7043 = vmatprep.subr.mxu0 0.0
  %7044 = vmatpush1.msra.mxu0 0.0
  %7045 = vmatprep.subr.mxu0 0.0
  %7046 = vmatpush1.msra.mxu0 0.0
  %7047 = vmatprep.subr.mxu0 0.0
  %7048 = vmatpush1.msra.mxu0 0.0
  %7049 = vmatprep.subr.mxu0 0.0
  %7050 = vmatpush1.msra.mxu0 0.0
  %7051 = vmatprep.subr.mxu0 0.0
  %7052 = vmatpush1.msra.mxu0 0.0
  %7053 = vmatprep.subr.mxu0 0.0
  %7054 = vmatpush1.msra.mxu0 0.0
  %7055 = vmatprep.subr.mxu0 0.0
  %7056 = vmatpush1.msra.mxu0 0.0
  %7057 = vmatprep.subr.mxu0 0.0
  %7058 = vmatpush1.msra.mxu0 0.0
  %7059 = vmatprep.subr.mxu0 0.0
  %7060 = vmatpush1.msra.mxu0 0.0
  %7061 = vmatprep.subr.mxu0 0.0
  %7062 = vmatpush1.msra.mxu0 0.0
  %7063 = vmatprep.subr.mxu0 0.0
  %7064 = vmatpush1.msra.mxu0 0.0
  %7065 = vmatprep.subr.mxu0 0.0
  %7066 = vmatpush1.msra.mxu0 0.0
  %7067 = vmatprep.subr.mxu0 0.0
  %7068 = vmatpush1.msra.mxu0 0.0
  %7069 = vmatprep.subr.mxu0 0.0
  %7070 = vmatpush1.msra.mxu0 0.0
  %7071 = vmatprep.mubr.f32.mxu0 0.0
  %7072 = vmatmul.mubr.f32.gmra.mrb[0].mxu0 %v7005
  %v7073 = vpop.f32.mrb[0].mxu0
  %v7074 = vadd.f32 %v5537, %v7073
  %v7075 = vpop.f32.mrb[0].mxu0
  %7076 = vdwg.mxu0
  %v7078 = vrot.slane %v7002, 4
  %v7079 = vsel %vm1032, %v7078, 0
  %7081 = vmatprep.subr.mxu0 0.0
  %7082 = vmatpush1.msra.mxu0 %v5015
  %7083 = vmatprep.subr.mxu0 0.0
  %7084 = vmatpush1.msra.mxu0 %v5016
  %7085 = vmatprep.subr.mxu0 0.0
  %7086 = vmatpush1.msra.mxu0 %v5017
  %7087 = vmatprep.subr.mxu0 0.0
  %7088 = vmatpush1.msra.mxu0 %v5018
  %7089 = vmatprep.subr.mxu0 0.0
  %7090 = vmatpush1.msra.mxu0 0.0
  %7091 = vmatprep.subr.mxu0 0.0
  %7092 = vmatpush1.msra.mxu0 0.0
  %7093 = vmatprep.subr.mxu0 0.0
  %7094 = vmatpush1.msra.mxu0 0.0
  %7095 = vmatprep.subr.mxu0 0.0
  %7096 = vmatpush1.msra.mxu0 0.0
  %7097 = vmatprep.subr.mxu0 0.0
  %7098 = vmatpush1.msra.mxu0 0.0
  %7099 = vmatprep.subr.mxu0 0.0
  %7100 = vmatpush1.msra.mxu0 0.0
  %7101 = vmatprep.subr.mxu0 0.0
  %7102 = vmatpush1.msra.mxu0 0.0
  %7103 = vmatprep.subr.mxu0 0.0
  %7104 = vmatpush1.msra.mxu0 0.0
  %7105 = vmatprep.subr.mxu0 0.0
  %7106 = vmatpush1.msra.mxu0 0.0
  %7107 = vmatprep.subr.mxu0 0.0
  %7108 = vmatpush1.msra.mxu0 0.0
  %7109 = vmatprep.subr.mxu0 0.0
  %7110 = vmatpush1.msra.mxu0 0.0
  %7111 = vmatprep.subr.mxu0 0.0
  %7112 = vmatpush1.msra.mxu0 0.0
  %7113 = vmatprep.subr.mxu0 0.0
  %7114 = vmatpush1.msra.mxu0 0.0
  %7115 = vmatprep.subr.mxu0 0.0
  %7116 = vmatpush1.msra.mxu0 0.0
  %7117 = vmatprep.subr.mxu0 0.0
  %7118 = vmatpush1.msra.mxu0 0.0
  %7119 = vmatprep.subr.mxu0 0.0
  %7120 = vmatpush1.msra.mxu0 0.0
  %7121 = vmatprep.subr.mxu0 0.0
  %7122 = vmatpush1.msra.mxu0 0.0
  %7123 = vmatprep.subr.mxu0 0.0
  %7124 = vmatpush1.msra.mxu0 0.0
  %7125 = vmatprep.subr.mxu0 0.0
  %7126 = vmatpush1.msra.mxu0 0.0
  %7127 = vmatprep.subr.mxu0 0.0
  %7128 = vmatpush1.msra.mxu0 0.0
  %7129 = vmatprep.subr.mxu0 0.0
  %7130 = vmatpush1.msra.mxu0 0.0
  %7131 = vmatprep.subr.mxu0 0.0
  %7132 = vmatpush1.msra.mxu0 0.0
  %7133 = vmatprep.subr.mxu0 0.0
  %7134 = vmatpush1.msra.mxu0 0.0
  %7135 = vmatprep.subr.mxu0 0.0
  %7136 = vmatpush1.msra.mxu0 0.0
  %7137 = vmatprep.subr.mxu0 0.0
  %7138 = vmatpush1.msra.mxu0 0.0
  %7139 = vmatprep.subr.mxu0 0.0
  %7140 = vmatpush1.msra.mxu0 0.0
  %7141 = vmatprep.subr.mxu0 0.0
  %7142 = vmatpush1.msra.mxu0 0.0
  %7143 = vmatprep.subr.mxu0 0.0
  %7144 = vmatpush1.msra.mxu0 0.0
  %7145 = vmatprep.mubr.f32.mxu0 0.0
  %7146 = vmatmul.mubr.f32.gmra.mrb[0].mxu0 %v7079
  %v7147 = vpop.f32.mrb[0].mxu0
  %v7148 = vadd.f32 %v5541, %v7147
  %v7149 = vpop.f32.mrb[0].mxu0
  %7150 = vdwg.mxu0
  %7151 = vmatprep.subr.mxu0 0.0
  %7152 = vmatpush1.msra.mxu0 %v5007
  %7153 = vmatprep.subr.mxu0 0.0
  %7154 = vmatpush1.msra.mxu0 %v5008
  %7155 = vmatprep.subr.mxu0 0.0
  %7156 = vmatpush1.msra.mxu0 %v5009
  %7157 = vmatprep.subr.mxu0 0.0
  %7158 = vmatpush1.msra.mxu0 %v5010
  %7159 = vmatprep.subr.mxu0 0.0
  %7160 = vmatpush1.msra.mxu0 0.0
  %7161 = vmatprep.subr.mxu0 0.0
  %7162 = vmatpush1.msra.mxu0 0.0
  %7163 = vmatprep.subr.mxu0 0.0
  %7164 = vmatpush1.msra.mxu0 0.0
  %7165 = vmatprep.subr.mxu0 0.0
  %7166 = vmatpush1.msra.mxu0 0.0
  %7167 = vmatprep.subr.mxu0 0.0
  %7168 = vmatpush1.msra.mxu0 0.0
  %7169 = vmatprep.subr.mxu0 0.0
  %7170 = vmatpush1.msra.mxu0 0.0
  %7171 = vmatprep.subr.mxu0 0.0
  %7172 = vmatpush1.msra.mxu0 0.0
  %7173 = vmatprep.subr.mxu0 0.0
  %7174 = vmatpush1.msra.mxu0 0.0
  %7175 = vmatprep.subr.mxu0 0.0
  %7176 = vmatpush1.msra.mxu0 0.0
  %7177 = vmatprep.subr.mxu0 0.0
  %7178 = vmatpush1.msra.mxu0 0.0
  %7179 = vmatprep.subr.mxu0 0.0
  %7180 = vmatpush1.msra.mxu0 0.0
  %7181 = vmatprep.subr.mxu0 0.0
  %7182 = vmatpush1.msra.mxu0 0.0
  %7183 = vmatprep.subr.mxu0 0.0
  %7184 = vmatpush1.msra.mxu0 0.0
  %7185 = vmatprep.subr.mxu0 0.0
  %7186 = vmatpush1.msra.mxu0 0.0
  %7187 = vmatprep.subr.mxu0 0.0
  %7188 = vmatpush1.msra.mxu0 0.0
  %7189 = vmatprep.subr.mxu0 0.0
  %7190 = vmatpush1.msra.mxu0 0.0
  %7191 = vmatprep.subr.mxu0 0.0
  %7192 = vmatpush1.msra.mxu0 0.0
  %7193 = vmatprep.subr.mxu0 0.0
  %7194 = vmatpush1.msra.mxu0 0.0
  %7195 = vmatprep.subr.mxu0 0.0
  %7196 = vmatpush1.msra.mxu0 0.0
  %7197 = vmatprep.subr.mxu0 0.0
  %7198 = vmatpush1.msra.mxu0 0.0
  %7199 = vmatprep.subr.mxu0 0.0
  %7200 = vmatpush1.msra.mxu0 0.0
  %7201 = vmatprep.subr.mxu0 0.0
  %7202 = vmatpush1.msra.mxu0 0.0
  %7203 = vmatprep.subr.mxu0 0.0
  %7204 = vmatpush1.msra.mxu0 0.0
  %7205 = vmatprep.subr.mxu0 0.0
  %7206 = vmatpush1.msra.mxu0 0.0
  %7207 = vmatprep.subr.mxu0 0.0
  %7208 = vmatpush1.msra.mxu0 0.0
  %7209 = vmatprep.subr.mxu0 0.0
  %7210 = vmatpush1.msra.mxu0 0.0
  %7211 = vmatprep.subr.mxu0 0.0
  %7212 = vmatpush1.msra.mxu0 0.0
  %7213 = vmatprep.subr.mxu0 0.0
  %7214 = vmatpush1.msra.mxu0 0.0
  %7215 = vmatprep.mubr.f32.mxu0 0.0
  %7216 = vmatmul.mubr.f32.gmra.mrb[0].mxu0 %v7005
  %v7217 = vpop.f32.mrb[0].mxu0
  %v7218 = vadd.f32 %v5689, %v7217
  %v7219 = vpop.f32.mrb[0].mxu0
  %7220 = vdwg.mxu0
  %7221 = vmatprep.subr.mxu0 0.0
  %7222 = vmatpush1.msra.mxu0 %v5019
  %7223 = vmatprep.subr.mxu0 0.0
  %7224 = vmatpush1.msra.mxu0 %v5020
  %7225 = vmatprep.subr.mxu0 0.0
  %7226 = vmatpush1.msra.mxu0 %v5021
  %7227 = vmatprep.subr.mxu0 0.0
  %7228 = vmatpush1.msra.mxu0 %v5022
  %7229 = vmatprep.subr.mxu0 0.0
  %7230 = vmatpush1.msra.mxu0 0.0
  %7231 = vmatprep.subr.mxu0 0.0
  %7232 = vmatpush1.msra.mxu0 0.0
  %7233 = vmatprep.subr.mxu0 0.0
  %7234 = vmatpush1.msra.mxu0 0.0
  %7235 = vmatprep.subr.mxu0 0.0
  %7236 = vmatpush1.msra.mxu0 0.0
  %7237 = vmatprep.subr.mxu0 0.0
  %7238 = vmatpush1.msra.mxu0 0.0
  %7239 = vmatprep.subr.mxu0 0.0
  %7240 = vmatpush1.msra.mxu0 0.0
  %7241 = vmatprep.subr.mxu0 0.0
  %7242 = vmatpush1.msra.mxu0 0.0
  %7243 = vmatprep.subr.mxu0 0.0
  %7244 = vmatpush1.msra.mxu0 0.0
  %7245 = vmatprep.subr.mxu0 0.0
  %7246 = vmatpush1.msra.mxu0 0.0
  %7247 = vmatprep.subr.mxu0 0.0
  %7248 = vmatpush1.msra.mxu0 0.0
  %7249 = vmatprep.subr.mxu0 0.0
  %7250 = vmatpush1.msra.mxu0 0.0
  %7251 = vmatprep.subr.mxu0 0.0
  %7252 = vmatpush1.msra.mxu0 0.0
  %7253 = vmatprep.subr.mxu0 0.0
  %7254 = vmatpush1.msra.mxu0 0.0
  %7255 = vmatprep.subr.mxu0 0.0
  %7256 = vmatpush1.msra.mxu0 0.0
  %7257 = vmatprep.subr.mxu0 0.0
  %7258 = vmatpush1.msra.mxu0 0.0
  %7259 = vmatprep.subr.mxu0 0.0
  %7260 = vmatpush1.msra.mxu0 0.0
  %7261 = vmatprep.subr.mxu0 0.0
  %7262 = vmatpush1.msra.mxu0 0.0
  %7263 = vmatprep.subr.mxu0 0.0
  %7264 = vmatpush1.msra.mxu0 0.0
  %7265 = vmatprep.subr.mxu0 0.0
  %7266 = vmatpush1.msra.mxu0 0.0
  %7267 = vmatprep.subr.mxu0 0.0
  %7268 = vmatpush1.msra.mxu0 0.0
  %7269 = vmatprep.subr.mxu0 0.0
  %7270 = vmatpush1.msra.mxu0 0.0
  %7271 = vmatprep.subr.mxu0 0.0
  %7272 = vmatpush1.msra.mxu0 0.0
  %7273 = vmatprep.subr.mxu0 0.0
  %7274 = vmatpush1.msra.mxu0 0.0
  %7275 = vmatprep.subr.mxu0 0.0
  %7276 = vmatpush1.msra.mxu0 0.0
  %7277 = vmatprep.subr.mxu0 0.0
  %7278 = vmatpush1.msra.mxu0 0.0
  %7279 = vmatprep.subr.mxu0 0.0
  %7280 = vmatpush1.msra.mxu0 0.0
  %7281 = vmatprep.subr.mxu0 0.0
  %7282 = vmatpush1.msra.mxu0 0.0
  %7283 = vmatprep.subr.mxu0 0.0
  %7284 = vmatpush1.msra.mxu0 0.0
  %7285 = vmatprep.mubr.f32.mxu0 0.0
  %7286 = vmatmul.mubr.f32.gmra.mrb[0].mxu0 %v7079
  %v7287 = vpop.f32.mrb[0].mxu0
  %v7288 = vadd.f32 %v5693, %v7287
  %v7289 = vpop.f32.mrb[0].mxu0
  %7290 = vdwg.mxu0
  %7291 = vmatprep.subr.mxu0 0.0
  %7292 = vmatpush1.msra.mxu0 %v5011
  %7293 = vmatprep.subr.mxu0 0.0
  %7294 = vmatpush1.msra.mxu0 %v5012
  %7295 = vmatprep.subr.mxu0 0.0
  %7296 = vmatpush1.msra.mxu0 %v5013
  %7297 = vmatprep.subr.mxu0 0.0
  %7298 = vmatpush1.msra.mxu0 %v5014
  %7299 = vmatprep.subr.mxu0 0.0
  %7300 = vmatpush1.msra.mxu0 0.0
  %7301 = vmatprep.subr.mxu0 0.0
  %7302 = vmatpush1.msra.mxu0 0.0
  %7303 = vmatprep.subr.mxu0 0.0
  %7304 = vmatpush1.msra.mxu0 0.0
  %7305 = vmatprep.subr.mxu0 0.0
  %7306 = vmatpush1.msra.mxu0 0.0
  %7307 = vmatprep.subr.mxu0 0.0
  %7308 = vmatpush1.msra.mxu0 0.0
  %7309 = vmatprep.subr.mxu0 0.0
  %7310 = vmatpush1.msra.mxu0 0.0
  %7311 = vmatprep.subr.mxu0 0.0
  %7312 = vmatpush1.msra.mxu0 0.0
  %7313 = vmatprep.subr.mxu0 0.0
  %7314 = vmatpush1.msra.mxu0 0.0
  %7315 = vmatprep.subr.mxu0 0.0
  %7316 = vmatpush1.msra.mxu0 0.0
  %7317 = vmatprep.subr.mxu0 0.0
  %7318 = vmatpush1.msra.mxu0 0.0
  %7319 = vmatprep.subr.mxu0 0.0
  %7320 = vmatpush1.msra.mxu0 0.0
  %7321 = vmatprep.subr.mxu0 0.0
  %7322 = vmatpush1.msra.mxu0 0.0
  %7323 = vmatprep.subr.mxu0 0.0
  %7324 = vmatpush1.msra.mxu0 0.0
  %7325 = vmatprep.subr.mxu0 0.0
  %7326 = vmatpush1.msra.mxu0 0.0
  %7327 = vmatprep.subr.mxu0 0.0
  %7328 = vmatpush1.msra.mxu0 0.0
  %7329 = vmatprep.subr.mxu0 0.0
  %7330 = vmatpush1.msra.mxu0 0.0
  %7331 = vmatprep.subr.mxu0 0.0
  %7332 = vmatpush1.msra.mxu0 0.0
  %7333 = vmatprep.subr.mxu0 0.0
  %7334 = vmatpush1.msra.mxu0 0.0
  %7335 = vmatprep.subr.mxu0 0.0
  %7336 = vmatpush1.msra.mxu0 0.0
  %7337 = vmatprep.subr.mxu0 0.0
  %7338 = vmatpush1.msra.mxu0 0.0
  %7339 = vmatprep.subr.mxu0 0.0
  %7340 = vmatpush1.msra.mxu0 0.0
  %7341 = vmatprep.subr.mxu0 0.0
  %7342 = vmatpush1.msra.mxu0 0.0
  %7343 = vmatprep.subr.mxu0 0.0
  %7344 = vmatpush1.msra.mxu0 0.0
  %7345 = vmatprep.subr.mxu0 0.0
  %7346 = vmatpush1.msra.mxu0 0.0
  %7347 = vmatprep.subr.mxu0 0.0
  %7348 = vmatpush1.msra.mxu0 0.0
  %7349 = vmatprep.subr.mxu0 0.0
  %7350 = vmatpush1.msra.mxu0 0.0
  %7351 = vmatprep.subr.mxu0 0.0
  %7352 = vmatpush1.msra.mxu0 0.0
  %7353 = vmatprep.subr.mxu0 0.0
  %7354 = vmatpush1.msra.mxu0 0.0
  %7355 = vmatprep.mubr.f32.mxu0 0.0
  %7356 = vmatmul.mubr.f32.gmra.mrb[0].mxu0 %v7005
  %v7357 = vpop.f32.mrb[0].mxu0
  %v7358 = vadd.f32 %v5841, %v7357
  %v7359 = vpop.f32.mrb[0].mxu0
  %7360 = vdwg.mxu0
  %7361 = vmatprep.subr.mxu0 0.0
  %7362 = vmatpush1.msra.mxu0 %v5023
  %7363 = vmatprep.subr.mxu0 0.0
  %7364 = vmatpush1.msra.mxu0 %v5024
  %7365 = vmatprep.subr.mxu0 0.0
  %7366 = vmatpush1.msra.mxu0 %v5025
  %7367 = vmatprep.subr.mxu0 0.0
  %7368 = vmatpush1.msra.mxu0 %v5026
  %7369 = vmatprep.subr.mxu0 0.0
  %7370 = vmatpush1.msra.mxu0 0.0
  %7371 = vmatprep.subr.mxu0 0.0
  %7372 = vmatpush1.msra.mxu0 0.0
  %7373 = vmatprep.subr.mxu0 0.0
  %7374 = vmatpush1.msra.mxu0 0.0
  %7375 = vmatprep.subr.mxu0 0.0
  %7376 = vmatpush1.msra.mxu0 0.0
  %7377 = vmatprep.subr.mxu0 0.0
  %7378 = vmatpush1.msra.mxu0 0.0
  %7379 = vmatprep.subr.mxu0 0.0
  %7380 = vmatpush1.msra.mxu0 0.0
  %7381 = vmatprep.subr.mxu0 0.0
  %7382 = vmatpush1.msra.mxu0 0.0
  %7383 = vmatprep.subr.mxu0 0.0
  %7384 = vmatpush1.msra.mxu0 0.0
  %7385 = vmatprep.subr.mxu0 0.0
  %7386 = vmatpush1.msra.mxu0 0.0
  %7387 = vmatprep.subr.mxu0 0.0
  %7388 = vmatpush1.msra.mxu0 0.0
  %7389 = vmatprep.subr.mxu0 0.0
  %7390 = vmatpush1.msra.mxu0 0.0
  %7391 = vmatprep.subr.mxu0 0.0
  %7392 = vmatpush1.msra.mxu0 0.0
  %7393 = vmatprep.subr.mxu0 0.0
  %7394 = vmatpush1.msra.mxu0 0.0
  %7395 = vmatprep.subr.mxu0 0.0
  %7396 = vmatpush1.msra.mxu0 0.0
  %7397 = vmatprep.subr.mxu0 0.0
  %7398 = vmatpush1.msra.mxu0 0.0
  %7399 = vmatprep.subr.mxu0 0.0
  %7400 = vmatpush1.msra.mxu0 0.0
  %7401 = vmatprep.subr.mxu0 0.0
  %7402 = vmatpush1.msra.mxu0 0.0
  %7403 = vmatprep.subr.mxu0 0.0
  %7404 = vmatpush1.msra.mxu0 0.0
  %7405 = vmatprep.subr.mxu0 0.0
  %7406 = vmatpush1.msra.mxu0 0.0
  %7407 = vmatprep.subr.mxu0 0.0
  %7408 = vmatpush1.msra.mxu0 0.0
  %7409 = vmatprep.subr.mxu0 0.0
  %7410 = vmatpush1.msra.mxu0 0.0
  %7411 = vmatprep.subr.mxu0 0.0
  %7412 = vmatpush1.msra.mxu0 0.0
  %7413 = vmatprep.subr.mxu0 0.0
  %7414 = vmatpush1.msra.mxu0 0.0
  %7415 = vmatprep.subr.mxu0 0.0
  %7416 = vmatpush1.msra.mxu0 0.0
  %7417 = vmatprep.subr.mxu0 0.0
  %7418 = vmatpush1.msra.mxu0 0.0
  %7419 = vmatprep.subr.mxu0 0.0
  %7420 = vmatpush1.msra.mxu0 0.0
  %7421 = vmatprep.subr.mxu0 0.0
  %7422 = vmatpush1.msra.mxu0 0.0
  %7423 = vmatprep.subr.mxu0 0.0
  %7424 = vmatpush1.msra.mxu0 0.0
  %7425 = vmatprep.mubr.f32.mxu0 0.0
  %7426 = vmatmul.mubr.f32.gmra.mrb[0].mxu0 %v7079
  %v7427 = vpop.f32.mrb[0].mxu0
  %v7428 = vadd.f32 %v5845, %v7427
  %v7429 = vpop.f32.mrb[0].mxu0
  %7430 = vdwg.mxu0
  %v7433 = vrot.slane %v7074, 2
  %v7434 = vrot.slane %v7148, 2
  %v7437 = vadd.f32 %v5119, %v7433
  %v7438 = vadd.f32 %v6457, %v7434
  %v7439 = vmul.f32 %v7437, 0.5
  %v7440 = vmul.f32 %v7438, 0.5
  %v7441 = vtanh.pop %v7439
  %v7442 = vtanh.pop %v7440
  %v7443 = vmul.f32 %v7441, 0.5
  %v7444 = vmul.f32 %v7442, 0.5
  %v7445 = vadd.f32 %v7443, 0.5
  %v7446 = vadd.f32 %v7444, 0.5
  %v7449 = vrot.slane %v7218, 2
  %v7450 = vrot.slane %v7288, 2
  %v7453 = vadd.f32 %v5200, %v7449
  %v7454 = vadd.f32 %v6475, %v7450
  %v7455 = vmul.f32 %v7453, 0.5
  %v7456 = vmul.f32 %v7454, 0.5
  %v7457 = vtanh.pop %v7455
  %v7458 = vtanh.pop %v7456
  %v7459 = vmul.f32 %v7457, 0.5
  %v7460 = vmul.f32 %v7458, 0.5
  %v7461 = vadd.f32 %v7459, 0.5
  %v7462 = vadd.f32 %v7460, 0.5
  %v7465 = vrot.slane %v7358, 2
  %v7466 = vrot.slane %v7428, 2
  %v7469 = vmul.f32 %v7445, %v7465
  %v7470 = vmul.f32 %v7446, %v7466
  %v7471 = vadd.f32 %v5281, %v7469
  %v7472 = vadd.f32 %v6493, %v7470
  %v7473 = vtanh.pop %v7471
  %v7474 = vtanh.pop %v7472
  %v7475 = vsub.f32 1.0, %v7461
  %v7476 = vsub.f32 1.0, %v7462
  %v7477 = vmul.f32 %v7475, %v7473
  %v7478 = vmul.f32 %v7476, %v7474
  %v7479 = vrot.slane %v7001, 6
  %v7480 = vrot.slane %v7002, 6
  %v7483 = vmul.f32 %v7461, %v7479
  %v7484 = vmul.f32 %v7462, %v7480
  %v7485 = vadd.f32 %v7477, %v7483
  %v7486 = vadd.f32 %v7478, %v7484
  %v7488 = vrot.slane %v7485, 6
  %v7489 = vsel %vm1032, %v7488, 0
  %7491 = vmatprep.subr.mxu0 0.0
  %7492 = vmatpush1.msra.mxu0 %v5003
  %7493 = vmatprep.subr.mxu0 0.0
  %7494 = vmatpush1.msra.mxu0 %v5004
  %7495 = vmatprep.subr.mxu0 0.0
  %7496 = vmatpush1.msra.mxu0 %v5005
  %7497 = vmatprep.subr.mxu0 0.0
  %7498 = vmatpush1.msra.mxu0 %v5006
  %7499 = vmatprep.subr.mxu0 0.0
  %7500 = vmatpush1.msra.mxu0 0.0
  %7501 = vmatprep.subr.mxu0 0.0
  %7502 = vmatpush1.msra.mxu0 0.0
  %7503 = vmatprep.subr.mxu0 0.0
  %7504 = vmatpush1.msra.mxu0 0.0
  %7505 = vmatprep.subr.mxu0 0.0
  %7506 = vmatpush1.msra.mxu0 0.0
  %7507 = vmatprep.subr.mxu0 0.0
  %7508 = vmatpush1.msra.mxu0 0.0
  %7509 = vmatprep.subr.mxu0 0.0
  %7510 = vmatpush1.msra.mxu0 0.0
  %7511 = vmatprep.subr.mxu0 0.0
  %7512 = vmatpush1.msra.mxu0 0.0
  %7513 = vmatprep.subr.mxu0 0.0
  %7514 = vmatpush1.msra.mxu0 0.0
  %7515 = vmatprep.subr.mxu0 0.0
  %7516 = vmatpush1.msra.mxu0 0.0
  %7517 = vmatprep.subr.mxu0 0.0
  %7518 = vmatpush1.msra.mxu0 0.0
  %7519 = vmatprep.subr.mxu0 0.0
  %7520 = vmatpush1.msra.mxu0 0.0
  %7521 = vmatprep.subr.mxu0 0.0
  %7522 = vmatpush1.msra.mxu0 0.0
  %7523 = vmatprep.subr.mxu0 0.0
  %7524 = vmatpush1.msra.mxu0 0.0
  %7525 = vmatprep.subr.mxu0 0.0
  %7526 = vmatpush1.msra.mxu0 0.0
  %7527 = vmatprep.subr.mxu0 0.0
  %7528 = vmatpush1.msra.mxu0 0.0
  %7529 = vmatprep.subr.mxu0 0.0
  %7530 = vmatpush1.msra.mxu0 0.0
  %7531 = vmatprep.subr.mxu0 0.0
  %7532 = vmatpush1.msra.mxu0 0.0
  %7533 = vmatprep.subr.mxu0 0.0
  %7534 = vmatpush1.msra.mxu0 0.0
  %7535 = vmatprep.subr.mxu0 0.0
  %7536 = vmatpush1.msra.mxu0 0.0
  %7537 = vmatprep.subr.mxu0 0.0
  %7538 = vmatpush1.msra.mxu0 0.0
  %7539 = vmatprep.subr.mxu0 0.0
  %7540 = vmatpush1.msra.mxu0 0.0
  %7541 = vmatprep.subr.mxu0 0.0
  %7542 = vmatpush1.msra.mxu0 0.0
  %7543 = vmatprep.subr.mxu0 0.0
  %7544 = vmatpush1.msra.mxu0 0.0
  %7545 = vmatprep.subr.mxu0 0.0
  %7546 = vmatpush1.msra.mxu0 0.0
  %7547 = vmatprep.subr.mxu0 0.0
  %7548 = vmatpush1.msra.mxu0 0.0
  %7549 = vmatprep.subr.mxu0 0.0
  %7550 = vmatpush1.msra.mxu0 0.0
  %7551 = vmatprep.subr.mxu0 0.0
  %7552 = vmatpush1.msra.mxu0 0.0
  %7553 = vmatprep.subr.mxu0 0.0
  %7554 = vmatpush1.msra.mxu0 0.0
  %7555 = vmatprep.mubr.f32.mxu0 0.0
  %7556 = vmatmul.mubr.f32.gmra.mrb[0].mxu0 %v7489
  %v7557 = vpop.f32.mrb[0].mxu0
  %v7558 = vadd.f32 %v5537, %v7557
  %v7559 = vpop.f32.mrb[0].mxu0
  %7560 = vdwg.mxu0
  %v7562 = vrot.slane %v7486, 6
  %v7563 = vsel %vm1032, %v7562, 0
  %7565 = vmatprep.subr.mxu0 0.0
  %7566 = vmatpush1.msra.mxu0 %v5015
  %7567 = vmatprep.subr.mxu0 0.0
  %7568 = vmatpush1.msra.mxu0 %v5016
  %7569 = vmatprep.subr.mxu0 0.0
  %7570 = vmatpush1.msra.mxu0 %v5017
  %7571 = vmatprep.subr.mxu0 0.0
  %7572 = vmatpush1.msra.mxu0 %v5018
  %7573 = vmatprep.subr.mxu0 0.0
  %7574 = vmatpush1.msra.mxu0 0.0
  %7575 = vmatprep.subr.mxu0 0.0
  %7576 = vmatpush1.msra.mxu0 0.0
  %7577 = vmatprep.subr.mxu0 0.0
  %7578 = vmatpush1.msra.mxu0 0.0
  %7579 = vmatprep.subr.mxu0 0.0
  %7580 = vmatpush1.msra.mxu0 0.0
  %7581 = vmatprep.subr.mxu0 0.0
  %7582 = vmatpush1.msra.mxu0 0.0
  %7583 = vmatprep.subr.mxu0 0.0
  %7584 = vmatpush1.msra.mxu0 0.0
  %7585 = vmatprep.subr.mxu0 0.0
  %7586 = vmatpush1.msra.mxu0 0.0
  %7587 = vmatprep.subr.mxu0 0.0
  %7588 = vmatpush1.msra.mxu0 0.0
  %7589 = vmatprep.subr.mxu0 0.0
  %7590 = vmatpush1.msra.mxu0 0.0
  %7591 = vmatprep.subr.mxu0 0.0
  %7592 = vmatpush1.msra.mxu0 0.0
  %7593 = vmatprep.subr.mxu0 0.0
  %7594 = vmatpush1.msra.mxu0 0.0
  %7595 = vmatprep.subr.mxu0 0.0
  %7596 = vmatpush1.msra.mxu0 0.0
  %7597 = vmatprep.subr.mxu0 0.0
  %7598 = vmatpush1.msra.mxu0 0.0
  %7599 = vmatprep.subr.mxu0 0.0
  %7600 = vmatpush1.msra.mxu0 0.0
  %7601 = vmatprep.subr.mxu0 0.0
  %7602 = vmatpush1.msra.mxu0 0.0
  %7603 = vmatprep.subr.mxu0 0.0
  %7604 = vmatpush1.msra.mxu0 0.0
  %7605 = vmatprep.subr.mxu0 0.0
  %7606 = vmatpush1.msra.mxu0 0.0
  %7607 = vmatprep.subr.mxu0 0.0
  %7608 = vmatpush1.msra.mxu0 0.0
  %7609 = vmatprep.subr.mxu0 0.0
  %7610 = vmatpush1.msra.mxu0 0.0
  %7611 = vmatprep.subr.mxu0 0.0
  %7612 = vmatpush1.msra.mxu0 0.0
  %7613 = vmatprep.subr.mxu0 0.0
  %7614 = vmatpush1.msra.mxu0 0.0
  %7615 = vmatprep.subr.mxu0 0.0
  %7616 = vmatpush1.msra.mxu0 0.0
  %7617 = vmatprep.subr.mxu0 0.0
  %7618 = vmatpush1.msra.mxu0 0.0
  %7619 = vmatprep.subr.mxu0 0.0
  %7620 = vmatpush1.msra.mxu0 0.0
  %7621 = vmatprep.subr.mxu0 0.0
  %7622 = vmatpush1.msra.mxu0 0.0
  %7623 = vmatprep.subr.mxu0 0.0
  %7624 = vmatpush1.msra.mxu0 0.0
  %7625 = vmatprep.subr.mxu0 0.0
  %7626 = vmatpush1.msra.mxu0 0.0
  %7627 = vmatprep.subr.mxu0 0.0
  %7628 = vmatpush1.msra.mxu0 0.0
  %7629 = vmatprep.mubr.f32.mxu0 0.0
  %7630 = vmatmul.mubr.f32.gmra.mrb[0].mxu0 %v7563
  %v7631 = vpop.f32.mrb[0].mxu0
  %v7632 = vadd.f32 %v5541, %v7631
  %v7633 = vpop.f32.mrb[0].mxu0
  %7634 = vdwg.mxu0
  %7635 = vmatprep.subr.mxu0 0.0
  %7636 = vmatpush1.msra.mxu0 %v5007
  %7637 = vmatprep.subr.mxu0 0.0
  %7638 = vmatpush1.msra.mxu0 %v5008
  %7639 = vmatprep.subr.mxu0 0.0
  %7640 = vmatpush1.msra.mxu0 %v5009
  %7641 = vmatprep.subr.mxu0 0.0
  %7642 = vmatpush1.msra.mxu0 %v5010
  %7643 = vmatprep.subr.mxu0 0.0
  %7644 = vmatpush1.msra.mxu0 0.0
  %7645 = vmatprep.subr.mxu0 0.0
  %7646 = vmatpush1.msra.mxu0 0.0
  %7647 = vmatprep.subr.mxu0 0.0
  %7648 = vmatpush1.msra.mxu0 0.0
  %7649 = vmatprep.subr.mxu0 0.0
  %7650 = vmatpush1.msra.mxu0 0.0
  %7651 = vmatprep.subr.mxu0 0.0
  %7652 = vmatpush1.msra.mxu0 0.0
  %7653 = vmatprep.subr.mxu0 0.0
  %7654 = vmatpush1.msra.mxu0 0.0
  %7655 = vmatprep.subr.mxu0 0.0
  %7656 = vmatpush1.msra.mxu0 0.0
  %7657 = vmatprep.subr.mxu0 0.0
  %7658 = vmatpush1.msra.mxu0 0.0
  %7659 = vmatprep.subr.mxu0 0.0
  %7660 = vmatpush1.msra.mxu0 0.0
  %7661 = vmatprep.subr.mxu0 0.0
  %7662 = vmatpush1.msra.mxu0 0.0
  %7663 = vmatprep.subr.mxu0 0.0
  %7664 = vmatpush1.msra.mxu0 0.0
  %7665 = vmatprep.subr.mxu0 0.0
  %7666 = vmatpush1.msra.mxu0 0.0
  %7667 = vmatprep.subr.mxu0 0.0
  %7668 = vmatpush1.msra.mxu0 0.0
  %7669 = vmatprep.subr.mxu0 0.0
  %7670 = vmatpush1.msra.mxu0 0.0
  %7671 = vmatprep.subr.mxu0 0.0
  %7672 = vmatpush1.msra.mxu0 0.0
  %7673 = vmatprep.subr.mxu0 0.0
  %7674 = vmatpush1.msra.mxu0 0.0
  %7675 = vmatprep.subr.mxu0 0.0
  %7676 = vmatpush1.msra.mxu0 0.0
  %7677 = vmatprep.subr.mxu0 0.0
  %7678 = vmatpush1.msra.mxu0 0.0
  %7679 = vmatprep.subr.mxu0 0.0
  %7680 = vmatpush1.msra.mxu0 0.0
  %7681 = vmatprep.subr.mxu0 0.0
  %7682 = vmatpush1.msra.mxu0 0.0
  %7683 = vmatprep.subr.mxu0 0.0
  %7684 = vmatpush1.msra.mxu0 0.0
  %7685 = vmatprep.subr.mxu0 0.0
  %7686 = vmatpush1.msra.mxu0 0.0
  %7687 = vmatprep.subr.mxu0 0.0
  %7688 = vmatpush1.msra.mxu0 0.0
  %7689 = vmatprep.subr.mxu0 0.0
  %7690 = vmatpush1.msra.mxu0 0.0
  %7691 = vmatprep.subr.mxu0 0.0
  %7692 = vmatpush1.msra.mxu0 0.0
  %7693 = vmatprep.subr.mxu0 0.0
  %7694 = vmatpush1.msra.mxu0 0.0
  %7695 = vmatprep.subr.mxu0 0.0
  %7696 = vmatpush1.msra.mxu0 0.0
  %7697 = vmatprep.subr.mxu0 0.0
  %7698 = vmatpush1.msra.mxu0 0.0
  %7699 = vmatprep.mubr.f32.mxu0 0.0
  %7700 = vmatmul.mubr.f32.gmra.mrb[0].mxu0 %v7489
  %v7701 = vpop.f32.mrb[0].mxu0
  %v7702 = vadd.f32 %v5689, %v7701
  %v7703 = vpop.f32.mrb[0].mxu0
  %7704 = vdwg.mxu0
  %7705 = vmatprep.subr.mxu0 0.0
  %7706 = vmatpush1.msra.mxu0 %v5019
  %7707 = vmatprep.subr.mxu0 0.0
  %7708 = vmatpush1.msra.mxu0 %v5020
  %7709 = vmatprep.subr.mxu0 0.0
  %7710 = vmatpush1.msra.mxu0 %v5021
  %7711 = vmatprep.subr.mxu0 0.0
  %7712 = vmatpush1.msra.mxu0 %v5022
  %7713 = vmatprep.subr.mxu0 0.0
  %7714 = vmatpush1.msra.mxu0 0.0
  %7715 = vmatprep.subr.mxu0 0.0
  %7716 = vmatpush1.msra.mxu0 0.0
  %7717 = vmatprep.subr.mxu0 0.0
  %7718 = vmatpush1.msra.mxu0 0.0
  %7719 = vmatprep.subr.mxu0 0.0
  %7720 = vmatpush1.msra.mxu0 0.0
  %7721 = vmatprep.subr.mxu0 0.0
  %7722 = vmatpush1.msra.mxu0 0.0
  %7723 = vmatprep.subr.mxu0 0.0
  %7724 = vmatpush1.msra.mxu0 0.0
  %7725 = vmatprep.subr.mxu0 0.0
  %7726 = vmatpush1.msra.mxu0 0.0
  %7727 = vmatprep.subr.mxu0 0.0
  %7728 = vmatpush1.msra.mxu0 0.0
  %7729 = vmatprep.subr.mxu0 0.0
  %7730 = vmatpush1.msra.mxu0 0.0
  %7731 = vmatprep.subr.mxu0 0.0
  %7732 = vmatpush1.msra.mxu0 0.0
  %7733 = vmatprep.subr.mxu0 0.0
  %7734 = vmatpush1.msra.mxu0 0.0
  %7735 = vmatprep.subr.mxu0 0.0
  %7736 = vmatpush1.msra.mxu0 0.0
  %7737 = vmatprep.subr.mxu0 0.0
  %7738 = vmatpush1.msra.mxu0 0.0
  %7739 = vmatprep.subr.mxu0 0.0
  %7740 = vmatpush1.msra.mxu0 0.0
  %7741 = vmatprep.subr.mxu0 0.0
  %7742 = vmatpush1.msra.mxu0 0.0
  %7743 = vmatprep.subr.mxu0 0.0
  %7744 = vmatpush1.msra.mxu0 0.0
  %7745 = vmatprep.subr.mxu0 0.0
  %7746 = vmatpush1.msra.mxu0 0.0
  %7747 = vmatprep.subr.mxu0 0.0
  %7748 = vmatpush1.msra.mxu0 0.0
  %7749 = vmatprep.subr.mxu0 0.0
  %7750 = vmatpush1.msra.mxu0 0.0
  %7751 = vmatprep.subr.mxu0 0.0
  %7752 = vmatpush1.msra.mxu0 0.0
  %7753 = vmatprep.subr.mxu0 0.0
  %7754 = vmatpush1.msra.mxu0 0.0
  %7755 = vmatprep.subr.mxu0 0.0
  %7756 = vmatpush1.msra.mxu0 0.0
  %7757 = vmatprep.subr.mxu0 0.0
  %7758 = vmatpush1.msra.mxu0 0.0
  %7759 = vmatprep.subr.mxu0 0.0
  %7760 = vmatpush1.msra.mxu0 0.0
  %7761 = vmatprep.subr.mxu0 0.0
  %7762 = vmatpush1.msra.mxu0 0.0
  %7763 = vmatprep.subr.mxu0 0.0
  %7764 = vmatpush1.msra.mxu0 0.0
  %7765 = vmatprep.subr.mxu0 0.0
  %7766 = vmatpush1.msra.mxu0 0.0
  %7767 = vmatprep.subr.mxu0 0.0
  %7768 = vmatpush1.msra.mxu0 0.0
  %7769 = vmatprep.mubr.f32.mxu0 0.0
  %7770 = vmatmul.mubr.f32.gmra.mrb[0].mxu0 %v7563
  %v7771 = vpop.f32.mrb[0].mxu0
  %v7772 = vadd.f32 %v5693, %v7771
  %v7773 = vpop.f32.mrb[0].mxu0
  %7774 = vdwg.mxu0
  %7775 = vmatprep.subr.mxu0 0.0
  %7776 = vmatpush1.msra.mxu0 %v5011
  %7777 = vmatprep.subr.mxu0 0.0
  %7778 = vmatpush1.msra.mxu0 %v5012
  %7779 = vmatprep.subr.mxu0 0.0
  %7780 = vmatpush1.msra.mxu0 %v5013
  %7781 = vmatprep.subr.mxu0 0.0
  %7782 = vmatpush1.msra.mxu0 %v5014
  %7783 = vmatprep.subr.mxu0 0.0
  %7784 = vmatpush1.msra.mxu0 0.0
  %7785 = vmatprep.subr.mxu0 0.0
  %7786 = vmatpush1.msra.mxu0 0.0
  %7787 = vmatprep.subr.mxu0 0.0
  %7788 = vmatpush1.msra.mxu0 0.0
  %7789 = vmatprep.subr.mxu0 0.0
  %7790 = vmatpush1.msra.mxu0 0.0
  %7791 = vmatprep.subr.mxu0 0.0
  %7792 = vmatpush1.msra.mxu0 0.0
  %7793 = vmatprep.subr.mxu0 0.0
  %7794 = vmatpush1.msra.mxu0 0.0
  %7795 = vmatprep.subr.mxu0 0.0
  %7796 = vmatpush1.msra.mxu0 0.0
  %7797 = vmatprep.subr.mxu0 0.0
  %7798 = vmatpush1.msra.mxu0 0.0
  %7799 = vmatprep.subr.mxu0 0.0
  %7800 = vmatpush1.msra.mxu0 0.0
  %7801 = vmatprep.subr.mxu0 0.0
  %7802 = vmatpush1.msra.mxu0 0.0
  %7803 = vmatprep.subr.mxu0 0.0
  %7804 = vmatpush1.msra.mxu0 0.0
  %7805 = vmatprep.subr.mxu0 0.0
  %7806 = vmatpush1.msra.mxu0 0.0
  %7807 = vmatprep.subr.mxu0 0.0
  %7808 = vmatpush1.msra.mxu0 0.0
  %7809 = vmatprep.subr.mxu0 0.0
  %7810 = vmatpush1.msra.mxu0 0.0
  %7811 = vmatprep.subr.mxu0 0.0
  %7812 = vmatpush1.msra.mxu0 0.0
  %7813 = vmatprep.subr.mxu0 0.0
  %7814 = vmatpush1.msra.mxu0 0.0
  %7815 = vmatprep.subr.mxu0 0.0
  %7816 = vmatpush1.msra.mxu0 0.0
  %7817 = vmatprep.subr.mxu0 0.0
  %7818 = vmatpush1.msra.mxu0 0.0
  %7819 = vmatprep.subr.mxu0 0.0
  %7820 = vmatpush1.msra.mxu0 0.0
  %7821 = vmatprep.subr.mxu0 0.0
  %7822 = vmatpush1.msra.mxu0 0.0
  %7823 = vmatprep.subr.mxu0 0.0
  %7824 = vmatpush1.msra.mxu0 0.0
  %7825 = vmatprep.subr.mxu0 0.0
  %7826 = vmatpush1.msra.mxu0 0.0
  %7827 = vmatprep.subr.mxu0 0.0
  %7828 = vmatpush1.msra.mxu0 0.0
  %7829 = vmatprep.subr.mxu0 0.0
  %7830 = vmatpush1.msra.mxu0 0.0
  %7831 = vmatprep.subr.mxu0 0.0
  %7832 = vmatpush1.msra.mxu0 0.0
  %7833 = vmatprep.subr.mxu0 0.0
  %7834 = vmatpush1.msra.mxu0 0.0
  %7835 = vmatprep.subr.mxu0 0.0
  %7836 = vmatpush1.msra.mxu0 0.0
  %7837 = vmatprep.subr.mxu0 0.0
  %7838 = vmatpush1.msra.mxu0 0.0
  %7839 = vmatprep.mubr.f32.mxu0 0.0
  %7840 = vmatmul.mubr.f32.gmra.mrb[0].mxu0 %v7489
  %v7841 = vpop.f32.mrb[0].mxu0
  %v7842 = vadd.f32 %v5841, %v7841
  %v7843 = vpop.f32.mrb[0].mxu0
  %7844 = vdwg.mxu0
  %7845 = vmatprep.subr.mxu0 0.0
  %7846 = vmatpush1.msra.mxu0 %v5023
  %7847 = vmatprep.subr.mxu0 0.0
  %7848 = vmatpush1.msra.mxu0 %v5024
  %7849 = vmatprep.subr.mxu0 0.0
  %7850 = vmatpush1.msra.mxu0 %v5025
  %7851 = vmatprep.subr.mxu0 0.0
  %7852 = vmatpush1.msra.mxu0 %v5026
  %7853 = vmatprep.subr.mxu0 0.0
  %7854 = vmatpush1.msra.mxu0 0.0
  %7855 = vmatprep.subr.mxu0 0.0
  %7856 = vmatpush1.msra.mxu0 0.0
  %7857 = vmatprep.subr.mxu0 0.0
  %7858 = vmatpush1.msra.mxu0 0.0
  %7859 = vmatprep.subr.mxu0 0.0
  %7860 = vmatpush1.msra.mxu0 0.0
  %7861 = vmatprep.subr.mxu0 0.0
  %7862 = vmatpush1.msra.mxu0 0.0
  %7863 = vmatprep.subr.mxu0 0.0
  %7864 = vmatpush1.msra.mxu0 0.0
  %7865 = vmatprep.subr.mxu0 0.0
  %7866 = vmatpush1.msra.mxu0 0.0
  %7867 = vmatprep.subr.mxu0 0.0
  %7868 = vmatpush1.msra.mxu0 0.0
  %7869 = vmatprep.subr.mxu0 0.0
  %7870 = vmatpush1.msra.mxu0 0.0
  %7871 = vmatprep.subr.mxu0 0.0
  %7872 = vmatpush1.msra.mxu0 0.0
  %7873 = vmatprep.subr.mxu0 0.0
  %7874 = vmatpush1.msra.mxu0 0.0
  %7875 = vmatprep.subr.mxu0 0.0
  %7876 = vmatpush1.msra.mxu0 0.0
  %7877 = vmatprep.subr.mxu0 0.0
  %7878 = vmatpush1.msra.mxu0 0.0
  %7879 = vmatprep.subr.mxu0 0.0
  %7880 = vmatpush1.msra.mxu0 0.0
  %7881 = vmatprep.subr.mxu0 0.0
  %7882 = vmatpush1.msra.mxu0 0.0
  %7883 = vmatprep.subr.mxu0 0.0
  %7884 = vmatpush1.msra.mxu0 0.0
  %7885 = vmatprep.subr.mxu0 0.0
  %7886 = vmatpush1.msra.mxu0 0.0
  %7887 = vmatprep.subr.mxu0 0.0
  %7888 = vmatpush1.msra.mxu0 0.0
  %7889 = vmatprep.subr.mxu0 0.0
  %7890 = vmatpush1.msra.mxu0 0.0
  %7891 = vmatprep.subr.mxu0 0.0
  %7892 = vmatpush1.msra.mxu0 0.0
  %7893 = vmatprep.subr.mxu0 0.0
  %7894 = vmatpush1.msra.mxu0 0.0
  %7895 = vmatprep.subr.mxu0 0.0
  %7896 = vmatpush1.msra.mxu0 0.0
  %7897 = vmatprep.subr.mxu0 0.0
  %7898 = vmatpush1.msra.mxu0 0.0
  %7899 = vmatprep.subr.mxu0 0.0
  %7900 = vmatpush1.msra.mxu0 0.0
  %7901 = vmatprep.subr.mxu0 0.0
  %7902 = vmatpush1.msra.mxu0 0.0
  %7903 = vmatprep.subr.mxu0 0.0
  %7904 = vmatpush1.msra.mxu0 0.0
  %7905 = vmatprep.subr.mxu0 0.0
  %7906 = vmatpush1.msra.mxu0 0.0
  %7907 = vmatprep.subr.mxu0 0.0
  %7908 = vmatpush1.msra.mxu0 0.0
  %7909 = vmatprep.mubr.f32.mxu0 0.0
  %7910 = vmatmul.mubr.f32.gmra.mrb[0].mxu0 %v7563
  %v7911 = vpop.f32.mrb[0].mxu0
  %v7912 = vadd.f32 %v5845, %v7911
  %v7913 = vpop.f32.mrb[0].mxu0
  %7914 = vdwg.mxu0
  %v7916 = vrot.slane %v5362, 6
  %v7918 = vadd.f32 %v5124, %v7558
  %v7919 = vadd.f32 %v7916, %v7632
  %v7920 = vmul.f32 %v7918, 0.5
  %v7921 = vmul.f32 %v7919, 0.5
  %v7922 = vtanh.pop %v7920
  %v7923 = vtanh.pop %v7921
  %v7924 = vmul.f32 %v7922, 0.5
  %v7925 = vmul.f32 %v7923, 0.5
  %v7926 = vadd.f32 %v7924, 0.5
  %v7927 = vadd.f32 %v7925, 0.5
  %v7929 = vrot.slane %v5443, 6
  %v7931 = vadd.f32 %v5205, %v7702
  %v7932 = vadd.f32 %v7929, %v7772
  %v7933 = vmul.f32 %v7931, 0.5
  %v7934 = vmul.f32 %v7932, 0.5
  %v7935 = vtanh.pop %v7933
  %v7936 = vtanh.pop %v7934
  %v7937 = vmul.f32 %v7935, 0.5
  %v7938 = vmul.f32 %v7936, 0.5
  %v7939 = vadd.f32 %v7937, 0.5
  %v7940 = vadd.f32 %v7938, 0.5
  %v7942 = vrot.slane %v5524, 6
  %v7944 = vmul.f32 %v7926, %v7842
  %v7945 = vmul.f32 %v7927, %v7912
  %v7946 = vadd.f32 %v5286, %v7944
  %v7947 = vadd.f32 %v7942, %v7945
  %v7948 = vtanh.pop %v7946
  %v7949 = vtanh.pop %v7947
  %v7950 = vsub.f32 1.0, %v7939
  %v7951 = vsub.f32 1.0, %v7940
  %v7952 = vmul.f32 %v7950, %v7948
  %v7953 = vmul.f32 %v7951, %v7949
  %v7956 = vmul.f32 %v7939, %v7488
  %v7957 = vmul.f32 %v7940, %v7562
  %v7958 = vadd.f32 %v7952, %v7956
  %v7959 = vadd.f32 %v7953, %v7957
  %v7961 = vsel %vm1032, %v7958, 0
  %7963 = vmatprep.subr.mxu0 0.0
  %7964 = vmatpush1.msra.mxu0 %v5003
  %7965 = vmatprep.subr.mxu0 0.0
  %7966 = vmatpush1.msra.mxu0 %v5004
  %7967 = vmatprep.subr.mxu0 0.0
  %7968 = vmatpush1.msra.mxu0 %v5005
  %7969 = vmatprep.subr.mxu0 0.0
  %7970 = vmatpush1.msra.mxu0 %v5006
  %7971 = vmatprep.subr.mxu0 0.0
  %7972 = vmatpush1.msra.mxu0 0.0
  %7973 = vmatprep.subr.mxu0 0.0
  %7974 = vmatpush1.msra.mxu0 0.0
  %7975 = vmatprep.subr.mxu0 0.0
  %7976 = vmatpush1.msra.mxu0 0.0
  %7977 = vmatprep.subr.mxu0 0.0
  %7978 = vmatpush1.msra.mxu0 0.0
  %7979 = vmatprep.subr.mxu0 0.0
  %7980 = vmatpush1.msra.mxu0 0.0
  %7981 = vmatprep.subr.mxu0 0.0
  %7982 = vmatpush1.msra.mxu0 0.0
  %7983 = vmatprep.subr.mxu0 0.0
  %7984 = vmatpush1.msra.mxu0 0.0
  %7985 = vmatprep.subr.mxu0 0.0
  %7986 = vmatpush1.msra.mxu0 0.0
  %7987 = vmatprep.subr.mxu0 0.0
  %7988 = vmatpush1.msra.mxu0 0.0
  %7989 = vmatprep.subr.mxu0 0.0
  %7990 = vmatpush1.msra.mxu0 0.0
  %7991 = vmatprep.subr.mxu0 0.0
  %7992 = vmatpush1.msra.mxu0 0.0
  %7993 = vmatprep.subr.mxu0 0.0
  %7994 = vmatpush1.msra.mxu0 0.0
  %7995 = vmatprep.subr.mxu0 0.0
  %7996 = vmatpush1.msra.mxu0 0.0
  %7997 = vmatprep.subr.mxu0 0.0
  %7998 = vmatpush1.msra.mxu0 0.0
  %7999 = vmatprep.subr.mxu0 0.0
  %8000 = vmatpush1.msra.mxu0 0.0
  %8001 = vmatprep.subr.mxu0 0.0
  %8002 = vmatpush1.msra.mxu0 0.0
  %8003 = vmatprep.subr.mxu0 0.0
  %8004 = vmatpush1.msra.mxu0 0.0
  %8005 = vmatprep.subr.mxu0 0.0
  %8006 = vmatpush1.msra.mxu0 0.0
  %8007 = vmatprep.subr.mxu0 0.0
  %8008 = vmatpush1.msra.mxu0 0.0
  %8009 = vmatprep.subr.mxu0 0.0
  %8010 = vmatpush1.msra.mxu0 0.0
  %8011 = vmatprep.subr.mxu0 0.0
  %8012 = vmatpush1.msra.mxu0 0.0
  %8013 = vmatprep.subr.mxu0 0.0
  %8014 = vmatpush1.msra.mxu0 0.0
  %8015 = vmatprep.subr.mxu0 0.0
  %8016 = vmatpush1.msra.mxu0 0.0
  %8017 = vmatprep.subr.mxu0 0.0
  %8018 = vmatpush1.msra.mxu0 0.0
  %8019 = vmatprep.subr.mxu0 0.0
  %8020 = vmatpush1.msra.mxu0 0.0
  %8021 = vmatprep.subr.mxu0 0.0
  %8022 = vmatpush1.msra.mxu0 0.0
  %8023 = vmatprep.subr.mxu0 0.0
  %8024 = vmatpush1.msra.mxu0 0.0
  %8025 = vmatprep.subr.mxu0 0.0
  %8026 = vmatpush1.msra.mxu0 0.0
  %8027 = vmatprep.mubr.f32.mxu0 0.0
  %8028 = vmatmul.mubr.f32.gmra.mrb[0].mxu0 %v7961
  %v8029 = vpop.f32.mrb[0].mxu0
  %v8030 = vadd.f32 %v5537, %v8029
  %v8031 = vpop.f32.mrb[0].mxu0
  %8032 = vdwg.mxu0
  %v8034 = vsel %vm1032, %v7959, 0
  %8036 = vmatprep.subr.mxu0 0.0
  %8037 = vmatpush1.msra.mxu0 %v5015
  %8038 = vmatprep.subr.mxu0 0.0
  %8039 = vmatpush1.msra.mxu0 %v5016
  %8040 = vmatprep.subr.mxu0 0.0
  %8041 = vmatpush1.msra.mxu0 %v5017
  %8042 = vmatprep.subr.mxu0 0.0
  %8043 = vmatpush1.msra.mxu0 %v5018
  %8044 = vmatprep.subr.mxu0 0.0
  %8045 = vmatpush1.msra.mxu0 0.0
  %8046 = vmatprep.subr.mxu0 0.0
  %8047 = vmatpush1.msra.mxu0 0.0
  %8048 = vmatprep.subr.mxu0 0.0
  %8049 = vmatpush1.msra.mxu0 0.0
  %8050 = vmatprep.subr.mxu0 0.0
  %8051 = vmatpush1.msra.mxu0 0.0
  %8052 = vmatprep.subr.mxu0 0.0
  %8053 = vmatpush1.msra.mxu0 0.0
  %8054 = vmatprep.subr.mxu0 0.0
  %8055 = vmatpush1.msra.mxu0 0.0
  %8056 = vmatprep.subr.mxu0 0.0
  %8057 = vmatpush1.msra.mxu0 0.0
  %8058 = vmatprep.subr.mxu0 0.0
  %8059 = vmatpush1.msra.mxu0 0.0
  %8060 = vmatprep.subr.mxu0 0.0
  %8061 = vmatpush1.msra.mxu0 0.0
  %8062 = vmatprep.subr.mxu0 0.0
  %8063 = vmatpush1.msra.mxu0 0.0
  %8064 = vmatprep.subr.mxu0 0.0
  %8065 = vmatpush1.msra.mxu0 0.0
  %8066 = vmatprep.subr.mxu0 0.0
  %8067 = vmatpush1.msra.mxu0 0.0
  %8068 = vmatprep.subr.mxu0 0.0
  %8069 = vmatpush1.msra.mxu0 0.0
  %8070 = vmatprep.subr.mxu0 0.0
  %8071 = vmatpush1.msra.mxu0 0.0
  %8072 = vmatprep.subr.mxu0 0.0
  %8073 = vmatpush1.msra.mxu0 0.0
  %8074 = vmatprep.subr.mxu0 0.0
  %8075 = vmatpush1.msra.mxu0 0.0
  %8076 = vmatprep.subr.mxu0 0.0
  %8077 = vmatpush1.msra.mxu0 0.0
  %8078 = vmatprep.subr.mxu0 0.0
  %8079 = vmatpush1.msra.mxu0 0.0
  %8080 = vmatprep.subr.mxu0 0.0
  %8081 = vmatpush1.msra.mxu0 0.0
  %8082 = vmatprep.subr.mxu0 0.0
  %8083 = vmatpush1.msra.mxu0 0.0
  %8084 = vmatprep.subr.mxu0 0.0
  %8085 = vmatpush1.msra.mxu0 0.0
  %8086 = vmatprep.subr.mxu0 0.0
  %8087 = vmatpush1.msra.mxu0 0.0
  %8088 = vmatprep.subr.mxu0 0.0
  %8089 = vmatpush1.msra.mxu0 0.0
  %8090 = vmatprep.subr.mxu0 0.0
  %8091 = vmatpush1.msra.mxu0 0.0
  %8092 = vmatprep.subr.mxu0 0.0
  %8093 = vmatpush1.msra.mxu0 0.0
  %8094 = vmatprep.subr.mxu0 0.0
  %8095 = vmatpush1.msra.mxu0 0.0
  %8096 = vmatprep.subr.mxu0 0.0
  %8097 = vmatpush1.msra.mxu0 0.0
  %8098 = vmatprep.subr.mxu0 0.0
  %8099 = vmatpush1.msra.mxu0 0.0
  %8100 = vmatprep.mubr.f32.mxu0 0.0
  %8101 = vmatmul.mubr.f32.gmra.mrb[0].mxu0 %v8034
  %v8102 = vpop.f32.mrb[0].mxu0
  %v8103 = vadd.f32 %v5541, %v8102
  %v8104 = vpop.f32.mrb[0].mxu0
  %8105 = vdwg.mxu0
  %8106 = vmatprep.subr.mxu0 0.0
  %8107 = vmatpush1.msra.mxu0 %v5007
  %8108 = vmatprep.subr.mxu0 0.0
  %8109 = vmatpush1.msra.mxu0 %v5008
  %8110 = vmatprep.subr.mxu0 0.0
  %8111 = vmatpush1.msra.mxu0 %v5009
  %8112 = vmatprep.subr.mxu0 0.0
  %8113 = vmatpush1.msra.mxu0 %v5010
  %8114 = vmatprep.subr.mxu0 0.0
  %8115 = vmatpush1.msra.mxu0 0.0
  %8116 = vmatprep.subr.mxu0 0.0
  %8117 = vmatpush1.msra.mxu0 0.0
  %8118 = vmatprep.subr.mxu0 0.0
  %8119 = vmatpush1.msra.mxu0 0.0
  %8120 = vmatprep.subr.mxu0 0.0
  %8121 = vmatpush1.msra.mxu0 0.0
  %8122 = vmatprep.subr.mxu0 0.0
  %8123 = vmatpush1.msra.mxu0 0.0
  %8124 = vmatprep.subr.mxu0 0.0
  %8125 = vmatpush1.msra.mxu0 0.0
  %8126 = vmatprep.subr.mxu0 0.0
  %8127 = vmatpush1.msra.mxu0 0.0
  %8128 = vmatprep.subr.mxu0 0.0
  %8129 = vmatpush1.msra.mxu0 0.0
  %8130 = vmatprep.subr.mxu0 0.0
  %8131 = vmatpush1.msra.mxu0 0.0
  %8132 = vmatprep.subr.mxu0 0.0
  %8133 = vmatpush1.msra.mxu0 0.0
  %8134 = vmatprep.subr.mxu0 0.0
  %8135 = vmatpush1.msra.mxu0 0.0
  %8136 = vmatprep.subr.mxu0 0.0
  %8137 = vmatpush1.msra.mxu0 0.0
  %8138 = vmatprep.subr.mxu0 0.0
  %8139 = vmatpush1.msra.mxu0 0.0
  %8140 = vmatprep.subr.mxu0 0.0
  %8141 = vmatpush1.msra.mxu0 0.0
  %8142 = vmatprep.subr.mxu0 0.0
  %8143 = vmatpush1.msra.mxu0 0.0
  %8144 = vmatprep.subr.mxu0 0.0
  %8145 = vmatpush1.msra.mxu0 0.0
  %8146 = vmatprep.subr.mxu0 0.0
  %8147 = vmatpush1.msra.mxu0 0.0
  %8148 = vmatprep.subr.mxu0 0.0
  %8149 = vmatpush1.msra.mxu0 0.0
  %8150 = vmatprep.subr.mxu0 0.0
  %8151 = vmatpush1.msra.mxu0 0.0
  %8152 = vmatprep.subr.mxu0 0.0
  %8153 = vmatpush1.msra.mxu0 0.0
  %8154 = vmatprep.subr.mxu0 0.0
  %8155 = vmatpush1.msra.mxu0 0.0
  %8156 = vmatprep.subr.mxu0 0.0
  %8157 = vmatpush1.msra.mxu0 0.0
  %8158 = vmatprep.subr.mxu0 0.0
  %8159 = vmatpush1.msra.mxu0 0.0
  %8160 = vmatprep.subr.mxu0 0.0
  %8161 = vmatpush1.msra.mxu0 0.0
  %8162 = vmatprep.subr.mxu0 0.0
  %8163 = vmatpush1.msra.mxu0 0.0
  %8164 = vmatprep.subr.mxu0 0.0
  %8165 = vmatpush1.msra.mxu0 0.0
  %8166 = vmatprep.subr.mxu0 0.0
  %8167 = vmatpush1.msra.mxu0 0.0
  %8168 = vmatprep.subr.mxu0 0.0
  %8169 = vmatpush1.msra.mxu0 0.0
  %8170 = vmatprep.mubr.f32.mxu0 0.0
  %8171 = vmatmul.mubr.f32.gmra.mrb[0].mxu0 %v7961
  %v8172 = vpop.f32.mrb[0].mxu0
  %v8173 = vadd.f32 %v5689, %v8172
  %v8174 = vpop.f32.mrb[0].mxu0
  %8175 = vdwg.mxu0
  %8176 = vmatprep.subr.mxu0 0.0
  %8177 = vmatpush1.msra.mxu0 %v5019
  %8178 = vmatprep.subr.mxu0 0.0
  %8179 = vmatpush1.msra.mxu0 %v5020
  %8180 = vmatprep.subr.mxu0 0.0
  %8181 = vmatpush1.msra.mxu0 %v5021
  %8182 = vmatprep.subr.mxu0 0.0
  %8183 = vmatpush1.msra.mxu0 %v5022
  %8184 = vmatprep.subr.mxu0 0.0
  %8185 = vmatpush1.msra.mxu0 0.0
  %8186 = vmatprep.subr.mxu0 0.0
  %8187 = vmatpush1.msra.mxu0 0.0
  %8188 = vmatprep.subr.mxu0 0.0
  %8189 = vmatpush1.msra.mxu0 0.0
  %8190 = vmatprep.subr.mxu0 0.0
  %8191 = vmatpush1.msra.mxu0 0.0
  %8192 = vmatprep.subr.mxu0 0.0
  %8193 = vmatpush1.msra.mxu0 0.0
  %8194 = vmatprep.subr.mxu0 0.0
  %8195 = vmatpush1.msra.mxu0 0.0
  %8196 = vmatprep.subr.mxu0 0.0
  %8197 = vmatpush1.msra.mxu0 0.0
  %8198 = vmatprep.subr.mxu0 0.0
  %8199 = vmatpush1.msra.mxu0 0.0
  %8200 = vmatprep.subr.mxu0 0.0
  %8201 = vmatpush1.msra.mxu0 0.0
  %8202 = vmatprep.subr.mxu0 0.0
  %8203 = vmatpush1.msra.mxu0 0.0
  %8204 = vmatprep.subr.mxu0 0.0
  %8205 = vmatpush1.msra.mxu0 0.0
  %8206 = vmatprep.subr.mxu0 0.0
  %8207 = vmatpush1.msra.mxu0 0.0
  %8208 = vmatprep.subr.mxu0 0.0
  %8209 = vmatpush1.msra.mxu0 0.0
  %8210 = vmatprep.subr.mxu0 0.0
  %8211 = vmatpush1.msra.mxu0 0.0
  %8212 = vmatprep.subr.mxu0 0.0
  %8213 = vmatpush1.msra.mxu0 0.0
  %8214 = vmatprep.subr.mxu0 0.0
  %8215 = vmatpush1.msra.mxu0 0.0
  %8216 = vmatprep.subr.mxu0 0.0
  %8217 = vmatpush1.msra.mxu0 0.0
  %8218 = vmatprep.subr.mxu0 0.0
  %8219 = vmatpush1.msra.mxu0 0.0
  %8220 = vmatprep.subr.mxu0 0.0
  %8221 = vmatpush1.msra.mxu0 0.0
  %8222 = vmatprep.subr.mxu0 0.0
  %8223 = vmatpush1.msra.mxu0 0.0
  %8224 = vmatprep.subr.mxu0 0.0
  %8225 = vmatpush1.msra.mxu0 0.0
  %8226 = vmatprep.subr.mxu0 0.0
  %8227 = vmatpush1.msra.mxu0 0.0
  %8228 = vmatprep.subr.mxu0 0.0
  %8229 = vmatpush1.msra.mxu0 0.0
  %8230 = vmatprep.subr.mxu0 0.0
  %8231 = vmatpush1.msra.mxu0 0.0
  %8232 = vmatprep.subr.mxu0 0.0
  %8233 = vmatpush1.msra.mxu0 0.0
  %8234 = vmatprep.subr.mxu0 0.0
  %8235 = vmatpush1.msra.mxu0 0.0
  %8236 = vmatprep.subr.mxu0 0.0
  %8237 = vmatpush1.msra.mxu0 0.0
  %8238 = vmatprep.subr.mxu0 0.0
  %8239 = vmatpush1.msra.mxu0 0.0
  %8240 = vmatprep.mubr.f32.mxu0 0.0
  %8241 = vmatmul.mubr.f32.gmra.mrb[0].mxu0 %v8034
  %v8242 = vpop.f32.mrb[0].mxu0
  %v8243 = vadd.f32 %v5693, %v8242
  %v8244 = vpop.f32.mrb[0].mxu0
  %8245 = vdwg.mxu0
  %8246 = vmatprep.subr.mxu0 0.0
  %8247 = vmatpush1.msra.mxu0 %v5011
  %8248 = vmatprep.subr.mxu0 0.0
  %8249 = vmatpush1.msra.mxu0 %v5012
  %8250 = vmatprep.subr.mxu0 0.0
  %8251 = vmatpush1.msra.mxu0 %v5013
  %8252 = vmatprep.subr.mxu0 0.0
  %8253 = vmatpush1.msra.mxu0 %v5014
  %8254 = vmatprep.subr.mxu0 0.0
  %8255 = vmatpush1.msra.mxu0 0.0
  %8256 = vmatprep.subr.mxu0 0.0
  %8257 = vmatpush1.msra.mxu0 0.0
  %8258 = vmatprep.subr.mxu0 0.0
  %8259 = vmatpush1.msra.mxu0 0.0
  %8260 = vmatprep.subr.mxu0 0.0
  %8261 = vmatpush1.msra.mxu0 0.0
  %8262 = vmatprep.subr.mxu0 0.0
  %8263 = vmatpush1.msra.mxu0 0.0
  %8264 = vmatprep.subr.mxu0 0.0
  %8265 = vmatpush1.msra.mxu0 0.0
  %8266 = vmatprep.subr.mxu0 0.0
  %8267 = vmatpush1.msra.mxu0 0.0
  %8268 = vmatprep.subr.mxu0 0.0
  %8269 = vmatpush1.msra.mxu0 0.0
  %8270 = vmatprep.subr.mxu0 0.0
  %8271 = vmatpush1.msra.mxu0 0.0
  %8272 = vmatprep.subr.mxu0 0.0
  %8273 = vmatpush1.msra.mxu0 0.0
  %8274 = vmatprep.subr.mxu0 0.0
  %8275 = vmatpush1.msra.mxu0 0.0
  %8276 = vmatprep.subr.mxu0 0.0
  %8277 = vmatpush1.msra.mxu0 0.0
  %8278 = vmatprep.subr.mxu0 0.0
  %8279 = vmatpush1.msra.mxu0 0.0
  %8280 = vmatprep.subr.mxu0 0.0
  %8281 = vmatpush1.msra.mxu0 0.0
  %8282 = vmatprep.subr.mxu0 0.0
  %8283 = vmatpush1.msra.mxu0 0.0
  %8284 = vmatprep.subr.mxu0 0.0
  %8285 = vmatpush1.msra.mxu0 0.0
  %8286 = vmatprep.subr.mxu0 0.0
  %8287 = vmatpush1.msra.mxu0 0.0
  %8288 = vmatprep.subr.mxu0 0.0
  %8289 = vmatpush1.msra.mxu0 0.0
  %8290 = vmatprep.subr.mxu0 0.0
  %8291 = vmatpush1.msra.mxu0 0.0
  %8292 = vmatprep.subr.mxu0 0.0
  %8293 = vmatpush1.msra.mxu0 0.0
  %8294 = vmatprep.subr.mxu0 0.0
  %8295 = vmatpush1.msra.mxu0 0.0
  %8296 = vmatprep.subr.mxu0 0.0
  %8297 = vmatpush1.msra.mxu0 0.0
  %8298 = vmatprep.subr.mxu0 0.0
  %8299 = vmatpush1.msra.mxu0 0.0
  %8300 = vmatprep.subr.mxu0 0.0
  %8301 = vmatpush1.msra.mxu0 0.0
  %8302 = vmatprep.subr.mxu0 0.0
  %8303 = vmatpush1.msra.mxu0 0.0
  %8304 = vmatprep.subr.mxu0 0.0
  %8305 = vmatpush1.msra.mxu0 0.0
  %8306 = vmatprep.subr.mxu0 0.0
  %8307 = vmatpush1.msra.mxu0 0.0
  %8308 = vmatprep.subr.mxu0 0.0
  %8309 = vmatpush1.msra.mxu0 0.0
  %8310 = vmatprep.mubr.f32.mxu0 0.0
  %8311 = vmatmul.mubr.f32.gmra.mrb[0].mxu0 %v7961
  %v8312 = vpop.f32.mrb[0].mxu0
  %v8313 = vadd.f32 %v5841, %v8312
  %v8314 = vpop.f32.mrb[0].mxu0
  %8315 = vdwg.mxu0
  %8316 = vmatprep.subr.mxu0 0.0
  %8317 = vmatpush1.msra.mxu0 %v5023
  %8318 = vmatprep.subr.mxu0 0.0
  %8319 = vmatpush1.msra.mxu0 %v5024
  %8320 = vmatprep.subr.mxu0 0.0
  %8321 = vmatpush1.msra.mxu0 %v5025
  %8322 = vmatprep.subr.mxu0 0.0
  %8323 = vmatpush1.msra.mxu0 %v5026
  %8324 = vmatprep.subr.mxu0 0.0
  %8325 = vmatpush1.msra.mxu0 0.0
  %8326 = vmatprep.subr.mxu0 0.0
  %8327 = vmatpush1.msra.mxu0 0.0
  %8328 = vmatprep.subr.mxu0 0.0
  %8329 = vmatpush1.msra.mxu0 0.0
  %8330 = vmatprep.subr.mxu0 0.0
  %8331 = vmatpush1.msra.mxu0 0.0
  %8332 = vmatprep.subr.mxu0 0.0
  %8333 = vmatpush1.msra.mxu0 0.0
  %8334 = vmatprep.subr.mxu0 0.0
  %8335 = vmatpush1.msra.mxu0 0.0
  %8336 = vmatprep.subr.mxu0 0.0
  %8337 = vmatpush1.msra.mxu0 0.0
  %8338 = vmatprep.subr.mxu0 0.0
  %8339 = vmatpush1.msra.mxu0 0.0
  %8340 = vmatprep.subr.mxu0 0.0
  %8341 = vmatpush1.msra.mxu0 0.0
  %8342 = vmatprep.subr.mxu0 0.0
  %8343 = vmatpush1.msra.mxu0 0.0
  %8344 = vmatprep.subr.mxu0 0.0
  %8345 = vmatpush1.msra.mxu0 0.0
  %8346 = vmatprep.subr.mxu0 0.0
  %8347 = vmatpush1.msra.mxu0 0.0
  %8348 = vmatprep.subr.mxu0 0.0
  %8349 = vmatpush1.msra.mxu0 0.0
  %8350 = vmatprep.subr.mxu0 0.0
  %8351 = vmatpush1.msra.mxu0 0.0
  %8352 = vmatprep.subr.mxu0 0.0
  %8353 = vmatpush1.msra.mxu0 0.0
  %8354 = vmatprep.subr.mxu0 0.0
  %8355 = vmatpush1.msra.mxu0 0.0
  %8356 = vmatprep.subr.mxu0 0.0
  %8357 = vmatpush1.msra.mxu0 0.0
  %8358 = vmatprep.subr.mxu0 0.0
  %8359 = vmatpush1.msra.mxu0 0.0
  %8360 = vmatprep.subr.mxu0 0.0
  %8361 = vmatpush1.msra.mxu0 0.0
  %8362 = vmatprep.subr.mxu0 0.0
  %8363 = vmatpush1.msra.mxu0 0.0
  %8364 = vmatprep.subr.mxu0 0.0
  %8365 = vmatpush1.msra.mxu0 0.0
  %8366 = vmatprep.subr.mxu0 0.0
  %8367 = vmatpush1.msra.mxu0 0.0
  %8368 = vmatprep.subr.mxu0 0.0
  %8369 = vmatpush1.msra.mxu0 0.0
  %8370 = vmatprep.subr.mxu0 0.0
  %8371 = vmatpush1.msra.mxu0 0.0
  %8372 = vmatprep.subr.mxu0 0.0
  %8373 = vmatpush1.msra.mxu0 0.0
  %8374 = vmatprep.subr.mxu0 0.0
  %8375 = vmatpush1.msra.mxu0 0.0
  %8376 = vmatprep.subr.mxu0 0.0
  %8377 = vmatpush1.msra.mxu0 0.0
  %8378 = vmatprep.subr.mxu0 0.0
  %8379 = vmatpush1.msra.mxu0 0.0
  %8380 = vmatprep.mubr.f32.mxu0 0.0
  %8381 = vmatmul.mubr.f32.gmra.mrb[0].mxu0 %v8034
  %v8382 = vpop.f32.mrb[0].mxu0
  %v8383 = vadd.f32 %v5845, %v8382
  %v8384 = vpop.f32.mrb[0].mxu0
  %8385 = vdwg.mxu0
  %v8386 = vrot.slane %v5362, 2
  %v8390 = vrot.slane %v8030, 6
  %v8391 = vrot.slane %v8103, 6
  %v8394 = vadd.f32 %v5124, %v8390
  %v8395 = vadd.f32 %v8386, %v8391
  %v8396 = vmul.f32 %v8394, 0.5
  %v8397 = vmul.f32 %v8395, 0.5
  %v8398 = vtanh.pop %v8396
  %v8399 = vtanh.pop %v8397
  %v8400 = vmul.f32 %v8398, 0.5
  %v8401 = vmul.f32 %v8399, 0.5
  %v8402 = vadd.f32 %v8400, 0.5
  %v8403 = vadd.f32 %v8401, 0.5
  %v8404 = vrot.slane %v5443, 2
  %v8408 = vrot.slane %v8173, 6
  %v8409 = vrot.slane %v8243, 6
  %v8412 = vadd.f32 %v5205, %v8408
  %v8413 = vadd.f32 %v8404, %v8409
  %v8414 = vmul.f32 %v8412, 0.5
  %v8415 = vmul.f32 %v8413, 0.5
  %v8416 = vtanh.pop %v8414
  %v8417 = vtanh.pop %v8415
  %v8418 = vmul.f32 %v8416, 0.5
  %v8419 = vmul.f32 %v8417, 0.5
  %v8420 = vadd.f32 %v8418, 0.5
  %v8421 = vadd.f32 %v8419, 0.5
  %v8422 = vrot.slane %v5524, 2
  %v8426 = vrot.slane %v8313, 6
  %v8427 = vrot.slane %v8383, 6
  %v8430 = vmul.f32 %v8402, %v8426
  %v8431 = vmul.f32 %v8403, %v8427
  %v8432 = vadd.f32 %v5286, %v8430
  %v8433 = vadd.f32 %v8422, %v8431
  %v8434 = vtanh.pop %v8432
  %v8435 = vtanh.pop %v8433
  %v8436 = vsub.f32 1.0, %v8420
  %v8437 = vsub.f32 1.0, %v8421
  %v8438 = vmul.f32 %v8436, %v8434
  %v8439 = vmul.f32 %v8437, %v8435
  %v8440 = vrot.slane %v7958, 6
  %v8441 = vrot.slane %v7959, 6
  %v8444 = vmul.f32 %v8420, %v8440
  %v8445 = vmul.f32 %v8421, %v8441
  %v8446 = vadd.f32 %v8438, %v8444
  %v8447 = vadd.f32 %v8439, %v8445
  %v8449 = vrot.slane %v8446, 2
  %v8450 = vsel %vm1032, %v8449, 0
  %8452 = vmatprep.subr.mxu0 0.0
  %8453 = vmatpush1.msra.mxu0 %v5003
  %8454 = vmatprep.subr.mxu0 0.0
  %8455 = vmatpush1.msra.mxu0 %v5004
  %8456 = vmatprep.subr.mxu0 0.0
  %8457 = vmatpush1.msra.mxu0 %v5005
  %8458 = vmatprep.subr.mxu0 0.0
  %8459 = vmatpush1.msra.mxu0 %v5006
  %8460 = vmatprep.subr.mxu0 0.0
  %8461 = vmatpush1.msra.mxu0 0.0
  %8462 = vmatprep.subr.mxu0 0.0
  %8463 = vmatpush1.msra.mxu0 0.0
  %8464 = vmatprep.subr.mxu0 0.0
  %8465 = vmatpush1.msra.mxu0 0.0
  %8466 = vmatprep.subr.mxu0 0.0
  %8467 = vmatpush1.msra.mxu0 0.0
  %8468 = vmatprep.subr.mxu0 0.0
  %8469 = vmatpush1.msra.mxu0 0.0
  %8470 = vmatprep.subr.mxu0 0.0
  %8471 = vmatpush1.msra.mxu0 0.0
  %8472 = vmatprep.subr.mxu0 0.0
  %8473 = vmatpush1.msra.mxu0 0.0
  %8474 = vmatprep.subr.mxu0 0.0
  %8475 = vmatpush1.msra.mxu0 0.0
  %8476 = vmatprep.subr.mxu0 0.0
  %8477 = vmatpush1.msra.mxu0 0.0
  %8478 = vmatprep.subr.mxu0 0.0
  %8479 = vmatpush1.msra.mxu0 0.0
  %8480 = vmatprep.subr.mxu0 0.0
  %8481 = vmatpush1.msra.mxu0 0.0
  %8482 = vmatprep.subr.mxu0 0.0
  %8483 = vmatpush1.msra.mxu0 0.0
  %8484 = vmatprep.subr.mxu0 0.0
  %8485 = vmatpush1.msra.mxu0 0.0
  %8486 = vmatprep.subr.mxu0 0.0
  %8487 = vmatpush1.msra.mxu0 0.0
  %8488 = vmatprep.subr.mxu0 0.0
  %8489 = vmatpush1.msra.mxu0 0.0
  %8490 = vmatprep.subr.mxu0 0.0
  %8491 = vmatpush1.msra.mxu0 0.0
  %8492 = vmatprep.subr.mxu0 0.0
  %8493 = vmatpush1.msra.mxu0 0.0
  %8494 = vmatprep.subr.mxu0 0.0
  %8495 = vmatpush1.msra.mxu0 0.0
  %8496 = vmatprep.subr.mxu0 0.0
  %8497 = vmatpush1.msra.mxu0 0.0
  %8498 = vmatprep.subr.mxu0 0.0
  %8499 = vmatpush1.msra.mxu0 0.0
  %8500 = vmatprep.subr.mxu0 0.0
  %8501 = vmatpush1.msra.mxu0 0.0
  %8502 = vmatprep.subr.mxu0 0.0
  %8503 = vmatpush1.msra.mxu0 0.0
  %8504 = vmatprep.subr.mxu0 0.0
  %8505 = vmatpush1.msra.mxu0 0.0
  %8506 = vmatprep.subr.mxu0 0.0
  %8507 = vmatpush1.msra.mxu0 0.0
  %8508 = vmatprep.subr.mxu0 0.0
  %8509 = vmatpush1.msra.mxu0 0.0
  %8510 = vmatprep.subr.mxu0 0.0
  %8511 = vmatpush1.msra.mxu0 0.0
  %8512 = vmatprep.subr.mxu0 0.0
  %8513 = vmatpush1.msra.mxu0 0.0
  %8514 = vmatprep.subr.mxu0 0.0
  %8515 = vmatpush1.msra.mxu0 0.0
  %8516 = vmatprep.mubr.f32.mxu0 0.0
  %8517 = vmatmul.mubr.f32.gmra.mrb[0].mxu0 %v8450
  %v8518 = vpop.f32.mrb[0].mxu0
  %v8519 = vadd.f32 %v5537, %v8518
  %v8520 = vpop.f32.mrb[0].mxu0
  %8521 = vdwg.mxu0
  %v8523 = vrot.slane %v8447, 2
  %v8524 = vsel %vm1032, %v8523, 0
  %8526 = vmatprep.subr.mxu0 0.0
  %8527 = vmatpush1.msra.mxu0 %v5015
  %8528 = vmatprep.subr.mxu0 0.0
  %8529 = vmatpush1.msra.mxu0 %v5016
  %8530 = vmatprep.subr.mxu0 0.0
  %8531 = vmatpush1.msra.mxu0 %v5017
  %8532 = vmatprep.subr.mxu0 0.0
  %8533 = vmatpush1.msra.mxu0 %v5018
  %8534 = vmatprep.subr.mxu0 0.0
  %8535 = vmatpush1.msra.mxu0 0.0
  %8536 = vmatprep.subr.mxu0 0.0
  %8537 = vmatpush1.msra.mxu0 0.0
  %8538 = vmatprep.subr.mxu0 0.0
  %8539 = vmatpush1.msra.mxu0 0.0
  %8540 = vmatprep.subr.mxu0 0.0
  %8541 = vmatpush1.msra.mxu0 0.0
  %8542 = vmatprep.subr.mxu0 0.0
  %8543 = vmatpush1.msra.mxu0 0.0
  %8544 = vmatprep.subr.mxu0 0.0
  %8545 = vmatpush1.msra.mxu0 0.0
  %8546 = vmatprep.subr.mxu0 0.0
  %8547 = vmatpush1.msra.mxu0 0.0
  %8548 = vmatprep.subr.mxu0 0.0
  %8549 = vmatpush1.msra.mxu0 0.0
  %8550 = vmatprep.subr.mxu0 0.0
  %8551 = vmatpush1.msra.mxu0 0.0
  %8552 = vmatprep.subr.mxu0 0.0
  %8553 = vmatpush1.msra.mxu0 0.0
  %8554 = vmatprep.subr.mxu0 0.0
  %8555 = vmatpush1.msra.mxu0 0.0
  %8556 = vmatprep.subr.mxu0 0.0
  %8557 = vmatpush1.msra.mxu0 0.0
  %8558 = vmatprep.subr.mxu0 0.0
  %8559 = vmatpush1.msra.mxu0 0.0
  %8560 = vmatprep.subr.mxu0 0.0
  %8561 = vmatpush1.msra.mxu0 0.0
  %8562 = vmatprep.subr.mxu0 0.0
  %8563 = vmatpush1.msra.mxu0 0.0
  %8564 = vmatprep.subr.mxu0 0.0
  %8565 = vmatpush1.msra.mxu0 0.0
  %8566 = vmatprep.subr.mxu0 0.0
  %8567 = vmatpush1.msra.mxu0 0.0
  %8568 = vmatprep.subr.mxu0 0.0
  %8569 = vmatpush1.msra.mxu0 0.0
  %8570 = vmatprep.subr.mxu0 0.0
  %8571 = vmatpush1.msra.mxu0 0.0
  %8572 = vmatprep.subr.mxu0 0.0
  %8573 = vmatpush1.msra.mxu0 0.0
  %8574 = vmatprep.subr.mxu0 0.0
  %8575 = vmatpush1.msra.mxu0 0.0
  %8576 = vmatprep.subr.mxu0 0.0
  %8577 = vmatpush1.msra.mxu0 0.0
  %8578 = vmatprep.subr.mxu0 0.0
  %8579 = vmatpush1.msra.mxu0 0.0
  %8580 = vmatprep.subr.mxu0 0.0
  %8581 = vmatpush1.msra.mxu0 0.0
  %8582 = vmatprep.subr.mxu0 0.0
  %8583 = vmatpush1.msra.mxu0 0.0
  %8584 = vmatprep.subr.mxu0 0.0
  %8585 = vmatpush1.msra.mxu0 0.0
  %8586 = vmatprep.subr.mxu0 0.0
  %8587 = vmatpush1.msra.mxu0 0.0
  %8588 = vmatprep.subr.mxu0 0.0
  %8589 = vmatpush1.msra.mxu0 0.0
  %8590 = vmatprep.mubr.f32.mxu0 0.0
  %8591 = vmatmul.mubr.f32.gmra.mrb[0].mxu0 %v8524
  %v8592 = vpop.f32.mrb[0].mxu0
  %v8593 = vadd.f32 %v5541, %v8592
  %v8594 = vpop.f32.mrb[0].mxu0
  %8595 = vdwg.mxu0
  %8596 = vmatprep.subr.mxu0 0.0
  %8597 = vmatpush1.msra.mxu0 %v5007
  %8598 = vmatprep.subr.mxu0 0.0
  %8599 = vmatpush1.msra.mxu0 %v5008
  %8600 = vmatprep.subr.mxu0 0.0
  %8601 = vmatpush1.msra.mxu0 %v5009
  %8602 = vmatprep.subr.mxu0 0.0
  %8603 = vmatpush1.msra.mxu0 %v5010
  %8604 = vmatprep.subr.mxu0 0.0
  %8605 = vmatpush1.msra.mxu0 0.0
  %8606 = vmatprep.subr.mxu0 0.0
  %8607 = vmatpush1.msra.mxu0 0.0
  %8608 = vmatprep.subr.mxu0 0.0
  %8609 = vmatpush1.msra.mxu0 0.0
  %8610 = vmatprep.subr.mxu0 0.0
  %8611 = vmatpush1.msra.mxu0 0.0
  %8612 = vmatprep.subr.mxu0 0.0
  %8613 = vmatpush1.msra.mxu0 0.0
  %8614 = vmatprep.subr.mxu0 0.0
  %8615 = vmatpush1.msra.mxu0 0.0
  %8616 = vmatprep.subr.mxu0 0.0
  %8617 = vmatpush1.msra.mxu0 0.0
  %8618 = vmatprep.subr.mxu0 0.0
  %8619 = vmatpush1.msra.mxu0 0.0
  %8620 = vmatprep.subr.mxu0 0.0
  %8621 = vmatpush1.msra.mxu0 0.0
  %8622 = vmatprep.subr.mxu0 0.0
  %8623 = vmatpush1.msra.mxu0 0.0
  %8624 = vmatprep.subr.mxu0 0.0
  %8625 = vmatpush1.msra.mxu0 0.0
  %8626 = vmatprep.subr.mxu0 0.0
  %8627 = vmatpush1.msra.mxu0 0.0
  %8628 = vmatprep.subr.mxu0 0.0
  %8629 = vmatpush1.msra.mxu0 0.0
  %8630 = vmatprep.subr.mxu0 0.0
  %8631 = vmatpush1.msra.mxu0 0.0
  %8632 = vmatprep.subr.mxu0 0.0
  %8633 = vmatpush1.msra.mxu0 0.0
  %8634 = vmatprep.subr.mxu0 0.0
  %8635 = vmatpush1.msra.mxu0 0.0
  %8636 = vmatprep.subr.mxu0 0.0
  %8637 = vmatpush1.msra.mxu0 0.0
  %8638 = vmatprep.subr.mxu0 0.0
  %8639 = vmatpush1.msra.mxu0 0.0
  %8640 = vmatprep.subr.mxu0 0.0
  %8641 = vmatpush1.msra.mxu0 0.0
  %8642 = vmatprep.subr.mxu0 0.0
  %8643 = vmatpush1.msra.mxu0 0.0
  %8644 = vmatprep.subr.mxu0 0.0
  %8645 = vmatpush1.msra.mxu0 0.0
  %8646 = vmatprep.subr.mxu0 0.0
  %8647 = vmatpush1.msra.mxu0 0.0
  %8648 = vmatprep.subr.mxu0 0.0
  %8649 = vmatpush1.msra.mxu0 0.0
  %8650 = vmatprep.subr.mxu0 0.0
  %8651 = vmatpush1.msra.mxu0 0.0
  %8652 = vmatprep.subr.mxu0 0.0
  %8653 = vmatpush1.msra.mxu0 0.0
  %8654 = vmatprep.subr.mxu0 0.0
  %8655 = vmatpush1.msra.mxu0 0.0
  %8656 = vmatprep.subr.mxu0 0.0
  %8657 = vmatpush1.msra.mxu0 0.0
  %8658 = vmatprep.subr.mxu0 0.0
  %8659 = vmatpush1.msra.mxu0 0.0
  %8660 = vmatprep.mubr.f32.mxu0 0.0
  %8661 = vmatmul.mubr.f32.gmra.mrb[0].mxu0 %v8450
  %v8662 = vpop.f32.mrb[0].mxu0
  %v8663 = vadd.f32 %v5689, %v8662
  %v8664 = vpop.f32.mrb[0].mxu0
  %8665 = vdwg.mxu0
  %8666 = vmatprep.subr.mxu0 0.0
  %8667 = vmatpush1.msra.mxu0 %v5019
  %8668 = vmatprep.subr.mxu0 0.0
  %8669 = vmatpush1.msra.mxu0 %v5020
  %8670 = vmatprep.subr.mxu0 0.0
  %8671 = vmatpush1.msra.mxu0 %v5021
  %8672 = vmatprep.subr.mxu0 0.0
  %8673 = vmatpush1.msra.mxu0 %v5022
  %8674 = vmatprep.subr.mxu0 0.0
  %8675 = vmatpush1.msra.mxu0 0.0
  %8676 = vmatprep.subr.mxu0 0.0
  %8677 = vmatpush1.msra.mxu0 0.0
  %8678 = vmatprep.subr.mxu0 0.0
  %8679 = vmatpush1.msra.mxu0 0.0
  %8680 = vmatprep.subr.mxu0 0.0
  %8681 = vmatpush1.msra.mxu0 0.0
  %8682 = vmatprep.subr.mxu0 0.0
  %8683 = vmatpush1.msra.mxu0 0.0
  %8684 = vmatprep.subr.mxu0 0.0
  %8685 = vmatpush1.msra.mxu0 0.0
  %8686 = vmatprep.subr.mxu0 0.0
  %8687 = vmatpush1.msra.mxu0 0.0
  %8688 = vmatprep.subr.mxu0 0.0
  %8689 = vmatpush1.msra.mxu0 0.0
  %8690 = vmatprep.subr.mxu0 0.0
  %8691 = vmatpush1.msra.mxu0 0.0
  %8692 = vmatprep.subr.mxu0 0.0
  %8693 = vmatpush1.msra.mxu0 0.0
  %8694 = vmatprep.subr.mxu0 0.0
  %8695 = vmatpush1.msra.mxu0 0.0
  %8696 = vmatprep.subr.mxu0 0.0
  %8697 = vmatpush1.msra.mxu0 0.0
  %8698 = vmatprep.subr.mxu0 0.0
  %8699 = vmatpush1.msra.mxu0 0.0
  %8700 = vmatprep.subr.mxu0 0.0
  %8701 = vmatpush1.msra.mxu0 0.0
  %8702 = vmatprep.subr.mxu0 0.0
  %8703 = vmatpush1.msra.mxu0 0.0
  %8704 = vmatprep.subr.mxu0 0.0
  %8705 = vmatpush1.msra.mxu0 0.0
  %8706 = vmatprep.subr.mxu0 0.0
  %8707 = vmatpush1.msra.mxu0 0.0
  %8708 = vmatprep.subr.mxu0 0.0
  %8709 = vmatpush1.msra.mxu0 0.0
  %8710 = vmatprep.subr.mxu0 0.0
  %8711 = vmatpush1.msra.mxu0 0.0
  %8712 = vmatprep.subr.mxu0 0.0
  %8713 = vmatpush1.msra.mxu0 0.0
  %8714 = vmatprep.subr.mxu0 0.0
  %8715 = vmatpush1.msra.mxu0 0.0
  %8716 = vmatprep.subr.mxu0 0.0
  %8717 = vmatpush1.msra.mxu0 0.0
  %8718 = vmatprep.subr.mxu0 0.0
  %8719 = vmatpush1.msra.mxu0 0.0
  %8720 = vmatprep.subr.mxu0 0.0
  %8721 = vmatpush1.msra.mxu0 0.0
  %8722 = vmatprep.subr.mxu0 0.0
  %8723 = vmatpush1.msra.mxu0 0.0
  %8724 = vmatprep.subr.mxu0 0.0
  %8725 = vmatpush1.msra.mxu0 0.0
  %8726 = vmatprep.subr.mxu0 0.0
  %8727 = vmatpush1.msra.mxu0 0.0
  %8728 = vmatprep.subr.mxu0 0.0
  %8729 = vmatpush1.msra.mxu0 0.0
  %8730 = vmatprep.mubr.f32.mxu0 0.0
  %8731 = vmatmul.mubr.f32.gmra.mrb[0].mxu0 %v8524
  %v8732 = vpop.f32.mrb[0].mxu0
  %v8733 = vadd.f32 %v5693, %v8732
  %v8734 = vpop.f32.mrb[0].mxu0
  %8735 = vdwg.mxu0
  %8736 = vmatprep.subr.mxu0 0.0
  %8737 = vmatpush1.msra.mxu0 %v5011
  %8738 = vmatprep.subr.mxu0 0.0
  %8739 = vmatpush1.msra.mxu0 %v5012
  %8740 = vmatprep.subr.mxu0 0.0
  %8741 = vmatpush1.msra.mxu0 %v5013
  %8742 = vmatprep.subr.mxu0 0.0
  %8743 = vmatpush1.msra.mxu0 %v5014
  %8744 = vmatprep.subr.mxu0 0.0
  %8745 = vmatpush1.msra.mxu0 0.0
  %8746 = vmatprep.subr.mxu0 0.0
  %8747 = vmatpush1.msra.mxu0 0.0
  %8748 = vmatprep.subr.mxu0 0.0
  %8749 = vmatpush1.msra.mxu0 0.0
  %8750 = vmatprep.subr.mxu0 0.0
  %8751 = vmatpush1.msra.mxu0 0.0
  %8752 = vmatprep.subr.mxu0 0.0
  %8753 = vmatpush1.msra.mxu0 0.0
  %8754 = vmatprep.subr.mxu0 0.0
  %8755 = vmatpush1.msra.mxu0 0.0
  %8756 = vmatprep.subr.mxu0 0.0
  %8757 = vmatpush1.msra.mxu0 0.0
  %8758 = vmatprep.subr.mxu0 0.0
  %8759 = vmatpush1.msra.mxu0 0.0
  %8760 = vmatprep.subr.mxu0 0.0
  %8761 = vmatpush1.msra.mxu0 0.0
  %8762 = vmatprep.subr.mxu0 0.0
  %8763 = vmatpush1.msra.mxu0 0.0
  %8764 = vmatprep.subr.mxu0 0.0
  %8765 = vmatpush1.msra.mxu0 0.0
  %8766 = vmatprep.subr.mxu0 0.0
  %8767 = vmatpush1.msra.mxu0 0.0
  %8768 = vmatprep.subr.mxu0 0.0
  %8769 = vmatpush1.msra.mxu0 0.0
  %8770 = vmatprep.subr.mxu0 0.0
  %8771 = vmatpush1.msra.mxu0 0.0
  %8772 = vmatprep.subr.mxu0 0.0
  %8773 = vmatpush1.msra.mxu0 0.0
  %8774 = vmatprep.subr.mxu0 0.0
  %8775 = vmatpush1.msra.mxu0 0.0
  %8776 = vmatprep.subr.mxu0 0.0
  %8777 = vmatpush1.msra.mxu0 0.0
  %8778 = vmatprep.subr.mxu0 0.0
  %8779 = vmatpush1.msra.mxu0 0.0
  %8780 = vmatprep.subr.mxu0 0.0
  %8781 = vmatpush1.msra.mxu0 0.0
  %8782 = vmatprep.subr.mxu0 0.0
  %8783 = vmatpush1.msra.mxu0 0.0
  %8784 = vmatprep.subr.mxu0 0.0
  %8785 = vmatpush1.msra.mxu0 0.0
  %8786 = vmatprep.subr.mxu0 0.0
  %8787 = vmatpush1.msra.mxu0 0.0
  %8788 = vmatprep.subr.mxu0 0.0
  %8789 = vmatpush1.msra.mxu0 0.0
  %8790 = vmatprep.subr.mxu0 0.0
  %8791 = vmatpush1.msra.mxu0 0.0
  %8792 = vmatprep.subr.mxu0 0.0
  %8793 = vmatpush1.msra.mxu0 0.0
  %8794 = vmatprep.subr.mxu0 0.0
  %8795 = vmatpush1.msra.mxu0 0.0
  %8796 = vmatprep.subr.mxu0 0.0
  %8797 = vmatpush1.msra.mxu0 0.0
  %8798 = vmatprep.subr.mxu0 0.0
  %8799 = vmatpush1.msra.mxu0 0.0
  %8800 = vmatprep.mubr.f32.mxu0 0.0
  %8801 = vmatmul.mubr.f32.gmra.mrb[0].mxu0 %v8450
  %v8802 = vpop.f32.mrb[0].mxu0
  %v8803 = vadd.f32 %v5841, %v8802
  %v8804 = vpop.f32.mrb[0].mxu0
  %8805 = vdwg.mxu0
  %8806 = vmatprep.subr.mxu0 0.0
  %8807 = vmatpush1.msra.mxu0 %v5023
  %8808 = vmatprep.subr.mxu0 0.0
  %8809 = vmatpush1.msra.mxu0 %v5024
  %8810 = vmatprep.subr.mxu0 0.0
  %8811 = vmatpush1.msra.mxu0 %v5025
  %8812 = vmatprep.subr.mxu0 0.0
  %8813 = vmatpush1.msra.mxu0 %v5026
  %8814 = vmatprep.subr.mxu0 0.0
  %8815 = vmatpush1.msra.mxu0 0.0
  %8816 = vmatprep.subr.mxu0 0.0
  %8817 = vmatpush1.msra.mxu0 0.0
  %8818 = vmatprep.subr.mxu0 0.0
  %8819 = vmatpush1.msra.mxu0 0.0
  %8820 = vmatprep.subr.mxu0 0.0
  %8821 = vmatpush1.msra.mxu0 0.0
  %8822 = vmatprep.subr.mxu0 0.0
  %8823 = vmatpush1.msra.mxu0 0.0
  %8824 = vmatprep.subr.mxu0 0.0
  %8825 = vmatpush1.msra.mxu0 0.0
  %8826 = vmatprep.subr.mxu0 0.0
  %8827 = vmatpush1.msra.mxu0 0.0
  %8828 = vmatprep.subr.mxu0 0.0
  %8829 = vmatpush1.msra.mxu0 0.0
  %8830 = vmatprep.subr.mxu0 0.0
  %8831 = vmatpush1.msra.mxu0 0.0
  %8832 = vmatprep.subr.mxu0 0.0
  %8833 = vmatpush1.msra.mxu0 0.0
  %8834 = vmatprep.subr.mxu0 0.0
  %8835 = vmatpush1.msra.mxu0 0.0
  %8836 = vmatprep.subr.mxu0 0.0
  %8837 = vmatpush1.msra.mxu0 0.0
  %8838 = vmatprep.subr.mxu0 0.0
  %8839 = vmatpush1.msra.mxu0 0.0
  %8840 = vmatprep.subr.mxu0 0.0
  %8841 = vmatpush1.msra.mxu0 0.0
  %8842 = vmatprep.subr.mxu0 0.0
  %8843 = vmatpush1.msra.mxu0 0.0
  %8844 = vmatprep.subr.mxu0 0.0
  %8845 = vmatpush1.msra.mxu0 0.0
  %8846 = vmatprep.subr.mxu0 0.0
  %8847 = vmatpush1.msra.mxu0 0.0
  %8848 = vmatprep.subr.mxu0 0.0
  %8849 = vmatpush1.msra.mxu0 0.0
  %8850 = vmatprep.subr.mxu0 0.0
  %8851 = vmatpush1.msra.mxu0 0.0
  %8852 = vmatprep.subr.mxu0 0.0
  %8853 = vmatpush1.msra.mxu0 0.0
  %8854 = vmatprep.subr.mxu0 0.0
  %8855 = vmatpush1.msra.mxu0 0.0
  %8856 = vmatprep.subr.mxu0 0.0
  %8857 = vmatpush1.msra.mxu0 0.0
  %8858 = vmatprep.subr.mxu0 0.0
  %8859 = vmatpush1.msra.mxu0 0.0
  %8860 = vmatprep.subr.mxu0 0.0
  %8861 = vmatpush1.msra.mxu0 0.0
  %8862 = vmatprep.subr.mxu0 0.0
  %8863 = vmatpush1.msra.mxu0 0.0
  %8864 = vmatprep.subr.mxu0 0.0
  %8865 = vmatpush1.msra.mxu0 0.0
  %8866 = vmatprep.subr.mxu0 0.0
  %8867 = vmatpush1.msra.mxu0 0.0
  %8868 = vmatprep.subr.mxu0 0.0
  %8869 = vmatpush1.msra.mxu0 0.0
  %8870 = vmatprep.mubr.f32.mxu0 0.0
  %8871 = vmatmul.mubr.f32.gmra.mrb[0].mxu0 %v8524
  %v8872 = vpop.f32.mrb[0].mxu0
  %v8873 = vadd.f32 %v5845, %v8872
  %v8874 = vpop.f32.mrb[0].mxu0
  %8875 = vdwg.mxu0
  %v8878 = vrot.slane %v8519, 4
  %v8879 = vrot.slane %v8593, 4
  %v8882 = vadd.f32 %v5124, %v8878
  %v8883 = vadd.f32 %v7916, %v8879
  %v8884 = vmul.f32 %v8882, 0.5
  %v8885 = vmul.f32 %v8883, 0.5
  %v8886 = vtanh.pop %v8884
  %v8887 = vtanh.pop %v8885
  %v8888 = vmul.f32 %v8886, 0.5
  %v8889 = vmul.f32 %v8887, 0.5
  %v8890 = vadd.f32 %v8888, 0.5
  %v8891 = vadd.f32 %v8889, 0.5
  %v8894 = vrot.slane %v8663, 4
  %v8895 = vrot.slane %v8733, 4
  %v8898 = vadd.f32 %v5205, %v8894
  %v8899 = vadd.f32 %v7929, %v8895
  %v8900 = vmul.f32 %v8898, 0.5
  %v8901 = vmul.f32 %v8899, 0.5
  %v8902 = vtanh.pop %v8900
  %v8903 = vtanh.pop %v8901
  %v8904 = vmul.f32 %v8902, 0.5
  %v8905 = vmul.f32 %v8903, 0.5
  %v8906 = vadd.f32 %v8904, 0.5
  %v8907 = vadd.f32 %v8905, 0.5
  %v8910 = vrot.slane %v8803, 4
  %v8911 = vrot.slane %v8873, 4
  %v8914 = vmul.f32 %v8890, %v8910
  %v8915 = vmul.f32 %v8891, %v8911
  %v8916 = vadd.f32 %v5286, %v8914
  %v8917 = vadd.f32 %v7942, %v8915
  %v8918 = vtanh.pop %v8916
  %v8919 = vtanh.pop %v8917
  %v8920 = vsub.f32 1.0, %v8906
  %v8921 = vsub.f32 1.0, %v8907
  %v8922 = vmul.f32 %v8920, %v8918
  %v8923 = vmul.f32 %v8921, %v8919
  %v8924 = vrot.slane %v8446, 6
  %v8925 = vrot.slane %v8447, 6
  %v8928 = vmul.f32 %v8906, %v8924
  %v8929 = vmul.f32 %v8907, %v8925
  %v8930 = vadd.f32 %v8922, %v8928
  %v8931 = vadd.f32 %v8923, %v8929
  %v8933 = vrot.slane %v8930, 4
  %v8934 = vsel %vm1032, %v8933, 0
  %8936 = vmatprep.subr.mxu0 0.0
  %8937 = vmatpush1.msra.mxu0 %v5003
  %8938 = vmatprep.subr.mxu0 0.0
  %8939 = vmatpush1.msra.mxu0 %v5004
  %8940 = vmatprep.subr.mxu0 0.0
  %8941 = vmatpush1.msra.mxu0 %v5005
  %8942 = vmatprep.subr.mxu0 0.0
  %8943 = vmatpush1.msra.mxu0 %v5006
  %8944 = vmatprep.subr.mxu0 0.0
  %8945 = vmatpush1.msra.mxu0 0.0
  %8946 = vmatprep.subr.mxu0 0.0
  %8947 = vmatpush1.msra.mxu0 0.0
  %8948 = vmatprep.subr.mxu0 0.0
  %8949 = vmatpush1.msra.mxu0 0.0
  %8950 = vmatprep.subr.mxu0 0.0
  %8951 = vmatpush1.msra.mxu0 0.0
  %8952 = vmatprep.subr.mxu0 0.0
  %8953 = vmatpush1.msra.mxu0 0.0
  %8954 = vmatprep.subr.mxu0 0.0
  %8955 = vmatpush1.msra.mxu0 0.0
  %8956 = vmatprep.subr.mxu0 0.0
  %8957 = vmatpush1.msra.mxu0 0.0
  %8958 = vmatprep.subr.mxu0 0.0
  %8959 = vmatpush1.msra.mxu0 0.0
  %8960 = vmatprep.subr.mxu0 0.0
  %8961 = vmatpush1.msra.mxu0 0.0
  %8962 = vmatprep.subr.mxu0 0.0
  %8963 = vmatpush1.msra.mxu0 0.0
  %8964 = vmatprep.subr.mxu0 0.0
  %8965 = vmatpush1.msra.mxu0 0.0
  %8966 = vmatprep.subr.mxu0 0.0
  %8967 = vmatpush1.msra.mxu0 0.0
  %8968 = vmatprep.subr.mxu0 0.0
  %8969 = vmatpush1.msra.mxu0 0.0
  %8970 = vmatprep.subr.mxu0 0.0
  %8971 = vmatpush1.msra.mxu0 0.0
  %8972 = vmatprep.subr.mxu0 0.0
  %8973 = vmatpush1.msra.mxu0 0.0
  %8974 = vmatprep.subr.mxu0 0.0
  %8975 = vmatpush1.msra.mxu0 0.0
  %8976 = vmatprep.subr.mxu0 0.0
  %8977 = vmatpush1.msra.mxu0 0.0
  %8978 = vmatprep.subr.mxu0 0.0
  %8979 = vmatpush1.msra.mxu0 0.0
  %8980 = vmatprep.subr.mxu0 0.0
  %8981 = vmatpush1.msra.mxu0 0.0
  %8982 = vmatprep.subr.mxu0 0.0
  %8983 = vmatpush1.msra.mxu0 0.0
  %8984 = vmatprep.subr.mxu0 0.0
  %8985 = vmatpush1.msra.mxu0 0.0
  %8986 = vmatprep.subr.mxu0 0.0
  %8987 = vmatpush1.msra.mxu0 0.0
  %8988 = vmatprep.subr.mxu0 0.0
  %8989 = vmatpush1.msra.mxu0 0.0
  %8990 = vmatprep.subr.mxu0 0.0
  %8991 = vmatpush1.msra.mxu0 0.0
  %8992 = vmatprep.subr.mxu0 0.0
  %8993 = vmatpush1.msra.mxu0 0.0
  %8994 = vmatprep.subr.mxu0 0.0
  %8995 = vmatpush1.msra.mxu0 0.0
  %8996 = vmatprep.subr.mxu0 0.0
  %8997 = vmatpush1.msra.mxu0 0.0
  %8998 = vmatprep.subr.mxu0 0.0
  %8999 = vmatpush1.msra.mxu0 0.0
  %9000 = vmatprep.mubr.f32.mxu0 0.0
  %9001 = vmatmul.mubr.f32.gmra.mrb[0].mxu0 %v8934
  %v9002 = vpop.f32.mrb[0].mxu0
  %v9003 = vadd.f32 %v5537, %v9002
  %v9004 = vpop.f32.mrb[0].mxu0
  %9005 = vdwg.mxu0
  %v9007 = vrot.slane %v8931, 4
  %v9008 = vsel %vm1032, %v9007, 0
  %9010 = vmatprep.subr.mxu0 0.0
  %9011 = vmatpush1.msra.mxu0 %v5015
  %9012 = vmatprep.subr.mxu0 0.0
  %9013 = vmatpush1.msra.mxu0 %v5016
  %9014 = vmatprep.subr.mxu0 0.0
  %9015 = vmatpush1.msra.mxu0 %v5017
  %9016 = vmatprep.subr.mxu0 0.0
  %9017 = vmatpush1.msra.mxu0 %v5018
  %9018 = vmatprep.subr.mxu0 0.0
  %9019 = vmatpush1.msra.mxu0 0.0
  %9020 = vmatprep.subr.mxu0 0.0
  %9021 = vmatpush1.msra.mxu0 0.0
  %9022 = vmatprep.subr.mxu0 0.0
  %9023 = vmatpush1.msra.mxu0 0.0
  %9024 = vmatprep.subr.mxu0 0.0
  %9025 = vmatpush1.msra.mxu0 0.0
  %9026 = vmatprep.subr.mxu0 0.0
  %9027 = vmatpush1.msra.mxu0 0.0
  %9028 = vmatprep.subr.mxu0 0.0
  %9029 = vmatpush1.msra.mxu0 0.0
  %9030 = vmatprep.subr.mxu0 0.0
  %9031 = vmatpush1.msra.mxu0 0.0
  %9032 = vmatprep.subr.mxu0 0.0
  %9033 = vmatpush1.msra.mxu0 0.0
  %9034 = vmatprep.subr.mxu0 0.0
  %9035 = vmatpush1.msra.mxu0 0.0
  %9036 = vmatprep.subr.mxu0 0.0
  %9037 = vmatpush1.msra.mxu0 0.0
  %9038 = vmatprep.subr.mxu0 0.0
  %9039 = vmatpush1.msra.mxu0 0.0
  %9040 = vmatprep.subr.mxu0 0.0
  %9041 = vmatpush1.msra.mxu0 0.0
  %9042 = vmatprep.subr.mxu0 0.0
  %9043 = vmatpush1.msra.mxu0 0.0
  %9044 = vmatprep.subr.mxu0 0.0
  %9045 = vmatpush1.msra.mxu0 0.0
  %9046 = vmatprep.subr.mxu0 0.0
  %9047 = vmatpush1.msra.mxu0 0.0
  %9048 = vmatprep.subr.mxu0 0.0
  %9049 = vmatpush1.msra.mxu0 0.0
  %9050 = vmatprep.subr.mxu0 0.0
  %9051 = vmatpush1.msra.mxu0 0.0
  %9052 = vmatprep.subr.mxu0 0.0
  %9053 = vmatpush1.msra.mxu0 0.0
  %9054 = vmatprep.subr.mxu0 0.0
  %9055 = vmatpush1.msra.mxu0 0.0
  %9056 = vmatprep.subr.mxu0 0.0
  %9057 = vmatpush1.msra.mxu0 0.0
  %9058 = vmatprep.subr.mxu0 0.0
  %9059 = vmatpush1.msra.mxu0 0.0
  %9060 = vmatprep.subr.mxu0 0.0
  %9061 = vmatpush1.msra.mxu0 0.0
  %9062 = vmatprep.subr.mxu0 0.0
  %9063 = vmatpush1.msra.mxu0 0.0
  %9064 = vmatprep.subr.mxu0 0.0
  %9065 = vmatpush1.msra.mxu0 0.0
  %9066 = vmatprep.subr.mxu0 0.0
  %9067 = vmatpush1.msra.mxu0 0.0
  %9068 = vmatprep.subr.mxu0 0.0
  %9069 = vmatpush1.msra.mxu0 0.0
  %9070 = vmatprep.subr.mxu0 0.0
  %9071 = vmatpush1.msra.mxu0 0.0
  %9072 = vmatprep.subr.mxu0 0.0
  %9073 = vmatpush1.msra.mxu0 0.0
  %9074 = vmatprep.mubr.f32.mxu0 0.0
  %9075 = vmatmul.mubr.f32.gmra.mrb[0].mxu0 %v9008
  %v9076 = vpop.f32.mrb[0].mxu0
  %v9077 = vadd.f32 %v5541, %v9076
  %v9078 = vpop.f32.mrb[0].mxu0
  %9079 = vdwg.mxu0
  %9080 = vmatprep.subr.mxu0 0.0
  %9081 = vmatpush1.msra.mxu0 %v5007
  %9082 = vmatprep.subr.mxu0 0.0
  %9083 = vmatpush1.msra.mxu0 %v5008
  %9084 = vmatprep.subr.mxu0 0.0
  %9085 = vmatpush1.msra.mxu0 %v5009
  %9086 = vmatprep.subr.mxu0 0.0
  %9087 = vmatpush1.msra.mxu0 %v5010
  %9088 = vmatprep.subr.mxu0 0.0
  %9089 = vmatpush1.msra.mxu0 0.0
  %9090 = vmatprep.subr.mxu0 0.0
  %9091 = vmatpush1.msra.mxu0 0.0
  %9092 = vmatprep.subr.mxu0 0.0
  %9093 = vmatpush1.msra.mxu0 0.0
  %9094 = vmatprep.subr.mxu0 0.0
  %9095 = vmatpush1.msra.mxu0 0.0
  %9096 = vmatprep.subr.mxu0 0.0
  %9097 = vmatpush1.msra.mxu0 0.0
  %9098 = vmatprep.subr.mxu0 0.0
  %9099 = vmatpush1.msra.mxu0 0.0
  %9100 = vmatprep.subr.mxu0 0.0
  %9101 = vmatpush1.msra.mxu0 0.0
  %9102 = vmatprep.subr.mxu0 0.0
  %9103 = vmatpush1.msra.mxu0 0.0
  %9104 = vmatprep.subr.mxu0 0.0
  %9105 = vmatpush1.msra.mxu0 0.0
  %9106 = vmatprep.subr.mxu0 0.0
  %9107 = vmatpush1.msra.mxu0 0.0
  %9108 = vmatprep.subr.mxu0 0.0
  %9109 = vmatpush1.msra.mxu0 0.0
  %9110 = vmatprep.subr.mxu0 0.0
  %9111 = vmatpush1.msra.mxu0 0.0
  %9112 = vmatprep.subr.mxu0 0.0
  %9113 = vmatpush1.msra.mxu0 0.0
  %9114 = vmatprep.subr.mxu0 0.0
  %9115 = vmatpush1.msra.mxu0 0.0
  %9116 = vmatprep.subr.mxu0 0.0
  %9117 = vmatpush1.msra.mxu0 0.0
  %9118 = vmatprep.subr.mxu0 0.0
  %9119 = vmatpush1.msra.mxu0 0.0
  %9120 = vmatprep.subr.mxu0 0.0
  %9121 = vmatpush1.msra.mxu0 0.0
  %9122 = vmatprep.subr.mxu0 0.0
  %9123 = vmatpush1.msra.mxu0 0.0
  %9124 = vmatprep.subr.mxu0 0.0
  %9125 = vmatpush1.msra.mxu0 0.0
  %9126 = vmatprep.subr.mxu0 0.0
  %9127 = vmatpush1.msra.mxu0 0.0
  %9128 = vmatprep.subr.mxu0 0.0
  %9129 = vmatpush1.msra.mxu0 0.0
  %9130 = vmatprep.subr.mxu0 0.0
  %9131 = vmatpush1.msra.mxu0 0.0
  %9132 = vmatprep.subr.mxu0 0.0
  %9133 = vmatpush1.msra.mxu0 0.0
  %9134 = vmatprep.subr.mxu0 0.0
  %9135 = vmatpush1.msra.mxu0 0.0
  %9136 = vmatprep.subr.mxu0 0.0
  %9137 = vmatpush1.msra.mxu0 0.0
  %9138 = vmatprep.subr.mxu0 0.0
  %9139 = vmatpush1.msra.mxu0 0.0
  %9140 = vmatprep.subr.mxu0 0.0
  %9141 = vmatpush1.msra.mxu0 0.0
  %9142 = vmatprep.subr.mxu0 0.0
  %9143 = vmatpush1.msra.mxu0 0.0
  %9144 = vmatprep.mubr.f32.mxu0 0.0
  %9145 = vmatmul.mubr.f32.gmra.mrb[0].mxu0 %v8934
  %v9146 = vpop.f32.mrb[0].mxu0
  %v9147 = vadd.f32 %v5689, %v9146
  %v9148 = vpop.f32.mrb[0].mxu0
  %9149 = vdwg.mxu0
  %9150 = vmatprep.subr.mxu0 0.0
  %9151 = vmatpush1.msra.mxu0 %v5019
  %9152 = vmatprep.subr.mxu0 0.0
  %9153 = vmatpush1.msra.mxu0 %v5020
  %9154 = vmatprep.subr.mxu0 0.0
  %9155 = vmatpush1.msra.mxu0 %v5021
  %9156 = vmatprep.subr.mxu0 0.0
  %9157 = vmatpush1.msra.mxu0 %v5022
  %9158 = vmatprep.subr.mxu0 0.0
  %9159 = vmatpush1.msra.mxu0 0.0
  %9160 = vmatprep.subr.mxu0 0.0
  %9161 = vmatpush1.msra.mxu0 0.0
  %9162 = vmatprep.subr.mxu0 0.0
  %9163 = vmatpush1.msra.mxu0 0.0
  %9164 = vmatprep.subr.mxu0 0.0
  %9165 = vmatpush1.msra.mxu0 0.0
  %9166 = vmatprep.subr.mxu0 0.0
  %9167 = vmatpush1.msra.mxu0 0.0
  %9168 = vmatprep.subr.mxu0 0.0
  %9169 = vmatpush1.msra.mxu0 0.0
  %9170 = vmatprep.subr.mxu0 0.0
  %9171 = vmatpush1.msra.mxu0 0.0
  %9172 = vmatprep.subr.mxu0 0.0
  %9173 = vmatpush1.msra.mxu0 0.0
  %9174 = vmatprep.subr.mxu0 0.0
  %9175 = vmatpush1.msra.mxu0 0.0
  %9176 = vmatprep.subr.mxu0 0.0
  %9177 = vmatpush1.msra.mxu0 0.0
  %9178 = vmatprep.subr.mxu0 0.0
  %9179 = vmatpush1.msra.mxu0 0.0
  %9180 = vmatprep.subr.mxu0 0.0
  %9181 = vmatpush1.msra.mxu0 0.0
  %9182 = vmatprep.subr.mxu0 0.0
  %9183 = vmatpush1.msra.mxu0 0.0
  %9184 = vmatprep.subr.mxu0 0.0
  %9185 = vmatpush1.msra.mxu0 0.0
  %9186 = vmatprep.subr.mxu0 0.0
  %9187 = vmatpush1.msra.mxu0 0.0
  %9188 = vmatprep.subr.mxu0 0.0
  %9189 = vmatpush1.msra.mxu0 0.0
  %9190 = vmatprep.subr.mxu0 0.0
  %9191 = vmatpush1.msra.mxu0 0.0
  %9192 = vmatprep.subr.mxu0 0.0
  %9193 = vmatpush1.msra.mxu0 0.0
  %9194 = vmatprep.subr.mxu0 0.0
  %9195 = vmatpush1.msra.mxu0 0.0
  %9196 = vmatprep.subr.mxu0 0.0
  %9197 = vmatpush1.msra.mxu0 0.0
  %9198 = vmatprep.subr.mxu0 0.0
  %9199 = vmatpush1.msra.mxu0 0.0
  %9200 = vmatprep.subr.mxu0 0.0
  %9201 = vmatpush1.msra.mxu0 0.0
  %9202 = vmatprep.subr.mxu0 0.0
  %9203 = vmatpush1.msra.mxu0 0.0
  %9204 = vmatprep.subr.mxu0 0.0
  %9205 = vmatpush1.msra.mxu0 0.0
  %9206 = vmatprep.subr.mxu0 0.0
  %9207 = vmatpush1.msra.mxu0 0.0
  %9208 = vmatprep.subr.mxu0 0.0
  %9209 = vmatpush1.msra.mxu0 0.0
  %9210 = vmatprep.subr.mxu0 0.0
  %9211 = vmatpush1.msra.mxu0 0.0
  %9212 = vmatprep.subr.mxu0 0.0
  %9213 = vmatpush1.msra.mxu0 0.0
  %9214 = vmatprep.mubr.f32.mxu0 0.0
  %9215 = vmatmul.mubr.f32.gmra.mrb[0].mxu0 %v9008
  %v9216 = vpop.f32.mrb[0].mxu0
  %v9217 = vadd.f32 %v5693, %v9216
  %v9218 = vpop.f32.mrb[0].mxu0
  %9219 = vdwg.mxu0
  %9220 = vmatprep.subr.mxu0 0.0
  %9221 = vmatpush1.msra.mxu0 %v5011
  %9222 = vmatprep.subr.mxu0 0.0
  %9223 = vmatpush1.msra.mxu0 %v5012
  %9224 = vmatprep.subr.mxu0 0.0
  %9225 = vmatpush1.msra.mxu0 %v5013
  %9226 = vmatprep.subr.mxu0 0.0
  %9227 = vmatpush1.msra.mxu0 %v5014
  %9228 = vmatprep.subr.mxu0 0.0
  %9229 = vmatpush1.msra.mxu0 0.0
  %9230 = vmatprep.subr.mxu0 0.0
  %9231 = vmatpush1.msra.mxu0 0.0
  %9232 = vmatprep.subr.mxu0 0.0
  %9233 = vmatpush1.msra.mxu0 0.0
  %9234 = vmatprep.subr.mxu0 0.0
  %9235 = vmatpush1.msra.mxu0 0.0
  %9236 = vmatprep.subr.mxu0 0.0
  %9237 = vmatpush1.msra.mxu0 0.0
  %9238 = vmatprep.subr.mxu0 0.0
  %9239 = vmatpush1.msra.mxu0 0.0
  %9240 = vmatprep.subr.mxu0 0.0
  %9241 = vmatpush1.msra.mxu0 0.0
  %9242 = vmatprep.subr.mxu0 0.0
  %9243 = vmatpush1.msra.mxu0 0.0
  %9244 = vmatprep.subr.mxu0 0.0
  %9245 = vmatpush1.msra.mxu0 0.0
  %9246 = vmatprep.subr.mxu0 0.0
  %9247 = vmatpush1.msra.mxu0 0.0
  %9248 = vmatprep.subr.mxu0 0.0
  %9249 = vmatpush1.msra.mxu0 0.0
  %9250 = vmatprep.subr.mxu0 0.0
  %9251 = vmatpush1.msra.mxu0 0.0
  %9252 = vmatprep.subr.mxu0 0.0
  %9253 = vmatpush1.msra.mxu0 0.0
  %9254 = vmatprep.subr.mxu0 0.0
  %9255 = vmatpush1.msra.mxu0 0.0
  %9256 = vmatprep.subr.mxu0 0.0
  %9257 = vmatpush1.msra.mxu0 0.0
  %9258 = vmatprep.subr.mxu0 0.0
  %9259 = vmatpush1.msra.mxu0 0.0
  %9260 = vmatprep.subr.mxu0 0.0
  %9261 = vmatpush1.msra.mxu0 0.0
  %9262 = vmatprep.subr.mxu0 0.0
  %9263 = vmatpush1.msra.mxu0 0.0
  %9264 = vmatprep.subr.mxu0 0.0
  %9265 = vmatpush1.msra.mxu0 0.0
  %9266 = vmatprep.subr.mxu0 0.0
  %9267 = vmatpush1.msra.mxu0 0.0
  %9268 = vmatprep.subr.mxu0 0.0
  %9269 = vmatpush1.msra.mxu0 0.0
  %9270 = vmatprep.subr.mxu0 0.0
  %9271 = vmatpush1.msra.mxu0 0.0
  %9272 = vmatprep.subr.mxu0 0.0
  %9273 = vmatpush1.msra.mxu0 0.0
  %9274 = vmatprep.subr.mxu0 0.0
  %9275 = vmatpush1.msra.mxu0 0.0
  %9276 = vmatprep.subr.mxu0 0.0
  %9277 = vmatpush1.msra.mxu0 0.0
  %9278 = vmatprep.subr.mxu0 0.0
  %9279 = vmatpush1.msra.mxu0 0.0
  %9280 = vmatprep.subr.mxu0 0.0
  %9281 = vmatpush1.msra.mxu0 0.0
  %9282 = vmatprep.subr.mxu0 0.0
  %9283 = vmatpush1.msra.mxu0 0.0
  %9284 = vmatprep.mubr.f32.mxu0 0.0
  %9285 = vmatmul.mubr.f32.gmra.mrb[0].mxu0 %v8934
  %v9286 = vpop.f32.mrb[0].mxu0
  %v9287 = vadd.f32 %v5841, %v9286
  %v9288 = vpop.f32.mrb[0].mxu0
  %9289 = vdwg.mxu0
  %9290 = vmatprep.subr.mxu0 0.0
  %9291 = vmatpush1.msra.mxu0 %v5023
  %9292 = vmatprep.subr.mxu0 0.0
  %9293 = vmatpush1.msra.mxu0 %v5024
  %9294 = vmatprep.subr.mxu0 0.0
  %9295 = vmatpush1.msra.mxu0 %v5025
  %9296 = vmatprep.subr.mxu0 0.0
  %9297 = vmatpush1.msra.mxu0 %v5026
  %9298 = vmatprep.subr.mxu0 0.0
  %9299 = vmatpush1.msra.mxu0 0.0
  %9300 = vmatprep.subr.mxu0 0.0
  %9301 = vmatpush1.msra.mxu0 0.0
  %9302 = vmatprep.subr.mxu0 0.0
  %9303 = vmatpush1.msra.mxu0 0.0
  %9304 = vmatprep.subr.mxu0 0.0
  %9305 = vmatpush1.msra.mxu0 0.0
  %9306 = vmatprep.subr.mxu0 0.0
  %9307 = vmatpush1.msra.mxu0 0.0
  %9308 = vmatprep.subr.mxu0 0.0
  %9309 = vmatpush1.msra.mxu0 0.0
  %9310 = vmatprep.subr.mxu0 0.0
  %9311 = vmatpush1.msra.mxu0 0.0
  %9312 = vmatprep.subr.mxu0 0.0
  %9313 = vmatpush1.msra.mxu0 0.0
  %9314 = vmatprep.subr.mxu0 0.0
  %9315 = vmatpush1.msra.mxu0 0.0
  %9316 = vmatprep.subr.mxu0 0.0
  %9317 = vmatpush1.msra.mxu0 0.0
  %9318 = vmatprep.subr.mxu0 0.0
  %9319 = vmatpush1.msra.mxu0 0.0
  %9320 = vmatprep.subr.mxu0 0.0
  %9321 = vmatpush1.msra.mxu0 0.0
  %9322 = vmatprep.subr.mxu0 0.0
  %9323 = vmatpush1.msra.mxu0 0.0
  %9324 = vmatprep.subr.mxu0 0.0
  %9325 = vmatpush1.msra.mxu0 0.0
  %9326 = vmatprep.subr.mxu0 0.0
  %9327 = vmatpush1.msra.mxu0 0.0
  %9328 = vmatprep.subr.mxu0 0.0
  %9329 = vmatpush1.msra.mxu0 0.0
  %9330 = vmatprep.subr.mxu0 0.0
  %9331 = vmatpush1.msra.mxu0 0.0
  %9332 = vmatprep.subr.mxu0 0.0
  %9333 = vmatpush1.msra.mxu0 0.0
  %9334 = vmatprep.subr.mxu0 0.0
  %9335 = vmatpush1.msra.mxu0 0.0
  %9336 = vmatprep.subr.mxu0 0.0
  %9337 = vmatpush1.msra.mxu0 0.0
  %9338 = vmatprep.subr.mxu0 0.0
  %9339 = vmatpush1.msra.mxu0 0.0
  %9340 = vmatprep.subr.mxu0 0.0
  %9341 = vmatpush1.msra.mxu0 0.0
  %9342 = vmatprep.subr.mxu0 0.0
  %9343 = vmatpush1.msra.mxu0 0.0
  %9344 = vmatprep.subr.mxu0 0.0
  %9345 = vmatpush1.msra.mxu0 0.0
  %9346 = vmatprep.subr.mxu0 0.0
  %9347 = vmatpush1.msra.mxu0 0.0
  %9348 = vmatprep.subr.mxu0 0.0
  %9349 = vmatpush1.msra.mxu0 0.0
  %9350 = vmatprep.subr.mxu0 0.0
  %9351 = vmatpush1.msra.mxu0 0.0
  %9352 = vmatprep.subr.mxu0 0.0
  %9353 = vmatpush1.msra.mxu0 0.0
  %9354 = vmatprep.mubr.f32.mxu0 0.0
  %9355 = vmatmul.mubr.f32.gmra.mrb[0].mxu0 %v9008
  %v9356 = vpop.f32.mrb[0].mxu0
  %v9357 = vadd.f32 %v5845, %v9356
  %v9358 = vpop.f32.mrb[0].mxu0
  %9359 = vdwg.mxu0
  %v9362 = vrot.slane %v9003, 2
  %v9363 = vrot.slane %v9077, 2
  %v9366 = vadd.f32 %v5124, %v9362
  %v9367 = vadd.f32 %v8386, %v9363
  %v9368 = vmul.f32 %v9366, 0.5
  %v9369 = vmul.f32 %v9367, 0.5
  %v9370 = vtanh.pop %v9368
  %v9371 = vtanh.pop %v9369
  %v9372 = vmul.f32 %v9370, 0.5
  %v9373 = vmul.f32 %v9371, 0.5
  %v9374 = vadd.f32 %v9372, 0.5
  %v9375 = vadd.f32 %v9373, 0.5
  %v9378 = vrot.slane %v9147, 2
  %v9379 = vrot.slane %v9217, 2
  %v9382 = vadd.f32 %v5205, %v9378
  %v9383 = vadd.f32 %v8404, %v9379
  %v9384 = vmul.f32 %v9382, 0.5
  %v9385 = vmul.f32 %v9383, 0.5
  %v9386 = vtanh.pop %v9384
  %v9387 = vtanh.pop %v9385
  %v9388 = vmul.f32 %v9386, 0.5
  %v9389 = vmul.f32 %v9387, 0.5
  %v9390 = vadd.f32 %v9388, 0.5
  %v9391 = vadd.f32 %v9389, 0.5
  %v9394 = vrot.slane %v9287, 2
  %v9395 = vrot.slane %v9357, 2
  %v9398 = vmul.f32 %v9374, %v9394
  %v9399 = vmul.f32 %v9375, %v9395
  %v9400 = vadd.f32 %v5286, %v9398
  %v9401 = vadd.f32 %v8422, %v9399
  %v9402 = vtanh.pop %v9400
  %v9403 = vtanh.pop %v9401
  %v9404 = vsub.f32 1.0, %v9390
  %v9405 = vsub.f32 1.0, %v9391
  %v9406 = vmul.f32 %v9404, %v9402
  %v9407 = vmul.f32 %v9405, %v9403
  %v9408 = vrot.slane %v8930, 6
  %v9409 = vrot.slane %v8931, 6
  %v9412 = vmul.f32 %v9390, %v9408
  %v9413 = vmul.f32 %v9391, %v9409
  %v9414 = vadd.f32 %v9406, %v9412
  %v9415 = vadd.f32 %v9407, %v9413
  %v9417 = vrot.slane %v9415, 6
  %9418 = vrot.lane.b32.xlu0 %v9417, 32
  %v9419 = vpop.permute.xlu0 %9418
  %v9421 = vsel %vm1032, %v6029, %v9419
  %v9422 = vrot.slane %v8931, 2
  %9423 = vrot.lane.b32.xlu0 %v9422, 32
  %v9424 = vpop.permute.xlu0 %9423
  %v9426 = vsel %vm1032, %v6517, %v9424
  %9427 = vrot.lane.b32.xlu0 %v8925, 32
  %v9428 = vpop.permute.xlu0 %9427
  %v9430 = vsel %vm1032, %v7001, %v9428
  %v9431 = vrot.slane %v7959, 2
  %9432 = vrot.lane.b32.xlu0 %v9431, 32
  %v9433 = vpop.permute.xlu0 %9432
  %v9435 = vsel %vm1032, %v7485, %v9433
  %9436 = vrot.lane.b32.xlu0 %v7562, 32
  %v9437 = vpop.permute.xlu0 %9436
  %v9439 = vsel %vm1032, %v7958, %v9437
  %v9440 = vrot.slane %v7002, 2
  %9441 = vrot.lane.b32.xlu0 %v9440, 32
  %v9442 = vpop.permute.xlu0 %9441
  %v9444 = vsel %vm1032, %v8446, %v9442
  %9445 = vrot.lane.b32.xlu0 %v6996, 32
  %v9446 = vpop.permute.xlu0 %9445
  %v9448 = vsel %vm1032, %v8930, %v9446
  %v9449 = vrot.slane %v6030, 2
  %9450 = vrot.lane.b32.xlu0 %v9449, 32
  %v9451 = vpop.permute.xlu0 %9450
  %v9453 = vsel %vm1032, %v9414, %v9451
  %v9454 = vsel %vm4946, %v9421, %v9426
  %v9455 = vsel %vm4948, %v9454, %v9430
  %v9456 = vsel %vm4950, %v9455, %v9435
  %v9457 = vsel %vm4946, %v9439, %v9444
  %v9458 = vsel %vm4948, %v9457, %v9448
  %v9459 = vsel %vm4950, %v9458, %v9453
  %v9460 = vld [vmem:[%s13] sm:$0xff]
  %v9461 = vld [vmem:[%s13 + $0x8] sm:$0xff]
  %v9462 = vld [vmem:[%s13 + $0x10] sm:$0xff]
  %v9463 = vld [vmem:[%s13 + $0x18] sm:$0xff]
  %v9464 = vld [vmem:[%s13 + $0x20] sm:$0xff]
  %v9465 = vld [vmem:[%s13 + $0x28] sm:$0xff]
  %v9466 = vld [vmem:[%s13 + $0x30] sm:$0xff]
  %v9467 = vld [vmem:[%s13 + $0x38] sm:$0xff]
  %v9468 = vld [vmem:[%s14] sm:$0x1]
  %v9470 = vlaneseq
  %v9471 = vshrl.u32 %v9470, 7
  %v9472 = vsub.s32 0, %v9471
  %v9473 = vrot.slane %v9468, %v9472
  %v9476 = vsel %vm5045, %v9456, 0
  %v9479 = vsel %vm5045, %v9459, 0
  %9481 = vmatprep.subr.mxu0 0.0
  %9482 = vmatpush1.msra.mxu0 %v9460
  %9483 = vmatprep.subr.mxu0 0.0
  %9484 = vmatpush1.msra.mxu0 %v9461
  %9485 = vmatprep.subr.mxu0 0.0
  %9486 = vmatpush1.msra.mxu0 %v9462
  %9487 = vmatprep.subr.mxu0 0.0
  %9488 = vmatpush1.msra.mxu0 %v9463
  %9489 = vmatprep.subr.mxu0 0.0
  %9490 = vmatpush1.msra.mxu0 %v9464
  %9491 = vmatprep.subr.mxu0 0.0
  %9492 = vmatpush1.msra.mxu0 %v9465
  %9493 = vmatprep.subr.mxu0 0.0
  %9494 = vmatpush1.msra.mxu0 %v9466
  %9495 = vmatprep.subr.mxu0 0.0
  %9496 = vmatpush1.msra.mxu0 %v9467
  %9497 = vmatprep.subr.mxu0 0.0
  %9498 = vmatpush1.msra.mxu0 0.0
  %9499 = vmatprep.subr.mxu0 0.0
  %9500 = vmatpush1.msra.mxu0 0.0
  %9501 = vmatprep.subr.mxu0 0.0
  %9502 = vmatpush1.msra.mxu0 0.0
  %9503 = vmatprep.subr.mxu0 0.0
  %9504 = vmatpush1.msra.mxu0 0.0
  %9505 = vmatprep.subr.mxu0 0.0
  %9506 = vmatpush1.msra.mxu0 0.0
  %9507 = vmatprep.subr.mxu0 0.0
  %9508 = vmatpush1.msra.mxu0 0.0
  %9509 = vmatprep.subr.mxu0 0.0
  %9510 = vmatpush1.msra.mxu0 0.0
  %9511 = vmatprep.subr.mxu0 0.0
  %9512 = vmatpush1.msra.mxu0 0.0
  %9513 = vmatprep.subr.mxu0 0.0
  %9514 = vmatpush1.msra.mxu0 0.0
  %9515 = vmatprep.subr.mxu0 0.0
  %9516 = vmatpush1.msra.mxu0 0.0
  %9517 = vmatprep.subr.mxu0 0.0
  %9518 = vmatpush1.msra.mxu0 0.0
  %9519 = vmatprep.subr.mxu0 0.0
  %9520 = vmatpush1.msra.mxu0 0.0
  %9521 = vmatprep.subr.mxu0 0.0
  %9522 = vmatpush1.msra.mxu0 0.0
  %9523 = vmatprep.subr.mxu0 0.0
  %9524 = vmatpush1.msra.mxu0 0.0
  %9525 = vmatprep.subr.mxu0 0.0
  %9526 = vmatpush1.msra.mxu0 0.0
  %9527 = vmatprep.subr.mxu0 0.0
  %9528 = vmatpush1.msra.mxu0 0.0
  %9529 = vmatprep.subr.mxu0 0.0
  %9530 = vmatpush1.msra.mxu0 0.0
  %9531 = vmatprep.subr.mxu0 0.0
  %9532 = vmatpush1.msra.mxu0 0.0
  %9533 = vmatprep.subr.mxu0 0.0
  %9534 = vmatpush1.msra.mxu0 0.0
  %9535 = vmatprep.subr.mxu0 0.0
  %9536 = vmatpush1.msra.mxu0 0.0
  %9537 = vmatprep.subr.mxu0 0.0
  %9538 = vmatpush1.msra.mxu0 0.0
  %9539 = vmatprep.subr.mxu0 0.0
  %9540 = vmatpush1.msra.mxu0 0.0
  %9541 = vmatprep.subr.mxu0 0.0
  %9542 = vmatpush1.msra.mxu0 0.0
  %9543 = vmatprep.subr.mxu0 0.0
  %9544 = vmatpush1.msra.mxu0 0.0
  %9545 = vmatprep.mubr.f32.mxu0 0.0
  %9546 = vmatmul.mubr.f32.gmra.mrb[0].mxu0 %v9476
  %v9547 = vpop.f32.mrb[0].mxu0
  %v9548 = vadd.f32 %v9473, %v9547
  %v9549 = vpop.f32.mrb[0].mxu0
  %9550 = vmatprep.mubr.f32.mxu0 0.0
  %9551 = vmatmul.mubr.f32.gmra.mrb[0].mxu0 %v9479
  %v9552 = vpop.f32.mrb[0].mxu0
  %v9553 = vadd.f32 %v9473, %v9552
  %v9554 = vpop.f32.mrb[0].mxu0
  %9555 = vdwg.mxu0
  %v9556 = vmul.f32 %v9548, 0.5
  %v9557 = vmul.f32 %v9553, 0.5
  %v9558 = vtanh.pop %v9556
  %v9559 = vtanh.pop %v9557
  %v9560 = vmul.f32 %v9558, 0.5
  %v9561 = vmul.f32 %v9559, 0.5
  %v9562 = vadd.f32 %v9560, 0.5
  %v9563 = vadd.f32 %v9561, 0.5
  %9564 = vst.msk [vmem:[%s15] sm:$0xff] %vm86, %v9562
  %9565 = vst.msk [vmem:[%s15 + $0x8] sm:$0xff] %vm86, %v9563
  // Predicated region
  $region62: #{_lambda_.1} parent=0 // pred_check
    _
  $region63: #{_lambda_.1} parent=0 // pred_check_branch
    %9567 = sbr.rel (0) target = $region65
  $region64: #{_lambda_.1} parent=0 // pred_region
    _
  $region65: #{_lambda_.1} parent=0 // pred_fallthru
    _
  // Predicated region
  $region66: #{_lambda_.1} parent=0 // pred_check
    _
  $region67: #{_lambda_.1} parent=0 // pred_check_branch
    %9569 = sbr.rel (0) target = $region69
  $region68: #{_lambda_.1} parent=0 // pred_region
    _
  $region69: #{_lambda_.1} parent=0 // pred_fallthru
    _

</llo_original>
